<compile_context>
chip_gen: v5e
topology: v5e:2x2
jax: 0.10.0
libtpu: 0.0.40
codegen_flags: <defaults>
</compile_context>

<pallas_src>
import jax
import jax.numpy as jnp
from jax.experimental import pallas as pl
from jax.experimental.pallas import tpu as pltpu

LANE = 128  # pad conv channel dims to the TPU lane width


def _round_up(x, m):
    return (x + m - 1) // m * m


def _down_conv_kernel(x_ref, w1_ref, p1_ref, w2_ref, p2_ref, o_ref,
                      xp_ref, y1p_ref):
    # x_ref  : (1, H, W, Cin)   one image, NHWC, unpadded, f32
    # w1_ref : (9, Cin, Cp)     conv1 weights per tap, Cout zero-padded to Cp, bf16
    # p1_ref : (3, Cp)          rows = [bias, bn_scale, bn_shift] (block 1), f32
    # w2_ref : (9, Cp, Cp)      conv2 weights per tap, both channel dims padded, bf16
    # p2_ref : (3, Cp)          rows = [bias, bn_scale, bn_shift] (block 2), f32
    # o_ref  : (1, Cout, H*W)   output = flattened NCHW (lane-dense: H*W last)
    # xp_ref : (H+2, W+2, Cin)  f32 scratch: SAME-padded conv1 input
    # y1p_ref: (H+2, W+2, Cp)   bf16 scratch: SAME-padded conv1 output
    _, H, W, Cin = x_ref.shape
    Cp = w1_ref.shape[2]
    Cout = o_ref.shape[1]
    HW = H * W

    # ---- SAME-pad the conv1 input in VMEM (no wrapper jnp.pad) ----------------
    xp_ref[...] = jnp.zeros_like(xp_ref)
    xp_ref[1:H + 1, 1:W + 1, :] = x_ref[0]

    # ---- block 1: conv3x3 + bias + ReLU + BN(eval) ----------------------------
    acc1 = jnp.zeros((HW, Cp), jnp.float32)
    for k in range(9):                                     # static unroll, 9 taps
        dy, dx = k // 3, k % 3
        patch = xp_ref[dy:dy + H, dx:dx + W, :].reshape(HW, Cin)
        acc1 = acc1 + jnp.dot(patch.astype(jnp.bfloat16), w1_ref[k],
                              preferred_element_type=jnp.float32)
    p1 = p1_ref[...]
    y1 = jnp.maximum(acc1 + p1[0][None, :], 0.0)           # bias + ReLU
    y1 = y1 * p1[1][None, :] + p1[2][None, :]              # BN with running stats
    # Dropout2d is identity in eval mode.

    # ---- SAME-pad the conv1 output in VMEM (fused: no HBM round trip) ---------
    y1p_ref[...] = jnp.zeros_like(y1p_ref)
    y1p_ref[1:H + 1, 1:W + 1, :] = y1.reshape(H, W, Cp).astype(jnp.bfloat16)

    # ---- block 2: conv3x3 + bias + ReLU + BN(eval) ----------------------------
    # 9 lane-dense (HW, Cp) x (Cp, Cp) bf16 matmuls, f32 accumulation.
    acc2 = jnp.zeros((HW, Cp), jnp.float32)
    for k in range(9):
        dy, dx = k // 3, k % 3
        patch = y1p_ref[dy:dy + H, dx:dx + W, :].reshape(HW, Cp)
        acc2 = acc2 + jnp.dot(patch, w2_ref[k],
                              preferred_element_type=jnp.float32)
    p2 = p2_ref[...]
    y2 = jnp.maximum(acc2 + p2[0][None, :], 0.0)
    y2 = y2 * p2[1][None, :] + p2[2][None, :]

    # ---- lane-dense store: (HW, Cp) -> (Cp, HW), keep only the real channels --
    y2t = jnp.transpose(y2)                                # (Cp, HW), HW on lanes
    o_ref[...] = y2t[:Cout, :].reshape(1, Cout, HW).astype(o_ref.dtype)


def _fold_bn(gamma, beta, mean, var, eps):
    scale = gamma / jnp.sqrt(var + eps)
    shift = beta - mean * scale
    return scale, shift


def _pack_params(bias, scale, shift, cp):
    pad = lambda v: jnp.pad(v, (0, cp - v.shape[0]))
    return jnp.stack([pad(bias), pad(scale), pad(shift)], axis=0).astype(jnp.float32)


def down_conv_forward(x_nchw, params, eps=1e-5):
    """Full DownConv forward (eval mode). Input/output NCHW (PyTorch layout)."""
    N, Cin, H, W = x_nchw.shape
    Cout = params["w1"].shape[3]
    Cp = _round_up(Cout, LANE)
    HW = H * W

    x_nhwc = jnp.transpose(x_nchw, (0, 2, 3, 1)).astype(jnp.float32)

    # conv1 weights (3,3,Cin,Cout) -> (9, Cin, Cp): Cout zero-padded to the lane width.
    w1 = params["w1"].reshape(9, Cin, Cout)
    w1 = jnp.pad(w1, ((0, 0), (0, 0), (0, Cp - Cout))).astype(jnp.bfloat16)
    # conv2 weights (3,3,Cout,Cout) -> (9, Cp, Cp): both channel dims zero-padded.
    w2 = params["w2"].reshape(9, Cout, Cout)
    w2 = jnp.pad(w2, ((0, 0), (0, Cp - Cout), (0, Cp - Cout))).astype(jnp.bfloat16)

    s1, t1 = _fold_bn(params["g1"], params["be1"], params["m1"], params["v1"], eps)
    s2, t2 = _fold_bn(params["g2"], params["be2"], params["m2"], params["v2"], eps)
    p1 = _pack_params(params["b1"], s1, t1, Cp)
    p2 = _pack_params(params["b2"], s2, t2, Cp)

    out = pl.pallas_call(
        _down_conv_kernel,
        out_shape=jax.ShapeDtypeStruct((N, Cout, HW), jnp.float32),
        grid_spec=pltpu.PrefetchScalarGridSpec(
            num_scalar_prefetch=0,
            grid=(N,),
            in_specs=[
                pl.BlockSpec((1, H, W, Cin), lambda n: (n, 0, 0, 0)),
                pl.BlockSpec((9, Cin, Cp), lambda n: (0, 0, 0)),
                pl.BlockSpec((3, Cp), lambda n: (0, 0)),
                pl.BlockSpec((9, Cp, Cp), lambda n: (0, 0, 0)),
                pl.BlockSpec((3, Cp), lambda n: (0, 0)),
            ],
            out_specs=pl.BlockSpec((1, Cout, HW), lambda n: (n, 0, 0)),
            scratch_shapes=[
                pltpu.VMEM((H + 2, W + 2, Cin), jnp.float32),     # padded conv1 input
                pltpu.VMEM((H + 2, W + 2, Cp), jnp.bfloat16),     # padded conv1 output
            ],
        ),
        compiler_params=pltpu.CompilerParams(
            dimension_semantics=("parallel",)),
    )(x_nhwc, w1, p1, w2, p2)

    return out.reshape(N, Cout, H, W)                      # already NCHW


def _reference_block(x_nhwc, w, b, gamma, beta, mean, var, eps=1e-5):
    """Pure-JAX reference mirroring the kernel's numerics (bf16 operands, f32 acc)."""
    N, H, W, Cin = x_nhwc.shape
    Cout = w.shape[3]
    xp = jnp.pad(x_nhwc, ((0, 0), (1, 1), (1, 1), (0, 0))).astype(jnp.bfloat16)
    wb = w.astype(jnp.bfloat16)
    acc = jnp.zeros((N, H, W, Cout), jnp.float32)
    for dy in range(3):
        for dx in range(3):
            acc = acc + jnp.einsum("nhwc,co->nhwo", xp[:, dy:dy + H, dx:dx + W, :],
                                   wb[dy, dx], preferred_element_type=jnp.float32)
    y = jnp.maximum(acc + b, 0.0)
    scale = gamma / jnp.sqrt(var + eps)
    shift = beta - mean * scale
    return y * scale + shift


if __name__ == "__main__":
    key = jax.random.PRNGKey(0)
    keys = jax.random.split(key, 13)

    N, Cin, H, W = 2, 4, 16, 16
    Cout = 8

    # Deterministic synthetic parameters (shapes follow nn.Conv2d / BatchNorm2d);
    # PyTorch conv weight (Cout, Cin, 3, 3) is stored here as (3, 3, Cin, Cout).
    params = {
        "w1": 0.1 * jax.random.normal(keys[1], (3, 3, Cin, Cout), jnp.float32),
        "b1": 0.1 * jax.random.normal(keys[2], (Cout,), jnp.float32),
        "g1": 1.0 + 0.1 * jax.random.normal(keys[3], (Cout,), jnp.float32),
        "be1": 0.1 * jax.random.normal(keys[4], (Cout,), jnp.float32),
        "m1": 0.1 * jax.random.normal(keys[5], (Cout,), jnp.float32),
        "v1": 1.0 + 0.1 * jnp.abs(jax.random.normal(keys[6], (Cout,), jnp.float32)),
        "w2": 0.1 * jax.random.normal(keys[7], (3, 3, Cout, Cout), jnp.float32),
        "b2": 0.1 * jax.random.normal(keys[8], (Cout,), jnp.float32),
        "g2": 1.0 + 0.1 * jax.random.normal(keys[9], (Cout,), jnp.float32),
        "be2": 0.1 * jax.random.normal(keys[10], (Cout,), jnp.float32),
        "m2": 0.1 * jax.random.normal(keys[11], (Cout,), jnp.float32),
        "v2": 1.0 + 0.1 * jnp.abs(jax.random.normal(keys[12], (Cout,), jnp.float32)),
    }

    x = jax.random.normal(keys[0], (N, Cin, H, W), jnp.float32)   # NCHW input

    out = down_conv_forward(x, params)
    out = jax.block_until_ready(out)
    assert out.shape == (N, Cout, H, W), out.shape

    # Correctness check against a pure-JAX reference with matching bf16 numerics.
    x_nhwc = jnp.transpose(x, (0, 2, 3, 1))
    ref = _reference_block(x_nhwc, params["w1"], params["b1"], params["g1"],
                           params["be1"], params["m1"], params["v1"])
    ref = _reference_block(ref, params["w2"], params["b2"], params["g2"],
                           params["be2"], params["m2"], params["v2"])
    ref = jnp.transpose(ref, (0, 3, 1, 2))
    err = float(jnp.max(jnp.abs(out - ref)))
    assert jnp.allclose(out, ref, atol=2e-3, rtol=2e-3), err

    print("KERNEL_OK")
</pallas_src>

<mosaic_0001>
module attributes {stable_mosaic.version = 11 : i64} {
  func.func @_down_conv_kernel(%arg0: i32, %arg1: memref<1x16x16x4xf32, #tpu.memory_space<vmem>>, %arg2: memref<9x4x128xbf16, #tpu.memory_space<vmem>>, %arg3: memref<3x128xf32, #tpu.memory_space<vmem>>, %arg4: memref<9x128x128xbf16, #tpu.memory_space<vmem>>, %arg5: memref<3x128xf32, #tpu.memory_space<vmem>>, %arg6: memref<1x8x256xf32, #tpu.memory_space<vmem>>, %arg7: memref<18x18x4xf32, #tpu.memory_space<vmem>>, %arg8: memref<18x18x128xbf16, #tpu.memory_space<vmem>>) attributes {dimension_semantics = [#tpu.dimension_semantics<parallel>], iteration_bounds = array<i64: 2>, scalar_prefetch = 0 : i64, scratch_operands = 2 : i64, tpu.core_type = #tpu.core_type<tc>, window_params = [{transform_indices = @transform_0, window_bounds = array<i64: 1, 16, 16, 4>}, {pipeline_mode = #tpu.pipeline_mode<synchronous>, transform_indices = @transform_1, window_bounds = array<i64: 9, 4, 128>}, {pipeline_mode = #tpu.pipeline_mode<synchronous>, transform_indices = @transform_2, window_bounds = array<i64: 3, 128>}, {pipeline_mode = #tpu.pipeline_mode<synchronous>, transform_indices = @transform_3, window_bounds = array<i64: 9, 128, 128>}, {pipeline_mode = #tpu.pipeline_mode<synchronous>, transform_indices = @transform_4, window_bounds = array<i64: 3, 128>}, {transform_indices = @transform_5, window_bounds = array<i64: 1, 8, 256>}]} {
    %cst = arith.constant 0.000000e+00 : f32
    %0 = vector.broadcast %cst : f32 to vector<18x18x4xf32>
    %c0 = arith.constant 0 : index
    %c0_0 = arith.constant 0 : index
    %c0_1 = arith.constant 0 : index
    %1 = vector.load %arg7[%c0, %c0_0, %c0_1] : memref<18x18x4xf32, #tpu.memory_space<vmem>>, vector<18x18x4xf32>
    tpu.vector_store %arg7[%c0, %c0_0, %c0_1], %0 {strides = array<i32>} : memref<18x18x4xf32, #tpu.memory_space<vmem>>, vector<18x18x4xf32>,
    %c0_2 = arith.constant 0 : index
    %c0_3 = arith.constant 0 : index
    %c0_4 = arith.constant 0 : index
    %c0_5 = arith.constant 0 : index
    %2 = vector.load %arg1[%c0_2, %c0_3, %c0_4, %c0_5] : memref<1x16x16x4xf32, #tpu.memory_space<vmem>>, vector<1x16x16x4xf32>
    %3 = vector.shape_cast %2 : vector<1x16x16x4xf32> to vector<16x16x4xf32>
    %c1 = arith.constant 1 : index
    %c1_6 = arith.constant 1 : index
    %c0_7 = arith.constant 0 : index
    %4 = vector.load %arg7[%c1, %c1_6, %c0_7] : memref<18x18x4xf32, #tpu.memory_space<vmem>>, vector<16x16x4xf32>
    tpu.vector_store %arg7[%c1, %c1_6, %c0_7], %3 {strides = array<i32>} : memref<18x18x4xf32, #tpu.memory_space<vmem>>, vector<16x16x4xf32>,
    %cst_8 = arith.constant 0.000000e+00 : f32
    %5 = vector.broadcast %cst_8 : f32 to vector<256x128xf32>
    %c0_9 = arith.constant 0 : index
    %c0_10 = arith.constant 0 : index
    %c0_11 = arith.constant 0 : index
    %6 = vector.load %arg7[%c0_9, %c0_10, %c0_11] : memref<18x18x4xf32, #tpu.memory_space<vmem>>, vector<16x16x4xf32>
    %7 = vector.shape_cast %6 : vector<16x16x4xf32> to vector<256x4xf32>
    %8 = arith.truncf %7 : vector<256x4xf32> to vector<256x4xbf16>
    %c0_12 = arith.constant 0 : index
    %c0_13 = arith.constant 0 : index
    %c0_14 = arith.constant 0 : index
    %9 = vector.load %arg2[%c0_12, %c0_13, %c0_14] : memref<9x4x128xbf16, #tpu.memory_space<vmem>>, vector<1x4x128xbf16>
    %10 = vector.shape_cast %9 : vector<1x4x128xbf16> to vector<4x128xbf16>
    %cst_15 = arith.constant dense<0.000000e+00> : vector<256x128xf32>
    %11 = tpu.matmul %8, %10, %cst_15 {dimension_numbers = #tpu.dot_dimension_numbers<[1], [0], [0], [1], [0, 0, 1, 1], [], []>} : vector<256x4xbf16>, vector<4x128xbf16>, vector<256x128xf32> -> vector<256x128xf32>
    %12 = arith.addf %5, %11 : vector<256x128xf32>
    %c0_16 = arith.constant 0 : index
    %c1_17 = arith.constant 1 : index
    %c0_18 = arith.constant 0 : index
    %13 = vector.load %arg7[%c0_16, %c1_17, %c0_18] : memref<18x18x4xf32, #tpu.memory_space<vmem>>, vector<16x16x4xf32>
    %14 = vector.shape_cast %13 : vector<16x16x4xf32> to vector<256x4xf32>
    %15 = arith.truncf %14 : vector<256x4xf32> to vector<256x4xbf16>
    %c1_19 = arith.constant 1 : index
    %c0_20 = arith.constant 0 : index
    %c0_21 = arith.constant 0 : index
    %16 = vector.load %arg2[%c1_19, %c0_20, %c0_21] : memref<9x4x128xbf16, #tpu.memory_space<vmem>>, vector<1x4x128xbf16>
    %17 = vector.shape_cast %16 : vector<1x4x128xbf16> to vector<4x128xbf16>
    %cst_22 = arith.constant dense<0.000000e+00> : vector<256x128xf32>
    %18 = tpu.matmul %15, %17, %cst_22 {dimension_numbers = #tpu.dot_dimension_numbers<[1], [0], [0], [1], [0, 0, 1, 1], [], []>} : vector<256x4xbf16>, vector<4x128xbf16>, vector<256x128xf32> -> vector<256x128xf32>
    %19 = arith.addf %12, %18 : vector<256x128xf32>
    %c0_23 = arith.constant 0 : index
    %c2 = arith.constant 2 : index
    %c0_24 = arith.constant 0 : index
    %20 = vector.load %arg7[%c0_23, %c2, %c0_24] : memref<18x18x4xf32, #tpu.memory_space<vmem>>, vector<16x16x4xf32>
    %21 = vector.shape_cast %20 : vector<16x16x4xf32> to vector<256x4xf32>
    %22 = arith.truncf %21 : vector<256x4xf32> to vector<256x4xbf16>
    %c2_25 = arith.constant 2 : index
    %c0_26 = arith.constant 0 : index
    %c0_27 = arith.constant 0 : index
    %23 = vector.load %arg2[%c2_25, %c0_26, %c0_27] : memref<9x4x128xbf16, #tpu.memory_space<vmem>>, vector<1x4x128xbf16>
    %24 = vector.shape_cast %23 : vector<1x4x128xbf16> to vector<4x128xbf16>
    %cst_28 = arith.constant dense<0.000000e+00> : vector<256x128xf32>
    %25 = tpu.matmul %22, %24, %cst_28 {dimension_numbers = #tpu.dot_dimension_numbers<[1], [0], [0], [1], [0, 0, 1, 1], [], []>} : vector<256x4xbf16>, vector<4x128xbf16>, vector<256x128xf32> -> vector<256x128xf32>
    %26 = arith.addf %19, %25 : vector<256x128xf32>
    %c1_29 = arith.constant 1 : index
    %c0_30 = arith.constant 0 : index
    %c0_31 = arith.constant 0 : index
    %27 = vector.load %arg7[%c1_29, %c0_30, %c0_31] : memref<18x18x4xf32, #tpu.memory_space<vmem>>, vector<16x16x4xf32>
    %28 = vector.shape_cast %27 : vector<16x16x4xf32> to vector<256x4xf32>
    %29 = arith.truncf %28 : vector<256x4xf32> to vector<256x4xbf16>
    %c3 = arith.constant 3 : index
    %c0_32 = arith.constant 0 : index
    %c0_33 = arith.constant 0 : index
    %30 = vector.load %arg2[%c3, %c0_32, %c0_33] : memref<9x4x128xbf16, #tpu.memory_space<vmem>>, vector<1x4x128xbf16>
    %31 = vector.shape_cast %30 : vector<1x4x128xbf16> to vector<4x128xbf16>
    %cst_34 = arith.constant dense<0.000000e+00> : vector<256x128xf32>
    %32 = tpu.matmul %29, %31, %cst_34 {dimension_numbers = #tpu.dot_dimension_numbers<[1], [0], [0], [1], [0, 0, 1, 1], [], []>} : vector<256x4xbf16>, vector<4x128xbf16>, vector<256x128xf32> -> vector<256x128xf32>
    %33 = arith.addf %26, %32 : vector<256x128xf32>
    %c1_35 = arith.constant 1 : index
    %c1_36 = arith.constant 1 : index
    %c0_37 = arith.constant 0 : index
    %34 = vector.load %arg7[%c1_35, %c1_36, %c0_37] : memref<18x18x4xf32, #tpu.memory_space<vmem>>, vector<16x16x4xf32>
    %35 = vector.shape_cast %34 : vector<16x16x4xf32> to vector<256x4xf32>
    %36 = arith.truncf %35 : vector<256x4xf32> to vector<256x4xbf16>
    %c4 = arith.constant 4 : index
    %c0_38 = arith.constant 0 : index
    %c0_39 = arith.constant 0 : index
    %37 = vector.load %arg2[%c4, %c0_38, %c0_39] : memref<9x4x128xbf16, #tpu.memory_space<vmem>>, vector<1x4x128xbf16>
    %38 = vector.shape_cast %37 : vector<1x4x128xbf16> to vector<4x128xbf16>
    %cst_40 = arith.constant dense<0.000000e+00> : vector<256x128xf32>
    %39 = tpu.matmul %36, %38, %cst_40 {dimension_numbers = #tpu.dot_dimension_numbers<[1], [0], [0], [1], [0, 0, 1, 1], [], []>} : vector<256x4xbf16>, vector<4x128xbf16>, vector<256x128xf32> -> vector<256x128xf32>
    %40 = arith.addf %33, %39 : vector<256x128xf32>
    %c1_41 = arith.constant 1 : index
    %c2_42 = arith.constant 2 : index
    %c0_43 = arith.constant 0 : index
    %41 = vector.load %arg7[%c1_41, %c2_42, %c0_43] : memref<18x18x4xf32, #tpu.memory_space<vmem>>, vector<16x16x4xf32>
    %42 = vector.shape_cast %41 : vector<16x16x4xf32> to vector<256x4xf32>
    %43 = arith.truncf %42 : vector<256x4xf32> to vector<256x4xbf16>
    %c5 = arith.constant 5 : index
    %c0_44 = arith.constant 0 : index
    %c0_45 = arith.constant 0 : index
    %44 = vector.load %arg2[%c5, %c0_44, %c0_45] : memref<9x4x128xbf16, #tpu.memory_space<vmem>>, vector<1x4x128xbf16>
    %45 = vector.shape_cast %44 : vector<1x4x128xbf16> to vector<4x128xbf16>
    %cst_46 = arith.constant dense<0.000000e+00> : vector<256x128xf32>
    %46 = tpu.matmul %43, %45, %cst_46 {dimension_numbers = #tpu.dot_dimension_numbers<[1], [0], [0], [1], [0, 0, 1, 1], [], []>} : vector<256x4xbf16>, vector<4x128xbf16>, vector<256x128xf32> -> vector<256x128xf32>
    %47 = arith.addf %40, %46 : vector<256x128xf32>
    %c2_47 = arith.constant 2 : index
    %c0_48 = arith.constant 0 : index
    %c0_49 = arith.constant 0 : index
    %48 = vector.load %arg7[%c2_47, %c0_48, %c0_49] : memref<18x18x4xf32, #tpu.memory_space<vmem>>, vector<16x16x4xf32>
    %49 = vector.shape_cast %48 : vector<16x16x4xf32> to vector<256x4xf32>
    %50 = arith.truncf %49 : vector<256x4xf32> to vector<256x4xbf16>
    %c6 = arith.constant 6 : index
    %c0_50 = arith.constant 0 : index
    %c0_51 = arith.constant 0 : index
    %51 = vector.load %arg2[%c6, %c0_50, %c0_51] : memref<9x4x128xbf16, #tpu.memory_space<vmem>>, vector<1x4x128xbf16>
    %52 = vector.shape_cast %51 : vector<1x4x128xbf16> to vector<4x128xbf16>
    %cst_52 = arith.constant dense<0.000000e+00> : vector<256x128xf32>
    %53 = tpu.matmul %50, %52, %cst_52 {dimension_numbers = #tpu.dot_dimension_numbers<[1], [0], [0], [1], [0, 0, 1, 1], [], []>} : vector<256x4xbf16>, vector<4x128xbf16>, vector<256x128xf32> -> vector<256x128xf32>
    %54 = arith.addf %47, %53 : vector<256x128xf32>
    %c2_53 = arith.constant 2 : index
    %c1_54 = arith.constant 1 : index
    %c0_55 = arith.constant 0 : index
    %55 = vector.load %arg7[%c2_53, %c1_54, %c0_55] : memref<18x18x4xf32, #tpu.memory_space<vmem>>, vector<16x16x4xf32>
    %56 = vector.shape_cast %55 : vector<16x16x4xf32> to vector<256x4xf32>
    %57 = arith.truncf %56 : vector<256x4xf32> to vector<256x4xbf16>
    %c7 = arith.constant 7 : index
    %c0_56 = arith.constant 0 : index
    %c0_57 = arith.constant 0 : index
    %58 = vector.load %arg2[%c7, %c0_56, %c0_57] : memref<9x4x128xbf16, #tpu.memory_space<vmem>>, vector<1x4x128xbf16>
    %59 = vector.shape_cast %58 : vector<1x4x128xbf16> to vector<4x128xbf16>
    %cst_58 = arith.constant dense<0.000000e+00> : vector<256x128xf32>
    %60 = tpu.matmul %57, %59, %cst_58 {dimension_numbers = #tpu.dot_dimension_numbers<[1], [0], [0], [1], [0, 0, 1, 1], [], []>} : vector<256x4xbf16>, vector<4x128xbf16>, vector<256x128xf32> -> vector<256x128xf32>
    %61 = arith.addf %54, %60 : vector<256x128xf32>
    %c2_59 = arith.constant 2 : index
    %c2_60 = arith.constant 2 : index
    %c0_61 = arith.constant 0 : index
    %62 = vector.load %arg7[%c2_59, %c2_60, %c0_61] : memref<18x18x4xf32, #tpu.memory_space<vmem>>, vector<16x16x4xf32>
    %63 = vector.shape_cast %62 : vector<16x16x4xf32> to vector<256x4xf32>
    %64 = arith.truncf %63 : vector<256x4xf32> to vector<256x4xbf16>
    %c8 = arith.constant 8 : index
    %c0_62 = arith.constant 0 : index
    %c0_63 = arith.constant 0 : index
    %65 = vector.load %arg2[%c8, %c0_62, %c0_63] : memref<9x4x128xbf16, #tpu.memory_space<vmem>>, vector<1x4x128xbf16>
    %66 = vector.shape_cast %65 : vector<1x4x128xbf16> to vector<4x128xbf16>
    %cst_64 = arith.constant dense<0.000000e+00> : vector<256x128xf32>
    %67 = tpu.matmul %64, %66, %cst_64 {dimension_numbers = #tpu.dot_dimension_numbers<[1], [0], [0], [1], [0, 0, 1, 1], [], []>} : vector<256x4xbf16>, vector<4x128xbf16>, vector<256x128xf32> -> vector<256x128xf32>
    %68 = arith.addf %61, %67 : vector<256x128xf32>
    %c0_65 = arith.constant 0 : index
    %c0_66 = arith.constant 0 : index
    %69 = vector.load %arg3[%c0_65, %c0_66] : memref<3x128xf32, #tpu.memory_space<vmem>>, vector<3x128xf32>
    %70 = vector.extract_strided_slice %69 {offsets = [0, 0], sizes = [1, 128], strides = [1, 1]} : vector<3x128xf32> to vector<1x128xf32>
    %71 = vector.shape_cast %70 : vector<1x128xf32> to vector<128xf32>
    %72 = vector.shape_cast %71 : vector<128xf32> to vector<1x128xf32>
    %73 = vector.broadcast %72 : vector<1x128xf32> to vector<256x128xf32>
    %74 = arith.addf %68, %73 : vector<256x128xf32>
    %cst_67 = arith.constant 0.000000e+00 : f32
    %75 = vector.broadcast %cst_67 : f32 to vector<256x128xf32>
    %76 = arith.maximumf %74, %75 : vector<256x128xf32>
    %77 = vector.extract_strided_slice %69 {offsets = [1, 0], sizes = [1, 128], strides = [1, 1]} : vector<3x128xf32> to vector<1x128xf32>
    %78 = vector.shape_cast %77 : vector<1x128xf32> to vector<128xf32>
    %79 = vector.shape_cast %78 : vector<128xf32> to vector<1x128xf32>
    %80 = vector.broadcast %79 : vector<1x128xf32> to vector<256x128xf32>
    %81 = arith.mulf %76, %80 : vector<256x128xf32>
    %82 = vector.extract_strided_slice %69 {offsets = [2, 0], sizes = [1, 128], strides = [1, 1]} : vector<3x128xf32> to vector<1x128xf32>
    %83 = vector.shape_cast %82 : vector<1x128xf32> to vector<128xf32>
    %84 = vector.shape_cast %83 : vector<128xf32> to vector<1x128xf32>
    %85 = vector.broadcast %84 : vector<1x128xf32> to vector<256x128xf32>
    %86 = arith.addf %81, %85 : vector<256x128xf32>
    %cst_68 = arith.constant 0.000000e+00 : bf16
    %87 = vector.broadcast %cst_68 : bf16 to vector<18x18x128xbf16>
    %c0_69 = arith.constant 0 : index
    %c0_70 = arith.constant 0 : index
    %c0_71 = arith.constant 0 : index
    %88 = vector.load %arg8[%c0_69, %c0_70, %c0_71] : memref<18x18x128xbf16, #tpu.memory_space<vmem>>, vector<18x18x128xbf16>
    tpu.vector_store %arg8[%c0_69, %c0_70, %c0_71], %87 {strides = array<i32>} : memref<18x18x128xbf16, #tpu.memory_space<vmem>>, vector<18x18x128xbf16>,
    %89 = vector.shape_cast %86 : vector<256x128xf32> to vector<16x16x128xf32>
    %90 = arith.truncf %89 : vector<16x16x128xf32> to vector<16x16x128xbf16>
    %c1_72 = arith.constant 1 : index
    %c1_73 = arith.constant 1 : index
    %c0_74 = arith.constant 0 : index
    %91 = vector.load %arg8[%c1_72, %c1_73, %c0_74] : memref<18x18x128xbf16, #tpu.memory_space<vmem>>, vector<16x16x128xbf16>
    tpu.vector_store %arg8[%c1_72, %c1_73, %c0_74], %90 {strides = array<i32>} : memref<18x18x128xbf16, #tpu.memory_space<vmem>>, vector<16x16x128xbf16>,
    %cst_75 = arith.constant 0.000000e+00 : f32
    %92 = vector.broadcast %cst_75 : f32 to vector<256x128xf32>
    %c0_76 = arith.constant 0 : index
    %c0_77 = arith.constant 0 : index
    %c0_78 = arith.constant 0 : index
    %93 = vector.load %arg8[%c0_76, %c0_77, %c0_78] : memref<18x18x128xbf16, #tpu.memory_space<vmem>>, vector<16x16x128xbf16>
    %94 = vector.shape_cast %93 : vector<16x16x128xbf16> to vector<256x128xbf16>
    %c0_79 = arith.constant 0 : index
    %c0_80 = arith.constant 0 : index
    %c0_81 = arith.constant 0 : index
    %95 = vector.load %arg4[%c0_79, %c0_80, %c0_81] : memref<9x128x128xbf16, #tpu.memory_space<vmem>>, vector<1x128x128xbf16>
    %96 = vector.shape_cast %95 : vector<1x128x128xbf16> to vector<128x128xbf16>
    %cst_82 = arith.constant dense<0.000000e+00> : vector<256x128xf32>
    %97 = tpu.matmul %94, %96, %cst_82 {dimension_numbers = #tpu.dot_dimension_numbers<[1], [0], [0], [1], [0, 0, 1, 1], [], []>} : vector<256x128xbf16>, vector<128x128xbf16>, vector<256x128xf32> -> vector<256x128xf32>
    %98 = arith.addf %92, %97 : vector<256x128xf32>
    %c0_83 = arith.constant 0 : index
    %c1_84 = arith.constant 1 : index
    %c0_85 = arith.constant 0 : index
    %99 = vector.load %arg8[%c0_83, %c1_84, %c0_85] : memref<18x18x128xbf16, #tpu.memory_space<vmem>>, vector<16x16x128xbf16>
    %100 = vector.shape_cast %99 : vector<16x16x128xbf16> to vector<256x128xbf16>
    %c1_86 = arith.constant 1 : index
    %c0_87 = arith.constant 0 : index
    %c0_88 = arith.constant 0 : index
    %101 = vector.load %arg4[%c1_86, %c0_87, %c0_88] : memref<9x128x128xbf16, #tpu.memory_space<vmem>>, vector<1x128x128xbf16>
    %102 = vector.shape_cast %101 : vector<1x128x128xbf16> to vector<128x128xbf16>
    %cst_89 = arith.constant dense<0.000000e+00> : vector<256x128xf32>
    %103 = tpu.matmul %100, %102, %cst_89 {dimension_numbers = #tpu.dot_dimension_numbers<[1], [0], [0], [1], [0, 0, 1, 1], [], []>} : vector<256x128xbf16>, vector<128x128xbf16>, vector<256x128xf32> -> vector<256x128xf32>
    %104 = arith.addf %98, %103 : vector<256x128xf32>
    %c0_90 = arith.constant 0 : index
    %c2_91 = arith.constant 2 : index
    %c0_92 = arith.constant 0 : index
    %105 = vector.load %arg8[%c0_90, %c2_91, %c0_92] : memref<18x18x128xbf16, #tpu.memory_space<vmem>>, vector<16x16x128xbf16>
    %106 = vector.shape_cast %105 : vector<16x16x128xbf16> to vector<256x128xbf16>
    %c2_93 = arith.constant 2 : index
    %c0_94 = arith.constant 0 : index
    %c0_95 = arith.constant 0 : index
    %107 = vector.load %arg4[%c2_93, %c0_94, %c0_95] : memref<9x128x128xbf16, #tpu.memory_space<vmem>>, vector<1x128x128xbf16>
    %108 = vector.shape_cast %107 : vector<1x128x128xbf16> to vector<128x128xbf16>
    %cst_96 = arith.constant dense<0.000000e+00> : vector<256x128xf32>
    %109 = tpu.matmul %106, %108, %cst_96 {dimension_numbers = #tpu.dot_dimension_numbers<[1], [0], [0], [1], [0, 0, 1, 1], [], []>} : vector<256x128xbf16>, vector<128x128xbf16>, vector<256x128xf32> -> vector<256x128xf32>
    %110 = arith.addf %104, %109 : vector<256x128xf32>
    %c1_97 = arith.constant 1 : index
    %c0_98 = arith.constant 0 : index
    %c0_99 = arith.constant 0 : index
    %111 = vector.load %arg8[%c1_97, %c0_98, %c0_99] : memref<18x18x128xbf16, #tpu.memory_space<vmem>>, vector<16x16x128xbf16>
    %112 = vector.shape_cast %111 : vector<16x16x128xbf16> to vector<256x128xbf16>
    %c3_100 = arith.constant 3 : index
    %c0_101 = arith.constant 0 : index
    %c0_102 = arith.constant 0 : index
    %113 = vector.load %arg4[%c3_100, %c0_101, %c0_102] : memref<9x128x128xbf16, #tpu.memory_space<vmem>>, vector<1x128x128xbf16>
    %114 = vector.shape_cast %113 : vector<1x128x128xbf16> to vector<128x128xbf16>
    %cst_103 = arith.constant dense<0.000000e+00> : vector<256x128xf32>
    %115 = tpu.matmul %112, %114, %cst_103 {dimension_numbers = #tpu.dot_dimension_numbers<[1], [0], [0], [1], [0, 0, 1, 1], [], []>} : vector<256x128xbf16>, vector<128x128xbf16>, vector<256x128xf32> -> vector<256x128xf32>
    %116 = arith.addf %110, %115 : vector<256x128xf32>
    %c1_104 = arith.constant 1 : index
    %c1_105 = arith.constant 1 : index
    %c0_106 = arith.constant 0 : index
    %117 = vector.load %arg8[%c1_104, %c1_105, %c0_106] : memref<18x18x128xbf16, #tpu.memory_space<vmem>>, vector<16x16x128xbf16>
    %118 = vector.shape_cast %117 : vector<16x16x128xbf16> to vector<256x128xbf16>
    %c4_107 = arith.constant 4 : index
    %c0_108 = arith.constant 0 : index
    %c0_109 = arith.constant 0 : index
    %119 = vector.load %arg4[%c4_107, %c0_108, %c0_109] : memref<9x128x128xbf16, #tpu.memory_space<vmem>>, vector<1x128x128xbf16>
    %120 = vector.shape_cast %119 : vector<1x128x128xbf16> to vector<128x128xbf16>
    %cst_110 = arith.constant dense<0.000000e+00> : vector<256x128xf32>
    %121 = tpu.matmul %118, %120, %cst_110 {dimension_numbers = #tpu.dot_dimension_numbers<[1], [0], [0], [1], [0, 0, 1, 1], [], []>} : vector<256x128xbf16>, vector<128x128xbf16>, vector<256x128xf32> -> vector<256x128xf32>
    %122 = arith.addf %116, %121 : vector<256x128xf32>
    %c1_111 = arith.constant 1 : index
    %c2_112 = arith.constant 2 : index
    %c0_113 = arith.constant 0 : index
    %123 = vector.load %arg8[%c1_111, %c2_112, %c0_113] : memref<18x18x128xbf16, #tpu.memory_space<vmem>>, vector<16x16x128xbf16>
    %124 = vector.shape_cast %123 : vector<16x16x128xbf16> to vector<256x128xbf16>
    %c5_114 = arith.constant 5 : index
    %c0_115 = arith.constant 0 : index
    %c0_116 = arith.constant 0 : index
    %125 = vector.load %arg4[%c5_114, %c0_115, %c0_116] : memref<9x128x128xbf16, #tpu.memory_space<vmem>>, vector<1x128x128xbf16>
    %126 = vector.shape_cast %125 : vector<1x128x128xbf16> to vector<128x128xbf16>
    %cst_117 = arith.constant dense<0.000000e+00> : vector<256x128xf32>
    %127 = tpu.matmul %124, %126, %cst_117 {dimension_numbers = #tpu.dot_dimension_numbers<[1], [0], [0], [1], [0, 0, 1, 1], [], []>} : vector<256x128xbf16>, vector<128x128xbf16>, vector<256x128xf32> -> vector<256x128xf32>
    %128 = arith.addf %122, %127 : vector<256x128xf32>
    %c2_118 = arith.constant 2 : index
    %c0_119 = arith.constant 0 : index
    %c0_120 = arith.constant 0 : index
    %129 = vector.load %arg8[%c2_118, %c0_119, %c0_120] : memref<18x18x128xbf16, #tpu.memory_space<vmem>>, vector<16x16x128xbf16>
    %130 = vector.shape_cast %129 : vector<16x16x128xbf16> to vector<256x128xbf16>
    %c6_121 = arith.constant 6 : index
    %c0_122 = arith.constant 0 : index
    %c0_123 = arith.constant 0 : index
    %131 = vector.load %arg4[%c6_121, %c0_122, %c0_123] : memref<9x128x128xbf16, #tpu.memory_space<vmem>>, vector<1x128x128xbf16>
    %132 = vector.shape_cast %131 : vector<1x128x128xbf16> to vector<128x128xbf16>
    %cst_124 = arith.constant dense<0.000000e+00> : vector<256x128xf32>
    %133 = tpu.matmul %130, %132, %cst_124 {dimension_numbers = #tpu.dot_dimension_numbers<[1], [0], [0], [1], [0, 0, 1, 1], [], []>} : vector<256x128xbf16>, vector<128x128xbf16>, vector<256x128xf32> -> vector<256x128xf32>
    %134 = arith.addf %128, %133 : vector<256x128xf32>
    %c2_125 = arith.constant 2 : index
    %c1_126 = arith.constant 1 : index
    %c0_127 = arith.constant 0 : index
    %135 = vector.load %arg8[%c2_125, %c1_126, %c0_127] : memref<18x18x128xbf16, #tpu.memory_space<vmem>>, vector<16x16x128xbf16>
    %136 = vector.shape_cast %135 : vector<16x16x128xbf16> to vector<256x128xbf16>
    %c7_128 = arith.constant 7 : index
    %c0_129 = arith.constant 0 : index
    %c0_130 = arith.constant 0 : index
    %137 = vector.load %arg4[%c7_128, %c0_129, %c0_130] : memref<9x128x128xbf16, #tpu.memory_space<vmem>>, vector<1x128x128xbf16>
    %138 = vector.shape_cast %137 : vector<1x128x128xbf16> to vector<128x128xbf16>
    %cst_131 = arith.constant dense<0.000000e+00> : vector<256x128xf32>
    %139 = tpu.matmul %136, %138, %cst_131 {dimension_numbers = #tpu.dot_dimension_numbers<[1], [0], [0], [1], [0, 0, 1, 1], [], []>} : vector<256x128xbf16>, vector<128x128xbf16>, vector<256x128xf32> -> vector<256x128xf32>
    %140 = arith.addf %134, %139 : vector<256x128xf32>
    %c2_132 = arith.constant 2 : index
    %c2_133 = arith.constant 2 : index
    %c0_134 = arith.constant 0 : index
    %141 = vector.load %arg8[%c2_132, %c2_133, %c0_134] : memref<18x18x128xbf16, #tpu.memory_space<vmem>>, vector<16x16x128xbf16>
    %142 = vector.shape_cast %141 : vector<16x16x128xbf16> to vector<256x128xbf16>
    %c8_135 = arith.constant 8 : index
    %c0_136 = arith.constant 0 : index
    %c0_137 = arith.constant 0 : index
    %143 = vector.load %arg4[%c8_135, %c0_136, %c0_137] : memref<9x128x128xbf16, #tpu.memory_space<vmem>>, vector<1x128x128xbf16>
    %144 = vector.shape_cast %143 : vector<1x128x128xbf16> to vector<128x128xbf16>
    %cst_138 = arith.constant dense<0.000000e+00> : vector<256x128xf32>
    %145 = tpu.matmul %142, %144, %cst_138 {dimension_numbers = #tpu.dot_dimension_numbers<[1], [0], [0], [1], [0, 0, 1, 1], [], []>} : vector<256x128xbf16>, vector<128x128xbf16>, vector<256x128xf32> -> vector<256x128xf32>
    %146 = arith.addf %140, %145 : vector<256x128xf32>
    %c0_139 = arith.constant 0 : index
    %c0_140 = arith.constant 0 : index
    %147 = vector.load %arg5[%c0_139, %c0_140] : memref<3x128xf32, #tpu.memory_space<vmem>>, vector<3x128xf32>
    %148 = vector.extract_strided_slice %147 {offsets = [0, 0], sizes = [1, 128], strides = [1, 1]} : vector<3x128xf32> to vector<1x128xf32>
    %149 = vector.shape_cast %148 : vector<1x128xf32> to vector<128xf32>
    %150 = vector.shape_cast %149 : vector<128xf32> to vector<1x128xf32>
    %151 = vector.broadcast %150 : vector<1x128xf32> to vector<256x128xf32>
    %152 = arith.addf %146, %151 : vector<256x128xf32>
    %cst_141 = arith.constant 0.000000e+00 : f32
    %153 = vector.broadcast %cst_141 : f32 to vector<256x128xf32>
    %154 = arith.maximumf %152, %153 : vector<256x128xf32>
    %155 = vector.extract_strided_slice %147 {offsets = [1, 0], sizes = [1, 128], strides = [1, 1]} : vector<3x128xf32> to vector<1x128xf32>
    %156 = vector.shape_cast %155 : vector<1x128xf32> to vector<128xf32>
    %157 = vector.shape_cast %156 : vector<128xf32> to vector<1x128xf32>
    %158 = vector.broadcast %157 : vector<1x128xf32> to vector<256x128xf32>
    %159 = arith.mulf %154, %158 : vector<256x128xf32>
    %160 = vector.extract_strided_slice %147 {offsets = [2, 0], sizes = [1, 128], strides = [1, 1]} : vector<3x128xf32> to vector<1x128xf32>
    %161 = vector.shape_cast %160 : vector<1x128xf32> to vector<128xf32>
    %162 = vector.shape_cast %161 : vector<128xf32> to vector<1x128xf32>
    %163 = vector.broadcast %162 : vector<1x128xf32> to vector<256x128xf32>
    %164 = arith.addf %159, %163 : vector<256x128xf32>
    %165 = tpu.transpose %164, [1, 0] : vector<256x128xf32> -> vector<128x256xf32>
    %166 = vector.extract_strided_slice %165 {offsets = [0, 0], sizes = [8, 256], strides = [1, 1]} : vector<128x256xf32> to vector<8x256xf32>
    %167 = vector.shape_cast %166 : vector<8x256xf32> to vector<1x8x256xf32>
    %c0_142 = arith.constant 0 : index
    %c0_143 = arith.constant 0 : index
    %c0_144 = arith.constant 0 : index
    %168 = vector.load %arg6[%c0_142, %c0_143, %c0_144] : memref<1x8x256xf32, #tpu.memory_space<vmem>>, vector<1x8x256xf32>
    tpu.vector_store %arg6[%c0_142, %c0_143, %c0_144], %167 {strides = array<i32>} : memref<1x8x256xf32, #tpu.memory_space<vmem>>, vector<1x8x256xf32>,
    return
  }
  func.func @transform_0(%arg0: i32) -> (i32, i32, i32, i32) {
    %c0_i32 = arith.constant 0 : i32
    %c0_i32_0 = arith.constant 0 : i32
    %c0_i32_1 = arith.constant 0 : i32
    %c0_i32_2 = arith.constant 0 : i32
    return %arg0, %c0_i32, %c0_i32_0, %c0_i32_1 : i32, i32, i32, i32
  }
  func.func @transform_1(%arg0: i32) -> (i32, i32, i32) {
    %c0_i32 = arith.constant 0 : i32
    %c0_i32_0 = arith.constant 0 : i32
    %c0_i32_1 = arith.constant 0 : i32
    %c0_i32_2 = arith.constant 0 : i32
    return %c0_i32, %c0_i32_0, %c0_i32_1 : i32, i32, i32
  }
  func.func @transform_2(%arg0: i32) -> (i32, i32) {
    %c0_i32 = arith.constant 0 : i32
    %c0_i32_0 = arith.constant 0 : i32
    %c0_i32_1 = arith.constant 0 : i32
    return %c0_i32, %c0_i32_0 : i32, i32
  }
  func.func @transform_3(%arg0: i32) -> (i32, i32, i32) {
    %c0_i32 = arith.constant 0 : i32
    %c0_i32_0 = arith.constant 0 : i32
    %c0_i32_1 = arith.constant 0 : i32
    %c0_i32_2 = arith.constant 0 : i32
    return %c0_i32, %c0_i32_0, %c0_i32_1 : i32, i32, i32
  }
  func.func @transform_4(%arg0: i32) -> (i32, i32) {
    %c0_i32 = arith.constant 0 : i32
    %c0_i32_0 = arith.constant 0 : i32
    %c0_i32_1 = arith.constant 0 : i32
    return %c0_i32, %c0_i32_0 : i32, i32
  }
  func.func @transform_5(%arg0: i32) -> (i32, i32, i32) {
    %c0_i32 = arith.constant 0 : i32
    %c0_i32_0 = arith.constant 0 : i32
    %c0_i32_1 = arith.constant 0 : i32
    return %arg0, %c0_i32, %c0_i32_0 : i32, i32, i32
  }
}

</mosaic_0001>

<llo_original>
// kernel: tpu_custom_call.1
$region0: #{tpu_custom_call.1}
  #allocation0 [shape = 'u32[]', space=smem, size = 0x4, offset = 0x4, fixed_abs, tag = 'smem constant byte address 0x4 - core index']
  #allocation1 [shape = 'u32[72,128]{1,0:T(1,128)}', space=vmem, size = 0x9000, scoped, tag = 'internal scratch']
  #allocation2 [shape = 'f32[18,18,4]{2,1,0:T(8,128)}', space=vmem, size = 0x36000, scoped, tag = 'scratch operand']
  #allocation3 [shape = 'bf16[18,18,128]{2,1,0:T(8,128)(2,1)}', space=vmem, size = 0x1b000, scoped, tag = 'scratch operand']
  %s0 = inlined_call_operand.vmem [shape: f32[2,16,16,4], index: 0, kind: input, shape index: {}]
  %s1 = inlined_call_operand.vmem [shape: bf16[9,4,128], index: 1, kind: input, shape index: {}]
  %s2 = inlined_call_operand.vmem [shape: f32[3,128], index: 2, kind: input, shape index: {}]
  %s3 = inlined_call_operand.vmem [shape: bf16[9,128,128], index: 3, kind: input, shape index: {}]
  %s4 = inlined_call_operand.vmem [shape: f32[3,128], index: 4, kind: input, shape index: {}]
  %s5 = inlined_call_operand.hbm [shape: f32[2,8,256], index: 5, kind: output, shape index: {}]
  %s6 = sld [smem:[#allocation0]]
  $region53: #{tpu_custom_call.1} parent=0
    _
  %s8 = ssub.s32 1, %s6
  %s9 = scalar_select 0, %s8, %s6
  $region1: #{tpu_custom_call.1} parent=0
    #allocation4 [shape = 'u8[16384]{0}', space=vmem, size = 0x4000, scoped, tag = 'output window, operand 0']
    #allocation5 [shape = 's32[2]{0}', space=sflag, size = 0x8, scoped, tag = 'scoped memory for tpu_custom_call.1']
    %10 = vsyncpa [#allocation5], 0
    %s11 = scalar_lea.sflag [#allocation5], 1
    %12 = vsyncpa %s11, 0
    loop: start=0, step=1, limit=4
    $region2: #{tpu_custom_call.1} parent=1 // loop_pre_header
      _
    $region3: #{tpu_custom_call.1} parent=1 // loop_header
      %s14 = sphi 0, %s18
      %p15 = scmp.ge.s32.totalorder %s14, 4
      %s24 = sphi 0, %s26
      %s27 = sphi 0, %s24
      %s28 = sphi 0, %s27
      %s44 = sphi 0, %s28
      %s48 = sphi 0, %s48
      %s50 = sphi 0, %s48
      %s51 = sphi 0, %s50
      %s65 = sphi 0, %s51
      %s69 = sphi 0, %s69
      %s71 = sphi 0, %s69
      %s72 = sphi 0, %s71
      %s86 = sphi 0, %s72
      %s90 = sphi 0, %s90
      %s92 = sphi 0, %s90
      %s93 = sphi 0, %s92
      %s107 = sphi 0, %s93
      %s111 = sphi 0, %s111
      %s113 = sphi 0, %s111
      %s114 = sphi 0, %s113
      %s128 = sphi 0, %s114
      %s134 = sphi 0, %s136
      %s137 = sphi 0, %s134
      %s138 = sphi 0, %s137
      %s154 = sphi 0, %s138
    $region4: #{tpu_custom_call.1} parent=1 // loop_header_branch
      %17 = sbr.rel (%p15) target = $region8
    $region5: #{tpu_custom_call.1} parent=1 // loop_body
      %s19 = ssub.s32 %s14, 1
      %s20 = ssub.s32 %s14, 2
      %s21 = sadd.s32 %s14, 1
      %s22 = ssub.s32 %s14, %s21
      %p23 = scmp.eq.s32.totalorder %s22, 0
      %s25 = sadd.s32 %s24, 1
      %s26 = scalar_select %p23, %s24, %s25
      %p29 = pneg %p23
      %p30 = scmp.eq.s32.totalorder %s14, 1
      %p31 = por %p29, %p30
      %p32 = scmp.ne.s32.totalorder %s24, %s27
      %p33 = scmp.eq.s32.totalorder %s14, 0
      %p34 = por %p32, %p33
      %p35 = scmp.ne.s32.totalorder %s24, %s27
      %p36 = scmp.eq.s32.totalorder %s19, 1
      %p37 = por %p35, %p36
      %p38 = scmp.ne.s32.totalorder %s27, %s28
      %p39 = scmp.eq.s32.totalorder %s19, 0
      %p40 = por %p38, %p39
      %p41 = scmp.ne.s32.totalorder %s27, %s28
      %p42 = scmp.eq.s32.totalorder %s20, 1
      %p43 = por %p41, %p42
      %p45 = scmp.ne.s32.totalorder %s28, %s44
      %p46 = scmp.eq.s32.totalorder %s20, 0
      %p47 = por %p45, %p46
      %s49 = sadd.s32 %s48, 1
      %p52 = scmp.eq.s32.totalorder %s14, 1
      %p53 = scmp.ne.s32.totalorder %s48, %s50
      %p54 = scmp.eq.s32.totalorder %s14, 0
      %p55 = por %p53, %p54
      %p56 = scmp.ne.s32.totalorder %s48, %s50
      %p57 = scmp.eq.s32.totalorder %s19, 1
      %p58 = por %p56, %p57
      %p59 = scmp.ne.s32.totalorder %s50, %s51
      %p60 = scmp.eq.s32.totalorder %s19, 0
      %p61 = por %p59, %p60
      %p62 = scmp.ne.s32.totalorder %s50, %s51
      %p63 = scmp.eq.s32.totalorder %s20, 1
      %p64 = por %p62, %p63
      %p66 = scmp.ne.s32.totalorder %s51, %s65
      %p67 = scmp.eq.s32.totalorder %s20, 0
      %p68 = por %p66, %p67
      %s70 = sadd.s32 %s69, 1
      %p73 = scmp.eq.s32.totalorder %s14, 1
      %p74 = scmp.ne.s32.totalorder %s69, %s71
      %p75 = scmp.eq.s32.totalorder %s14, 0
      %p76 = por %p74, %p75
      %p77 = scmp.ne.s32.totalorder %s69, %s71
      %p78 = scmp.eq.s32.totalorder %s19, 1
      %p79 = por %p77, %p78
      %p80 = scmp.ne.s32.totalorder %s71, %s72
      %p81 = scmp.eq.s32.totalorder %s19, 0
      %p82 = por %p80, %p81
      %p83 = scmp.ne.s32.totalorder %s71, %s72
      %p84 = scmp.eq.s32.totalorder %s20, 1
      %p85 = por %p83, %p84
      %p87 = scmp.ne.s32.totalorder %s72, %s86
      %p88 = scmp.eq.s32.totalorder %s20, 0
      %p89 = por %p87, %p88
      %s91 = sadd.s32 %s90, 1
      %p94 = scmp.eq.s32.totalorder %s14, 1
      %p95 = scmp.ne.s32.totalorder %s90, %s92
      %p96 = scmp.eq.s32.totalorder %s14, 0
      %p97 = por %p95, %p96
      %p98 = scmp.ne.s32.totalorder %s90, %s92
      %p99 = scmp.eq.s32.totalorder %s19, 1
      %p100 = por %p98, %p99
      %p101 = scmp.ne.s32.totalorder %s92, %s93
      %p102 = scmp.eq.s32.totalorder %s19, 0
      %p103 = por %p101, %p102
      %p104 = scmp.ne.s32.totalorder %s92, %s93
      %p105 = scmp.eq.s32.totalorder %s20, 1
      %p106 = por %p104, %p105
      %p108 = scmp.ne.s32.totalorder %s93, %s107
      %p109 = scmp.eq.s32.totalorder %s20, 0
      %p110 = por %p108, %p109
      %s112 = sadd.s32 %s111, 1
      %p115 = scmp.eq.s32.totalorder %s14, 1
      %p116 = scmp.ne.s32.totalorder %s111, %s113
      %p117 = scmp.eq.s32.totalorder %s14, 0
      %p118 = por %p116, %p117
      %p119 = scmp.ne.s32.totalorder %s111, %s113
      %p120 = scmp.eq.s32.totalorder %s19, 1
      %p121 = por %p119, %p120
      %p122 = scmp.ne.s32.totalorder %s113, %s114
      %p123 = scmp.eq.s32.totalorder %s19, 0
      %p124 = por %p122, %p123
      %p125 = scmp.ne.s32.totalorder %s113, %s114
      %p126 = scmp.eq.s32.totalorder %s20, 1
      %p127 = por %p125, %p126
      %p129 = scmp.ne.s32.totalorder %s114, %s128
      %p130 = scmp.eq.s32.totalorder %s20, 0
      %p131 = por %p129, %p130
      %s132 = ssub.s32 %s14, %s21
      %p133 = scmp.eq.s32.totalorder %s132, 0
      %s135 = sadd.s32 %s134, 1
      %s136 = scalar_select %p133, %s134, %s135
      %p139 = pneg %p133
      %p140 = scmp.eq.s32.totalorder %s14, 1
      %p141 = por %p139, %p140
      %p142 = scmp.ne.s32.totalorder %s134, %s137
      %p143 = scmp.eq.s32.totalorder %s14, 0
      %p144 = por %p142, %p143
      %p145 = scmp.ne.s32.totalorder %s134, %s137
      %p146 = scmp.eq.s32.totalorder %s19, 1
      %p147 = por %p145, %p146
      %p148 = scmp.ne.s32.totalorder %s137, %s138
      %p149 = scmp.eq.s32.totalorder %s19, 0
      %p150 = por %p148, %p149
      %p151 = scmp.ne.s32.totalorder %s137, %s138
      %p152 = scmp.eq.s32.totalorder %s20, 1
      %p153 = por %p151, %p152
      %p155 = scmp.ne.s32.totalorder %s138, %s154
      %p156 = scmp.eq.s32.totalorder %s20, 0
      %p157 = por %p155, %p156
      %p158 = scmp.le.s32.totalorder 1, %s14
      %p159 = scmp.lt.s32.totalorder %s14, 3
      %p160 = pnand %p158, %p159
      %p161 = pneg %p160
      // Predicated region
      $region9: #{tpu_custom_call.1} parent=5 // pred_check
        _
      $region10: #{tpu_custom_call.1} parent=5 // pred_check_branch
        %163 = sbr.rel (%p160) target = $region12
      $region11: #{tpu_custom_call.1} parent=5 // pred_region
        %s164 = ssub.s32 %s14, 1
        // Predicated region
        $region13: #{tpu_custom_call.1} parent=11 // pred_check
          %p165 = pneg %p61
        $region14: #{tpu_custom_call.1} parent=11 // pred_check_branch
          %167 = sbr.rel (%p165) target = $region16
        $region15: #{tpu_custom_call.1} parent=11 // pred_region
          _
        $region16: #{tpu_custom_call.1} parent=11 // pred_fallthru
          _
        // Predicated region
        $region17: #{tpu_custom_call.1} parent=11 // pred_check
          %p168 = pneg %p82
        $region18: #{tpu_custom_call.1} parent=11 // pred_check_branch
          %170 = sbr.rel (%p168) target = $region20
        $region19: #{tpu_custom_call.1} parent=11 // pred_region
          _
        $region20: #{tpu_custom_call.1} parent=11 // pred_fallthru
          _
        // Predicated region
        $region21: #{tpu_custom_call.1} parent=11 // pred_check
          %p171 = pneg %p103
        $region22: #{tpu_custom_call.1} parent=11 // pred_check_branch
          %173 = sbr.rel (%p171) target = $region24
        $region23: #{tpu_custom_call.1} parent=11 // pred_region
          _
        $region24: #{tpu_custom_call.1} parent=11 // pred_fallthru
          _
        // Predicated region
        $region25: #{tpu_custom_call.1} parent=11 // pred_check
          %p174 = pneg %p124
        $region26: #{tpu_custom_call.1} parent=11 // pred_check_branch
          %176 = sbr.rel (%p174) target = $region28
        $region27: #{tpu_custom_call.1} parent=11 // pred_region
          _
        $region28: #{tpu_custom_call.1} parent=11 // pred_fallthru
          _
      $region12: #{tpu_custom_call.1} parent=5 // pred_fallthru
        _
      %p177 = scmp.lt.s32.totalorder %s14, 2
      // Predicated region
      $region29: #{tpu_custom_call.1} parent=5 // pred_check
        %p178 = pneg %p177
      $region30: #{tpu_custom_call.1} parent=5 // pred_check_branch
        %180 = sbr.rel (%p178) target = $region32
      $region31: #{tpu_custom_call.1} parent=5 // pred_region
        // Predicated region
        $region33: #{tpu_custom_call.1} parent=31 // pred_check
          %p181 = pneg %p34
        $region34: #{tpu_custom_call.1} parent=31 // pred_check_branch
          %183 = sbr.rel (%p181) target = $region36
        $region35: #{tpu_custom_call.1} parent=31 // pred_region
          %p184 = scmp.lt.s32.totalorder %s14, 1
          %s185 = scalar_select %p184, %s14, 1
          %s186 = smul.addr %s185, 32
          %s187 = smul.addr %s186, 8
          %s188 = scalar_lea.vmem %s0, %s187
        $region36: #{tpu_custom_call.1} parent=31 // pred_fallthru
          _
      $region32: #{tpu_custom_call.1} parent=5 // pred_fallthru
        _
      %p189 = scmp.le.s32.totalorder 1, %s14
      %p190 = scmp.lt.s32.totalorder %s14, 3
      %p191 = pnand %p189, %p190
      %p192 = pneg %p191
      // Predicated region
      $region37: #{tpu_custom_call.1} parent=5 // pred_check
        _
      $region38: #{tpu_custom_call.1} parent=5 // pred_check_branch
        %194 = sbr.rel (%p191) target = $region40
      $region39: #{tpu_custom_call.1} parent=5 // pred_region
        %s195 = ssub.s32 %s14, 1
        %p196 = scmp.lt.s32.totalorder %s19, 1
        %s197 = scalar_select %p196, %s19, 1
        %s198 = smul.addr %s197, 32
        %s199 = smul.addr %s198, 8
        %s200 = scalar_lea.vmem %s0, %s199
        %p201 = pneg %p40
        %p202 = pneg %p37
        %p203 = pneg %p61
        %p204 = pneg %p58
        %p205 = pneg %p82
        %p206 = pneg %p79
        %p207 = pneg %p103
        %p208 = pneg %p100
        %p209 = pneg %p124
        %p210 = pneg %p121
        %p211 = pneg %p150
        %p212 = pneg %p147
        %s213 = sand.u32 %s137, 1
        %s214 = scalar_lea.sflag [#allocation5], %s213
        %s215 = sand.u32 %s137, 1
        %s216 = smul.addr %s215, 16
        %s217 = scalar_lea.vmem [#allocation4], %s216
        %p218 = scmp.lt.s32.totalorder %s19, 1
        %s219 = scalar_select %p218, %s19, 1
        %s220 = smul.addr %s219, 32
        %s221 = smul.addr %s220, 8
        %s222 = scalar_lea.vmem %s0, %s221
        %vm224 = vcmask 31744
        %225 = vst.msk [vmem:[#allocation2] sm:$0xff] %vm224, 0.0
        %226 = vst.msk [vmem:[#allocation2 + $0x8] sm:$0xff] %vm224, 0.0
        %vm227 = vcmask 25600
        %228 = vst.msk [vmem:[#allocation2 + $0x10] sm:$0x3] %vm227, 0.0
        %229 = vst.msk [vmem:[#allocation2 + $0x18] sm:$0xff] %vm224, 0.0
        %230 = vst.msk [vmem:[#allocation2 + $0x20] sm:$0xff] %vm224, 0.0
        %231 = vst.msk [vmem:[#allocation2 + $0x28] sm:$0x3] %vm227, 0.0
        %232 = vst.msk [vmem:[#allocation2 + $0x30] sm:$0xff] %vm224, 0.0
        %233 = vst.msk [vmem:[#allocation2 + $0x38] sm:$0xff] %vm224, 0.0
        %234 = vst.msk [vmem:[#allocation2 + $0x40] sm:$0x3] %vm227, 0.0
        %235 = vst.msk [vmem:[#allocation2 + $0x48] sm:$0xff] %vm224, 0.0
        %236 = vst.msk [vmem:[#allocation2 + $0x50] sm:$0xff] %vm224, 0.0
        %237 = vst.msk [vmem:[#allocation2 + $0x58] sm:$0x3] %vm227, 0.0
        %238 = vst.msk [vmem:[#allocation2 + $0x60] sm:$0xff] %vm224, 0.0
        %239 = vst.msk [vmem:[#allocation2 + $0x68] sm:$0xff] %vm224, 0.0
        %240 = vst.msk [vmem:[#allocation2 + $0x70] sm:$0x3] %vm227, 0.0
        %241 = vst.msk [vmem:[#allocation2 + $0x78] sm:$0xff] %vm224, 0.0
        %242 = vst.msk [vmem:[#allocation2 + $0x80] sm:$0xff] %vm224, 0.0
        %243 = vst.msk [vmem:[#allocation2 + $0x88] sm:$0x3] %vm227, 0.0
        %244 = vst.msk [vmem:[#allocation2 + $0x90] sm:$0xff] %vm224, 0.0
        %245 = vst.msk [vmem:[#allocation2 + $0x98] sm:$0xff] %vm224, 0.0
        %246 = vst.msk [vmem:[#allocation2 + $0xa0] sm:$0x3] %vm227, 0.0
        %247 = vst.msk [vmem:[#allocation2 + $0xa8] sm:$0xff] %vm224, 0.0
        %248 = vst.msk [vmem:[#allocation2 + $0xb0] sm:$0xff] %vm224, 0.0
        %249 = vst.msk [vmem:[#allocation2 + $0xb8] sm:$0x3] %vm227, 0.0
        %250 = vst.msk [vmem:[#allocation2 + $0xc0] sm:$0xff] %vm224, 0.0
        %251 = vst.msk [vmem:[#allocation2 + $0xc8] sm:$0xff] %vm224, 0.0
        %252 = vst.msk [vmem:[#allocation2 + $0xd0] sm:$0x3] %vm227, 0.0
        %253 = vst.msk [vmem:[#allocation2 + $0xd8] sm:$0xff] %vm224, 0.0
        %254 = vst.msk [vmem:[#allocation2 + $0xe0] sm:$0xff] %vm224, 0.0
        %255 = vst.msk [vmem:[#allocation2 + $0xe8] sm:$0x3] %vm227, 0.0
        %256 = vst.msk [vmem:[#allocation2 + $0xf0] sm:$0xff] %vm224, 0.0
        %257 = vst.msk [vmem:[#allocation2 + $0xf8] sm:$0xff] %vm224, 0.0
        %258 = vst.msk [vmem:[#allocation2 + $0x100] sm:$0x3] %vm227, 0.0
        %259 = vst.msk [vmem:[#allocation2 + $0x108] sm:$0xff] %vm224, 0.0
        %260 = vst.msk [vmem:[#allocation2 + $0x110] sm:$0xff] %vm224, 0.0
        %261 = vst.msk [vmem:[#allocation2 + $0x118] sm:$0x3] %vm227, 0.0
        %262 = vst.msk [vmem:[#allocation2 + $0x120] sm:$0xff] %vm224, 0.0
        %263 = vst.msk [vmem:[#allocation2 + $0x128] sm:$0xff] %vm224, 0.0
        %264 = vst.msk [vmem:[#allocation2 + $0x130] sm:$0x3] %vm227, 0.0
        %265 = vst.msk [vmem:[#allocation2 + $0x138] sm:$0xff] %vm224, 0.0
        %266 = vst.msk [vmem:[#allocation2 + $0x140] sm:$0xff] %vm224, 0.0
        %267 = vst.msk [vmem:[#allocation2 + $0x148] sm:$0x3] %vm227, 0.0
        %268 = vst.msk [vmem:[#allocation2 + $0x150] sm:$0xff] %vm224, 0.0
        %269 = vst.msk [vmem:[#allocation2 + $0x158] sm:$0xff] %vm224, 0.0
        %270 = vst.msk [vmem:[#allocation2 + $0x160] sm:$0x3] %vm227, 0.0
        %271 = vst.msk [vmem:[#allocation2 + $0x168] sm:$0xff] %vm224, 0.0
        %272 = vst.msk [vmem:[#allocation2 + $0x170] sm:$0xff] %vm224, 0.0
        %273 = vst.msk [vmem:[#allocation2 + $0x178] sm:$0x3] %vm227, 0.0
        %274 = vst.msk [vmem:[#allocation2 + $0x180] sm:$0xff] %vm224, 0.0
        %275 = vst.msk [vmem:[#allocation2 + $0x188] sm:$0xff] %vm224, 0.0
        %276 = vst.msk [vmem:[#allocation2 + $0x190] sm:$0x3] %vm227, 0.0
        %277 = vst.msk [vmem:[#allocation2 + $0x198] sm:$0xff] %vm224, 0.0
        %278 = vst.msk [vmem:[#allocation2 + $0x1a0] sm:$0xff] %vm224, 0.0
        %279 = vst.msk [vmem:[#allocation2 + $0x1a8] sm:$0x3] %vm227, 0.0
        %v280 = vld [vmem:[%s222] sm:$0xff]
        %v281 = vld [vmem:[%s222 + $0x8] sm:$0xff]
        %v282 = vld [vmem:[%s222 + $0x10] sm:$0xff]
        %v283 = vld [vmem:[%s222 + $0x18] sm:$0xff]
        %v284 = vld [vmem:[%s222 + $0x20] sm:$0xff]
        %v285 = vld [vmem:[%s222 + $0x28] sm:$0xff]
        %v286 = vld [vmem:[%s222 + $0x30] sm:$0xff]
        %v287 = vld [vmem:[%s222 + $0x38] sm:$0xff]
        %v288 = vld [vmem:[%s222 + $0x40] sm:$0xff]
        %v289 = vld [vmem:[%s222 + $0x48] sm:$0xff]
        %v290 = vld [vmem:[%s222 + $0x50] sm:$0xff]
        %v291 = vld [vmem:[%s222 + $0x58] sm:$0xff]
        %v292 = vld [vmem:[%s222 + $0x60] sm:$0xff]
        %v293 = vld [vmem:[%s222 + $0x68] sm:$0xff]
        %v294 = vld [vmem:[%s222 + $0x70] sm:$0xff]
        %v295 = vld [vmem:[%s222 + $0x78] sm:$0xff]
        %v296 = vld [vmem:[%s222 + $0x80] sm:$0xff]
        %v297 = vld [vmem:[%s222 + $0x88] sm:$0xff]
        %v298 = vld [vmem:[%s222 + $0x90] sm:$0xff]
        %v299 = vld [vmem:[%s222 + $0x98] sm:$0xff]
        %v300 = vld [vmem:[%s222 + $0xa0] sm:$0xff]
        %v301 = vld [vmem:[%s222 + $0xa8] sm:$0xff]
        %v302 = vld [vmem:[%s222 + $0xb0] sm:$0xff]
        %v303 = vld [vmem:[%s222 + $0xb8] sm:$0xff]
        %v304 = vld [vmem:[%s222 + $0xc0] sm:$0xff]
        %v305 = vld [vmem:[%s222 + $0xc8] sm:$0xff]
        %v306 = vld [vmem:[%s222 + $0xd0] sm:$0xff]
        %v307 = vld [vmem:[%s222 + $0xd8] sm:$0xff]
        %v308 = vld [vmem:[%s222 + $0xe0] sm:$0xff]
        %v309 = vld [vmem:[%s222 + $0xe8] sm:$0xff]
        %v310 = vld [vmem:[%s222 + $0xf0] sm:$0xff]
        %v311 = vld [vmem:[%s222 + $0xf8] sm:$0xff]
        %s312 = scalar_lea.vmem [#allocation2], 24
        %313 = vst.msk [vmem:[%s312 + $0x1] sm:$0xff] %vm224, %v280
        %314 = vst.msk [vmem:[%s312 + $0x9] sm:$0xff] %vm224, %v281
        %315 = vst.msk [vmem:[%s312 + $0x19] sm:$0xff] %vm224, %v282
        %316 = vst.msk [vmem:[%s312 + $0x21] sm:$0xff] %vm224, %v283
        %317 = vst.msk [vmem:[%s312 + $0x31] sm:$0xff] %vm224, %v284
        %318 = vst.msk [vmem:[%s312 + $0x39] sm:$0xff] %vm224, %v285
        %319 = vst.msk [vmem:[%s312 + $0x49] sm:$0xff] %vm224, %v286
        %320 = vst.msk [vmem:[%s312 + $0x51] sm:$0xff] %vm224, %v287
        %321 = vst.msk [vmem:[%s312 + $0x61] sm:$0xff] %vm224, %v288
        %322 = vst.msk [vmem:[%s312 + $0x69] sm:$0xff] %vm224, %v289
        %323 = vst.msk [vmem:[%s312 + $0x79] sm:$0xff] %vm224, %v290
        %324 = vst.msk [vmem:[%s312 + $0x81] sm:$0xff] %vm224, %v291
        %325 = vst.msk [vmem:[%s312 + $0x91] sm:$0xff] %vm224, %v292
        %326 = vst.msk [vmem:[%s312 + $0x99] sm:$0xff] %vm224, %v293
        %327 = vst.msk [vmem:[%s312 + $0xa9] sm:$0xff] %vm224, %v294
        %328 = vst.msk [vmem:[%s312 + $0xb1] sm:$0xff] %vm224, %v295
        %329 = vst.msk [vmem:[%s312 + $0xc1] sm:$0xff] %vm224, %v296
        %330 = vst.msk [vmem:[%s312 + $0xc9] sm:$0xff] %vm224, %v297
        %331 = vst.msk [vmem:[%s312 + $0xd9] sm:$0xff] %vm224, %v298
        %332 = vst.msk [vmem:[%s312 + $0xe1] sm:$0xff] %vm224, %v299
        %333 = vst.msk [vmem:[%s312 + $0xf1] sm:$0xff] %vm224, %v300
        %334 = vst.msk [vmem:[%s312 + $0xf9] sm:$0xff] %vm224, %v301
        %335 = vst.msk [vmem:[%s312 + $0x109] sm:$0xff] %vm224, %v302
        %336 = vst.msk [vmem:[%s312 + $0x111] sm:$0xff] %vm224, %v303
        %337 = vst.msk [vmem:[%s312 + $0x121] sm:$0xff] %vm224, %v304
        %338 = vst.msk [vmem:[%s312 + $0x129] sm:$0xff] %vm224, %v305
        %339 = vst.msk [vmem:[%s312 + $0x139] sm:$0xff] %vm224, %v306
        %340 = vst.msk [vmem:[%s312 + $0x141] sm:$0xff] %vm224, %v307
        %341 = vst.msk [vmem:[%s312 + $0x151] sm:$0xff] %vm224, %v308
        %342 = vst.msk [vmem:[%s312 + $0x159] sm:$0xff] %vm224, %v309
        %343 = vst.msk [vmem:[%s312 + $0x169] sm:$0xff] %vm224, %v310
        %344 = vst.msk [vmem:[%s312 + $0x171] sm:$0xff] %vm224, %v311
        %v345 = vld [vmem:[#allocation2] sm:$0xff]
        %v346 = vld [vmem:[#allocation2 + $0x8] sm:$0xff]
        %v347 = vld [vmem:[#allocation2 + $0x18] sm:$0xff]
        %v348 = vld [vmem:[#allocation2 + $0x20] sm:$0xff]
        %v349 = vld [vmem:[#allocation2 + $0x30] sm:$0xff]
        %v350 = vld [vmem:[#allocation2 + $0x38] sm:$0xff]
        %v351 = vld [vmem:[#allocation2 + $0x48] sm:$0xff]
        %v352 = vld [vmem:[#allocation2 + $0x50] sm:$0xff]
        %v353 = vld [vmem:[#allocation2 + $0x60] sm:$0xff]
        %v354 = vld [vmem:[#allocation2 + $0x68] sm:$0xff]
        %v355 = vld [vmem:[#allocation2 + $0x78] sm:$0xff]
        %v356 = vld [vmem:[#allocation2 + $0x80] sm:$0xff]
        %v357 = vld [vmem:[#allocation2 + $0x90] sm:$0xff]
        %v358 = vld [vmem:[#allocation2 + $0x98] sm:$0xff]
        %v359 = vld [vmem:[#allocation2 + $0xa8] sm:$0xff]
        %v360 = vld [vmem:[#allocation2 + $0xb0] sm:$0xff]
        %v361 = vld [vmem:[#allocation2 + $0xc0] sm:$0xff]
        %v362 = vld [vmem:[#allocation2 + $0xc8] sm:$0xff]
        %v363 = vld [vmem:[#allocation2 + $0xd8] sm:$0xff]
        %v364 = vld [vmem:[#allocation2 + $0xe0] sm:$0xff]
        %v365 = vld [vmem:[#allocation2 + $0xf0] sm:$0xff]
        %v366 = vld [vmem:[#allocation2 + $0xf8] sm:$0xff]
        %v367 = vld [vmem:[#allocation2 + $0x108] sm:$0xff]
        %v368 = vld [vmem:[#allocation2 + $0x110] sm:$0xff]
        %v369 = vld [vmem:[#allocation2 + $0x120] sm:$0xff]
        %v370 = vld [vmem:[#allocation2 + $0x128] sm:$0xff]
        %v371 = vld [vmem:[#allocation2 + $0x138] sm:$0xff]
        %v372 = vld [vmem:[#allocation2 + $0x140] sm:$0xff]
        %v373 = vld [vmem:[#allocation2 + $0x150] sm:$0xff]
        %v374 = vld [vmem:[#allocation2 + $0x158] sm:$0xff]
        %v375 = vld [vmem:[#allocation2 + $0x168] sm:$0xff]
        %v376 = vld [vmem:[#allocation2 + $0x170] sm:$0xff]
        %v377 = vpack.c.bf16 %v346, %v345
        %v378 = vpack.c.bf16 %v348, %v347
        %v379 = vpack.c.bf16 %v350, %v349
        %v380 = vpack.c.bf16 %v352, %v351
        %v381 = vpack.c.bf16 %v354, %v353
        %v382 = vpack.c.bf16 %v356, %v355
        %v383 = vpack.c.bf16 %v358, %v357
        %v384 = vpack.c.bf16 %v360, %v359
        %v385 = vpack.c.bf16 %v362, %v361
        %v386 = vpack.c.bf16 %v364, %v363
        %v387 = vpack.c.bf16 %v366, %v365
        %v388 = vpack.c.bf16 %v368, %v367
        %v389 = vpack.c.bf16 %v370, %v369
        %v390 = vpack.c.bf16 %v372, %v371
        %v391 = vpack.c.bf16 %v374, %v373
        %v392 = vpack.c.bf16 %v376, %v375
        %v393 = vld [vmem:[%s1] sm:$0x3]
        %v394 = vld [vmem:[#allocation2 + $0x1] sm:$0xff]
        %v395 = vld [vmem:[#allocation2 + $0x9] sm:$0xff]
        %v396 = vld [vmem:[#allocation2 + $0x19] sm:$0xff]
        %v397 = vld [vmem:[#allocation2 + $0x21] sm:$0xff]
        %v398 = vld [vmem:[#allocation2 + $0x31] sm:$0xff]
        %v399 = vld [vmem:[#allocation2 + $0x39] sm:$0xff]
        %v400 = vld [vmem:[#allocation2 + $0x49] sm:$0xff]
        %v401 = vld [vmem:[#allocation2 + $0x51] sm:$0xff]
        %v402 = vld [vmem:[#allocation2 + $0x61] sm:$0xff]
        %v403 = vld [vmem:[#allocation2 + $0x69] sm:$0xff]
        %v404 = vld [vmem:[#allocation2 + $0x79] sm:$0xff]
        %v405 = vld [vmem:[#allocation2 + $0x81] sm:$0xff]
        %v406 = vld [vmem:[#allocation2 + $0x91] sm:$0xff]
        %v407 = vld [vmem:[#allocation2 + $0x99] sm:$0xff]
        %v408 = vld [vmem:[#allocation2 + $0xa9] sm:$0xff]
        %v409 = vld [vmem:[#allocation2 + $0xb1] sm:$0xff]
        %v410 = vld [vmem:[#allocation2 + $0xc1] sm:$0xff]
        %v411 = vld [vmem:[#allocation2 + $0xc9] sm:$0xff]
        %v412 = vld [vmem:[#allocation2 + $0xd9] sm:$0xff]
        %v413 = vld [vmem:[#allocation2 + $0xe1] sm:$0xff]
        %v414 = vld [vmem:[#allocation2 + $0xf1] sm:$0xff]
        %v415 = vld [vmem:[#allocation2 + $0xf9] sm:$0xff]
        %v416 = vld [vmem:[#allocation2 + $0x109] sm:$0xff]
        %v417 = vld [vmem:[#allocation2 + $0x111] sm:$0xff]
        %v418 = vld [vmem:[#allocation2 + $0x121] sm:$0xff]
        %v419 = vld [vmem:[#allocation2 + $0x129] sm:$0xff]
        %v420 = vld [vmem:[#allocation2 + $0x139] sm:$0xff]
        %v421 = vld [vmem:[#allocation2 + $0x141] sm:$0xff]
        %v422 = vld [vmem:[#allocation2 + $0x151] sm:$0xff]
        %v423 = vld [vmem:[#allocation2 + $0x159] sm:$0xff]
        %v424 = vld [vmem:[#allocation2 + $0x169] sm:$0xff]
        %v425 = vld [vmem:[#allocation2 + $0x171] sm:$0xff]
        %v426 = vpack.c.bf16 %v395, %v394
        %v427 = vpack.c.bf16 %v397, %v396
        %v428 = vpack.c.bf16 %v399, %v398
        %v429 = vpack.c.bf16 %v401, %v400
        %v430 = vpack.c.bf16 %v403, %v402
        %v431 = vpack.c.bf16 %v405, %v404
        %v432 = vpack.c.bf16 %v407, %v406
        %v433 = vpack.c.bf16 %v409, %v408
        %v434 = vpack.c.bf16 %v411, %v410
        %v435 = vpack.c.bf16 %v413, %v412
        %v436 = vpack.c.bf16 %v415, %v414
        %v437 = vpack.c.bf16 %v417, %v416
        %v438 = vpack.c.bf16 %v419, %v418
        %v439 = vpack.c.bf16 %v421, %v420
        %v440 = vpack.c.bf16 %v423, %v422
        %v441 = vpack.c.bf16 %v425, %v424
        %s442 = scalar_lea.vmem %s1, 2
        %v443 = vld [vmem:[%s442] sm:$0x3]
        %v445 = vsel %vm224, %v426, 0
        %v448 = vsel %vm224, %v427, 0
        %v451 = vsel %vm224, %v428, 0
        %v454 = vsel %vm224, %v429, 0
        %v457 = vsel %vm224, %v430, 0
        %v460 = vsel %vm224, %v431, 0
        %v463 = vsel %vm224, %v432, 0
        %v466 = vsel %vm224, %v433, 0
        %v469 = vsel %vm224, %v434, 0
        %v472 = vsel %vm224, %v435, 0
        %v475 = vsel %vm224, %v436, 0
        %v478 = vsel %vm224, %v437, 0
        %v481 = vsel %vm224, %v438, 0
        %v484 = vsel %vm224, %v439, 0
        %v487 = vsel %vm224, %v440, 0
        %v490 = vsel %vm224, %v441, 0
        %vm492 = vcmask 1041408
        %v494 = vsel %vm492, %v443, 0
        %496 = vmatpush.bf16.msra.mxu0 0
        %497 = vmatpush.bf16.msra.mxu0 0
        %498 = vmatpush.bf16.msra.mxu0 0
        %499 = vmatpush.bf16.msra.mxu0 0
        %500 = vmatpush.bf16.msra.mxu0 0
        %501 = vmatpush.bf16.msra.mxu0 0
        %502 = vmatpush.bf16.msra.mxu0 0
        %503 = vmatpush.bf16.msra.mxu0 %v494
        %504 = vmatmul.bf16.gmra.mxu0 %v445
        %v505 = vpop.f32.mrf.mxu0
        %v506 = vadd.f32 0.0, %v505
        %v507 = vpop.f32.mrf.mxu0
        %v508 = vadd.f32 0.0, %v507
        %509 = vmatmul.bf16.gmra.mxu0 %v448
        %v510 = vpop.f32.mrf.mxu0
        %v511 = vadd.f32 0.0, %v510
        %v512 = vpop.f32.mrf.mxu0
        %v513 = vadd.f32 0.0, %v512
        %514 = vmatmul.bf16.gmra.mxu0 %v451
        %v515 = vpop.f32.mrf.mxu0
        %v516 = vadd.f32 0.0, %v515
        %v517 = vpop.f32.mrf.mxu0
        %v518 = vadd.f32 0.0, %v517
        %519 = vmatmul.bf16.gmra.mxu0 %v454
        %v520 = vpop.f32.mrf.mxu0
        %v521 = vadd.f32 0.0, %v520
        %v522 = vpop.f32.mrf.mxu0
        %v523 = vadd.f32 0.0, %v522
        %524 = vmatmul.bf16.gmra.mxu0 %v457
        %v525 = vpop.f32.mrf.mxu0
        %v526 = vadd.f32 0.0, %v525
        %v527 = vpop.f32.mrf.mxu0
        %v528 = vadd.f32 0.0, %v527
        %529 = vmatmul.bf16.gmra.mxu0 %v460
        %v530 = vpop.f32.mrf.mxu0
        %v531 = vadd.f32 0.0, %v530
        %v532 = vpop.f32.mrf.mxu0
        %v533 = vadd.f32 0.0, %v532
        %534 = vmatmul.bf16.gmra.mxu0 %v463
        %v535 = vpop.f32.mrf.mxu0
        %v536 = vadd.f32 0.0, %v535
        %v537 = vpop.f32.mrf.mxu0
        %v538 = vadd.f32 0.0, %v537
        %539 = vmatmul.bf16.gmra.mxu0 %v466
        %v540 = vpop.f32.mrf.mxu0
        %v541 = vadd.f32 0.0, %v540
        %v542 = vpop.f32.mrf.mxu0
        %v543 = vadd.f32 0.0, %v542
        %544 = vmatmul.bf16.gmra.mxu0 %v469
        %v545 = vpop.f32.mrf.mxu0
        %v546 = vadd.f32 0.0, %v545
        %v547 = vpop.f32.mrf.mxu0
        %v548 = vadd.f32 0.0, %v547
        %549 = vmatmul.bf16.gmra.mxu0 %v472
        %v550 = vpop.f32.mrf.mxu0
        %v551 = vadd.f32 0.0, %v550
        %v552 = vpop.f32.mrf.mxu0
        %v553 = vadd.f32 0.0, %v552
        %554 = vmatmul.bf16.gmra.mxu0 %v475
        %v555 = vpop.f32.mrf.mxu0
        %v556 = vadd.f32 0.0, %v555
        %v557 = vpop.f32.mrf.mxu0
        %v558 = vadd.f32 0.0, %v557
        %559 = vmatmul.bf16.gmra.mxu0 %v478
        %v560 = vpop.f32.mrf.mxu0
        %v561 = vadd.f32 0.0, %v560
        %v562 = vpop.f32.mrf.mxu0
        %v563 = vadd.f32 0.0, %v562
        %564 = vmatmul.bf16.gmra.mxu0 %v481
        %v565 = vpop.f32.mrf.mxu0
        %v566 = vadd.f32 0.0, %v565
        %v567 = vpop.f32.mrf.mxu0
        %v568 = vadd.f32 0.0, %v567
        %569 = vmatmul.bf16.gmra.mxu0 %v484
        %v570 = vpop.f32.mrf.mxu0
        %v571 = vadd.f32 0.0, %v570
        %v572 = vpop.f32.mrf.mxu0
        %v573 = vadd.f32 0.0, %v572
        %574 = vmatmul.bf16.gmra.mxu0 %v487
        %v575 = vpop.f32.mrf.mxu0
        %v576 = vadd.f32 0.0, %v575
        %v577 = vpop.f32.mrf.mxu0
        %v578 = vadd.f32 0.0, %v577
        %579 = vmatmul.bf16.gmra.mxu0 %v490
        %v580 = vpop.f32.mrf.mxu0
        %v581 = vadd.f32 0.0, %v580
        %v582 = vpop.f32.mrf.mxu0
        %v583 = vadd.f32 0.0, %v582
        %584 = vdwg.mxu0
        %v586 = vsel %vm224, %v377, 0
        %v589 = vsel %vm224, %v378, 0
        %v592 = vsel %vm224, %v379, 0
        %v595 = vsel %vm224, %v380, 0
        %v598 = vsel %vm224, %v381, 0
        %v601 = vsel %vm224, %v382, 0
        %v604 = vsel %vm224, %v383, 0
        %v607 = vsel %vm224, %v384, 0
        %v610 = vsel %vm224, %v385, 0
        %v613 = vsel %vm224, %v386, 0
        %v616 = vsel %vm224, %v387, 0
        %v619 = vsel %vm224, %v388, 0
        %v622 = vsel %vm224, %v389, 0
        %v625 = vsel %vm224, %v390, 0
        %v628 = vsel %vm224, %v391, 0
        %v631 = vsel %vm224, %v392, 0
        %v634 = vsel %vm492, %v393, 0
        %636 = vmatpush.bf16.msra.mxu0 0
        %637 = vmatpush.bf16.msra.mxu0 0
        %638 = vmatpush.bf16.msra.mxu0 0
        %639 = vmatpush.bf16.msra.mxu0 0
        %640 = vmatpush.bf16.msra.mxu0 0
        %641 = vmatpush.bf16.msra.mxu0 0
        %642 = vmatpush.bf16.msra.mxu0 0
        %643 = vmatpush.bf16.msra.mxu0 %v634
        %644 = vmatmul.bf16.gmra.mxu0 %v586
        %v645 = vpop.f32.mrf.mxu0
        %v646 = vadd.f32 %v506, %v645
        %v647 = vpop.f32.mrf.mxu0
        %v648 = vadd.f32 %v508, %v647
        %649 = vmatmul.bf16.gmra.mxu0 %v589
        %v650 = vpop.f32.mrf.mxu0
        %v651 = vadd.f32 %v511, %v650
        %v652 = vpop.f32.mrf.mxu0
        %v653 = vadd.f32 %v513, %v652
        %654 = vmatmul.bf16.gmra.mxu0 %v592
        %v655 = vpop.f32.mrf.mxu0
        %v656 = vadd.f32 %v516, %v655
        %v657 = vpop.f32.mrf.mxu0
        %v658 = vadd.f32 %v518, %v657
        %659 = vmatmul.bf16.gmra.mxu0 %v595
        %v660 = vpop.f32.mrf.mxu0
        %v661 = vadd.f32 %v521, %v660
        %v662 = vpop.f32.mrf.mxu0
        %v663 = vadd.f32 %v523, %v662
        %664 = vmatmul.bf16.gmra.mxu0 %v598
        %v665 = vpop.f32.mrf.mxu0
        %v666 = vadd.f32 %v526, %v665
        %v667 = vpop.f32.mrf.mxu0
        %v668 = vadd.f32 %v528, %v667
        %669 = vmatmul.bf16.gmra.mxu0 %v601
        %v670 = vpop.f32.mrf.mxu0
        %v671 = vadd.f32 %v531, %v670
        %v672 = vpop.f32.mrf.mxu0
        %v673 = vadd.f32 %v533, %v672
        %674 = vmatmul.bf16.gmra.mxu0 %v604
        %v675 = vpop.f32.mrf.mxu0
        %v676 = vadd.f32 %v536, %v675
        %v677 = vpop.f32.mrf.mxu0
        %v678 = vadd.f32 %v538, %v677
        %679 = vmatmul.bf16.gmra.mxu0 %v607
        %v680 = vpop.f32.mrf.mxu0
        %v681 = vadd.f32 %v541, %v680
        %v682 = vpop.f32.mrf.mxu0
        %v683 = vadd.f32 %v543, %v682
        %684 = vmatmul.bf16.gmra.mxu0 %v610
        %v685 = vpop.f32.mrf.mxu0
        %v686 = vadd.f32 %v546, %v685
        %v687 = vpop.f32.mrf.mxu0
        %v688 = vadd.f32 %v548, %v687
        %689 = vmatmul.bf16.gmra.mxu0 %v613
        %v690 = vpop.f32.mrf.mxu0
        %v691 = vadd.f32 %v551, %v690
        %v692 = vpop.f32.mrf.mxu0
        %v693 = vadd.f32 %v553, %v692
        %694 = vmatmul.bf16.gmra.mxu0 %v616
        %v695 = vpop.f32.mrf.mxu0
        %v696 = vadd.f32 %v556, %v695
        %v697 = vpop.f32.mrf.mxu0
        %v698 = vadd.f32 %v558, %v697
        %699 = vmatmul.bf16.gmra.mxu0 %v619
        %v700 = vpop.f32.mrf.mxu0
        %v701 = vadd.f32 %v561, %v700
        %v702 = vpop.f32.mrf.mxu0
        %v703 = vadd.f32 %v563, %v702
        %704 = vmatmul.bf16.gmra.mxu0 %v622
        %v705 = vpop.f32.mrf.mxu0
        %v706 = vadd.f32 %v566, %v705
        %v707 = vpop.f32.mrf.mxu0
        %v708 = vadd.f32 %v568, %v707
        %709 = vmatmul.bf16.gmra.mxu0 %v625
        %v710 = vpop.f32.mrf.mxu0
        %v711 = vadd.f32 %v571, %v710
        %v712 = vpop.f32.mrf.mxu0
        %v713 = vadd.f32 %v573, %v712
        %714 = vmatmul.bf16.gmra.mxu0 %v628
        %v715 = vpop.f32.mrf.mxu0
        %v716 = vadd.f32 %v576, %v715
        %v717 = vpop.f32.mrf.mxu0
        %v718 = vadd.f32 %v578, %v717
        %719 = vmatmul.bf16.gmra.mxu0 %v631
        %v720 = vpop.f32.mrf.mxu0
        %v721 = vadd.f32 %v581, %v720
        %v722 = vpop.f32.mrf.mxu0
        %v723 = vadd.f32 %v583, %v722
        %724 = vdwg.mxu0
        %v725 = vld [vmem:[#allocation2 + $0x2] sm:$0xff]
        %v726 = vld [vmem:[#allocation2 + $0xa] sm:$0xff]
        %v727 = vld [vmem:[#allocation2 + $0x1a] sm:$0xff]
        %v728 = vld [vmem:[#allocation2 + $0x22] sm:$0xff]
        %v729 = vld [vmem:[#allocation2 + $0x32] sm:$0xff]
        %v730 = vld [vmem:[#allocation2 + $0x3a] sm:$0xff]
        %v731 = vld [vmem:[#allocation2 + $0x4a] sm:$0xff]
        %v732 = vld [vmem:[#allocation2 + $0x52] sm:$0xff]
        %v733 = vld [vmem:[#allocation2 + $0x62] sm:$0xff]
        %v734 = vld [vmem:[#allocation2 + $0x6a] sm:$0xff]
        %v735 = vld [vmem:[#allocation2 + $0x7a] sm:$0xff]
        %v736 = vld [vmem:[#allocation2 + $0x82] sm:$0xff]
        %v737 = vld [vmem:[#allocation2 + $0x92] sm:$0xff]
        %v738 = vld [vmem:[#allocation2 + $0x9a] sm:$0xff]
        %v739 = vld [vmem:[#allocation2 + $0xaa] sm:$0xff]
        %v740 = vld [vmem:[#allocation2 + $0xb2] sm:$0xff]
        %v741 = vld [vmem:[#allocation2 + $0xc2] sm:$0xff]
        %v742 = vld [vmem:[#allocation2 + $0xca] sm:$0xff]
        %v743 = vld [vmem:[#allocation2 + $0xda] sm:$0xff]
        %v744 = vld [vmem:[#allocation2 + $0xe2] sm:$0xff]
        %v745 = vld [vmem:[#allocation2 + $0xf2] sm:$0xff]
        %v746 = vld [vmem:[#allocation2 + $0xfa] sm:$0xff]
        %v747 = vld [vmem:[#allocation2 + $0x10a] sm:$0xff]
        %v748 = vld [vmem:[#allocation2 + $0x112] sm:$0xff]
        %v749 = vld [vmem:[#allocation2 + $0x122] sm:$0xff]
        %v750 = vld [vmem:[#allocation2 + $0x12a] sm:$0xff]
        %v751 = vld [vmem:[#allocation2 + $0x13a] sm:$0xff]
        %v752 = vld [vmem:[#allocation2 + $0x142] sm:$0xff]
        %v753 = vld [vmem:[#allocation2 + $0x152] sm:$0xff]
        %v754 = vld [vmem:[#allocation2 + $0x15a] sm:$0xff]
        %v755 = vld [vmem:[#allocation2 + $0x16a] sm:$0xff]
        %v756 = vld [vmem:[#allocation2 + $0x172] sm:$0xff]
        %v757 = vpack.c.bf16 %v726, %v725
        %v758 = vpack.c.bf16 %v728, %v727
        %v759 = vpack.c.bf16 %v730, %v729
        %v760 = vpack.c.bf16 %v732, %v731
        %v761 = vpack.c.bf16 %v734, %v733
        %v762 = vpack.c.bf16 %v736, %v735
        %v763 = vpack.c.bf16 %v738, %v737
        %v764 = vpack.c.bf16 %v740, %v739
        %v765 = vpack.c.bf16 %v742, %v741
        %v766 = vpack.c.bf16 %v744, %v743
        %v767 = vpack.c.bf16 %v746, %v745
        %v768 = vpack.c.bf16 %v748, %v747
        %v769 = vpack.c.bf16 %v750, %v749
        %v770 = vpack.c.bf16 %v752, %v751
        %v771 = vpack.c.bf16 %v754, %v753
        %v772 = vpack.c.bf16 %v756, %v755
        %s773 = scalar_lea.vmem %s1, 4
        %v774 = vld [vmem:[%s773] sm:$0x3]
        %v776 = vsel %vm224, %v757, 0
        %v779 = vsel %vm224, %v758, 0
        %v782 = vsel %vm224, %v759, 0
        %v785 = vsel %vm224, %v760, 0
        %v788 = vsel %vm224, %v761, 0
        %v791 = vsel %vm224, %v762, 0
        %v794 = vsel %vm224, %v763, 0
        %v797 = vsel %vm224, %v764, 0
        %v800 = vsel %vm224, %v765, 0
        %v803 = vsel %vm224, %v766, 0
        %v806 = vsel %vm224, %v767, 0
        %v809 = vsel %vm224, %v768, 0
        %v812 = vsel %vm224, %v769, 0
        %v815 = vsel %vm224, %v770, 0
        %v818 = vsel %vm224, %v771, 0
        %v821 = vsel %vm224, %v772, 0
        %v824 = vsel %vm492, %v774, 0
        %826 = vmatpush.bf16.msra.mxu0 0
        %827 = vmatpush.bf16.msra.mxu0 0
        %828 = vmatpush.bf16.msra.mxu0 0
        %829 = vmatpush.bf16.msra.mxu0 0
        %830 = vmatpush.bf16.msra.mxu0 0
        %831 = vmatpush.bf16.msra.mxu0 0
        %832 = vmatpush.bf16.msra.mxu0 0
        %833 = vmatpush.bf16.msra.mxu0 %v824
        %834 = vmatmul.bf16.gmra.mxu0 %v776
        %v835 = vpop.f32.mrf.mxu0
        %v836 = vadd.f32 0.0, %v835
        %v837 = vpop.f32.mrf.mxu0
        %v838 = vadd.f32 0.0, %v837
        %839 = vmatmul.bf16.gmra.mxu0 %v779
        %v840 = vpop.f32.mrf.mxu0
        %v841 = vadd.f32 0.0, %v840
        %v842 = vpop.f32.mrf.mxu0
        %v843 = vadd.f32 0.0, %v842
        %844 = vmatmul.bf16.gmra.mxu0 %v782
        %v845 = vpop.f32.mrf.mxu0
        %v846 = vadd.f32 0.0, %v845
        %v847 = vpop.f32.mrf.mxu0
        %v848 = vadd.f32 0.0, %v847
        %849 = vmatmul.bf16.gmra.mxu0 %v785
        %v850 = vpop.f32.mrf.mxu0
        %v851 = vadd.f32 0.0, %v850
        %v852 = vpop.f32.mrf.mxu0
        %v853 = vadd.f32 0.0, %v852
        %854 = vmatmul.bf16.gmra.mxu0 %v788
        %v855 = vpop.f32.mrf.mxu0
        %v856 = vadd.f32 0.0, %v855
        %v857 = vpop.f32.mrf.mxu0
        %v858 = vadd.f32 0.0, %v857
        %859 = vmatmul.bf16.gmra.mxu0 %v791
        %v860 = vpop.f32.mrf.mxu0
        %v861 = vadd.f32 0.0, %v860
        %v862 = vpop.f32.mrf.mxu0
        %v863 = vadd.f32 0.0, %v862
        %864 = vmatmul.bf16.gmra.mxu0 %v794
        %v865 = vpop.f32.mrf.mxu0
        %v866 = vadd.f32 0.0, %v865
        %v867 = vpop.f32.mrf.mxu0
        %v868 = vadd.f32 0.0, %v867
        %869 = vmatmul.bf16.gmra.mxu0 %v797
        %v870 = vpop.f32.mrf.mxu0
        %v871 = vadd.f32 0.0, %v870
        %v872 = vpop.f32.mrf.mxu0
        %v873 = vadd.f32 0.0, %v872
        %874 = vmatmul.bf16.gmra.mxu0 %v800
        %v875 = vpop.f32.mrf.mxu0
        %v876 = vadd.f32 0.0, %v875
        %v877 = vpop.f32.mrf.mxu0
        %v878 = vadd.f32 0.0, %v877
        %879 = vmatmul.bf16.gmra.mxu0 %v803
        %v880 = vpop.f32.mrf.mxu0
        %v881 = vadd.f32 0.0, %v880
        %v882 = vpop.f32.mrf.mxu0
        %v883 = vadd.f32 0.0, %v882
        %884 = vmatmul.bf16.gmra.mxu0 %v806
        %v885 = vpop.f32.mrf.mxu0
        %v886 = vadd.f32 0.0, %v885
        %v887 = vpop.f32.mrf.mxu0
        %v888 = vadd.f32 0.0, %v887
        %889 = vmatmul.bf16.gmra.mxu0 %v809
        %v890 = vpop.f32.mrf.mxu0
        %v891 = vadd.f32 0.0, %v890
        %v892 = vpop.f32.mrf.mxu0
        %v893 = vadd.f32 0.0, %v892
        %894 = vmatmul.bf16.gmra.mxu0 %v812
        %v895 = vpop.f32.mrf.mxu0
        %v896 = vadd.f32 0.0, %v895
        %v897 = vpop.f32.mrf.mxu0
        %v898 = vadd.f32 0.0, %v897
        %899 = vmatmul.bf16.gmra.mxu0 %v815
        %v900 = vpop.f32.mrf.mxu0
        %v901 = vadd.f32 0.0, %v900
        %v902 = vpop.f32.mrf.mxu0
        %v903 = vadd.f32 0.0, %v902
        %904 = vmatmul.bf16.gmra.mxu0 %v818
        %v905 = vpop.f32.mrf.mxu0
        %v906 = vadd.f32 0.0, %v905
        %v907 = vpop.f32.mrf.mxu0
        %v908 = vadd.f32 0.0, %v907
        %909 = vmatmul.bf16.gmra.mxu0 %v821
        %v910 = vpop.f32.mrf.mxu0
        %v911 = vadd.f32 0.0, %v910
        %v912 = vpop.f32.mrf.mxu0
        %v913 = vadd.f32 0.0, %v912
        %914 = vdwg.mxu0
        %v915 = vadd.f32 %v646, %v836
        %v916 = vadd.f32 %v648, %v838
        %v917 = vadd.f32 %v651, %v841
        %v918 = vadd.f32 %v653, %v843
        %v919 = vadd.f32 %v656, %v846
        %v920 = vadd.f32 %v658, %v848
        %v921 = vadd.f32 %v661, %v851
        %v922 = vadd.f32 %v663, %v853
        %v923 = vadd.f32 %v666, %v856
        %v924 = vadd.f32 %v668, %v858
        %v925 = vadd.f32 %v671, %v861
        %v926 = vadd.f32 %v673, %v863
        %v927 = vadd.f32 %v676, %v866
        %v928 = vadd.f32 %v678, %v868
        %v929 = vadd.f32 %v681, %v871
        %v930 = vadd.f32 %v683, %v873
        %v931 = vadd.f32 %v686, %v876
        %v932 = vadd.f32 %v688, %v878
        %v933 = vadd.f32 %v691, %v881
        %v934 = vadd.f32 %v693, %v883
        %v935 = vadd.f32 %v696, %v886
        %v936 = vadd.f32 %v698, %v888
        %v937 = vadd.f32 %v701, %v891
        %v938 = vadd.f32 %v703, %v893
        %v939 = vadd.f32 %v706, %v896
        %v940 = vadd.f32 %v708, %v898
        %v941 = vadd.f32 %v711, %v901
        %v942 = vadd.f32 %v713, %v903
        %v943 = vadd.f32 %v716, %v906
        %v944 = vadd.f32 %v718, %v908
        %v945 = vadd.f32 %v721, %v911
        %v946 = vadd.f32 %v723, %v913
        %v947 = vld [vmem:[%s312] sm:$0xff]
        %v948 = vld [vmem:[%s312 + $0x8] sm:$0xff]
        %v949 = vld [vmem:[%s312 + $0x18] sm:$0xff]
        %v950 = vld [vmem:[%s312 + $0x20] sm:$0xff]
        %v951 = vld [vmem:[%s312 + $0x30] sm:$0xff]
        %v952 = vld [vmem:[%s312 + $0x38] sm:$0xff]
        %v953 = vld [vmem:[%s312 + $0x48] sm:$0xff]
        %v954 = vld [vmem:[%s312 + $0x50] sm:$0xff]
        %v955 = vld [vmem:[%s312 + $0x60] sm:$0xff]
        %v956 = vld [vmem:[%s312 + $0x68] sm:$0xff]
        %v957 = vld [vmem:[%s312 + $0x78] sm:$0xff]
        %v958 = vld [vmem:[%s312 + $0x80] sm:$0xff]
        %v959 = vld [vmem:[%s312 + $0x90] sm:$0xff]
        %v960 = vld [vmem:[%s312 + $0x98] sm:$0xff]
        %v961 = vld [vmem:[%s312 + $0xa8] sm:$0xff]
        %v962 = vld [vmem:[%s312 + $0xb0] sm:$0xff]
        %v963 = vld [vmem:[%s312 + $0xc0] sm:$0xff]
        %v964 = vld [vmem:[%s312 + $0xc8] sm:$0xff]
        %v965 = vld [vmem:[%s312 + $0xd8] sm:$0xff]
        %v966 = vld [vmem:[%s312 + $0xe0] sm:$0xff]
        %v967 = vld [vmem:[%s312 + $0xf0] sm:$0xff]
        %v968 = vld [vmem:[%s312 + $0xf8] sm:$0xff]
        %v969 = vld [vmem:[%s312 + $0x108] sm:$0xff]
        %v970 = vld [vmem:[%s312 + $0x110] sm:$0xff]
        %v971 = vld [vmem:[%s312 + $0x120] sm:$0xff]
        %v972 = vld [vmem:[%s312 + $0x128] sm:$0xff]
        %v973 = vld [vmem:[%s312 + $0x138] sm:$0xff]
        %v974 = vld [vmem:[%s312 + $0x140] sm:$0xff]
        %v975 = vld [vmem:[%s312 + $0x150] sm:$0xff]
        %v976 = vld [vmem:[%s312 + $0x158] sm:$0xff]
        %v977 = vld [vmem:[%s312 + $0x168] sm:$0xff]
        %v978 = vld [vmem:[%s312 + $0x170] sm:$0xff]
        %v979 = vpack.c.bf16 %v948, %v947
        %v980 = vpack.c.bf16 %v950, %v949
        %v981 = vpack.c.bf16 %v952, %v951
        %v982 = vpack.c.bf16 %v954, %v953
        %v983 = vpack.c.bf16 %v956, %v955
        %v984 = vpack.c.bf16 %v958, %v957
        %v985 = vpack.c.bf16 %v960, %v959
        %v986 = vpack.c.bf16 %v962, %v961
        %v987 = vpack.c.bf16 %v964, %v963
        %v988 = vpack.c.bf16 %v966, %v965
        %v989 = vpack.c.bf16 %v968, %v967
        %v990 = vpack.c.bf16 %v970, %v969
        %v991 = vpack.c.bf16 %v972, %v971
        %v992 = vpack.c.bf16 %v974, %v973
        %v993 = vpack.c.bf16 %v976, %v975
        %v994 = vpack.c.bf16 %v978, %v977
        %s995 = scalar_lea.vmem %s1, 6
        %v996 = vld [vmem:[%s995] sm:$0x3]
        %v998 = vsel %vm224, %v979, 0
        %v1001 = vsel %vm224, %v980, 0
        %v1004 = vsel %vm224, %v981, 0
        %v1007 = vsel %vm224, %v982, 0
        %v1010 = vsel %vm224, %v983, 0
        %v1013 = vsel %vm224, %v984, 0
        %v1016 = vsel %vm224, %v985, 0
        %v1019 = vsel %vm224, %v986, 0
        %v1022 = vsel %vm224, %v987, 0
        %v1025 = vsel %vm224, %v988, 0
        %v1028 = vsel %vm224, %v989, 0
        %v1031 = vsel %vm224, %v990, 0
        %v1034 = vsel %vm224, %v991, 0
        %v1037 = vsel %vm224, %v992, 0
        %v1040 = vsel %vm224, %v993, 0
        %v1043 = vsel %vm224, %v994, 0
        %v1046 = vsel %vm492, %v996, 0
        %1048 = vmatpush.bf16.msra.mxu0 0
        %1049 = vmatpush.bf16.msra.mxu0 0
        %1050 = vmatpush.bf16.msra.mxu0 0
        %1051 = vmatpush.bf16.msra.mxu0 0
        %1052 = vmatpush.bf16.msra.mxu0 0
        %1053 = vmatpush.bf16.msra.mxu0 0
        %1054 = vmatpush.bf16.msra.mxu0 0
        %1055 = vmatpush.bf16.msra.mxu0 %v1046
        %1056 = vmatmul.bf16.gmra.mxu0 %v998
        %v1057 = vpop.f32.mrf.mxu0
        %v1058 = vadd.f32 0.0, %v1057
        %v1059 = vpop.f32.mrf.mxu0
        %v1060 = vadd.f32 0.0, %v1059
        %1061 = vmatmul.bf16.gmra.mxu0 %v1001
        %v1062 = vpop.f32.mrf.mxu0
        %v1063 = vadd.f32 0.0, %v1062
        %v1064 = vpop.f32.mrf.mxu0
        %v1065 = vadd.f32 0.0, %v1064
        %1066 = vmatmul.bf16.gmra.mxu0 %v1004
        %v1067 = vpop.f32.mrf.mxu0
        %v1068 = vadd.f32 0.0, %v1067
        %v1069 = vpop.f32.mrf.mxu0
        %v1070 = vadd.f32 0.0, %v1069
        %1071 = vmatmul.bf16.gmra.mxu0 %v1007
        %v1072 = vpop.f32.mrf.mxu0
        %v1073 = vadd.f32 0.0, %v1072
        %v1074 = vpop.f32.mrf.mxu0
        %v1075 = vadd.f32 0.0, %v1074
        %1076 = vmatmul.bf16.gmra.mxu0 %v1010
        %v1077 = vpop.f32.mrf.mxu0
        %v1078 = vadd.f32 0.0, %v1077
        %v1079 = vpop.f32.mrf.mxu0
        %v1080 = vadd.f32 0.0, %v1079
        %1081 = vmatmul.bf16.gmra.mxu0 %v1013
        %v1082 = vpop.f32.mrf.mxu0
        %v1083 = vadd.f32 0.0, %v1082
        %v1084 = vpop.f32.mrf.mxu0
        %v1085 = vadd.f32 0.0, %v1084
        %1086 = vmatmul.bf16.gmra.mxu0 %v1016
        %v1087 = vpop.f32.mrf.mxu0
        %v1088 = vadd.f32 0.0, %v1087
        %v1089 = vpop.f32.mrf.mxu0
        %v1090 = vadd.f32 0.0, %v1089
        %1091 = vmatmul.bf16.gmra.mxu0 %v1019
        %v1092 = vpop.f32.mrf.mxu0
        %v1093 = vadd.f32 0.0, %v1092
        %v1094 = vpop.f32.mrf.mxu0
        %v1095 = vadd.f32 0.0, %v1094
        %1096 = vmatmul.bf16.gmra.mxu0 %v1022
        %v1097 = vpop.f32.mrf.mxu0
        %v1098 = vadd.f32 0.0, %v1097
        %v1099 = vpop.f32.mrf.mxu0
        %v1100 = vadd.f32 0.0, %v1099
        %1101 = vmatmul.bf16.gmra.mxu0 %v1025
        %v1102 = vpop.f32.mrf.mxu0
        %v1103 = vadd.f32 0.0, %v1102
        %v1104 = vpop.f32.mrf.mxu0
        %v1105 = vadd.f32 0.0, %v1104
        %1106 = vmatmul.bf16.gmra.mxu0 %v1028
        %v1107 = vpop.f32.mrf.mxu0
        %v1108 = vadd.f32 0.0, %v1107
        %v1109 = vpop.f32.mrf.mxu0
        %v1110 = vadd.f32 0.0, %v1109
        %1111 = vmatmul.bf16.gmra.mxu0 %v1031
        %v1112 = vpop.f32.mrf.mxu0
        %v1113 = vadd.f32 0.0, %v1112
        %v1114 = vpop.f32.mrf.mxu0
        %v1115 = vadd.f32 0.0, %v1114
        %1116 = vmatmul.bf16.gmra.mxu0 %v1034
        %v1117 = vpop.f32.mrf.mxu0
        %v1118 = vadd.f32 0.0, %v1117
        %v1119 = vpop.f32.mrf.mxu0
        %v1120 = vadd.f32 0.0, %v1119
        %1121 = vmatmul.bf16.gmra.mxu0 %v1037
        %v1122 = vpop.f32.mrf.mxu0
        %v1123 = vadd.f32 0.0, %v1122
        %v1124 = vpop.f32.mrf.mxu0
        %v1125 = vadd.f32 0.0, %v1124
        %1126 = vmatmul.bf16.gmra.mxu0 %v1040
        %v1127 = vpop.f32.mrf.mxu0
        %v1128 = vadd.f32 0.0, %v1127
        %v1129 = vpop.f32.mrf.mxu0
        %v1130 = vadd.f32 0.0, %v1129
        %1131 = vmatmul.bf16.gmra.mxu0 %v1043
        %v1132 = vpop.f32.mrf.mxu0
        %v1133 = vadd.f32 0.0, %v1132
        %v1134 = vpop.f32.mrf.mxu0
        %v1135 = vadd.f32 0.0, %v1134
        %1136 = vdwg.mxu0
        %v1137 = vadd.f32 %v915, %v1058
        %v1138 = vadd.f32 %v916, %v1060
        %v1139 = vadd.f32 %v917, %v1063
        %v1140 = vadd.f32 %v918, %v1065
        %v1141 = vadd.f32 %v919, %v1068
        %v1142 = vadd.f32 %v920, %v1070
        %v1143 = vadd.f32 %v921, %v1073
        %v1144 = vadd.f32 %v922, %v1075
        %v1145 = vadd.f32 %v923, %v1078
        %v1146 = vadd.f32 %v924, %v1080
        %v1147 = vadd.f32 %v925, %v1083
        %v1148 = vadd.f32 %v926, %v1085
        %v1149 = vadd.f32 %v927, %v1088
        %v1150 = vadd.f32 %v928, %v1090
        %v1151 = vadd.f32 %v929, %v1093
        %v1152 = vadd.f32 %v930, %v1095
        %v1153 = vadd.f32 %v931, %v1098
        %v1154 = vadd.f32 %v932, %v1100
        %v1155 = vadd.f32 %v933, %v1103
        %v1156 = vadd.f32 %v934, %v1105
        %v1157 = vadd.f32 %v935, %v1108
        %v1158 = vadd.f32 %v936, %v1110
        %v1159 = vadd.f32 %v937, %v1113
        %v1160 = vadd.f32 %v938, %v1115
        %v1161 = vadd.f32 %v939, %v1118
        %v1162 = vadd.f32 %v940, %v1120
        %v1163 = vadd.f32 %v941, %v1123
        %v1164 = vadd.f32 %v942, %v1125
        %v1165 = vadd.f32 %v943, %v1128
        %v1166 = vadd.f32 %v944, %v1130
        %v1167 = vadd.f32 %v945, %v1133
        %v1168 = vadd.f32 %v946, %v1135
        %v1169 = vld [vmem:[%s312 + $0x1] sm:$0xff]
        %v1170 = vld [vmem:[%s312 + $0x9] sm:$0xff]
        %v1171 = vld [vmem:[%s312 + $0x19] sm:$0xff]
        %v1172 = vld [vmem:[%s312 + $0x21] sm:$0xff]
        %v1173 = vld [vmem:[%s312 + $0x31] sm:$0xff]
        %v1174 = vld [vmem:[%s312 + $0x39] sm:$0xff]
        %v1175 = vld [vmem:[%s312 + $0x49] sm:$0xff]
        %v1176 = vld [vmem:[%s312 + $0x51] sm:$0xff]
        %v1177 = vld [vmem:[%s312 + $0x61] sm:$0xff]
        %v1178 = vld [vmem:[%s312 + $0x69] sm:$0xff]
        %v1179 = vld [vmem:[%s312 + $0x79] sm:$0xff]
        %v1180 = vld [vmem:[%s312 + $0x81] sm:$0xff]
        %v1181 = vld [vmem:[%s312 + $0x91] sm:$0xff]
        %v1182 = vld [vmem:[%s312 + $0x99] sm:$0xff]
        %v1183 = vld [vmem:[%s312 + $0xa9] sm:$0xff]
        %v1184 = vld [vmem:[%s312 + $0xb1] sm:$0xff]
        %v1185 = vld [vmem:[%s312 + $0xc1] sm:$0xff]
        %v1186 = vld [vmem:[%s312 + $0xc9] sm:$0xff]
        %v1187 = vld [vmem:[%s312 + $0xd9] sm:$0xff]
        %v1188 = vld [vmem:[%s312 + $0xe1] sm:$0xff]
        %v1189 = vld [vmem:[%s312 + $0xf1] sm:$0xff]
        %v1190 = vld [vmem:[%s312 + $0xf9] sm:$0xff]
        %v1191 = vld [vmem:[%s312 + $0x109] sm:$0xff]
        %v1192 = vld [vmem:[%s312 + $0x111] sm:$0xff]
        %v1193 = vld [vmem:[%s312 + $0x121] sm:$0xff]
        %v1194 = vld [vmem:[%s312 + $0x129] sm:$0xff]
        %v1195 = vld [vmem:[%s312 + $0x139] sm:$0xff]
        %v1196 = vld [vmem:[%s312 + $0x141] sm:$0xff]
        %v1197 = vld [vmem:[%s312 + $0x151] sm:$0xff]
        %v1198 = vld [vmem:[%s312 + $0x159] sm:$0xff]
        %v1199 = vld [vmem:[%s312 + $0x169] sm:$0xff]
        %v1200 = vld [vmem:[%s312 + $0x171] sm:$0xff]
        %v1201 = vpack.c.bf16 %v1170, %v1169
        %v1202 = vpack.c.bf16 %v1172, %v1171
        %v1203 = vpack.c.bf16 %v1174, %v1173
        %v1204 = vpack.c.bf16 %v1176, %v1175
        %v1205 = vpack.c.bf16 %v1178, %v1177
        %v1206 = vpack.c.bf16 %v1180, %v1179
        %v1207 = vpack.c.bf16 %v1182, %v1181
        %v1208 = vpack.c.bf16 %v1184, %v1183
        %v1209 = vpack.c.bf16 %v1186, %v1185
        %v1210 = vpack.c.bf16 %v1188, %v1187
        %v1211 = vpack.c.bf16 %v1190, %v1189
        %v1212 = vpack.c.bf16 %v1192, %v1191
        %v1213 = vpack.c.bf16 %v1194, %v1193
        %v1214 = vpack.c.bf16 %v1196, %v1195
        %v1215 = vpack.c.bf16 %v1198, %v1197
        %v1216 = vpack.c.bf16 %v1200, %v1199
        %s1217 = scalar_lea.vmem %s1, 8
        %v1218 = vld [vmem:[%s1217] sm:$0x3]
        %v1220 = vsel %vm224, %v1201, 0
        %v1223 = vsel %vm224, %v1202, 0
        %v1226 = vsel %vm224, %v1203, 0
        %v1229 = vsel %vm224, %v1204, 0
        %v1232 = vsel %vm224, %v1205, 0
        %v1235 = vsel %vm224, %v1206, 0
        %v1238 = vsel %vm224, %v1207, 0
        %v1241 = vsel %vm224, %v1208, 0
        %v1244 = vsel %vm224, %v1209, 0
        %v1247 = vsel %vm224, %v1210, 0
        %v1250 = vsel %vm224, %v1211, 0
        %v1253 = vsel %vm224, %v1212, 0
        %v1256 = vsel %vm224, %v1213, 0
        %v1259 = vsel %vm224, %v1214, 0
        %v1262 = vsel %vm224, %v1215, 0
        %v1265 = vsel %vm224, %v1216, 0
        %v1268 = vsel %vm492, %v1218, 0
        %1270 = vmatpush.bf16.msra.mxu0 0
        %1271 = vmatpush.bf16.msra.mxu0 0
        %1272 = vmatpush.bf16.msra.mxu0 0
        %1273 = vmatpush.bf16.msra.mxu0 0
        %1274 = vmatpush.bf16.msra.mxu0 0
        %1275 = vmatpush.bf16.msra.mxu0 0
        %1276 = vmatpush.bf16.msra.mxu0 0
        %1277 = vmatpush.bf16.msra.mxu0 %v1268
        %1278 = vmatmul.bf16.gmra.mxu0 %v1220
        %v1279 = vpop.f32.mrf.mxu0
        %v1280 = vadd.f32 0.0, %v1279
        %v1281 = vpop.f32.mrf.mxu0
        %v1282 = vadd.f32 0.0, %v1281
        %1283 = vmatmul.bf16.gmra.mxu0 %v1223
        %v1284 = vpop.f32.mrf.mxu0
        %v1285 = vadd.f32 0.0, %v1284
        %v1286 = vpop.f32.mrf.mxu0
        %v1287 = vadd.f32 0.0, %v1286
        %1288 = vmatmul.bf16.gmra.mxu0 %v1226
        %v1289 = vpop.f32.mrf.mxu0
        %v1290 = vadd.f32 0.0, %v1289
        %v1291 = vpop.f32.mrf.mxu0
        %v1292 = vadd.f32 0.0, %v1291
        %1293 = vmatmul.bf16.gmra.mxu0 %v1229
        %v1294 = vpop.f32.mrf.mxu0
        %v1295 = vadd.f32 0.0, %v1294
        %v1296 = vpop.f32.mrf.mxu0
        %v1297 = vadd.f32 0.0, %v1296
        %1298 = vmatmul.bf16.gmra.mxu0 %v1232
        %v1299 = vpop.f32.mrf.mxu0
        %v1300 = vadd.f32 0.0, %v1299
        %v1301 = vpop.f32.mrf.mxu0
        %v1302 = vadd.f32 0.0, %v1301
        %1303 = vmatmul.bf16.gmra.mxu0 %v1235
        %v1304 = vpop.f32.mrf.mxu0
        %v1305 = vadd.f32 0.0, %v1304
        %v1306 = vpop.f32.mrf.mxu0
        %v1307 = vadd.f32 0.0, %v1306
        %1308 = vmatmul.bf16.gmra.mxu0 %v1238
        %v1309 = vpop.f32.mrf.mxu0
        %v1310 = vadd.f32 0.0, %v1309
        %v1311 = vpop.f32.mrf.mxu0
        %v1312 = vadd.f32 0.0, %v1311
        %1313 = vmatmul.bf16.gmra.mxu0 %v1241
        %v1314 = vpop.f32.mrf.mxu0
        %v1315 = vadd.f32 0.0, %v1314
        %v1316 = vpop.f32.mrf.mxu0
        %v1317 = vadd.f32 0.0, %v1316
        %1318 = vmatmul.bf16.gmra.mxu0 %v1244
        %v1319 = vpop.f32.mrf.mxu0
        %v1320 = vadd.f32 0.0, %v1319
        %v1321 = vpop.f32.mrf.mxu0
        %v1322 = vadd.f32 0.0, %v1321
        %1323 = vmatmul.bf16.gmra.mxu0 %v1247
        %v1324 = vpop.f32.mrf.mxu0
        %v1325 = vadd.f32 0.0, %v1324
        %v1326 = vpop.f32.mrf.mxu0
        %v1327 = vadd.f32 0.0, %v1326
        %1328 = vmatmul.bf16.gmra.mxu0 %v1250
        %v1329 = vpop.f32.mrf.mxu0
        %v1330 = vadd.f32 0.0, %v1329
        %v1331 = vpop.f32.mrf.mxu0
        %v1332 = vadd.f32 0.0, %v1331
        %1333 = vmatmul.bf16.gmra.mxu0 %v1253
        %v1334 = vpop.f32.mrf.mxu0
        %v1335 = vadd.f32 0.0, %v1334
        %v1336 = vpop.f32.mrf.mxu0
        %v1337 = vadd.f32 0.0, %v1336
        %1338 = vmatmul.bf16.gmra.mxu0 %v1256
        %v1339 = vpop.f32.mrf.mxu0
        %v1340 = vadd.f32 0.0, %v1339
        %v1341 = vpop.f32.mrf.mxu0
        %v1342 = vadd.f32 0.0, %v1341
        %1343 = vmatmul.bf16.gmra.mxu0 %v1259
        %v1344 = vpop.f32.mrf.mxu0
        %v1345 = vadd.f32 0.0, %v1344
        %v1346 = vpop.f32.mrf.mxu0
        %v1347 = vadd.f32 0.0, %v1346
        %1348 = vmatmul.bf16.gmra.mxu0 %v1262
        %v1349 = vpop.f32.mrf.mxu0
        %v1350 = vadd.f32 0.0, %v1349
        %v1351 = vpop.f32.mrf.mxu0
        %v1352 = vadd.f32 0.0, %v1351
        %1353 = vmatmul.bf16.gmra.mxu0 %v1265
        %v1354 = vpop.f32.mrf.mxu0
        %v1355 = vadd.f32 0.0, %v1354
        %v1356 = vpop.f32.mrf.mxu0
        %v1357 = vadd.f32 0.0, %v1356
        %1358 = vdwg.mxu0
        %v1359 = vadd.f32 %v1137, %v1280
        %v1360 = vadd.f32 %v1138, %v1282
        %v1361 = vadd.f32 %v1139, %v1285
        %v1362 = vadd.f32 %v1140, %v1287
        %v1363 = vadd.f32 %v1141, %v1290
        %v1364 = vadd.f32 %v1142, %v1292
        %v1365 = vadd.f32 %v1143, %v1295
        %v1366 = vadd.f32 %v1144, %v1297
        %v1367 = vadd.f32 %v1145, %v1300
        %v1368 = vadd.f32 %v1146, %v1302
        %v1369 = vadd.f32 %v1147, %v1305
        %v1370 = vadd.f32 %v1148, %v1307
        %v1371 = vadd.f32 %v1149, %v1310
        %v1372 = vadd.f32 %v1150, %v1312
        %v1373 = vadd.f32 %v1151, %v1315
        %v1374 = vadd.f32 %v1152, %v1317
        %v1375 = vadd.f32 %v1153, %v1320
        %v1376 = vadd.f32 %v1154, %v1322
        %v1377 = vadd.f32 %v1155, %v1325
        %v1378 = vadd.f32 %v1156, %v1327
        %v1379 = vadd.f32 %v1157, %v1330
        %v1380 = vadd.f32 %v1158, %v1332
        %v1381 = vadd.f32 %v1159, %v1335
        %v1382 = vadd.f32 %v1160, %v1337
        %v1383 = vadd.f32 %v1161, %v1340
        %v1384 = vadd.f32 %v1162, %v1342
        %v1385 = vadd.f32 %v1163, %v1345
        %v1386 = vadd.f32 %v1164, %v1347
        %v1387 = vadd.f32 %v1165, %v1350
        %v1388 = vadd.f32 %v1166, %v1352
        %v1389 = vadd.f32 %v1167, %v1355
        %v1390 = vadd.f32 %v1168, %v1357
        %v1391 = vld [vmem:[%s312 + $0x2] sm:$0xff]
        %v1392 = vld [vmem:[%s312 + $0xa] sm:$0xff]
        %v1393 = vld [vmem:[%s312 + $0x1a] sm:$0xff]
        %v1394 = vld [vmem:[%s312 + $0x22] sm:$0xff]
        %v1395 = vld [vmem:[%s312 + $0x32] sm:$0xff]
        %v1396 = vld [vmem:[%s312 + $0x3a] sm:$0xff]
        %v1397 = vld [vmem:[%s312 + $0x4a] sm:$0xff]
        %v1398 = vld [vmem:[%s312 + $0x52] sm:$0xff]
        %v1399 = vld [vmem:[%s312 + $0x62] sm:$0xff]
        %v1400 = vld [vmem:[%s312 + $0x6a] sm:$0xff]
        %v1401 = vld [vmem:[%s312 + $0x7a] sm:$0xff]
        %v1402 = vld [vmem:[%s312 + $0x82] sm:$0xff]
        %v1403 = vld [vmem:[%s312 + $0x92] sm:$0xff]
        %v1404 = vld [vmem:[%s312 + $0x9a] sm:$0xff]
        %v1405 = vld [vmem:[%s312 + $0xaa] sm:$0xff]
        %v1406 = vld [vmem:[%s312 + $0xb2] sm:$0xff]
        %v1407 = vld [vmem:[%s312 + $0xc2] sm:$0xff]
        %v1408 = vld [vmem:[%s312 + $0xca] sm:$0xff]
        %v1409 = vld [vmem:[%s312 + $0xda] sm:$0xff]
        %v1410 = vld [vmem:[%s312 + $0xe2] sm:$0xff]
        %v1411 = vld [vmem:[%s312 + $0xf2] sm:$0xff]
        %v1412 = vld [vmem:[%s312 + $0xfa] sm:$0xff]
        %v1413 = vld [vmem:[%s312 + $0x10a] sm:$0xff]
        %v1414 = vld [vmem:[%s312 + $0x112] sm:$0xff]
        %v1415 = vld [vmem:[%s312 + $0x122] sm:$0xff]
        %v1416 = vld [vmem:[%s312 + $0x12a] sm:$0xff]
        %v1417 = vld [vmem:[%s312 + $0x13a] sm:$0xff]
        %v1418 = vld [vmem:[%s312 + $0x142] sm:$0xff]
        %v1419 = vld [vmem:[%s312 + $0x152] sm:$0xff]
        %v1420 = vld [vmem:[%s312 + $0x15a] sm:$0xff]
        %v1421 = vld [vmem:[%s312 + $0x16a] sm:$0xff]
        %v1422 = vld [vmem:[%s312 + $0x172] sm:$0xff]
        %v1423 = vpack.c.bf16 %v1392, %v1391
        %v1424 = vpack.c.bf16 %v1394, %v1393
        %v1425 = vpack.c.bf16 %v1396, %v1395
        %v1426 = vpack.c.bf16 %v1398, %v1397
        %v1427 = vpack.c.bf16 %v1400, %v1399
        %v1428 = vpack.c.bf16 %v1402, %v1401
        %v1429 = vpack.c.bf16 %v1404, %v1403
        %v1430 = vpack.c.bf16 %v1406, %v1405
        %v1431 = vpack.c.bf16 %v1408, %v1407
        %v1432 = vpack.c.bf16 %v1410, %v1409
        %v1433 = vpack.c.bf16 %v1412, %v1411
        %v1434 = vpack.c.bf16 %v1414, %v1413
        %v1435 = vpack.c.bf16 %v1416, %v1415
        %v1436 = vpack.c.bf16 %v1418, %v1417
        %v1437 = vpack.c.bf16 %v1420, %v1419
        %v1438 = vpack.c.bf16 %v1422, %v1421
        %s1439 = scalar_lea.vmem %s1, 10
        %v1440 = vld [vmem:[%s1439] sm:$0x3]
        %v1442 = vsel %vm224, %v1423, 0
        %v1445 = vsel %vm224, %v1424, 0
        %v1448 = vsel %vm224, %v1425, 0
        %v1451 = vsel %vm224, %v1426, 0
        %v1454 = vsel %vm224, %v1427, 0
        %v1457 = vsel %vm224, %v1428, 0
        %v1460 = vsel %vm224, %v1429, 0
        %v1463 = vsel %vm224, %v1430, 0
        %v1466 = vsel %vm224, %v1431, 0
        %v1469 = vsel %vm224, %v1432, 0
        %v1472 = vsel %vm224, %v1433, 0
        %v1475 = vsel %vm224, %v1434, 0
        %v1478 = vsel %vm224, %v1435, 0
        %v1481 = vsel %vm224, %v1436, 0
        %v1484 = vsel %vm224, %v1437, 0
        %v1487 = vsel %vm224, %v1438, 0
        %v1490 = vsel %vm492, %v1440, 0
        %1492 = vmatpush.bf16.msra.mxu0 0
        %1493 = vmatpush.bf16.msra.mxu0 0
        %1494 = vmatpush.bf16.msra.mxu0 0
        %1495 = vmatpush.bf16.msra.mxu0 0
        %1496 = vmatpush.bf16.msra.mxu0 0
        %1497 = vmatpush.bf16.msra.mxu0 0
        %1498 = vmatpush.bf16.msra.mxu0 0
        %1499 = vmatpush.bf16.msra.mxu0 %v1490
        %1500 = vmatmul.bf16.gmra.mxu0 %v1442
        %v1501 = vpop.f32.mrf.mxu0
        %v1502 = vadd.f32 0.0, %v1501
        %v1503 = vpop.f32.mrf.mxu0
        %v1504 = vadd.f32 0.0, %v1503
        %1505 = vmatmul.bf16.gmra.mxu0 %v1445
        %v1506 = vpop.f32.mrf.mxu0
        %v1507 = vadd.f32 0.0, %v1506
        %v1508 = vpop.f32.mrf.mxu0
        %v1509 = vadd.f32 0.0, %v1508
        %1510 = vmatmul.bf16.gmra.mxu0 %v1448
        %v1511 = vpop.f32.mrf.mxu0
        %v1512 = vadd.f32 0.0, %v1511
        %v1513 = vpop.f32.mrf.mxu0
        %v1514 = vadd.f32 0.0, %v1513
        %1515 = vmatmul.bf16.gmra.mxu0 %v1451
        %v1516 = vpop.f32.mrf.mxu0
        %v1517 = vadd.f32 0.0, %v1516
        %v1518 = vpop.f32.mrf.mxu0
        %v1519 = vadd.f32 0.0, %v1518
        %1520 = vmatmul.bf16.gmra.mxu0 %v1454
        %v1521 = vpop.f32.mrf.mxu0
        %v1522 = vadd.f32 0.0, %v1521
        %v1523 = vpop.f32.mrf.mxu0
        %v1524 = vadd.f32 0.0, %v1523
        %1525 = vmatmul.bf16.gmra.mxu0 %v1457
        %v1526 = vpop.f32.mrf.mxu0
        %v1527 = vadd.f32 0.0, %v1526
        %v1528 = vpop.f32.mrf.mxu0
        %v1529 = vadd.f32 0.0, %v1528
        %1530 = vmatmul.bf16.gmra.mxu0 %v1460
        %v1531 = vpop.f32.mrf.mxu0
        %v1532 = vadd.f32 0.0, %v1531
        %v1533 = vpop.f32.mrf.mxu0
        %v1534 = vadd.f32 0.0, %v1533
        %1535 = vmatmul.bf16.gmra.mxu0 %v1463
        %v1536 = vpop.f32.mrf.mxu0
        %v1537 = vadd.f32 0.0, %v1536
        %v1538 = vpop.f32.mrf.mxu0
        %v1539 = vadd.f32 0.0, %v1538
        %1540 = vmatmul.bf16.gmra.mxu0 %v1466
        %v1541 = vpop.f32.mrf.mxu0
        %v1542 = vadd.f32 0.0, %v1541
        %v1543 = vpop.f32.mrf.mxu0
        %v1544 = vadd.f32 0.0, %v1543
        %1545 = vmatmul.bf16.gmra.mxu0 %v1469
        %v1546 = vpop.f32.mrf.mxu0
        %v1547 = vadd.f32 0.0, %v1546
        %v1548 = vpop.f32.mrf.mxu0
        %v1549 = vadd.f32 0.0, %v1548
        %1550 = vmatmul.bf16.gmra.mxu0 %v1472
        %v1551 = vpop.f32.mrf.mxu0
        %v1552 = vadd.f32 0.0, %v1551
        %v1553 = vpop.f32.mrf.mxu0
        %v1554 = vadd.f32 0.0, %v1553
        %1555 = vmatmul.bf16.gmra.mxu0 %v1475
        %v1556 = vpop.f32.mrf.mxu0
        %v1557 = vadd.f32 0.0, %v1556
        %v1558 = vpop.f32.mrf.mxu0
        %v1559 = vadd.f32 0.0, %v1558
        %1560 = vmatmul.bf16.gmra.mxu0 %v1478
        %v1561 = vpop.f32.mrf.mxu0
        %v1562 = vadd.f32 0.0, %v1561
        %v1563 = vpop.f32.mrf.mxu0
        %v1564 = vadd.f32 0.0, %v1563
        %1565 = vmatmul.bf16.gmra.mxu0 %v1481
        %v1566 = vpop.f32.mrf.mxu0
        %v1567 = vadd.f32 0.0, %v1566
        %v1568 = vpop.f32.mrf.mxu0
        %v1569 = vadd.f32 0.0, %v1568
        %1570 = vmatmul.bf16.gmra.mxu0 %v1484
        %v1571 = vpop.f32.mrf.mxu0
        %v1572 = vadd.f32 0.0, %v1571
        %v1573 = vpop.f32.mrf.mxu0
        %v1574 = vadd.f32 0.0, %v1573
        %1575 = vmatmul.bf16.gmra.mxu0 %v1487
        %v1576 = vpop.f32.mrf.mxu0
        %v1577 = vadd.f32 0.0, %v1576
        %v1578 = vpop.f32.mrf.mxu0
        %v1579 = vadd.f32 0.0, %v1578
        %1580 = vdwg.mxu0
        %v1581 = vadd.f32 %v1359, %v1502
        %v1582 = vadd.f32 %v1360, %v1504
        %v1583 = vadd.f32 %v1361, %v1507
        %v1584 = vadd.f32 %v1362, %v1509
        %v1585 = vadd.f32 %v1363, %v1512
        %v1586 = vadd.f32 %v1364, %v1514
        %v1587 = vadd.f32 %v1365, %v1517
        %v1588 = vadd.f32 %v1366, %v1519
        %v1589 = vadd.f32 %v1367, %v1522
        %v1590 = vadd.f32 %v1368, %v1524
        %v1591 = vadd.f32 %v1369, %v1527
        %v1592 = vadd.f32 %v1370, %v1529
        %v1593 = vadd.f32 %v1371, %v1532
        %v1594 = vadd.f32 %v1372, %v1534
        %v1595 = vadd.f32 %v1373, %v1537
        %v1596 = vadd.f32 %v1374, %v1539
        %v1597 = vadd.f32 %v1375, %v1542
        %v1598 = vadd.f32 %v1376, %v1544
        %v1599 = vadd.f32 %v1377, %v1547
        %v1600 = vadd.f32 %v1378, %v1549
        %v1601 = vadd.f32 %v1379, %v1552
        %v1602 = vadd.f32 %v1380, %v1554
        %v1603 = vadd.f32 %v1381, %v1557
        %v1604 = vadd.f32 %v1382, %v1559
        %v1605 = vadd.f32 %v1383, %v1562
        %v1606 = vadd.f32 %v1384, %v1564
        %v1607 = vadd.f32 %v1385, %v1567
        %v1608 = vadd.f32 %v1386, %v1569
        %v1609 = vadd.f32 %v1387, %v1572
        %v1610 = vadd.f32 %v1388, %v1574
        %v1611 = vadd.f32 %v1389, %v1577
        %v1612 = vadd.f32 %v1390, %v1579
        %s1613 = scalar_lea.vmem [#allocation2], 48
        %v1614 = vld [vmem:[%s1613] sm:$0xff]
        %v1615 = vld [vmem:[%s1613 + $0x8] sm:$0xff]
        %v1616 = vld [vmem:[%s1613 + $0x18] sm:$0xff]
        %v1617 = vld [vmem:[%s1613 + $0x20] sm:$0xff]
        %v1618 = vld [vmem:[%s1613 + $0x30] sm:$0xff]
        %v1619 = vld [vmem:[%s1613 + $0x38] sm:$0xff]
        %v1620 = vld [vmem:[%s1613 + $0x48] sm:$0xff]
        %v1621 = vld [vmem:[%s1613 + $0x50] sm:$0xff]
        %v1622 = vld [vmem:[%s1613 + $0x60] sm:$0xff]
        %v1623 = vld [vmem:[%s1613 + $0x68] sm:$0xff]
        %v1624 = vld [vmem:[%s1613 + $0x78] sm:$0xff]
        %v1625 = vld [vmem:[%s1613 + $0x80] sm:$0xff]
        %v1626 = vld [vmem:[%s1613 + $0x90] sm:$0xff]
        %v1627 = vld [vmem:[%s1613 + $0x98] sm:$0xff]
        %v1628 = vld [vmem:[%s1613 + $0xa8] sm:$0xff]
        %v1629 = vld [vmem:[%s1613 + $0xb0] sm:$0xff]
        %v1630 = vld [vmem:[%s1613 + $0xc0] sm:$0xff]
        %v1631 = vld [vmem:[%s1613 + $0xc8] sm:$0xff]
        %v1632 = vld [vmem:[%s1613 + $0xd8] sm:$0xff]
        %v1633 = vld [vmem:[%s1613 + $0xe0] sm:$0xff]
        %v1634 = vld [vmem:[%s1613 + $0xf0] sm:$0xff]
        %v1635 = vld [vmem:[%s1613 + $0xf8] sm:$0xff]
        %v1636 = vld [vmem:[%s1613 + $0x108] sm:$0xff]
        %v1637 = vld [vmem:[%s1613 + $0x110] sm:$0xff]
        %v1638 = vld [vmem:[%s1613 + $0x120] sm:$0xff]
        %v1639 = vld [vmem:[%s1613 + $0x128] sm:$0xff]
        %v1640 = vld [vmem:[%s1613 + $0x138] sm:$0xff]
        %v1641 = vld [vmem:[%s1613 + $0x140] sm:$0xff]
        %v1642 = vld [vmem:[%s1613 + $0x150] sm:$0xff]
        %v1643 = vld [vmem:[%s1613 + $0x158] sm:$0xff]
        %v1644 = vld [vmem:[%s1613 + $0x168] sm:$0xff]
        %v1645 = vld [vmem:[%s1613 + $0x170] sm:$0xff]
        %v1646 = vpack.c.bf16 %v1615, %v1614
        %v1647 = vpack.c.bf16 %v1617, %v1616
        %v1648 = vpack.c.bf16 %v1619, %v1618
        %v1649 = vpack.c.bf16 %v1621, %v1620
        %v1650 = vpack.c.bf16 %v1623, %v1622
        %v1651 = vpack.c.bf16 %v1625, %v1624
        %v1652 = vpack.c.bf16 %v1627, %v1626
        %v1653 = vpack.c.bf16 %v1629, %v1628
        %v1654 = vpack.c.bf16 %v1631, %v1630
        %v1655 = vpack.c.bf16 %v1633, %v1632
        %v1656 = vpack.c.bf16 %v1635, %v1634
        %v1657 = vpack.c.bf16 %v1637, %v1636
        %v1658 = vpack.c.bf16 %v1639, %v1638
        %v1659 = vpack.c.bf16 %v1641, %v1640
        %v1660 = vpack.c.bf16 %v1643, %v1642
        %v1661 = vpack.c.bf16 %v1645, %v1644
        %s1662 = scalar_lea.vmem %s1, 12
        %v1663 = vld [vmem:[%s1662] sm:$0x3]
        %v1665 = vsel %vm224, %v1646, 0
        %v1668 = vsel %vm224, %v1647, 0
        %v1671 = vsel %vm224, %v1648, 0
        %v1674 = vsel %vm224, %v1649, 0
        %v1677 = vsel %vm224, %v1650, 0
        %v1680 = vsel %vm224, %v1651, 0
        %v1683 = vsel %vm224, %v1652, 0
        %v1686 = vsel %vm224, %v1653, 0
        %v1689 = vsel %vm224, %v1654, 0
        %v1692 = vsel %vm224, %v1655, 0
        %v1695 = vsel %vm224, %v1656, 0
        %v1698 = vsel %vm224, %v1657, 0
        %v1701 = vsel %vm224, %v1658, 0
        %v1704 = vsel %vm224, %v1659, 0
        %v1707 = vsel %vm224, %v1660, 0
        %v1710 = vsel %vm224, %v1661, 0
        %v1713 = vsel %vm492, %v1663, 0
        %1715 = vmatpush.bf16.msra.mxu0 0
        %1716 = vmatpush.bf16.msra.mxu0 0
        %1717 = vmatpush.bf16.msra.mxu0 0
        %1718 = vmatpush.bf16.msra.mxu0 0
        %1719 = vmatpush.bf16.msra.mxu0 0
        %1720 = vmatpush.bf16.msra.mxu0 0
        %1721 = vmatpush.bf16.msra.mxu0 0
        %1722 = vmatpush.bf16.msra.mxu0 %v1713
        %1723 = vmatmul.bf16.gmra.mxu0 %v1665
        %v1724 = vpop.f32.mrf.mxu0
        %v1725 = vadd.f32 0.0, %v1724
        %v1726 = vpop.f32.mrf.mxu0
        %v1727 = vadd.f32 0.0, %v1726
        %1728 = vmatmul.bf16.gmra.mxu0 %v1668
        %v1729 = vpop.f32.mrf.mxu0
        %v1730 = vadd.f32 0.0, %v1729
        %v1731 = vpop.f32.mrf.mxu0
        %v1732 = vadd.f32 0.0, %v1731
        %1733 = vmatmul.bf16.gmra.mxu0 %v1671
        %v1734 = vpop.f32.mrf.mxu0
        %v1735 = vadd.f32 0.0, %v1734
        %v1736 = vpop.f32.mrf.mxu0
        %v1737 = vadd.f32 0.0, %v1736
        %1738 = vmatmul.bf16.gmra.mxu0 %v1674
        %v1739 = vpop.f32.mrf.mxu0
        %v1740 = vadd.f32 0.0, %v1739
        %v1741 = vpop.f32.mrf.mxu0
        %v1742 = vadd.f32 0.0, %v1741
        %1743 = vmatmul.bf16.gmra.mxu0 %v1677
        %v1744 = vpop.f32.mrf.mxu0
        %v1745 = vadd.f32 0.0, %v1744
        %v1746 = vpop.f32.mrf.mxu0
        %v1747 = vadd.f32 0.0, %v1746
        %1748 = vmatmul.bf16.gmra.mxu0 %v1680
        %v1749 = vpop.f32.mrf.mxu0
        %v1750 = vadd.f32 0.0, %v1749
        %v1751 = vpop.f32.mrf.mxu0
        %v1752 = vadd.f32 0.0, %v1751
        %1753 = vmatmul.bf16.gmra.mxu0 %v1683
        %v1754 = vpop.f32.mrf.mxu0
        %v1755 = vadd.f32 0.0, %v1754
        %v1756 = vpop.f32.mrf.mxu0
        %v1757 = vadd.f32 0.0, %v1756
        %1758 = vmatmul.bf16.gmra.mxu0 %v1686
        %v1759 = vpop.f32.mrf.mxu0
        %v1760 = vadd.f32 0.0, %v1759
        %v1761 = vpop.f32.mrf.mxu0
        %v1762 = vadd.f32 0.0, %v1761
        %1763 = vmatmul.bf16.gmra.mxu0 %v1689
        %v1764 = vpop.f32.mrf.mxu0
        %v1765 = vadd.f32 0.0, %v1764
        %v1766 = vpop.f32.mrf.mxu0
        %v1767 = vadd.f32 0.0, %v1766
        %1768 = vmatmul.bf16.gmra.mxu0 %v1692
        %v1769 = vpop.f32.mrf.mxu0
        %v1770 = vadd.f32 0.0, %v1769
        %v1771 = vpop.f32.mrf.mxu0
        %v1772 = vadd.f32 0.0, %v1771
        %1773 = vmatmul.bf16.gmra.mxu0 %v1695
        %v1774 = vpop.f32.mrf.mxu0
        %v1775 = vadd.f32 0.0, %v1774
        %v1776 = vpop.f32.mrf.mxu0
        %v1777 = vadd.f32 0.0, %v1776
        %1778 = vmatmul.bf16.gmra.mxu0 %v1698
        %v1779 = vpop.f32.mrf.mxu0
        %v1780 = vadd.f32 0.0, %v1779
        %v1781 = vpop.f32.mrf.mxu0
        %v1782 = vadd.f32 0.0, %v1781
        %1783 = vmatmul.bf16.gmra.mxu0 %v1701
        %v1784 = vpop.f32.mrf.mxu0
        %v1785 = vadd.f32 0.0, %v1784
        %v1786 = vpop.f32.mrf.mxu0
        %v1787 = vadd.f32 0.0, %v1786
        %1788 = vmatmul.bf16.gmra.mxu0 %v1704
        %v1789 = vpop.f32.mrf.mxu0
        %v1790 = vadd.f32 0.0, %v1789
        %v1791 = vpop.f32.mrf.mxu0
        %v1792 = vadd.f32 0.0, %v1791
        %1793 = vmatmul.bf16.gmra.mxu0 %v1707
        %v1794 = vpop.f32.mrf.mxu0
        %v1795 = vadd.f32 0.0, %v1794
        %v1796 = vpop.f32.mrf.mxu0
        %v1797 = vadd.f32 0.0, %v1796
        %1798 = vmatmul.bf16.gmra.mxu0 %v1710
        %v1799 = vpop.f32.mrf.mxu0
        %v1800 = vadd.f32 0.0, %v1799
        %v1801 = vpop.f32.mrf.mxu0
        %v1802 = vadd.f32 0.0, %v1801
        %1803 = vdwg.mxu0
        %v1804 = vadd.f32 %v1581, %v1725
        %v1805 = vadd.f32 %v1582, %v1727
        %v1806 = vadd.f32 %v1583, %v1730
        %v1807 = vadd.f32 %v1584, %v1732
        %v1808 = vadd.f32 %v1585, %v1735
        %v1809 = vadd.f32 %v1586, %v1737
        %v1810 = vadd.f32 %v1587, %v1740
        %v1811 = vadd.f32 %v1588, %v1742
        %v1812 = vadd.f32 %v1589, %v1745
        %v1813 = vadd.f32 %v1590, %v1747
        %v1814 = vadd.f32 %v1591, %v1750
        %v1815 = vadd.f32 %v1592, %v1752
        %v1816 = vadd.f32 %v1593, %v1755
        %v1817 = vadd.f32 %v1594, %v1757
        %v1818 = vadd.f32 %v1595, %v1760
        %v1819 = vadd.f32 %v1596, %v1762
        %v1820 = vadd.f32 %v1597, %v1765
        %v1821 = vadd.f32 %v1598, %v1767
        %v1822 = vadd.f32 %v1599, %v1770
        %v1823 = vadd.f32 %v1600, %v1772
        %v1824 = vadd.f32 %v1601, %v1775
        %v1825 = vadd.f32 %v1602, %v1777
        %v1826 = vadd.f32 %v1603, %v1780
        %v1827 = vadd.f32 %v1604, %v1782
        %v1828 = vadd.f32 %v1605, %v1785
        %v1829 = vadd.f32 %v1606, %v1787
        %v1830 = vadd.f32 %v1607, %v1790
        %v1831 = vadd.f32 %v1608, %v1792
        %v1832 = vadd.f32 %v1609, %v1795
        %v1833 = vadd.f32 %v1610, %v1797
        %v1834 = vadd.f32 %v1611, %v1800
        %v1835 = vadd.f32 %v1612, %v1802
        %v1836 = vld [vmem:[%s1613 + $0x1] sm:$0xff]
        %v1837 = vld [vmem:[%s1613 + $0x9] sm:$0xff]
        %v1838 = vld [vmem:[%s1613 + $0x19] sm:$0xff]
        %v1839 = vld [vmem:[%s1613 + $0x21] sm:$0xff]
        %v1840 = vld [vmem:[%s1613 + $0x31] sm:$0xff]
        %v1841 = vld [vmem:[%s1613 + $0x39] sm:$0xff]
        %v1842 = vld [vmem:[%s1613 + $0x49] sm:$0xff]
        %v1843 = vld [vmem:[%s1613 + $0x51] sm:$0xff]
        %v1844 = vld [vmem:[%s1613 + $0x61] sm:$0xff]
        %v1845 = vld [vmem:[%s1613 + $0x69] sm:$0xff]
        %v1846 = vld [vmem:[%s1613 + $0x79] sm:$0xff]
        %v1847 = vld [vmem:[%s1613 + $0x81] sm:$0xff]
        %v1848 = vld [vmem:[%s1613 + $0x91] sm:$0xff]
        %v1849 = vld [vmem:[%s1613 + $0x99] sm:$0xff]
        %v1850 = vld [vmem:[%s1613 + $0xa9] sm:$0xff]
        %v1851 = vld [vmem:[%s1613 + $0xb1] sm:$0xff]
        %v1852 = vld [vmem:[%s1613 + $0xc1] sm:$0xff]
        %v1853 = vld [vmem:[%s1613 + $0xc9] sm:$0xff]
        %v1854 = vld [vmem:[%s1613 + $0xd9] sm:$0xff]
        %v1855 = vld [vmem:[%s1613 + $0xe1] sm:$0xff]
        %v1856 = vld [vmem:[%s1613 + $0xf1] sm:$0xff]
        %v1857 = vld [vmem:[%s1613 + $0xf9] sm:$0xff]
        %v1858 = vld [vmem:[%s1613 + $0x109] sm:$0xff]
        %v1859 = vld [vmem:[%s1613 + $0x111] sm:$0xff]
        %v1860 = vld [vmem:[%s1613 + $0x121] sm:$0xff]
        %v1861 = vld [vmem:[%s1613 + $0x129] sm:$0xff]
        %v1862 = vld [vmem:[%s1613 + $0x139] sm:$0xff]
        %v1863 = vld [vmem:[%s1613 + $0x141] sm:$0xff]
        %v1864 = vld [vmem:[%s1613 + $0x151] sm:$0xff]
        %v1865 = vld [vmem:[%s1613 + $0x159] sm:$0xff]
        %v1866 = vld [vmem:[%s1613 + $0x169] sm:$0xff]
        %v1867 = vld [vmem:[%s1613 + $0x171] sm:$0xff]
        %v1868 = vpack.c.bf16 %v1837, %v1836
        %v1869 = vpack.c.bf16 %v1839, %v1838
        %v1870 = vpack.c.bf16 %v1841, %v1840
        %v1871 = vpack.c.bf16 %v1843, %v1842
        %v1872 = vpack.c.bf16 %v1845, %v1844
        %v1873 = vpack.c.bf16 %v1847, %v1846
        %v1874 = vpack.c.bf16 %v1849, %v1848
        %v1875 = vpack.c.bf16 %v1851, %v1850
        %v1876 = vpack.c.bf16 %v1853, %v1852
        %v1877 = vpack.c.bf16 %v1855, %v1854
        %v1878 = vpack.c.bf16 %v1857, %v1856
        %v1879 = vpack.c.bf16 %v1859, %v1858
        %v1880 = vpack.c.bf16 %v1861, %v1860
        %v1881 = vpack.c.bf16 %v1863, %v1862
        %v1882 = vpack.c.bf16 %v1865, %v1864
        %v1883 = vpack.c.bf16 %v1867, %v1866
        %s1884 = scalar_lea.vmem %s1, 14
        %v1885 = vld [vmem:[%s1884] sm:$0x3]
        %v1887 = vsel %vm224, %v1868, 0
        %v1890 = vsel %vm224, %v1869, 0
        %v1893 = vsel %vm224, %v1870, 0
        %v1896 = vsel %vm224, %v1871, 0
        %v1899 = vsel %vm224, %v1872, 0
        %v1902 = vsel %vm224, %v1873, 0
        %v1905 = vsel %vm224, %v1874, 0
        %v1908 = vsel %vm224, %v1875, 0
        %v1911 = vsel %vm224, %v1876, 0
        %v1914 = vsel %vm224, %v1877, 0
        %v1917 = vsel %vm224, %v1878, 0
        %v1920 = vsel %vm224, %v1879, 0
        %v1923 = vsel %vm224, %v1880, 0
        %v1926 = vsel %vm224, %v1881, 0
        %v1929 = vsel %vm224, %v1882, 0
        %v1932 = vsel %vm224, %v1883, 0
        %v1935 = vsel %vm492, %v1885, 0
        %1937 = vmatpush.bf16.msra.mxu0 0
        %1938 = vmatpush.bf16.msra.mxu0 0
        %1939 = vmatpush.bf16.msra.mxu0 0
        %1940 = vmatpush.bf16.msra.mxu0 0
        %1941 = vmatpush.bf16.msra.mxu0 0
        %1942 = vmatpush.bf16.msra.mxu0 0
        %1943 = vmatpush.bf16.msra.mxu0 0
        %1944 = vmatpush.bf16.msra.mxu0 %v1935
        %1945 = vmatmul.bf16.gmra.mxu0 %v1887
        %v1946 = vpop.f32.mrf.mxu0
        %v1947 = vadd.f32 0.0, %v1946
        %v1948 = vpop.f32.mrf.mxu0
        %v1949 = vadd.f32 0.0, %v1948
        %1950 = vmatmul.bf16.gmra.mxu0 %v1890
        %v1951 = vpop.f32.mrf.mxu0
        %v1952 = vadd.f32 0.0, %v1951
        %v1953 = vpop.f32.mrf.mxu0
        %v1954 = vadd.f32 0.0, %v1953
        %1955 = vmatmul.bf16.gmra.mxu0 %v1893
        %v1956 = vpop.f32.mrf.mxu0
        %v1957 = vadd.f32 0.0, %v1956
        %v1958 = vpop.f32.mrf.mxu0
        %v1959 = vadd.f32 0.0, %v1958
        %1960 = vmatmul.bf16.gmra.mxu0 %v1896
        %v1961 = vpop.f32.mrf.mxu0
        %v1962 = vadd.f32 0.0, %v1961
        %v1963 = vpop.f32.mrf.mxu0
        %v1964 = vadd.f32 0.0, %v1963
        %1965 = vmatmul.bf16.gmra.mxu0 %v1899
        %v1966 = vpop.f32.mrf.mxu0
        %v1967 = vadd.f32 0.0, %v1966
        %v1968 = vpop.f32.mrf.mxu0
        %v1969 = vadd.f32 0.0, %v1968
        %1970 = vmatmul.bf16.gmra.mxu0 %v1902
        %v1971 = vpop.f32.mrf.mxu0
        %v1972 = vadd.f32 0.0, %v1971
        %v1973 = vpop.f32.mrf.mxu0
        %v1974 = vadd.f32 0.0, %v1973
        %1975 = vmatmul.bf16.gmra.mxu0 %v1905
        %v1976 = vpop.f32.mrf.mxu0
        %v1977 = vadd.f32 0.0, %v1976
        %v1978 = vpop.f32.mrf.mxu0
        %v1979 = vadd.f32 0.0, %v1978
        %1980 = vmatmul.bf16.gmra.mxu0 %v1908
        %v1981 = vpop.f32.mrf.mxu0
        %v1982 = vadd.f32 0.0, %v1981
        %v1983 = vpop.f32.mrf.mxu0
        %v1984 = vadd.f32 0.0, %v1983
        %1985 = vmatmul.bf16.gmra.mxu0 %v1911
        %v1986 = vpop.f32.mrf.mxu0
        %v1987 = vadd.f32 0.0, %v1986
        %v1988 = vpop.f32.mrf.mxu0
        %v1989 = vadd.f32 0.0, %v1988
        %1990 = vmatmul.bf16.gmra.mxu0 %v1914
        %v1991 = vpop.f32.mrf.mxu0
        %v1992 = vadd.f32 0.0, %v1991
        %v1993 = vpop.f32.mrf.mxu0
        %v1994 = vadd.f32 0.0, %v1993
        %1995 = vmatmul.bf16.gmra.mxu0 %v1917
        %v1996 = vpop.f32.mrf.mxu0
        %v1997 = vadd.f32 0.0, %v1996
        %v1998 = vpop.f32.mrf.mxu0
        %v1999 = vadd.f32 0.0, %v1998
        %2000 = vmatmul.bf16.gmra.mxu0 %v1920
        %v2001 = vpop.f32.mrf.mxu0
        %v2002 = vadd.f32 0.0, %v2001
        %v2003 = vpop.f32.mrf.mxu0
        %v2004 = vadd.f32 0.0, %v2003
        %2005 = vmatmul.bf16.gmra.mxu0 %v1923
        %v2006 = vpop.f32.mrf.mxu0
        %v2007 = vadd.f32 0.0, %v2006
        %v2008 = vpop.f32.mrf.mxu0
        %v2009 = vadd.f32 0.0, %v2008
        %2010 = vmatmul.bf16.gmra.mxu0 %v1926
        %v2011 = vpop.f32.mrf.mxu0
        %v2012 = vadd.f32 0.0, %v2011
        %v2013 = vpop.f32.mrf.mxu0
        %v2014 = vadd.f32 0.0, %v2013
        %2015 = vmatmul.bf16.gmra.mxu0 %v1929
        %v2016 = vpop.f32.mrf.mxu0
        %v2017 = vadd.f32 0.0, %v2016
        %v2018 = vpop.f32.mrf.mxu0
        %v2019 = vadd.f32 0.0, %v2018
        %2020 = vmatmul.bf16.gmra.mxu0 %v1932
        %v2021 = vpop.f32.mrf.mxu0
        %v2022 = vadd.f32 0.0, %v2021
        %v2023 = vpop.f32.mrf.mxu0
        %v2024 = vadd.f32 0.0, %v2023
        %2025 = vdwg.mxu0
        %v2026 = vadd.f32 %v1804, %v1947
        %v2027 = vadd.f32 %v1805, %v1949
        %v2028 = vadd.f32 %v1806, %v1952
        %v2029 = vadd.f32 %v1807, %v1954
        %v2030 = vadd.f32 %v1808, %v1957
        %v2031 = vadd.f32 %v1809, %v1959
        %v2032 = vadd.f32 %v1810, %v1962
        %v2033 = vadd.f32 %v1811, %v1964
        %v2034 = vadd.f32 %v1812, %v1967
        %v2035 = vadd.f32 %v1813, %v1969
        %v2036 = vadd.f32 %v1814, %v1972
        %v2037 = vadd.f32 %v1815, %v1974
        %v2038 = vadd.f32 %v1816, %v1977
        %v2039 = vadd.f32 %v1817, %v1979
        %v2040 = vadd.f32 %v1818, %v1982
        %v2041 = vadd.f32 %v1819, %v1984
        %v2042 = vadd.f32 %v1820, %v1987
        %v2043 = vadd.f32 %v1821, %v1989
        %v2044 = vadd.f32 %v1822, %v1992
        %v2045 = vadd.f32 %v1823, %v1994
        %v2046 = vadd.f32 %v1824, %v1997
        %v2047 = vadd.f32 %v1825, %v1999
        %v2048 = vadd.f32 %v1826, %v2002
        %v2049 = vadd.f32 %v1827, %v2004
        %v2050 = vadd.f32 %v1828, %v2007
        %v2051 = vadd.f32 %v1829, %v2009
        %v2052 = vadd.f32 %v1830, %v2012
        %v2053 = vadd.f32 %v1831, %v2014
        %v2054 = vadd.f32 %v1832, %v2017
        %v2055 = vadd.f32 %v1833, %v2019
        %v2056 = vadd.f32 %v1834, %v2022
        %v2057 = vadd.f32 %v1835, %v2024
        %v2058 = vld [vmem:[%s1613 + $0x2] sm:$0xff]
        %v2059 = vld [vmem:[%s1613 + $0xa] sm:$0xff]
        %v2060 = vld [vmem:[%s1613 + $0x1a] sm:$0xff]
        %v2061 = vld [vmem:[%s1613 + $0x22] sm:$0xff]
        %v2062 = vld [vmem:[%s1613 + $0x32] sm:$0xff]
        %v2063 = vld [vmem:[%s1613 + $0x3a] sm:$0xff]
        %v2064 = vld [vmem:[%s1613 + $0x4a] sm:$0xff]
        %v2065 = vld [vmem:[%s1613 + $0x52] sm:$0xff]
        %v2066 = vld [vmem:[%s1613 + $0x62] sm:$0xff]
        %v2067 = vld [vmem:[%s1613 + $0x6a] sm:$0xff]
        %v2068 = vld [vmem:[%s1613 + $0x7a] sm:$0xff]
        %v2069 = vld [vmem:[%s1613 + $0x82] sm:$0xff]
        %v2070 = vld [vmem:[%s1613 + $0x92] sm:$0xff]
        %v2071 = vld [vmem:[%s1613 + $0x9a] sm:$0xff]
        %v2072 = vld [vmem:[%s1613 + $0xaa] sm:$0xff]
        %v2073 = vld [vmem:[%s1613 + $0xb2] sm:$0xff]
        %v2074 = vld [vmem:[%s1613 + $0xc2] sm:$0xff]
        %v2075 = vld [vmem:[%s1613 + $0xca] sm:$0xff]
        %v2076 = vld [vmem:[%s1613 + $0xda] sm:$0xff]
        %v2077 = vld [vmem:[%s1613 + $0xe2] sm:$0xff]
        %v2078 = vld [vmem:[%s1613 + $0xf2] sm:$0xff]
        %v2079 = vld [vmem:[%s1613 + $0xfa] sm:$0xff]
        %v2080 = vld [vmem:[%s1613 + $0x10a] sm:$0xff]
        %v2081 = vld [vmem:[%s1613 + $0x112] sm:$0xff]
        %v2082 = vld [vmem:[%s1613 + $0x122] sm:$0xff]
        %v2083 = vld [vmem:[%s1613 + $0x12a] sm:$0xff]
        %v2084 = vld [vmem:[%s1613 + $0x13a] sm:$0xff]
        %v2085 = vld [vmem:[%s1613 + $0x142] sm:$0xff]
        %v2086 = vld [vmem:[%s1613 + $0x152] sm:$0xff]
        %v2087 = vld [vmem:[%s1613 + $0x15a] sm:$0xff]
        %v2088 = vld [vmem:[%s1613 + $0x16a] sm:$0xff]
        %v2089 = vld [vmem:[%s1613 + $0x172] sm:$0xff]
        %v2090 = vpack.c.bf16 %v2059, %v2058
        %v2091 = vpack.c.bf16 %v2061, %v2060
        %v2092 = vpack.c.bf16 %v2063, %v2062
        %v2093 = vpack.c.bf16 %v2065, %v2064
        %v2094 = vpack.c.bf16 %v2067, %v2066
        %v2095 = vpack.c.bf16 %v2069, %v2068
        %v2096 = vpack.c.bf16 %v2071, %v2070
        %v2097 = vpack.c.bf16 %v2073, %v2072
        %v2098 = vpack.c.bf16 %v2075, %v2074
        %v2099 = vpack.c.bf16 %v2077, %v2076
        %v2100 = vpack.c.bf16 %v2079, %v2078
        %v2101 = vpack.c.bf16 %v2081, %v2080
        %v2102 = vpack.c.bf16 %v2083, %v2082
        %v2103 = vpack.c.bf16 %v2085, %v2084
        %v2104 = vpack.c.bf16 %v2087, %v2086
        %v2105 = vpack.c.bf16 %v2089, %v2088
        %s2106 = scalar_lea.vmem %s1, 16
        %v2107 = vld [vmem:[%s2106] sm:$0x3]
        %v2109 = vsel %vm224, %v2090, 0
        %v2112 = vsel %vm224, %v2091, 0
        %v2115 = vsel %vm224, %v2092, 0
        %v2118 = vsel %vm224, %v2093, 0
        %v2121 = vsel %vm224, %v2094, 0
        %v2124 = vsel %vm224, %v2095, 0
        %v2127 = vsel %vm224, %v2096, 0
        %v2130 = vsel %vm224, %v2097, 0
        %v2133 = vsel %vm224, %v2098, 0
        %v2136 = vsel %vm224, %v2099, 0
        %v2139 = vsel %vm224, %v2100, 0
        %v2142 = vsel %vm224, %v2101, 0
        %v2145 = vsel %vm224, %v2102, 0
        %v2148 = vsel %vm224, %v2103, 0
        %v2151 = vsel %vm224, %v2104, 0
        %v2154 = vsel %vm224, %v2105, 0
        %v2157 = vsel %vm492, %v2107, 0
        %2159 = vmatpush.bf16.msra.mxu0 0
        %2160 = vmatpush.bf16.msra.mxu0 0
        %2161 = vmatpush.bf16.msra.mxu0 0
        %2162 = vmatpush.bf16.msra.mxu0 0
        %2163 = vmatpush.bf16.msra.mxu0 0
        %2164 = vmatpush.bf16.msra.mxu0 0
        %2165 = vmatpush.bf16.msra.mxu0 0
        %2166 = vmatpush.bf16.msra.mxu0 %v2157
        %2167 = vmatmul.bf16.gmra.mxu0 %v2109
        %v2168 = vpop.f32.mrf.mxu0
        %v2169 = vadd.f32 0.0, %v2168
        %v2170 = vpop.f32.mrf.mxu0
        %v2171 = vadd.f32 0.0, %v2170
        %2172 = vmatmul.bf16.gmra.mxu0 %v2112
        %v2173 = vpop.f32.mrf.mxu0
        %v2174 = vadd.f32 0.0, %v2173
        %v2175 = vpop.f32.mrf.mxu0
        %v2176 = vadd.f32 0.0, %v2175
        %2177 = vmatmul.bf16.gmra.mxu0 %v2115
        %v2178 = vpop.f32.mrf.mxu0
        %v2179 = vadd.f32 0.0, %v2178
        %v2180 = vpop.f32.mrf.mxu0
        %v2181 = vadd.f32 0.0, %v2180
        %2182 = vmatmul.bf16.gmra.mxu0 %v2118
        %v2183 = vpop.f32.mrf.mxu0
        %v2184 = vadd.f32 0.0, %v2183
        %v2185 = vpop.f32.mrf.mxu0
        %v2186 = vadd.f32 0.0, %v2185
        %2187 = vmatmul.bf16.gmra.mxu0 %v2121
        %v2188 = vpop.f32.mrf.mxu0
        %v2189 = vadd.f32 0.0, %v2188
        %v2190 = vpop.f32.mrf.mxu0
        %v2191 = vadd.f32 0.0, %v2190
        %2192 = vmatmul.bf16.gmra.mxu0 %v2124
        %v2193 = vpop.f32.mrf.mxu0
        %v2194 = vadd.f32 0.0, %v2193
        %v2195 = vpop.f32.mrf.mxu0
        %v2196 = vadd.f32 0.0, %v2195
        %2197 = vmatmul.bf16.gmra.mxu0 %v2127
        %v2198 = vpop.f32.mrf.mxu0
        %v2199 = vadd.f32 0.0, %v2198
        %v2200 = vpop.f32.mrf.mxu0
        %v2201 = vadd.f32 0.0, %v2200
        %2202 = vmatmul.bf16.gmra.mxu0 %v2130
        %v2203 = vpop.f32.mrf.mxu0
        %v2204 = vadd.f32 0.0, %v2203
        %v2205 = vpop.f32.mrf.mxu0
        %v2206 = vadd.f32 0.0, %v2205
        %2207 = vmatmul.bf16.gmra.mxu0 %v2133
        %v2208 = vpop.f32.mrf.mxu0
        %v2209 = vadd.f32 0.0, %v2208
        %v2210 = vpop.f32.mrf.mxu0
        %v2211 = vadd.f32 0.0, %v2210
        %2212 = vmatmul.bf16.gmra.mxu0 %v2136
        %v2213 = vpop.f32.mrf.mxu0
        %v2214 = vadd.f32 0.0, %v2213
        %v2215 = vpop.f32.mrf.mxu0
        %v2216 = vadd.f32 0.0, %v2215
        %2217 = vmatmul.bf16.gmra.mxu0 %v2139
        %v2218 = vpop.f32.mrf.mxu0
        %v2219 = vadd.f32 0.0, %v2218
        %v2220 = vpop.f32.mrf.mxu0
        %v2221 = vadd.f32 0.0, %v2220
        %2222 = vmatmul.bf16.gmra.mxu0 %v2142
        %v2223 = vpop.f32.mrf.mxu0
        %v2224 = vadd.f32 0.0, %v2223
        %v2225 = vpop.f32.mrf.mxu0
        %v2226 = vadd.f32 0.0, %v2225
        %2227 = vmatmul.bf16.gmra.mxu0 %v2145
        %v2228 = vpop.f32.mrf.mxu0
        %v2229 = vadd.f32 0.0, %v2228
        %v2230 = vpop.f32.mrf.mxu0
        %v2231 = vadd.f32 0.0, %v2230
        %2232 = vmatmul.bf16.gmra.mxu0 %v2148
        %v2233 = vpop.f32.mrf.mxu0
        %v2234 = vadd.f32 0.0, %v2233
        %v2235 = vpop.f32.mrf.mxu0
        %v2236 = vadd.f32 0.0, %v2235
        %2237 = vmatmul.bf16.gmra.mxu0 %v2151
        %v2238 = vpop.f32.mrf.mxu0
        %v2239 = vadd.f32 0.0, %v2238
        %v2240 = vpop.f32.mrf.mxu0
        %v2241 = vadd.f32 0.0, %v2240
        %2242 = vmatmul.bf16.gmra.mxu0 %v2154
        %v2243 = vpop.f32.mrf.mxu0
        %v2244 = vadd.f32 0.0, %v2243
        %v2245 = vpop.f32.mrf.mxu0
        %v2246 = vadd.f32 0.0, %v2245
        %2247 = vdwg.mxu0
        %v2248 = vadd.f32 %v2026, %v2169
        %v2249 = vadd.f32 %v2027, %v2171
        %v2250 = vadd.f32 %v2028, %v2174
        %v2251 = vadd.f32 %v2029, %v2176
        %v2252 = vadd.f32 %v2030, %v2179
        %v2253 = vadd.f32 %v2031, %v2181
        %v2254 = vadd.f32 %v2032, %v2184
        %v2255 = vadd.f32 %v2033, %v2186
        %v2256 = vadd.f32 %v2034, %v2189
        %v2257 = vadd.f32 %v2035, %v2191
        %v2258 = vadd.f32 %v2036, %v2194
        %v2259 = vadd.f32 %v2037, %v2196
        %v2260 = vadd.f32 %v2038, %v2199
        %v2261 = vadd.f32 %v2039, %v2201
        %v2262 = vadd.f32 %v2040, %v2204
        %v2263 = vadd.f32 %v2041, %v2206
        %v2264 = vadd.f32 %v2042, %v2209
        %v2265 = vadd.f32 %v2043, %v2211
        %v2266 = vadd.f32 %v2044, %v2214
        %v2267 = vadd.f32 %v2045, %v2216
        %v2268 = vadd.f32 %v2046, %v2219
        %v2269 = vadd.f32 %v2047, %v2221
        %v2270 = vadd.f32 %v2048, %v2224
        %v2271 = vadd.f32 %v2049, %v2226
        %v2272 = vadd.f32 %v2050, %v2229
        %v2273 = vadd.f32 %v2051, %v2231
        %v2274 = vadd.f32 %v2052, %v2234
        %v2275 = vadd.f32 %v2053, %v2236
        %v2276 = vadd.f32 %v2054, %v2239
        %v2277 = vadd.f32 %v2055, %v2241
        %v2278 = vadd.f32 %v2056, %v2244
        %v2279 = vadd.f32 %v2057, %v2246
        %v2280 = vld [vmem:[%s2] sm:$0x7]
        %v2281 = vperm.slane %v2280, 0
        %v2282 = vadd.f32 %v2248, %v2281
        %v2283 = vadd.f32 %v2249, %v2281
        %v2284 = vadd.f32 %v2250, %v2281
        %v2285 = vadd.f32 %v2251, %v2281
        %v2286 = vadd.f32 %v2252, %v2281
        %v2287 = vadd.f32 %v2253, %v2281
        %v2288 = vadd.f32 %v2254, %v2281
        %v2289 = vadd.f32 %v2255, %v2281
        %v2290 = vadd.f32 %v2256, %v2281
        %v2291 = vadd.f32 %v2257, %v2281
        %v2292 = vadd.f32 %v2258, %v2281
        %v2293 = vadd.f32 %v2259, %v2281
        %v2294 = vadd.f32 %v2260, %v2281
        %v2295 = vadd.f32 %v2261, %v2281
        %v2296 = vadd.f32 %v2262, %v2281
        %v2297 = vadd.f32 %v2263, %v2281
        %v2298 = vadd.f32 %v2264, %v2281
        %v2299 = vadd.f32 %v2265, %v2281
        %v2300 = vadd.f32 %v2266, %v2281
        %v2301 = vadd.f32 %v2267, %v2281
        %v2302 = vadd.f32 %v2268, %v2281
        %v2303 = vadd.f32 %v2269, %v2281
        %v2304 = vadd.f32 %v2270, %v2281
        %v2305 = vadd.f32 %v2271, %v2281
        %v2306 = vadd.f32 %v2272, %v2281
        %v2307 = vadd.f32 %v2273, %v2281
        %v2308 = vadd.f32 %v2274, %v2281
        %v2309 = vadd.f32 %v2275, %v2281
        %v2310 = vadd.f32 %v2276, %v2281
        %v2311 = vadd.f32 %v2277, %v2281
        %v2312 = vadd.f32 %v2278, %v2281
        %v2313 = vadd.f32 %v2279, %v2281
        %v2314 = vmax.f32 %v2282, 0.0
        %v2315 = vmax.f32 %v2283, 0.0
        %v2316 = vmax.f32 %v2284, 0.0
        %v2317 = vmax.f32 %v2285, 0.0
        %v2318 = vmax.f32 %v2286, 0.0
        %v2319 = vmax.f32 %v2287, 0.0
        %v2320 = vmax.f32 %v2288, 0.0
        %v2321 = vmax.f32 %v2289, 0.0
        %v2322 = vmax.f32 %v2290, 0.0
        %v2323 = vmax.f32 %v2291, 0.0
        %v2324 = vmax.f32 %v2292, 0.0
        %v2325 = vmax.f32 %v2293, 0.0
        %v2326 = vmax.f32 %v2294, 0.0
        %v2327 = vmax.f32 %v2295, 0.0
        %v2328 = vmax.f32 %v2296, 0.0
        %v2329 = vmax.f32 %v2297, 0.0
        %v2330 = vmax.f32 %v2298, 0.0
        %v2331 = vmax.f32 %v2299, 0.0
        %v2332 = vmax.f32 %v2300, 0.0
        %v2333 = vmax.f32 %v2301, 0.0
        %v2334 = vmax.f32 %v2302, 0.0
        %v2335 = vmax.f32 %v2303, 0.0
        %v2336 = vmax.f32 %v2304, 0.0
        %v2337 = vmax.f32 %v2305, 0.0
        %v2338 = vmax.f32 %v2306, 0.0
        %v2339 = vmax.f32 %v2307, 0.0
        %v2340 = vmax.f32 %v2308, 0.0
        %v2341 = vmax.f32 %v2309, 0.0
        %v2342 = vmax.f32 %v2310, 0.0
        %v2343 = vmax.f32 %v2311, 0.0
        %v2344 = vmax.f32 %v2312, 0.0
        %v2345 = vmax.f32 %v2313, 0.0
        %v2346 = vperm.slane %v2280, 1
        %v2347 = vmul.f32 %v2314, %v2346
        %v2348 = vmul.f32 %v2315, %v2346
        %v2349 = vmul.f32 %v2316, %v2346
        %v2350 = vmul.f32 %v2317, %v2346
        %v2351 = vmul.f32 %v2318, %v2346
        %v2352 = vmul.f32 %v2319, %v2346
        %v2353 = vmul.f32 %v2320, %v2346
        %v2354 = vmul.f32 %v2321, %v2346
        %v2355 = vmul.f32 %v2322, %v2346
        %v2356 = vmul.f32 %v2323, %v2346
        %v2357 = vmul.f32 %v2324, %v2346
        %v2358 = vmul.f32 %v2325, %v2346
        %v2359 = vmul.f32 %v2326, %v2346
        %v2360 = vmul.f32 %v2327, %v2346
        %v2361 = vmul.f32 %v2328, %v2346
        %v2362 = vmul.f32 %v2329, %v2346
        %v2363 = vmul.f32 %v2330, %v2346
        %v2364 = vmul.f32 %v2331, %v2346
        %v2365 = vmul.f32 %v2332, %v2346
        %v2366 = vmul.f32 %v2333, %v2346
        %v2367 = vmul.f32 %v2334, %v2346
        %v2368 = vmul.f32 %v2335, %v2346
        %v2369 = vmul.f32 %v2336, %v2346
        %v2370 = vmul.f32 %v2337, %v2346
        %v2371 = vmul.f32 %v2338, %v2346
        %v2372 = vmul.f32 %v2339, %v2346
        %v2373 = vmul.f32 %v2340, %v2346
        %v2374 = vmul.f32 %v2341, %v2346
        %v2375 = vmul.f32 %v2342, %v2346
        %v2376 = vmul.f32 %v2343, %v2346
        %v2377 = vmul.f32 %v2344, %v2346
        %v2378 = vmul.f32 %v2345, %v2346
        %v2379 = vperm.slane %v2280, 2
        %v2380 = vadd.f32 %v2347, %v2379
        %v2381 = vadd.f32 %v2348, %v2379
        %v2382 = vadd.f32 %v2349, %v2379
        %v2383 = vadd.f32 %v2350, %v2379
        %v2384 = vadd.f32 %v2351, %v2379
        %v2385 = vadd.f32 %v2352, %v2379
        %v2386 = vadd.f32 %v2353, %v2379
        %v2387 = vadd.f32 %v2354, %v2379
        %v2388 = vadd.f32 %v2355, %v2379
        %v2389 = vadd.f32 %v2356, %v2379
        %v2390 = vadd.f32 %v2357, %v2379
        %v2391 = vadd.f32 %v2358, %v2379
        %v2392 = vadd.f32 %v2359, %v2379
        %v2393 = vadd.f32 %v2360, %v2379
        %v2394 = vadd.f32 %v2361, %v2379
        %v2395 = vadd.f32 %v2362, %v2379
        %v2396 = vadd.f32 %v2363, %v2379
        %v2397 = vadd.f32 %v2364, %v2379
        %v2398 = vadd.f32 %v2365, %v2379
        %v2399 = vadd.f32 %v2366, %v2379
        %v2400 = vadd.f32 %v2367, %v2379
        %v2401 = vadd.f32 %v2368, %v2379
        %v2402 = vadd.f32 %v2369, %v2379
        %v2403 = vadd.f32 %v2370, %v2379
        %v2404 = vadd.f32 %v2371, %v2379
        %v2405 = vadd.f32 %v2372, %v2379
        %v2406 = vadd.f32 %v2373, %v2379
        %v2407 = vadd.f32 %v2374, %v2379
        %v2408 = vadd.f32 %v2375, %v2379
        %v2409 = vadd.f32 %v2376, %v2379
        %v2410 = vadd.f32 %v2377, %v2379
        %v2411 = vadd.f32 %v2378, %v2379
        %2412 = vst [vmem:[#allocation3] sm:$0xf] 0
        %2413 = vst [vmem:[#allocation3 + $0x4] sm:$0xf] 0
        %2414 = vst [vmem:[#allocation3 + $0x8] sm:$0x1] 0
        %2415 = vst [vmem:[#allocation3 + $0xc] sm:$0xf] 0
        %2416 = vst [vmem:[#allocation3 + $0x10] sm:$0xf] 0
        %2417 = vst [vmem:[#allocation3 + $0x14] sm:$0x1] 0
        %2418 = vst [vmem:[#allocation3 + $0x18] sm:$0xf] 0
        %2419 = vst [vmem:[#allocation3 + $0x1c] sm:$0xf] 0
        %2420 = vst [vmem:[#allocation3 + $0x20] sm:$0x1] 0
        %2421 = vst [vmem:[#allocation3 + $0x24] sm:$0xf] 0
        %2422 = vst [vmem:[#allocation3 + $0x28] sm:$0xf] 0
        %2423 = vst [vmem:[#allocation3 + $0x2c] sm:$0x1] 0
        %2424 = vst [vmem:[#allocation3 + $0x30] sm:$0xf] 0
        %2425 = vst [vmem:[#allocation3 + $0x34] sm:$0xf] 0
        %2426 = vst [vmem:[#allocation3 + $0x38] sm:$0x1] 0
        %2427 = vst [vmem:[#allocation3 + $0x3c] sm:$0xf] 0
        %2428 = vst [vmem:[#allocation3 + $0x40] sm:$0xf] 0
        %2429 = vst [vmem:[#allocation3 + $0x44] sm:$0x1] 0
        %2430 = vst [vmem:[#allocation3 + $0x48] sm:$0xf] 0
        %2431 = vst [vmem:[#allocation3 + $0x4c] sm:$0xf] 0
        %2432 = vst [vmem:[#allocation3 + $0x50] sm:$0x1] 0
        %2433 = vst [vmem:[#allocation3 + $0x54] sm:$0xf] 0
        %2434 = vst [vmem:[#allocation3 + $0x58] sm:$0xf] 0
        %2435 = vst [vmem:[#allocation3 + $0x5c] sm:$0x1] 0
        %2436 = vst [vmem:[#allocation3 + $0x60] sm:$0xf] 0
        %2437 = vst [vmem:[#allocation3 + $0x64] sm:$0xf] 0
        %2438 = vst [vmem:[#allocation3 + $0x68] sm:$0x1] 0
        %2439 = vst [vmem:[#allocation3 + $0x6c] sm:$0xf] 0
        %2440 = vst [vmem:[#allocation3 + $0x70] sm:$0xf] 0
        %2441 = vst [vmem:[#allocation3 + $0x74] sm:$0x1] 0
        %2442 = vst [vmem:[#allocation3 + $0x78] sm:$0xf] 0
        %2443 = vst [vmem:[#allocation3 + $0x7c] sm:$0xf] 0
        %2444 = vst [vmem:[#allocation3 + $0x80] sm:$0x1] 0
        %2445 = vst [vmem:[#allocation3 + $0x84] sm:$0xf] 0
        %2446 = vst [vmem:[#allocation3 + $0x88] sm:$0xf] 0
        %2447 = vst [vmem:[#allocation3 + $0x8c] sm:$0x1] 0
        %2448 = vst [vmem:[#allocation3 + $0x90] sm:$0xf] 0
        %2449 = vst [vmem:[#allocation3 + $0x94] sm:$0xf] 0
        %2450 = vst [vmem:[#allocation3 + $0x98] sm:$0x1] 0
        %2451 = vst [vmem:[#allocation3 + $0x9c] sm:$0xf] 0
        %2452 = vst [vmem:[#allocation3 + $0xa0] sm:$0xf] 0
        %2453 = vst [vmem:[#allocation3 + $0xa4] sm:$0x1] 0
        %2454 = vst [vmem:[#allocation3 + $0xa8] sm:$0xf] 0
        %2455 = vst [vmem:[#allocation3 + $0xac] sm:$0xf] 0
        %2456 = vst [vmem:[#allocation3 + $0xb0] sm:$0x1] 0
        %2457 = vst [vmem:[#allocation3 + $0xb4] sm:$0xf] 0
        %2458 = vst [vmem:[#allocation3 + $0xb8] sm:$0xf] 0
        %2459 = vst [vmem:[#allocation3 + $0xbc] sm:$0x1] 0
        %2460 = vst [vmem:[#allocation3 + $0xc0] sm:$0xf] 0
        %2461 = vst [vmem:[#allocation3 + $0xc4] sm:$0xf] 0
        %2462 = vst [vmem:[#allocation3 + $0xc8] sm:$0x1] 0
        %2463 = vst [vmem:[#allocation3 + $0xcc] sm:$0xf] 0
        %2464 = vst [vmem:[#allocation3 + $0xd0] sm:$0xf] 0
        %2465 = vst [vmem:[#allocation3 + $0xd4] sm:$0x1] 0
        %v2466 = vpack.c.bf16 %v2380, %v2380
        %v2467 = vpack.c.bf16 %v2381, %v2381
        %v2468 = vpack.c.bf16 %v2382, %v2382
        %v2469 = vpack.c.bf16 %v2383, %v2383
        %v2470 = vpack.c.bf16 %v2384, %v2384
        %v2471 = vpack.c.bf16 %v2385, %v2385
        %v2472 = vpack.c.bf16 %v2386, %v2386
        %v2473 = vpack.c.bf16 %v2387, %v2387
        %v2474 = vpack.c.bf16 %v2388, %v2388
        %v2475 = vpack.c.bf16 %v2389, %v2389
        %v2476 = vpack.c.bf16 %v2390, %v2390
        %v2477 = vpack.c.bf16 %v2391, %v2391
        %v2478 = vpack.c.bf16 %v2392, %v2392
        %v2479 = vpack.c.bf16 %v2393, %v2393
        %v2480 = vpack.c.bf16 %v2394, %v2394
        %v2481 = vpack.c.bf16 %v2395, %v2395
        %v2482 = vpack.c.bf16 %v2396, %v2396
        %v2483 = vpack.c.bf16 %v2397, %v2397
        %v2484 = vpack.c.bf16 %v2398, %v2398
        %v2485 = vpack.c.bf16 %v2399, %v2399
        %v2486 = vpack.c.bf16 %v2400, %v2400
        %v2487 = vpack.c.bf16 %v2401, %v2401
        %v2488 = vpack.c.bf16 %v2402, %v2402
        %v2489 = vpack.c.bf16 %v2403, %v2403
        %v2490 = vpack.c.bf16 %v2404, %v2404
        %v2491 = vpack.c.bf16 %v2405, %v2405
        %v2492 = vpack.c.bf16 %v2406, %v2406
        %v2493 = vpack.c.bf16 %v2407, %v2407
        %v2494 = vpack.c.bf16 %v2408, %v2408
        %v2495 = vpack.c.bf16 %v2409, %v2409
        %v2496 = vpack.c.bf16 %v2410, %v2410
        %v2497 = vpack.c.bf16 %v2411, %v2411
        %vm2498 = vsmask.f32 256
        %vm2499 = vsmask.f32 4368
        %vm2500 = vmor %vm2498, %vm2499
        %v2502 = vshrl.u32 %v2466, 16
        %v2504 = vrot.slane %v2502, 7
        %v2505 = vshll.u32 %v2466, 16
        %v2507 = vor.u32 %v2504, %v2505
        %v2508 = vrot.slane %v2504, 4
        %v2510 = vshrl.u32 %v2467, 16
        %v2512 = vrot.slane %v2510, 7
        %v2513 = vshll.u32 %v2467, 16
        %v2515 = vor.u32 %v2512, %v2513
        %v2516 = vsel %vm2500, %v2508, %v2515
        %v2517 = vrot.slane %v2512, 4
        %v2519 = vshrl.u32 %v2468, 16
        %v2521 = vrot.slane %v2519, 7
        %v2522 = vshll.u32 %v2468, 16
        %v2524 = vor.u32 %v2521, %v2522
        %v2525 = vrot.slane %v2521, 4
        %v2527 = vshrl.u32 %v2469, 16
        %v2529 = vrot.slane %v2527, 7
        %v2530 = vshll.u32 %v2469, 16
        %v2532 = vor.u32 %v2529, %v2530
        %v2533 = vsel %vm2500, %v2525, %v2532
        %v2534 = vrot.slane %v2529, 4
        %v2536 = vshrl.u32 %v2470, 16
        %v2538 = vrot.slane %v2536, 7
        %v2539 = vshll.u32 %v2470, 16
        %v2541 = vor.u32 %v2538, %v2539
        %v2542 = vrot.slane %v2538, 4
        %v2544 = vshrl.u32 %v2471, 16
        %v2546 = vrot.slane %v2544, 7
        %v2547 = vshll.u32 %v2471, 16
        %v2549 = vor.u32 %v2546, %v2547
        %v2550 = vsel %vm2500, %v2542, %v2549
        %v2551 = vrot.slane %v2546, 4
        %v2553 = vshrl.u32 %v2472, 16
        %v2555 = vrot.slane %v2553, 7
        %v2556 = vshll.u32 %v2472, 16
        %v2558 = vor.u32 %v2555, %v2556
        %v2559 = vrot.slane %v2555, 4
        %v2561 = vshrl.u32 %v2473, 16
        %v2563 = vrot.slane %v2561, 7
        %v2564 = vshll.u32 %v2473, 16
        %v2566 = vor.u32 %v2563, %v2564
        %v2567 = vsel %vm2500, %v2559, %v2566
        %v2568 = vrot.slane %v2563, 4
        %v2570 = vshrl.u32 %v2474, 16
        %v2572 = vrot.slane %v2570, 7
        %v2573 = vshll.u32 %v2474, 16
        %v2575 = vor.u32 %v2572, %v2573
        %v2576 = vrot.slane %v2572, 4
        %v2578 = vshrl.u32 %v2475, 16
        %v2580 = vrot.slane %v2578, 7
        %v2581 = vshll.u32 %v2475, 16
        %v2583 = vor.u32 %v2580, %v2581
        %v2584 = vsel %vm2500, %v2576, %v2583
        %v2585 = vrot.slane %v2580, 4
        %v2587 = vshrl.u32 %v2476, 16
        %v2589 = vrot.slane %v2587, 7
        %v2590 = vshll.u32 %v2476, 16
        %v2592 = vor.u32 %v2589, %v2590
        %v2593 = vrot.slane %v2589, 4
        %v2595 = vshrl.u32 %v2477, 16
        %v2597 = vrot.slane %v2595, 7
        %v2598 = vshll.u32 %v2477, 16
        %v2600 = vor.u32 %v2597, %v2598
        %v2601 = vsel %vm2500, %v2593, %v2600
        %v2602 = vrot.slane %v2597, 4
        %v2604 = vshrl.u32 %v2478, 16
        %v2606 = vrot.slane %v2604, 7
        %v2607 = vshll.u32 %v2478, 16
        %v2609 = vor.u32 %v2606, %v2607
        %v2610 = vrot.slane %v2606, 4
        %v2612 = vshrl.u32 %v2479, 16
        %v2614 = vrot.slane %v2612, 7
        %v2615 = vshll.u32 %v2479, 16
        %v2617 = vor.u32 %v2614, %v2615
        %v2618 = vsel %vm2500, %v2610, %v2617
        %v2619 = vrot.slane %v2614, 4
        %v2621 = vshrl.u32 %v2480, 16
        %v2623 = vrot.slane %v2621, 7
        %v2624 = vshll.u32 %v2480, 16
        %v2626 = vor.u32 %v2623, %v2624
        %v2627 = vrot.slane %v2623, 4
        %v2629 = vshrl.u32 %v2481, 16
        %v2631 = vrot.slane %v2629, 7
        %v2632 = vshll.u32 %v2481, 16
        %v2634 = vor.u32 %v2631, %v2632
        %v2635 = vsel %vm2500, %v2627, %v2634
        %v2636 = vrot.slane %v2631, 4
        %v2638 = vshrl.u32 %v2482, 16
        %v2640 = vrot.slane %v2638, 7
        %v2641 = vshll.u32 %v2482, 16
        %v2643 = vor.u32 %v2640, %v2641
        %v2644 = vrot.slane %v2640, 4
        %v2646 = vshrl.u32 %v2483, 16
        %v2648 = vrot.slane %v2646, 7
        %v2649 = vshll.u32 %v2483, 16
        %v2651 = vor.u32 %v2648, %v2649
        %v2652 = vsel %vm2500, %v2644, %v2651
        %v2653 = vrot.slane %v2648, 4
        %v2655 = vshrl.u32 %v2484, 16
        %v2657 = vrot.slane %v2655, 7
        %v2658 = vshll.u32 %v2484, 16
        %v2660 = vor.u32 %v2657, %v2658
        %v2661 = vrot.slane %v2657, 4
        %v2663 = vshrl.u32 %v2485, 16
        %v2665 = vrot.slane %v2663, 7
        %v2666 = vshll.u32 %v2485, 16
        %v2668 = vor.u32 %v2665, %v2666
        %v2669 = vsel %vm2500, %v2661, %v2668
        %v2670 = vrot.slane %v2665, 4
        %v2672 = vshrl.u32 %v2486, 16
        %v2674 = vrot.slane %v2672, 7
        %v2675 = vshll.u32 %v2486, 16
        %v2677 = vor.u32 %v2674, %v2675
        %v2678 = vrot.slane %v2674, 4
        %v2680 = vshrl.u32 %v2487, 16
        %v2682 = vrot.slane %v2680, 7
        %v2683 = vshll.u32 %v2487, 16
        %v2685 = vor.u32 %v2682, %v2683
        %v2686 = vsel %vm2500, %v2678, %v2685
        %v2687 = vrot.slane %v2682, 4
        %v2689 = vshrl.u32 %v2488, 16
        %v2691 = vrot.slane %v2689, 7
        %v2692 = vshll.u32 %v2488, 16
        %v2694 = vor.u32 %v2691, %v2692
        %v2695 = vrot.slane %v2691, 4
        %v2697 = vshrl.u32 %v2489, 16
        %v2699 = vrot.slane %v2697, 7
        %v2700 = vshll.u32 %v2489, 16
        %v2702 = vor.u32 %v2699, %v2700
        %v2703 = vsel %vm2500, %v2695, %v2702
        %v2704 = vrot.slane %v2699, 4
        %v2706 = vshrl.u32 %v2490, 16
        %v2708 = vrot.slane %v2706, 7
        %v2709 = vshll.u32 %v2490, 16
        %v2711 = vor.u32 %v2708, %v2709
        %v2712 = vrot.slane %v2708, 4
        %v2714 = vshrl.u32 %v2491, 16
        %v2716 = vrot.slane %v2714, 7
        %v2717 = vshll.u32 %v2491, 16
        %v2719 = vor.u32 %v2716, %v2717
        %v2720 = vsel %vm2500, %v2712, %v2719
        %v2721 = vrot.slane %v2716, 4
        %v2723 = vshrl.u32 %v2492, 16
        %v2725 = vrot.slane %v2723, 7
        %v2726 = vshll.u32 %v2492, 16
        %v2728 = vor.u32 %v2725, %v2726
        %v2729 = vrot.slane %v2725, 4
        %v2731 = vshrl.u32 %v2493, 16
        %v2733 = vrot.slane %v2731, 7
        %v2734 = vshll.u32 %v2493, 16
        %v2736 = vor.u32 %v2733, %v2734
        %v2737 = vsel %vm2500, %v2729, %v2736
        %v2738 = vrot.slane %v2733, 4
        %v2740 = vshrl.u32 %v2494, 16
        %v2742 = vrot.slane %v2740, 7
        %v2743 = vshll.u32 %v2494, 16
        %v2745 = vor.u32 %v2742, %v2743
        %v2746 = vrot.slane %v2742, 4
        %v2748 = vshrl.u32 %v2495, 16
        %v2750 = vrot.slane %v2748, 7
        %v2751 = vshll.u32 %v2495, 16
        %v2753 = vor.u32 %v2750, %v2751
        %v2754 = vsel %vm2500, %v2746, %v2753
        %v2755 = vrot.slane %v2750, 4
        %v2757 = vshrl.u32 %v2496, 16
        %v2759 = vrot.slane %v2757, 7
        %v2760 = vshll.u32 %v2496, 16
        %v2762 = vor.u32 %v2759, %v2760
        %v2763 = vrot.slane %v2759, 4
        %v2765 = vshrl.u32 %v2497, 16
        %v2767 = vrot.slane %v2765, 7
        %v2768 = vshll.u32 %v2497, 16
        %v2770 = vor.u32 %v2767, %v2768
        %v2771 = vsel %vm2500, %v2763, %v2770
        %v2772 = vrot.slane %v2767, 4
        %s2821 = scalar_lea.vmem [#allocation3], 12
        %vm2822 = vcmask 1043456
        %vm2823 = vsmask.f32 7938
        %vm2824 = vmand %vm2822, %vm2823
        %v2825 = vld [vmem:[%s2821] sm:$0xf]
        %v2826 = vsel %vm2824, %v2507, %v2825
        %2827 = vst [vmem:[%s2821] sm:$0xf] %v2826
        %2828 = vst [vmem:[%s2821 + $0x4] sm:$0xf] %v2516
        %vm2829 = vcmask 1040384
        %vm2830 = vmand %vm2829, %vm2498
        %v2831 = vld [vmem:[%s2821 + $0x8] sm:$0x1]
        %v2832 = vsel %vm2830, %v2517, %v2831
        %2833 = vst [vmem:[%s2821 + $0x8] sm:$0x1] %v2832
        %v2834 = vld [vmem:[%s2821 + $0xc] sm:$0xf]
        %v2835 = vsel %vm2824, %v2524, %v2834
        %2836 = vst [vmem:[%s2821 + $0xc] sm:$0xf] %v2835
        %2837 = vst [vmem:[%s2821 + $0x10] sm:$0xf] %v2533
        %v2838 = vld [vmem:[%s2821 + $0x14] sm:$0x1]
        %v2839 = vsel %vm2830, %v2534, %v2838
        %2840 = vst [vmem:[%s2821 + $0x14] sm:$0x1] %v2839
        %v2841 = vld [vmem:[%s2821 + $0x18] sm:$0xf]
        %v2842 = vsel %vm2824, %v2541, %v2841
        %2843 = vst [vmem:[%s2821 + $0x18] sm:$0xf] %v2842
        %2844 = vst [vmem:[%s2821 + $0x1c] sm:$0xf] %v2550
        %v2845 = vld [vmem:[%s2821 + $0x20] sm:$0x1]
        %v2846 = vsel %vm2830, %v2551, %v2845
        %2847 = vst [vmem:[%s2821 + $0x20] sm:$0x1] %v2846
        %v2848 = vld [vmem:[%s2821 + $0x24] sm:$0xf]
        %v2849 = vsel %vm2824, %v2558, %v2848
        %2850 = vst [vmem:[%s2821 + $0x24] sm:$0xf] %v2849
        %2851 = vst [vmem:[%s2821 + $0x28] sm:$0xf] %v2567
        %v2852 = vld [vmem:[%s2821 + $0x2c] sm:$0x1]
        %v2853 = vsel %vm2830, %v2568, %v2852
        %2854 = vst [vmem:[%s2821 + $0x2c] sm:$0x1] %v2853
        %v2855 = vld [vmem:[%s2821 + $0x30] sm:$0xf]
        %v2856 = vsel %vm2824, %v2575, %v2855
        %2857 = vst [vmem:[%s2821 + $0x30] sm:$0xf] %v2856
        %2858 = vst [vmem:[%s2821 + $0x34] sm:$0xf] %v2584
        %v2859 = vld [vmem:[%s2821 + $0x38] sm:$0x1]
        %v2860 = vsel %vm2830, %v2585, %v2859
        %2861 = vst [vmem:[%s2821 + $0x38] sm:$0x1] %v2860
        %v2862 = vld [vmem:[%s2821 + $0x3c] sm:$0xf]
        %v2863 = vsel %vm2824, %v2592, %v2862
        %2864 = vst [vmem:[%s2821 + $0x3c] sm:$0xf] %v2863
        %2865 = vst [vmem:[%s2821 + $0x40] sm:$0xf] %v2601
        %v2866 = vld [vmem:[%s2821 + $0x44] sm:$0x1]
        %v2867 = vsel %vm2830, %v2602, %v2866
        %2868 = vst [vmem:[%s2821 + $0x44] sm:$0x1] %v2867
        %v2869 = vld [vmem:[%s2821 + $0x48] sm:$0xf]
        %v2870 = vsel %vm2824, %v2609, %v2869
        %2871 = vst [vmem:[%s2821 + $0x48] sm:$0xf] %v2870
        %2872 = vst [vmem:[%s2821 + $0x4c] sm:$0xf] %v2618
        %v2873 = vld [vmem:[%s2821 + $0x50] sm:$0x1]
        %v2874 = vsel %vm2830, %v2619, %v2873
        %2875 = vst [vmem:[%s2821 + $0x50] sm:$0x1] %v2874
        %v2876 = vld [vmem:[%s2821 + $0x54] sm:$0xf]
        %v2877 = vsel %vm2824, %v2626, %v2876
        %2878 = vst [vmem:[%s2821 + $0x54] sm:$0xf] %v2877
        %2879 = vst [vmem:[%s2821 + $0x58] sm:$0xf] %v2635
        %v2880 = vld [vmem:[%s2821 + $0x5c] sm:$0x1]
        %v2881 = vsel %vm2830, %v2636, %v2880
        %2882 = vst [vmem:[%s2821 + $0x5c] sm:$0x1] %v2881
        %v2883 = vld [vmem:[%s2821 + $0x60] sm:$0xf]
        %v2884 = vsel %vm2824, %v2643, %v2883
        %2885 = vst [vmem:[%s2821 + $0x60] sm:$0xf] %v2884
        %2886 = vst [vmem:[%s2821 + $0x64] sm:$0xf] %v2652
        %v2887 = vld [vmem:[%s2821 + $0x68] sm:$0x1]
        %v2888 = vsel %vm2830, %v2653, %v2887
        %2889 = vst [vmem:[%s2821 + $0x68] sm:$0x1] %v2888
        %v2890 = vld [vmem:[%s2821 + $0x6c] sm:$0xf]
        %v2891 = vsel %vm2824, %v2660, %v2890
        %2892 = vst [vmem:[%s2821 + $0x6c] sm:$0xf] %v2891
        %2893 = vst [vmem:[%s2821 + $0x70] sm:$0xf] %v2669
        %v2894 = vld [vmem:[%s2821 + $0x74] sm:$0x1]
        %v2895 = vsel %vm2830, %v2670, %v2894
        %2896 = vst [vmem:[%s2821 + $0x74] sm:$0x1] %v2895
        %v2897 = vld [vmem:[%s2821 + $0x78] sm:$0xf]
        %v2898 = vsel %vm2824, %v2677, %v2897
        %2899 = vst [vmem:[%s2821 + $0x78] sm:$0xf] %v2898
        %2900 = vst [vmem:[%s2821 + $0x7c] sm:$0xf] %v2686
        %v2901 = vld [vmem:[%s2821 + $0x80] sm:$0x1]
        %v2902 = vsel %vm2830, %v2687, %v2901
        %2903 = vst [vmem:[%s2821 + $0x80] sm:$0x1] %v2902
        %v2904 = vld [vmem:[%s2821 + $0x84] sm:$0xf]
        %v2905 = vsel %vm2824, %v2694, %v2904
        %2906 = vst [vmem:[%s2821 + $0x84] sm:$0xf] %v2905
        %2907 = vst [vmem:[%s2821 + $0x88] sm:$0xf] %v2703
        %v2908 = vld [vmem:[%s2821 + $0x8c] sm:$0x1]
        %v2909 = vsel %vm2830, %v2704, %v2908
        %2910 = vst [vmem:[%s2821 + $0x8c] sm:$0x1] %v2909
        %v2911 = vld [vmem:[%s2821 + $0x90] sm:$0xf]
        %v2912 = vsel %vm2824, %v2711, %v2911
        %2913 = vst [vmem:[%s2821 + $0x90] sm:$0xf] %v2912
        %2914 = vst [vmem:[%s2821 + $0x94] sm:$0xf] %v2720
        %v2915 = vld [vmem:[%s2821 + $0x98] sm:$0x1]
        %v2916 = vsel %vm2830, %v2721, %v2915
        %2917 = vst [vmem:[%s2821 + $0x98] sm:$0x1] %v2916
        %v2918 = vld [vmem:[%s2821 + $0x9c] sm:$0xf]
        %v2919 = vsel %vm2824, %v2728, %v2918
        %2920 = vst [vmem:[%s2821 + $0x9c] sm:$0xf] %v2919
        %2921 = vst [vmem:[%s2821 + $0xa0] sm:$0xf] %v2737
        %v2922 = vld [vmem:[%s2821 + $0xa4] sm:$0x1]
        %v2923 = vsel %vm2830, %v2738, %v2922
        %2924 = vst [vmem:[%s2821 + $0xa4] sm:$0x1] %v2923
        %v2925 = vld [vmem:[%s2821 + $0xa8] sm:$0xf]
        %v2926 = vsel %vm2824, %v2745, %v2925
        %2927 = vst [vmem:[%s2821 + $0xa8] sm:$0xf] %v2926
        %2928 = vst [vmem:[%s2821 + $0xac] sm:$0xf] %v2754
        %v2929 = vld [vmem:[%s2821 + $0xb0] sm:$0x1]
        %v2930 = vsel %vm2830, %v2755, %v2929
        %2931 = vst [vmem:[%s2821 + $0xb0] sm:$0x1] %v2930
        %v2932 = vld [vmem:[%s2821 + $0xb4] sm:$0xf]
        %v2933 = vsel %vm2824, %v2762, %v2932
        %2934 = vst [vmem:[%s2821 + $0xb4] sm:$0xf] %v2933
        %2935 = vst [vmem:[%s2821 + $0xb8] sm:$0xf] %v2771
        %v2936 = vld [vmem:[%s2821 + $0xbc] sm:$0x1]
        %v2937 = vsel %vm2830, %v2772, %v2936
        %2938 = vst [vmem:[%s2821 + $0xbc] sm:$0x1] %v2937
        %v2939 = vld [vmem:[#allocation3] sm:$0xf]
        %v2940 = vld [vmem:[#allocation3 + $0x4] sm:$0xf]
        %v2941 = vld [vmem:[#allocation3 + $0xc] sm:$0xf]
        %v2942 = vld [vmem:[#allocation3 + $0x10] sm:$0xf]
        %v2943 = vld [vmem:[#allocation3 + $0x18] sm:$0xf]
        %v2944 = vld [vmem:[#allocation3 + $0x1c] sm:$0xf]
        %v2945 = vld [vmem:[#allocation3 + $0x24] sm:$0xf]
        %v2946 = vld [vmem:[#allocation3 + $0x28] sm:$0xf]
        %v2947 = vld [vmem:[#allocation3 + $0x30] sm:$0xf]
        %v2948 = vld [vmem:[#allocation3 + $0x34] sm:$0xf]
        %v2949 = vld [vmem:[#allocation3 + $0x3c] sm:$0xf]
        %v2950 = vld [vmem:[#allocation3 + $0x40] sm:$0xf]
        %v2951 = vld [vmem:[#allocation3 + $0x48] sm:$0xf]
        %v2952 = vld [vmem:[#allocation3 + $0x4c] sm:$0xf]
        %v2953 = vld [vmem:[#allocation3 + $0x54] sm:$0xf]
        %v2954 = vld [vmem:[#allocation3 + $0x58] sm:$0xf]
        %v2955 = vld [vmem:[#allocation3 + $0x60] sm:$0xf]
        %v2956 = vld [vmem:[#allocation3 + $0x64] sm:$0xf]
        %v2957 = vld [vmem:[#allocation3 + $0x6c] sm:$0xf]
        %v2958 = vld [vmem:[#allocation3 + $0x70] sm:$0xf]
        %v2959 = vld [vmem:[#allocation3 + $0x78] sm:$0xf]
        %v2960 = vld [vmem:[#allocation3 + $0x7c] sm:$0xf]
        %v2961 = vld [vmem:[#allocation3 + $0x84] sm:$0xf]
        %v2962 = vld [vmem:[#allocation3 + $0x88] sm:$0xf]
        %v2963 = vld [vmem:[#allocation3 + $0x90] sm:$0xf]
        %v2964 = vld [vmem:[#allocation3 + $0x94] sm:$0xf]
        %v2965 = vld [vmem:[#allocation3 + $0x9c] sm:$0xf]
        %v2966 = vld [vmem:[#allocation3 + $0xa0] sm:$0xf]
        %v2967 = vld [vmem:[#allocation3 + $0xa8] sm:$0xf]
        %v2968 = vld [vmem:[#allocation3 + $0xac] sm:$0xf]
        %v2969 = vld [vmem:[#allocation3 + $0xb4] sm:$0xf]
        %v2970 = vld [vmem:[#allocation3 + $0xb8] sm:$0xf]
        %v2971 = vld [vmem:[%s3] sm:$0xf]
        %v2972 = vld [vmem:[%s3 + $0x4] sm:$0xf]
        %v2973 = vld [vmem:[%s3 + $0x8] sm:$0xf]
        %v2974 = vld [vmem:[%s3 + $0xc] sm:$0xf]
        %v2975 = vld [vmem:[%s3 + $0x10] sm:$0xf]
        %v2976 = vld [vmem:[%s3 + $0x14] sm:$0xf]
        %v2977 = vld [vmem:[%s3 + $0x18] sm:$0xf]
        %v2978 = vld [vmem:[%s3 + $0x1c] sm:$0xf]
        %v2979 = vld [vmem:[%s3 + $0x20] sm:$0xf]
        %v2980 = vld [vmem:[%s3 + $0x24] sm:$0xf]
        %v2981 = vld [vmem:[%s3 + $0x28] sm:$0xf]
        %v2982 = vld [vmem:[%s3 + $0x2c] sm:$0xf]
        %v2983 = vld [vmem:[%s3 + $0x30] sm:$0xf]
        %v2984 = vld [vmem:[%s3 + $0x34] sm:$0xf]
        %v2985 = vld [vmem:[%s3 + $0x38] sm:$0xf]
        %v2986 = vld [vmem:[%s3 + $0x3c] sm:$0xf]
        %v2987 = vld [vmem:[#allocation3 + $0x8] sm:$0x1]
        %v2988 = vld [vmem:[#allocation3 + $0x14] sm:$0x1]
        %v2989 = vld [vmem:[#allocation3 + $0x20] sm:$0x1]
        %v2990 = vld [vmem:[#allocation3 + $0x2c] sm:$0x1]
        %v2991 = vld [vmem:[#allocation3 + $0x38] sm:$0x1]
        %v2992 = vld [vmem:[#allocation3 + $0x44] sm:$0x1]
        %v2993 = vld [vmem:[#allocation3 + $0x50] sm:$0x1]
        %v2994 = vld [vmem:[#allocation3 + $0x5c] sm:$0x1]
        %v2995 = vld [vmem:[#allocation3 + $0x68] sm:$0x1]
        %v2996 = vld [vmem:[#allocation3 + $0x74] sm:$0x1]
        %v2997 = vld [vmem:[#allocation3 + $0x80] sm:$0x1]
        %v2998 = vld [vmem:[#allocation3 + $0x8c] sm:$0x1]
        %v2999 = vld [vmem:[#allocation3 + $0x98] sm:$0x1]
        %v3000 = vld [vmem:[#allocation3 + $0xa4] sm:$0x1]
        %v3001 = vld [vmem:[#allocation3 + $0xb0] sm:$0x1]
        %v3002 = vld [vmem:[#allocation3 + $0xbc] sm:$0x1]
        %vm3003 = vsmask.f32 3328
        %vm3004 = vsmask.f32 7440
        %vm3005 = vmor %vm3003, %vm3004
        %v3007 = vshrl.u32 %v2939, 16
        %v3009 = vrot.slane %v3007, 4
        %v3010 = vshll.u32 %v2939, 16
        %v3012 = vrot.slane %v3010, 5
        %v3013 = vor.u32 %v3009, %v3012
        %v3014 = vrot.slane %v3013, 4
        %v3016 = vshll.u32 %v2940, 16
        %v3018 = vrot.slane %v3016, 5
        %v3019 = vsel %vm3005, %v3014, %v3018
        %v3020 = vshrl.u32 %v2940, 16
        %v3022 = vrot.slane %v3020, 4
        %v3023 = vor.u32 %v3022, %v3018
        %v3024 = vrot.slane %v3023, 4
        %v3026 = vshll.u32 %v2987, 16
        %v3028 = vrot.slane %v3026, 5
        %v3029 = vsel %vm3005, %v3024, %v3028
        %v3031 = vshrl.u32 %v2941, 16
        %v3033 = vrot.slane %v3031, 4
        %v3034 = vshll.u32 %v2941, 16
        %v3036 = vrot.slane %v3034, 5
        %v3037 = vor.u32 %v3033, %v3036
        %v3038 = vrot.slane %v3037, 4
        %v3040 = vshll.u32 %v2942, 16
        %v3042 = vrot.slane %v3040, 5
        %v3043 = vsel %vm3005, %v3038, %v3042
        %v3044 = vshrl.u32 %v2942, 16
        %v3046 = vrot.slane %v3044, 4
        %v3047 = vor.u32 %v3046, %v3042
        %v3048 = vrot.slane %v3047, 4
        %v3050 = vshll.u32 %v2988, 16
        %v3052 = vrot.slane %v3050, 5
        %v3053 = vsel %vm3005, %v3048, %v3052
        %v3055 = vshrl.u32 %v2943, 16
        %v3057 = vrot.slane %v3055, 4
        %v3058 = vshll.u32 %v2943, 16
        %v3060 = vrot.slane %v3058, 5
        %v3061 = vor.u32 %v3057, %v3060
        %v3062 = vrot.slane %v3061, 4
        %v3064 = vshll.u32 %v2944, 16
        %v3066 = vrot.slane %v3064, 5
        %v3067 = vsel %vm3005, %v3062, %v3066
        %v3068 = vshrl.u32 %v2944, 16
        %v3070 = vrot.slane %v3068, 4
        %v3071 = vor.u32 %v3070, %v3066
        %v3072 = vrot.slane %v3071, 4
        %v3074 = vshll.u32 %v2989, 16
        %v3076 = vrot.slane %v3074, 5
        %v3077 = vsel %vm3005, %v3072, %v3076
        %v3079 = vshrl.u32 %v2945, 16
        %v3081 = vrot.slane %v3079, 4
        %v3082 = vshll.u32 %v2945, 16
        %v3084 = vrot.slane %v3082, 5
        %v3085 = vor.u32 %v3081, %v3084
        %v3086 = vrot.slane %v3085, 4
        %v3088 = vshll.u32 %v2946, 16
        %v3090 = vrot.slane %v3088, 5
        %v3091 = vsel %vm3005, %v3086, %v3090
        %v3092 = vshrl.u32 %v2946, 16
        %v3094 = vrot.slane %v3092, 4
        %v3095 = vor.u32 %v3094, %v3090
        %v3096 = vrot.slane %v3095, 4
        %v3098 = vshll.u32 %v2990, 16
        %v3100 = vrot.slane %v3098, 5
        %v3101 = vsel %vm3005, %v3096, %v3100
        %v3103 = vshrl.u32 %v2947, 16
        %v3105 = vrot.slane %v3103, 4
        %v3106 = vshll.u32 %v2947, 16
        %v3108 = vrot.slane %v3106, 5
        %v3109 = vor.u32 %v3105, %v3108
        %v3110 = vrot.slane %v3109, 4
        %v3112 = vshll.u32 %v2948, 16
        %v3114 = vrot.slane %v3112, 5
        %v3115 = vsel %vm3005, %v3110, %v3114
        %v3116 = vshrl.u32 %v2948, 16
        %v3118 = vrot.slane %v3116, 4
        %v3119 = vor.u32 %v3118, %v3114
        %v3120 = vrot.slane %v3119, 4
        %v3122 = vshll.u32 %v2991, 16
        %v3124 = vrot.slane %v3122, 5
        %v3125 = vsel %vm3005, %v3120, %v3124
        %v3127 = vshrl.u32 %v2949, 16
        %v3129 = vrot.slane %v3127, 4
        %v3130 = vshll.u32 %v2949, 16
        %v3132 = vrot.slane %v3130, 5
        %v3133 = vor.u32 %v3129, %v3132
        %v3134 = vrot.slane %v3133, 4
        %v3136 = vshll.u32 %v2950, 16
        %v3138 = vrot.slane %v3136, 5
        %v3139 = vsel %vm3005, %v3134, %v3138
        %v3140 = vshrl.u32 %v2950, 16
        %v3142 = vrot.slane %v3140, 4
        %v3143 = vor.u32 %v3142, %v3138
        %v3144 = vrot.slane %v3143, 4
        %v3146 = vshll.u32 %v2992, 16
        %v3148 = vrot.slane %v3146, 5
        %v3149 = vsel %vm3005, %v3144, %v3148
        %v3151 = vshrl.u32 %v2951, 16
        %v3153 = vrot.slane %v3151, 4
        %v3154 = vshll.u32 %v2951, 16
        %v3156 = vrot.slane %v3154, 5
        %v3157 = vor.u32 %v3153, %v3156
        %v3158 = vrot.slane %v3157, 4
        %v3160 = vshll.u32 %v2952, 16
        %v3162 = vrot.slane %v3160, 5
        %v3163 = vsel %vm3005, %v3158, %v3162
        %v3164 = vshrl.u32 %v2952, 16
        %v3166 = vrot.slane %v3164, 4
        %v3167 = vor.u32 %v3166, %v3162
        %v3168 = vrot.slane %v3167, 4
        %v3170 = vshll.u32 %v2993, 16
        %v3172 = vrot.slane %v3170, 5
        %v3173 = vsel %vm3005, %v3168, %v3172
        %v3175 = vshrl.u32 %v2953, 16
        %v3177 = vrot.slane %v3175, 4
        %v3178 = vshll.u32 %v2953, 16
        %v3180 = vrot.slane %v3178, 5
        %v3181 = vor.u32 %v3177, %v3180
        %v3182 = vrot.slane %v3181, 4
        %v3184 = vshll.u32 %v2954, 16
        %v3186 = vrot.slane %v3184, 5
        %v3187 = vsel %vm3005, %v3182, %v3186
        %v3188 = vshrl.u32 %v2954, 16
        %v3190 = vrot.slane %v3188, 4
        %v3191 = vor.u32 %v3190, %v3186
        %v3192 = vrot.slane %v3191, 4
        %v3194 = vshll.u32 %v2994, 16
        %v3196 = vrot.slane %v3194, 5
        %v3197 = vsel %vm3005, %v3192, %v3196
        %v3199 = vshrl.u32 %v2955, 16
        %v3201 = vrot.slane %v3199, 4
        %v3202 = vshll.u32 %v2955, 16
        %v3204 = vrot.slane %v3202, 5
        %v3205 = vor.u32 %v3201, %v3204
        %v3206 = vrot.slane %v3205, 4
        %v3208 = vshll.u32 %v2956, 16
        %v3210 = vrot.slane %v3208, 5
        %v3211 = vsel %vm3005, %v3206, %v3210
        %v3212 = vshrl.u32 %v2956, 16
        %v3214 = vrot.slane %v3212, 4
        %v3215 = vor.u32 %v3214, %v3210
        %v3216 = vrot.slane %v3215, 4
        %v3218 = vshll.u32 %v2995, 16
        %v3220 = vrot.slane %v3218, 5
        %v3221 = vsel %vm3005, %v3216, %v3220
        %v3223 = vshrl.u32 %v2957, 16
        %v3225 = vrot.slane %v3223, 4
        %v3226 = vshll.u32 %v2957, 16
        %v3228 = vrot.slane %v3226, 5
        %v3229 = vor.u32 %v3225, %v3228
        %v3230 = vrot.slane %v3229, 4
        %v3232 = vshll.u32 %v2958, 16
        %v3234 = vrot.slane %v3232, 5
        %v3235 = vsel %vm3005, %v3230, %v3234
        %v3236 = vshrl.u32 %v2958, 16
        %v3238 = vrot.slane %v3236, 4
        %v3239 = vor.u32 %v3238, %v3234
        %v3240 = vrot.slane %v3239, 4
        %v3242 = vshll.u32 %v2996, 16
        %v3244 = vrot.slane %v3242, 5
        %v3245 = vsel %vm3005, %v3240, %v3244
        %v3247 = vshrl.u32 %v2959, 16
        %v3249 = vrot.slane %v3247, 4
        %v3250 = vshll.u32 %v2959, 16
        %v3252 = vrot.slane %v3250, 5
        %v3253 = vor.u32 %v3249, %v3252
        %v3254 = vrot.slane %v3253, 4
        %v3256 = vshll.u32 %v2960, 16
        %v3258 = vrot.slane %v3256, 5
        %v3259 = vsel %vm3005, %v3254, %v3258
        %v3260 = vshrl.u32 %v2960, 16
        %v3262 = vrot.slane %v3260, 4
        %v3263 = vor.u32 %v3262, %v3258
        %v3264 = vrot.slane %v3263, 4
        %v3266 = vshll.u32 %v2997, 16
        %v3268 = vrot.slane %v3266, 5
        %v3269 = vsel %vm3005, %v3264, %v3268
        %v3271 = vshrl.u32 %v2961, 16
        %v3273 = vrot.slane %v3271, 4
        %v3274 = vshll.u32 %v2961, 16
        %v3276 = vrot.slane %v3274, 5
        %v3277 = vor.u32 %v3273, %v3276
        %v3278 = vrot.slane %v3277, 4
        %v3280 = vshll.u32 %v2962, 16
        %v3282 = vrot.slane %v3280, 5
        %v3283 = vsel %vm3005, %v3278, %v3282
        %v3284 = vshrl.u32 %v2962, 16
        %v3286 = vrot.slane %v3284, 4
        %v3287 = vor.u32 %v3286, %v3282
        %v3288 = vrot.slane %v3287, 4
        %v3290 = vshll.u32 %v2998, 16
        %v3292 = vrot.slane %v3290, 5
        %v3293 = vsel %vm3005, %v3288, %v3292
        %v3295 = vshrl.u32 %v2963, 16
        %v3297 = vrot.slane %v3295, 4
        %v3298 = vshll.u32 %v2963, 16
        %v3300 = vrot.slane %v3298, 5
        %v3301 = vor.u32 %v3297, %v3300
        %v3302 = vrot.slane %v3301, 4
        %v3304 = vshll.u32 %v2964, 16
        %v3306 = vrot.slane %v3304, 5
        %v3307 = vsel %vm3005, %v3302, %v3306
        %v3308 = vshrl.u32 %v2964, 16
        %v3310 = vrot.slane %v3308, 4
        %v3311 = vor.u32 %v3310, %v3306
        %v3312 = vrot.slane %v3311, 4
        %v3314 = vshll.u32 %v2999, 16
        %v3316 = vrot.slane %v3314, 5
        %v3317 = vsel %vm3005, %v3312, %v3316
        %v3319 = vshrl.u32 %v2965, 16
        %v3321 = vrot.slane %v3319, 4
        %v3322 = vshll.u32 %v2965, 16
        %v3324 = vrot.slane %v3322, 5
        %v3325 = vor.u32 %v3321, %v3324
        %v3326 = vrot.slane %v3325, 4
        %v3328 = vshll.u32 %v2966, 16
        %v3330 = vrot.slane %v3328, 5
        %v3331 = vsel %vm3005, %v3326, %v3330
        %v3332 = vshrl.u32 %v2966, 16
        %v3334 = vrot.slane %v3332, 4
        %v3335 = vor.u32 %v3334, %v3330
        %v3336 = vrot.slane %v3335, 4
        %v3338 = vshll.u32 %v3000, 16
        %v3340 = vrot.slane %v3338, 5
        %v3341 = vsel %vm3005, %v3336, %v3340
        %v3343 = vshrl.u32 %v2967, 16
        %v3345 = vrot.slane %v3343, 4
        %v3346 = vshll.u32 %v2967, 16
        %v3348 = vrot.slane %v3346, 5
        %v3349 = vor.u32 %v3345, %v3348
        %v3350 = vrot.slane %v3349, 4
        %v3352 = vshll.u32 %v2968, 16
        %v3354 = vrot.slane %v3352, 5
        %v3355 = vsel %vm3005, %v3350, %v3354
        %v3356 = vshrl.u32 %v2968, 16
        %v3358 = vrot.slane %v3356, 4
        %v3359 = vor.u32 %v3358, %v3354
        %v3360 = vrot.slane %v3359, 4
        %v3362 = vshll.u32 %v3001, 16
        %v3364 = vrot.slane %v3362, 5
        %v3365 = vsel %vm3005, %v3360, %v3364
        %v3367 = vshrl.u32 %v2969, 16
        %v3369 = vrot.slane %v3367, 4
        %v3370 = vshll.u32 %v2969, 16
        %v3372 = vrot.slane %v3370, 5
        %v3373 = vor.u32 %v3369, %v3372
        %v3374 = vrot.slane %v3373, 4
        %v3376 = vshll.u32 %v2970, 16
        %v3378 = vrot.slane %v3376, 5
        %v3379 = vsel %vm3005, %v3374, %v3378
        %v3380 = vshrl.u32 %v2970, 16
        %v3382 = vrot.slane %v3380, 4
        %v3383 = vor.u32 %v3382, %v3378
        %v3384 = vrot.slane %v3383, 4
        %v3386 = vshll.u32 %v3002, 16
        %v3388 = vrot.slane %v3386, 5
        %v3389 = vsel %vm3005, %v3384, %v3388
        %s3390 = scalar_lea.vmem %s3, 64
        %v3391 = vld [vmem:[%s3390] sm:$0xf]
        %v3392 = vld [vmem:[%s3390 + $0x4] sm:$0xf]
        %v3393 = vld [vmem:[%s3390 + $0x8] sm:$0xf]
        %v3394 = vld [vmem:[%s3390 + $0xc] sm:$0xf]
        %v3395 = vld [vmem:[%s3390 + $0x10] sm:$0xf]
        %v3396 = vld [vmem:[%s3390 + $0x14] sm:$0xf]
        %v3397 = vld [vmem:[%s3390 + $0x18] sm:$0xf]
        %v3398 = vld [vmem:[%s3390 + $0x1c] sm:$0xf]
        %v3399 = vld [vmem:[%s3390 + $0x20] sm:$0xf]
        %v3400 = vld [vmem:[%s3390 + $0x24] sm:$0xf]
        %v3401 = vld [vmem:[%s3390 + $0x28] sm:$0xf]
        %v3402 = vld [vmem:[%s3390 + $0x2c] sm:$0xf]
        %v3403 = vld [vmem:[%s3390 + $0x30] sm:$0xf]
        %v3404 = vld [vmem:[%s3390 + $0x34] sm:$0xf]
        %v3405 = vld [vmem:[%s3390 + $0x38] sm:$0xf]
        %v3406 = vld [vmem:[%s3390 + $0x3c] sm:$0xf]
        %v3407 = vunpack.c.l.b16 %v3019
        %v3408 = vunpack.c.l.b16 %v3029
        %v3409 = vunpack.c.l.b16 %v3043
        %v3410 = vunpack.c.l.b16 %v3053
        %v3411 = vunpack.c.l.b16 %v3067
        %v3412 = vunpack.c.l.b16 %v3077
        %v3413 = vunpack.c.l.b16 %v3091
        %v3414 = vunpack.c.l.b16 %v3101
        %v3415 = vunpack.c.l.b16 %v3115
        %v3416 = vunpack.c.l.b16 %v3125
        %v3417 = vunpack.c.l.b16 %v3139
        %v3418 = vunpack.c.l.b16 %v3149
        %v3419 = vunpack.c.l.b16 %v3163
        %v3420 = vunpack.c.l.b16 %v3173
        %v3421 = vunpack.c.l.b16 %v3187
        %v3422 = vunpack.c.l.b16 %v3197
        %v3423 = vunpack.c.l.b16 %v3211
        %v3424 = vunpack.c.l.b16 %v3221
        %v3425 = vunpack.c.l.b16 %v3235
        %v3426 = vunpack.c.l.b16 %v3245
        %v3427 = vunpack.c.l.b16 %v3259
        %v3428 = vunpack.c.l.b16 %v3269
        %v3429 = vunpack.c.l.b16 %v3283
        %v3430 = vunpack.c.l.b16 %v3293
        %v3431 = vunpack.c.l.b16 %v3307
        %v3432 = vunpack.c.l.b16 %v3317
        %v3433 = vunpack.c.l.b16 %v3331
        %v3434 = vunpack.c.l.b16 %v3341
        %v3435 = vunpack.c.l.b16 %v3355
        %v3436 = vunpack.c.l.b16 %v3365
        %v3437 = vunpack.c.l.b16 %v3379
        %v3438 = vunpack.c.l.b16 %v3389
        %v3439 = vpack.c.b16 %v3408, %v3407
        %v3440 = vpack.c.b16 %v3410, %v3409
        %v3441 = vpack.c.b16 %v3412, %v3411
        %v3442 = vpack.c.b16 %v3414, %v3413
        %v3443 = vpack.c.b16 %v3416, %v3415
        %v3444 = vpack.c.b16 %v3418, %v3417
        %v3445 = vpack.c.b16 %v3420, %v3419
        %v3446 = vpack.c.b16 %v3422, %v3421
        %v3447 = vpack.c.b16 %v3424, %v3423
        %v3448 = vpack.c.b16 %v3426, %v3425
        %v3449 = vpack.c.b16 %v3428, %v3427
        %v3450 = vpack.c.b16 %v3430, %v3429
        %v3451 = vpack.c.b16 %v3432, %v3431
        %v3452 = vpack.c.b16 %v3434, %v3433
        %v3453 = vpack.c.b16 %v3436, %v3435
        %v3454 = vpack.c.b16 %v3438, %v3437
        %v3487 = vunpack.c.l.b16 %v3391
        %v3488 = vunpack.c.l.b16 %v3392
        %v3489 = vunpack.c.l.b16 %v3393
        %v3490 = vunpack.c.l.b16 %v3394
        %v3491 = vunpack.c.l.b16 %v3395
        %v3492 = vunpack.c.l.b16 %v3396
        %v3493 = vunpack.c.l.b16 %v3397
        %v3494 = vunpack.c.l.b16 %v3398
        %v3495 = vunpack.c.l.b16 %v3399
        %v3496 = vunpack.c.l.b16 %v3400
        %v3497 = vunpack.c.l.b16 %v3401
        %v3498 = vunpack.c.l.b16 %v3402
        %v3499 = vunpack.c.l.b16 %v3403
        %v3500 = vunpack.c.l.b16 %v3404
        %v3501 = vunpack.c.l.b16 %v3405
        %v3502 = vunpack.c.l.b16 %v3406
        %v3503 = vpack.c.b16 %v3488, %v3487
        %v3504 = vpack.c.b16 %v3490, %v3489
        %v3505 = vpack.c.b16 %v3492, %v3491
        %v3506 = vpack.c.b16 %v3494, %v3493
        %v3507 = vpack.c.b16 %v3496, %v3495
        %v3508 = vpack.c.b16 %v3498, %v3497
        %v3509 = vpack.c.b16 %v3500, %v3499
        %v3510 = vpack.c.b16 %v3502, %v3501
        %3519 = vmatpush.bf16.msra.mxu0 %v3510
        %3520 = vmatpush.bf16.msra.mxu0 %v3509
        %3521 = vmatpush.bf16.msra.mxu0 %v3508
        %3522 = vmatpush.bf16.msra.mxu0 %v3507
        %3523 = vmatpush.bf16.msra.mxu0 %v3506
        %3524 = vmatpush.bf16.msra.mxu0 %v3505
        %3525 = vmatpush.bf16.msra.mxu0 %v3504
        %3526 = vmatpush.bf16.msra.mxu0 %v3503
        %3527 = vmatmul.bf16.gmra.mxu0 %v3439
        %v3528 = vpop.f32.mrf.mxu0
        %v3529 = vadd.f32 0.0, %v3528
        %v3530 = vpop.f32.mrf.mxu0
        %v3531 = vadd.f32 0.0, %v3530
        %3532 = vmatmul.bf16.gmra.mxu0 %v3440
        %v3533 = vpop.f32.mrf.mxu0
        %v3534 = vadd.f32 0.0, %v3533
        %v3535 = vpop.f32.mrf.mxu0
        %v3536 = vadd.f32 0.0, %v3535
        %3537 = vmatmul.bf16.gmra.mxu0 %v3441
        %v3538 = vpop.f32.mrf.mxu0
        %v3539 = vadd.f32 0.0, %v3538
        %v3540 = vpop.f32.mrf.mxu0
        %v3541 = vadd.f32 0.0, %v3540
        %3542 = vmatmul.bf16.gmra.mxu0 %v3442
        %v3543 = vpop.f32.mrf.mxu0
        %v3544 = vadd.f32 0.0, %v3543
        %v3545 = vpop.f32.mrf.mxu0
        %v3546 = vadd.f32 0.0, %v3545
        %3547 = vmatmul.bf16.gmra.mxu0 %v3443
        %v3548 = vpop.f32.mrf.mxu0
        %v3549 = vadd.f32 0.0, %v3548
        %v3550 = vpop.f32.mrf.mxu0
        %v3551 = vadd.f32 0.0, %v3550
        %3552 = vmatmul.bf16.gmra.mxu0 %v3444
        %v3553 = vpop.f32.mrf.mxu0
        %v3554 = vadd.f32 0.0, %v3553
        %v3555 = vpop.f32.mrf.mxu0
        %v3556 = vadd.f32 0.0, %v3555
        %3557 = vmatmul.bf16.gmra.mxu0 %v3445
        %v3558 = vpop.f32.mrf.mxu0
        %v3559 = vadd.f32 0.0, %v3558
        %v3560 = vpop.f32.mrf.mxu0
        %v3561 = vadd.f32 0.0, %v3560
        %3562 = vmatmul.bf16.gmra.mxu0 %v3446
        %v3563 = vpop.f32.mrf.mxu0
        %v3564 = vadd.f32 0.0, %v3563
        %v3565 = vpop.f32.mrf.mxu0
        %v3566 = vadd.f32 0.0, %v3565
        %3567 = vmatmul.bf16.gmra.mxu0 %v3447
        %v3568 = vpop.f32.mrf.mxu0
        %v3569 = vadd.f32 0.0, %v3568
        %v3570 = vpop.f32.mrf.mxu0
        %v3571 = vadd.f32 0.0, %v3570
        %3572 = vmatmul.bf16.gmra.mxu0 %v3448
        %v3573 = vpop.f32.mrf.mxu0
        %v3574 = vadd.f32 0.0, %v3573
        %v3575 = vpop.f32.mrf.mxu0
        %v3576 = vadd.f32 0.0, %v3575
        %3577 = vmatmul.bf16.gmra.mxu0 %v3449
        %v3578 = vpop.f32.mrf.mxu0
        %v3579 = vadd.f32 0.0, %v3578
        %v3580 = vpop.f32.mrf.mxu0
        %v3581 = vadd.f32 0.0, %v3580
        %3582 = vmatmul.bf16.gmra.mxu0 %v3450
        %v3583 = vpop.f32.mrf.mxu0
        %v3584 = vadd.f32 0.0, %v3583
        %v3585 = vpop.f32.mrf.mxu0
        %v3586 = vadd.f32 0.0, %v3585
        %3587 = vmatmul.bf16.gmra.mxu0 %v3451
        %v3588 = vpop.f32.mrf.mxu0
        %v3589 = vadd.f32 0.0, %v3588
        %v3590 = vpop.f32.mrf.mxu0
        %v3591 = vadd.f32 0.0, %v3590
        %3592 = vmatmul.bf16.gmra.mxu0 %v3452
        %v3593 = vpop.f32.mrf.mxu0
        %v3594 = vadd.f32 0.0, %v3593
        %v3595 = vpop.f32.mrf.mxu0
        %v3596 = vadd.f32 0.0, %v3595
        %3597 = vmatmul.bf16.gmra.mxu0 %v3453
        %v3598 = vpop.f32.mrf.mxu0
        %v3599 = vadd.f32 0.0, %v3598
        %v3600 = vpop.f32.mrf.mxu0
        %v3601 = vadd.f32 0.0, %v3600
        %3602 = vmatmul.bf16.gmra.mxu0 %v3454
        %v3603 = vpop.f32.mrf.mxu0
        %v3604 = vadd.f32 0.0, %v3603
        %v3605 = vpop.f32.mrf.mxu0
        %v3606 = vadd.f32 0.0, %v3605
        %3607 = vdwg.mxu0
        %v3640 = vunpack.c.l.b16 %v2939
        %v3641 = vunpack.c.l.b16 %v2940
        %v3642 = vunpack.c.l.b16 %v2941
        %v3643 = vunpack.c.l.b16 %v2942
        %v3644 = vunpack.c.l.b16 %v2943
        %v3645 = vunpack.c.l.b16 %v2944
        %v3646 = vunpack.c.l.b16 %v2945
        %v3647 = vunpack.c.l.b16 %v2946
        %v3648 = vunpack.c.l.b16 %v2947
        %v3649 = vunpack.c.l.b16 %v2948
        %v3650 = vunpack.c.l.b16 %v2949
        %v3651 = vunpack.c.l.b16 %v2950
        %v3652 = vunpack.c.l.b16 %v2951
        %v3653 = vunpack.c.l.b16 %v2952
        %v3654 = vunpack.c.l.b16 %v2953
        %v3655 = vunpack.c.l.b16 %v2954
        %v3656 = vunpack.c.l.b16 %v2955
        %v3657 = vunpack.c.l.b16 %v2956
        %v3658 = vunpack.c.l.b16 %v2957
        %v3659 = vunpack.c.l.b16 %v2958
        %v3660 = vunpack.c.l.b16 %v2959
        %v3661 = vunpack.c.l.b16 %v2960
        %v3662 = vunpack.c.l.b16 %v2961
        %v3663 = vunpack.c.l.b16 %v2962
        %v3664 = vunpack.c.l.b16 %v2963
        %v3665 = vunpack.c.l.b16 %v2964
        %v3666 = vunpack.c.l.b16 %v2965
        %v3667 = vunpack.c.l.b16 %v2966
        %v3668 = vunpack.c.l.b16 %v2967
        %v3669 = vunpack.c.l.b16 %v2968
        %v3670 = vunpack.c.l.b16 %v2969
        %v3671 = vunpack.c.l.b16 %v2970
        %v3672 = vpack.c.b16 %v3641, %v3640
        %v3673 = vpack.c.b16 %v3643, %v3642
        %v3674 = vpack.c.b16 %v3645, %v3644
        %v3675 = vpack.c.b16 %v3647, %v3646
        %v3676 = vpack.c.b16 %v3649, %v3648
        %v3677 = vpack.c.b16 %v3651, %v3650
        %v3678 = vpack.c.b16 %v3653, %v3652
        %v3679 = vpack.c.b16 %v3655, %v3654
        %v3680 = vpack.c.b16 %v3657, %v3656
        %v3681 = vpack.c.b16 %v3659, %v3658
        %v3682 = vpack.c.b16 %v3661, %v3660
        %v3683 = vpack.c.b16 %v3663, %v3662
        %v3684 = vpack.c.b16 %v3665, %v3664
        %v3685 = vpack.c.b16 %v3667, %v3666
        %v3686 = vpack.c.b16 %v3669, %v3668
        %v3687 = vpack.c.b16 %v3671, %v3670
        %v3720 = vunpack.c.l.b16 %v2971
        %v3721 = vunpack.c.l.b16 %v2972
        %v3722 = vunpack.c.l.b16 %v2973
        %v3723 = vunpack.c.l.b16 %v2974
        %v3724 = vunpack.c.l.b16 %v2975
        %v3725 = vunpack.c.l.b16 %v2976
        %v3726 = vunpack.c.l.b16 %v2977
        %v3727 = vunpack.c.l.b16 %v2978
        %v3728 = vunpack.c.l.b16 %v2979
        %v3729 = vunpack.c.l.b16 %v2980
        %v3730 = vunpack.c.l.b16 %v2981
        %v3731 = vunpack.c.l.b16 %v2982
        %v3732 = vunpack.c.l.b16 %v2983
        %v3733 = vunpack.c.l.b16 %v2984
        %v3734 = vunpack.c.l.b16 %v2985
        %v3735 = vunpack.c.l.b16 %v2986
        %v3736 = vpack.c.b16 %v3721, %v3720
        %v3737 = vpack.c.b16 %v3723, %v3722
        %v3738 = vpack.c.b16 %v3725, %v3724
        %v3739 = vpack.c.b16 %v3727, %v3726
        %v3740 = vpack.c.b16 %v3729, %v3728
        %v3741 = vpack.c.b16 %v3731, %v3730
        %v3742 = vpack.c.b16 %v3733, %v3732
        %v3743 = vpack.c.b16 %v3735, %v3734
        %3752 = vmatpush.bf16.msra.mxu0 %v3743
        %3753 = vmatpush.bf16.msra.mxu0 %v3742
        %3754 = vmatpush.bf16.msra.mxu0 %v3741
        %3755 = vmatpush.bf16.msra.mxu0 %v3740
        %3756 = vmatpush.bf16.msra.mxu0 %v3739
        %3757 = vmatpush.bf16.msra.mxu0 %v3738
        %3758 = vmatpush.bf16.msra.mxu0 %v3737
        %3759 = vmatpush.bf16.msra.mxu0 %v3736
        %3760 = vmatmul.bf16.gmra.mxu0 %v3672
        %v3761 = vpop.f32.mrf.mxu0
        %v3762 = vadd.f32 %v3529, %v3761
        %v3763 = vpop.f32.mrf.mxu0
        %v3764 = vadd.f32 %v3531, %v3763
        %3765 = vmatmul.bf16.gmra.mxu0 %v3673
        %v3766 = vpop.f32.mrf.mxu0
        %v3767 = vadd.f32 %v3534, %v3766
        %v3768 = vpop.f32.mrf.mxu0
        %v3769 = vadd.f32 %v3536, %v3768
        %3770 = vmatmul.bf16.gmra.mxu0 %v3674
        %v3771 = vpop.f32.mrf.mxu0
        %v3772 = vadd.f32 %v3539, %v3771
        %v3773 = vpop.f32.mrf.mxu0
        %v3774 = vadd.f32 %v3541, %v3773
        %3775 = vmatmul.bf16.gmra.mxu0 %v3675
        %v3776 = vpop.f32.mrf.mxu0
        %v3777 = vadd.f32 %v3544, %v3776
        %v3778 = vpop.f32.mrf.mxu0
        %v3779 = vadd.f32 %v3546, %v3778
        %3780 = vmatmul.bf16.gmra.mxu0 %v3676
        %v3781 = vpop.f32.mrf.mxu0
        %v3782 = vadd.f32 %v3549, %v3781
        %v3783 = vpop.f32.mrf.mxu0
        %v3784 = vadd.f32 %v3551, %v3783
        %3785 = vmatmul.bf16.gmra.mxu0 %v3677
        %v3786 = vpop.f32.mrf.mxu0
        %v3787 = vadd.f32 %v3554, %v3786
        %v3788 = vpop.f32.mrf.mxu0
        %v3789 = vadd.f32 %v3556, %v3788
        %3790 = vmatmul.bf16.gmra.mxu0 %v3678
        %v3791 = vpop.f32.mrf.mxu0
        %v3792 = vadd.f32 %v3559, %v3791
        %v3793 = vpop.f32.mrf.mxu0
        %v3794 = vadd.f32 %v3561, %v3793
        %3795 = vmatmul.bf16.gmra.mxu0 %v3679
        %v3796 = vpop.f32.mrf.mxu0
        %v3797 = vadd.f32 %v3564, %v3796
        %v3798 = vpop.f32.mrf.mxu0
        %v3799 = vadd.f32 %v3566, %v3798
        %3800 = vmatmul.bf16.gmra.mxu0 %v3680
        %v3801 = vpop.f32.mrf.mxu0
        %v3802 = vadd.f32 %v3569, %v3801
        %v3803 = vpop.f32.mrf.mxu0
        %v3804 = vadd.f32 %v3571, %v3803
        %3805 = vmatmul.bf16.gmra.mxu0 %v3681
        %v3806 = vpop.f32.mrf.mxu0
        %v3807 = vadd.f32 %v3574, %v3806
        %v3808 = vpop.f32.mrf.mxu0
        %v3809 = vadd.f32 %v3576, %v3808
        %3810 = vmatmul.bf16.gmra.mxu0 %v3682
        %v3811 = vpop.f32.mrf.mxu0
        %v3812 = vadd.f32 %v3579, %v3811
        %v3813 = vpop.f32.mrf.mxu0
        %v3814 = vadd.f32 %v3581, %v3813
        %3815 = vmatmul.bf16.gmra.mxu0 %v3683
        %v3816 = vpop.f32.mrf.mxu0
        %v3817 = vadd.f32 %v3584, %v3816
        %v3818 = vpop.f32.mrf.mxu0
        %v3819 = vadd.f32 %v3586, %v3818
        %3820 = vmatmul.bf16.gmra.mxu0 %v3684
        %v3821 = vpop.f32.mrf.mxu0
        %v3822 = vadd.f32 %v3589, %v3821
        %v3823 = vpop.f32.mrf.mxu0
        %v3824 = vadd.f32 %v3591, %v3823
        %3825 = vmatmul.bf16.gmra.mxu0 %v3685
        %v3826 = vpop.f32.mrf.mxu0
        %v3827 = vadd.f32 %v3594, %v3826
        %v3828 = vpop.f32.mrf.mxu0
        %v3829 = vadd.f32 %v3596, %v3828
        %3830 = vmatmul.bf16.gmra.mxu0 %v3686
        %v3831 = vpop.f32.mrf.mxu0
        %v3832 = vadd.f32 %v3599, %v3831
        %v3833 = vpop.f32.mrf.mxu0
        %v3834 = vadd.f32 %v3601, %v3833
        %3835 = vmatmul.bf16.gmra.mxu0 %v3687
        %v3836 = vpop.f32.mrf.mxu0
        %v3837 = vadd.f32 %v3604, %v3836
        %v3838 = vpop.f32.mrf.mxu0
        %v3839 = vadd.f32 %v3606, %v3838
        %3840 = vdwg.mxu0
        %v3841 = vld [vmem:[#allocation3] sm:$0xe]
        %v3842 = vld [vmem:[#allocation3 + $0xc] sm:$0xe]
        %v3843 = vld [vmem:[#allocation3 + $0x18] sm:$0xe]
        %v3844 = vld [vmem:[#allocation3 + $0x24] sm:$0xe]
        %v3845 = vld [vmem:[#allocation3 + $0x30] sm:$0xe]
        %v3846 = vld [vmem:[#allocation3 + $0x3c] sm:$0xe]
        %v3847 = vld [vmem:[#allocation3 + $0x48] sm:$0xe]
        %v3848 = vld [vmem:[#allocation3 + $0x54] sm:$0xe]
        %v3849 = vld [vmem:[#allocation3 + $0x60] sm:$0xe]
        %v3850 = vld [vmem:[#allocation3 + $0x6c] sm:$0xe]
        %v3851 = vld [vmem:[#allocation3 + $0x78] sm:$0xe]
        %v3852 = vld [vmem:[#allocation3 + $0x84] sm:$0xe]
        %v3853 = vld [vmem:[#allocation3 + $0x90] sm:$0xe]
        %v3854 = vld [vmem:[#allocation3 + $0x9c] sm:$0xe]
        %v3855 = vld [vmem:[#allocation3 + $0xa8] sm:$0xe]
        %v3856 = vld [vmem:[#allocation3 + $0xb4] sm:$0xe]
        %vm3889 = vcmask 1042432
        %vm3890 = vcmask 1046532
        %vm3891 = vmor %vm3889, %vm3890
        %v3892 = vrot.slane %v3841, 5
        %v3893 = vrot.slane %v3892, 4
        %v3894 = vrot.slane %v2940, 5
        %v3895 = vsel %vm3891, %v3893, %v3894
        %v3896 = vrot.slane %v3894, 4
        %v3897 = vrot.slane %v2987, 5
        %v3898 = vsel %vm3891, %v3896, %v3897
        %v3899 = vrot.slane %v3842, 5
        %v3900 = vrot.slane %v3899, 4
        %v3901 = vrot.slane %v2942, 5
        %v3902 = vsel %vm3891, %v3900, %v3901
        %v3903 = vrot.slane %v3901, 4
        %v3904 = vrot.slane %v2988, 5
        %v3905 = vsel %vm3891, %v3903, %v3904
        %v3906 = vrot.slane %v3843, 5
        %v3907 = vrot.slane %v3906, 4
        %v3908 = vrot.slane %v2944, 5
        %v3909 = vsel %vm3891, %v3907, %v3908
        %v3910 = vrot.slane %v3908, 4
        %v3911 = vrot.slane %v2989, 5
        %v3912 = vsel %vm3891, %v3910, %v3911
        %v3913 = vrot.slane %v3844, 5
        %v3914 = vrot.slane %v3913, 4
        %v3915 = vrot.slane %v2946, 5
        %v3916 = vsel %vm3891, %v3914, %v3915
        %v3917 = vrot.slane %v3915, 4
        %v3918 = vrot.slane %v2990, 5
        %v3919 = vsel %vm3891, %v3917, %v3918
        %v3920 = vrot.slane %v3845, 5
        %v3921 = vrot.slane %v3920, 4
        %v3922 = vrot.slane %v2948, 5
        %v3923 = vsel %vm3891, %v3921, %v3922
        %v3924 = vrot.slane %v3922, 4
        %v3925 = vrot.slane %v2991, 5
        %v3926 = vsel %vm3891, %v3924, %v3925
        %v3927 = vrot.slane %v3846, 5
        %v3928 = vrot.slane %v3927, 4
        %v3929 = vrot.slane %v2950, 5
        %v3930 = vsel %vm3891, %v3928, %v3929
        %v3931 = vrot.slane %v3929, 4
        %v3932 = vrot.slane %v2992, 5
        %v3933 = vsel %vm3891, %v3931, %v3932
        %v3934 = vrot.slane %v3847, 5
        %v3935 = vrot.slane %v3934, 4
        %v3936 = vrot.slane %v2952, 5
        %v3937 = vsel %vm3891, %v3935, %v3936
        %v3938 = vrot.slane %v3936, 4
        %v3939 = vrot.slane %v2993, 5
        %v3940 = vsel %vm3891, %v3938, %v3939
        %v3941 = vrot.slane %v3848, 5
        %v3942 = vrot.slane %v3941, 4
        %v3943 = vrot.slane %v2954, 5
        %v3944 = vsel %vm3891, %v3942, %v3943
        %v3945 = vrot.slane %v3943, 4
        %v3946 = vrot.slane %v2994, 5
        %v3947 = vsel %vm3891, %v3945, %v3946
        %v3948 = vrot.slane %v3849, 5
        %v3949 = vrot.slane %v3948, 4
        %v3950 = vrot.slane %v2956, 5
        %v3951 = vsel %vm3891, %v3949, %v3950
        %v3952 = vrot.slane %v3950, 4
        %v3953 = vrot.slane %v2995, 5
        %v3954 = vsel %vm3891, %v3952, %v3953
        %v3955 = vrot.slane %v3850, 5
        %v3956 = vrot.slane %v3955, 4
        %v3957 = vrot.slane %v2958, 5
        %v3958 = vsel %vm3891, %v3956, %v3957
        %v3959 = vrot.slane %v3957, 4
        %v3960 = vrot.slane %v2996, 5
        %v3961 = vsel %vm3891, %v3959, %v3960
        %v3962 = vrot.slane %v3851, 5
        %v3963 = vrot.slane %v3962, 4
        %v3964 = vrot.slane %v2960, 5
        %v3965 = vsel %vm3891, %v3963, %v3964
        %v3966 = vrot.slane %v3964, 4
        %v3967 = vrot.slane %v2997, 5
        %v3968 = vsel %vm3891, %v3966, %v3967
        %v3969 = vrot.slane %v3852, 5
        %v3970 = vrot.slane %v3969, 4
        %v3971 = vrot.slane %v2962, 5
        %v3972 = vsel %vm3891, %v3970, %v3971
        %v3973 = vrot.slane %v3971, 4
        %v3974 = vrot.slane %v2998, 5
        %v3975 = vsel %vm3891, %v3973, %v3974
        %v3976 = vrot.slane %v3853, 5
        %v3977 = vrot.slane %v3976, 4
        %v3978 = vrot.slane %v2964, 5
        %v3979 = vsel %vm3891, %v3977, %v3978
        %v3980 = vrot.slane %v3978, 4
        %v3981 = vrot.slane %v2999, 5
        %v3982 = vsel %vm3891, %v3980, %v3981
        %v3983 = vrot.slane %v3854, 5
        %v3984 = vrot.slane %v3983, 4
        %v3985 = vrot.slane %v2966, 5
        %v3986 = vsel %vm3891, %v3984, %v3985
        %v3987 = vrot.slane %v3985, 4
        %v3988 = vrot.slane %v3000, 5
        %v3989 = vsel %vm3891, %v3987, %v3988
        %v3990 = vrot.slane %v3855, 5
        %v3991 = vrot.slane %v3990, 4
        %v3992 = vrot.slane %v2968, 5
        %v3993 = vsel %vm3891, %v3991, %v3992
        %v3994 = vrot.slane %v3992, 4
        %v3995 = vrot.slane %v3001, 5
        %v3996 = vsel %vm3891, %v3994, %v3995
        %v3997 = vrot.slane %v3856, 5
        %v3998 = vrot.slane %v3997, 4
        %v3999 = vrot.slane %v2970, 5
        %v4000 = vsel %vm3891, %v3998, %v3999
        %v4001 = vrot.slane %v3999, 4
        %v4002 = vrot.slane %v3002, 5
        %v4003 = vsel %vm3891, %v4001, %v4002
        %s4004 = scalar_lea.vmem %s3, 128
        %v4005 = vld [vmem:[%s4004] sm:$0xf]
        %v4006 = vld [vmem:[%s4004 + $0x4] sm:$0xf]
        %v4007 = vld [vmem:[%s4004 + $0x8] sm:$0xf]
        %v4008 = vld [vmem:[%s4004 + $0xc] sm:$0xf]
        %v4009 = vld [vmem:[%s4004 + $0x10] sm:$0xf]
        %v4010 = vld [vmem:[%s4004 + $0x14] sm:$0xf]
        %v4011 = vld [vmem:[%s4004 + $0x18] sm:$0xf]
        %v4012 = vld [vmem:[%s4004 + $0x1c] sm:$0xf]
        %v4013 = vld [vmem:[%s4004 + $0x20] sm:$0xf]
        %v4014 = vld [vmem:[%s4004 + $0x24] sm:$0xf]
        %v4015 = vld [vmem:[%s4004 + $0x28] sm:$0xf]
        %v4016 = vld [vmem:[%s4004 + $0x2c] sm:$0xf]
        %v4017 = vld [vmem:[%s4004 + $0x30] sm:$0xf]
        %v4018 = vld [vmem:[%s4004 + $0x34] sm:$0xf]
        %v4019 = vld [vmem:[%s4004 + $0x38] sm:$0xf]
        %v4020 = vld [vmem:[%s4004 + $0x3c] sm:$0xf]
        %v4021 = vunpack.c.l.b16 %v3895
        %v4022 = vunpack.c.l.b16 %v3898
        %v4023 = vunpack.c.l.b16 %v3902
        %v4024 = vunpack.c.l.b16 %v3905
        %v4025 = vunpack.c.l.b16 %v3909
        %v4026 = vunpack.c.l.b16 %v3912
        %v4027 = vunpack.c.l.b16 %v3916
        %v4028 = vunpack.c.l.b16 %v3919
        %v4029 = vunpack.c.l.b16 %v3923
        %v4030 = vunpack.c.l.b16 %v3926
        %v4031 = vunpack.c.l.b16 %v3930
        %v4032 = vunpack.c.l.b16 %v3933
        %v4033 = vunpack.c.l.b16 %v3937
        %v4034 = vunpack.c.l.b16 %v3940
        %v4035 = vunpack.c.l.b16 %v3944
        %v4036 = vunpack.c.l.b16 %v3947
        %v4037 = vunpack.c.l.b16 %v3951
        %v4038 = vunpack.c.l.b16 %v3954
        %v4039 = vunpack.c.l.b16 %v3958
        %v4040 = vunpack.c.l.b16 %v3961
        %v4041 = vunpack.c.l.b16 %v3965
        %v4042 = vunpack.c.l.b16 %v3968
        %v4043 = vunpack.c.l.b16 %v3972
        %v4044 = vunpack.c.l.b16 %v3975
        %v4045 = vunpack.c.l.b16 %v3979
        %v4046 = vunpack.c.l.b16 %v3982
        %v4047 = vunpack.c.l.b16 %v3986
        %v4048 = vunpack.c.l.b16 %v3989
        %v4049 = vunpack.c.l.b16 %v3993
        %v4050 = vunpack.c.l.b16 %v3996
        %v4051 = vunpack.c.l.b16 %v4000
        %v4052 = vunpack.c.l.b16 %v4003
        %v4053 = vpack.c.b16 %v4022, %v4021
        %v4054 = vpack.c.b16 %v4024, %v4023
        %v4055 = vpack.c.b16 %v4026, %v4025
        %v4056 = vpack.c.b16 %v4028, %v4027
        %v4057 = vpack.c.b16 %v4030, %v4029
        %v4058 = vpack.c.b16 %v4032, %v4031
        %v4059 = vpack.c.b16 %v4034, %v4033
        %v4060 = vpack.c.b16 %v4036, %v4035
        %v4061 = vpack.c.b16 %v4038, %v4037
        %v4062 = vpack.c.b16 %v4040, %v4039
        %v4063 = vpack.c.b16 %v4042, %v4041
        %v4064 = vpack.c.b16 %v4044, %v4043
        %v4065 = vpack.c.b16 %v4046, %v4045
        %v4066 = vpack.c.b16 %v4048, %v4047
        %v4067 = vpack.c.b16 %v4050, %v4049
        %v4068 = vpack.c.b16 %v4052, %v4051
        %v4101 = vunpack.c.l.b16 %v4005
        %v4102 = vunpack.c.l.b16 %v4006
        %v4103 = vunpack.c.l.b16 %v4007
        %v4104 = vunpack.c.l.b16 %v4008
        %v4105 = vunpack.c.l.b16 %v4009
        %v4106 = vunpack.c.l.b16 %v4010
        %v4107 = vunpack.c.l.b16 %v4011
        %v4108 = vunpack.c.l.b16 %v4012
        %v4109 = vunpack.c.l.b16 %v4013
        %v4110 = vunpack.c.l.b16 %v4014
        %v4111 = vunpack.c.l.b16 %v4015
        %v4112 = vunpack.c.l.b16 %v4016
        %v4113 = vunpack.c.l.b16 %v4017
        %v4114 = vunpack.c.l.b16 %v4018
        %v4115 = vunpack.c.l.b16 %v4019
        %v4116 = vunpack.c.l.b16 %v4020
        %v4117 = vpack.c.b16 %v4102, %v4101
        %v4118 = vpack.c.b16 %v4104, %v4103
        %v4119 = vpack.c.b16 %v4106, %v4105
        %v4120 = vpack.c.b16 %v4108, %v4107
        %v4121 = vpack.c.b16 %v4110, %v4109
        %v4122 = vpack.c.b16 %v4112, %v4111
        %v4123 = vpack.c.b16 %v4114, %v4113
        %v4124 = vpack.c.b16 %v4116, %v4115
        %4133 = vmatpush.bf16.msra.mxu0 %v4124
        %4134 = vmatpush.bf16.msra.mxu0 %v4123
        %4135 = vmatpush.bf16.msra.mxu0 %v4122
        %4136 = vmatpush.bf16.msra.mxu0 %v4121
        %4137 = vmatpush.bf16.msra.mxu0 %v4120
        %4138 = vmatpush.bf16.msra.mxu0 %v4119
        %4139 = vmatpush.bf16.msra.mxu0 %v4118
        %4140 = vmatpush.bf16.msra.mxu0 %v4117
        %4141 = vmatmul.bf16.gmra.mxu0 %v4053
        %v4142 = vpop.f32.mrf.mxu0
        %v4143 = vadd.f32 0.0, %v4142
        %v4144 = vpop.f32.mrf.mxu0
        %v4145 = vadd.f32 0.0, %v4144
        %4146 = vmatmul.bf16.gmra.mxu0 %v4054
        %v4147 = vpop.f32.mrf.mxu0
        %v4148 = vadd.f32 0.0, %v4147
        %v4149 = vpop.f32.mrf.mxu0
        %v4150 = vadd.f32 0.0, %v4149
        %4151 = vmatmul.bf16.gmra.mxu0 %v4055
        %v4152 = vpop.f32.mrf.mxu0
        %v4153 = vadd.f32 0.0, %v4152
        %v4154 = vpop.f32.mrf.mxu0
        %v4155 = vadd.f32 0.0, %v4154
        %4156 = vmatmul.bf16.gmra.mxu0 %v4056
        %v4157 = vpop.f32.mrf.mxu0
        %v4158 = vadd.f32 0.0, %v4157
        %v4159 = vpop.f32.mrf.mxu0
        %v4160 = vadd.f32 0.0, %v4159
        %4161 = vmatmul.bf16.gmra.mxu0 %v4057
        %v4162 = vpop.f32.mrf.mxu0
        %v4163 = vadd.f32 0.0, %v4162
        %v4164 = vpop.f32.mrf.mxu0
        %v4165 = vadd.f32 0.0, %v4164
        %4166 = vmatmul.bf16.gmra.mxu0 %v4058
        %v4167 = vpop.f32.mrf.mxu0
        %v4168 = vadd.f32 0.0, %v4167
        %v4169 = vpop.f32.mrf.mxu0
        %v4170 = vadd.f32 0.0, %v4169
        %4171 = vmatmul.bf16.gmra.mxu0 %v4059
        %v4172 = vpop.f32.mrf.mxu0
        %v4173 = vadd.f32 0.0, %v4172
        %v4174 = vpop.f32.mrf.mxu0
        %v4175 = vadd.f32 0.0, %v4174
        %4176 = vmatmul.bf16.gmra.mxu0 %v4060
        %v4177 = vpop.f32.mrf.mxu0
        %v4178 = vadd.f32 0.0, %v4177
        %v4179 = vpop.f32.mrf.mxu0
        %v4180 = vadd.f32 0.0, %v4179
        %4181 = vmatmul.bf16.gmra.mxu0 %v4061
        %v4182 = vpop.f32.mrf.mxu0
        %v4183 = vadd.f32 0.0, %v4182
        %v4184 = vpop.f32.mrf.mxu0
        %v4185 = vadd.f32 0.0, %v4184
        %4186 = vmatmul.bf16.gmra.mxu0 %v4062
        %v4187 = vpop.f32.mrf.mxu0
        %v4188 = vadd.f32 0.0, %v4187
        %v4189 = vpop.f32.mrf.mxu0
        %v4190 = vadd.f32 0.0, %v4189
        %4191 = vmatmul.bf16.gmra.mxu0 %v4063
        %v4192 = vpop.f32.mrf.mxu0
        %v4193 = vadd.f32 0.0, %v4192
        %v4194 = vpop.f32.mrf.mxu0
        %v4195 = vadd.f32 0.0, %v4194
        %4196 = vmatmul.bf16.gmra.mxu0 %v4064
        %v4197 = vpop.f32.mrf.mxu0
        %v4198 = vadd.f32 0.0, %v4197
        %v4199 = vpop.f32.mrf.mxu0
        %v4200 = vadd.f32 0.0, %v4199
        %4201 = vmatmul.bf16.gmra.mxu0 %v4065
        %v4202 = vpop.f32.mrf.mxu0
        %v4203 = vadd.f32 0.0, %v4202
        %v4204 = vpop.f32.mrf.mxu0
        %v4205 = vadd.f32 0.0, %v4204
        %4206 = vmatmul.bf16.gmra.mxu0 %v4066
        %v4207 = vpop.f32.mrf.mxu0
        %v4208 = vadd.f32 0.0, %v4207
        %v4209 = vpop.f32.mrf.mxu0
        %v4210 = vadd.f32 0.0, %v4209
        %4211 = vmatmul.bf16.gmra.mxu0 %v4067
        %v4212 = vpop.f32.mrf.mxu0
        %v4213 = vadd.f32 0.0, %v4212
        %v4214 = vpop.f32.mrf.mxu0
        %v4215 = vadd.f32 0.0, %v4214
        %4216 = vmatmul.bf16.gmra.mxu0 %v4068
        %v4217 = vpop.f32.mrf.mxu0
        %v4218 = vadd.f32 0.0, %v4217
        %v4219 = vpop.f32.mrf.mxu0
        %v4220 = vadd.f32 0.0, %v4219
        %4221 = vdwg.mxu0
        %v4222 = vadd.f32 %v3762, %v4143
        %v4223 = vadd.f32 %v3764, %v4145
        %v4224 = vadd.f32 %v3767, %v4148
        %v4225 = vadd.f32 %v3769, %v4150
        %v4226 = vadd.f32 %v3772, %v4153
        %v4227 = vadd.f32 %v3774, %v4155
        %v4228 = vadd.f32 %v3777, %v4158
        %v4229 = vadd.f32 %v3779, %v4160
        %v4230 = vadd.f32 %v3782, %v4163
        %v4231 = vadd.f32 %v3784, %v4165
        %v4232 = vadd.f32 %v3787, %v4168
        %v4233 = vadd.f32 %v3789, %v4170
        %v4234 = vadd.f32 %v3792, %v4173
        %v4235 = vadd.f32 %v3794, %v4175
        %v4236 = vadd.f32 %v3797, %v4178
        %v4237 = vadd.f32 %v3799, %v4180
        %v4238 = vadd.f32 %v3802, %v4183
        %v4239 = vadd.f32 %v3804, %v4185
        %v4240 = vadd.f32 %v3807, %v4188
        %v4241 = vadd.f32 %v3809, %v4190
        %v4242 = vadd.f32 %v3812, %v4193
        %v4243 = vadd.f32 %v3814, %v4195
        %v4244 = vadd.f32 %v3817, %v4198
        %v4245 = vadd.f32 %v3819, %v4200
        %v4246 = vadd.f32 %v3822, %v4203
        %v4247 = vadd.f32 %v3824, %v4205
        %v4248 = vadd.f32 %v3827, %v4208
        %v4249 = vadd.f32 %v3829, %v4210
        %v4250 = vadd.f32 %v3832, %v4213
        %v4251 = vadd.f32 %v3834, %v4215
        %v4252 = vadd.f32 %v3837, %v4218
        %v4253 = vadd.f32 %v3839, %v4220
        %v4254 = vld [vmem:[%s2821] sm:$0xf]
        %v4255 = vld [vmem:[%s2821 + $0x4] sm:$0xf]
        %v4256 = vld [vmem:[%s2821 + $0xc] sm:$0xf]
        %v4257 = vld [vmem:[%s2821 + $0x10] sm:$0xf]
        %v4258 = vld [vmem:[%s2821 + $0x18] sm:$0xf]
        %v4259 = vld [vmem:[%s2821 + $0x1c] sm:$0xf]
        %v4260 = vld [vmem:[%s2821 + $0x24] sm:$0xf]
        %v4261 = vld [vmem:[%s2821 + $0x28] sm:$0xf]
        %v4262 = vld [vmem:[%s2821 + $0x30] sm:$0xf]
        %v4263 = vld [vmem:[%s2821 + $0x34] sm:$0xf]
        %v4264 = vld [vmem:[%s2821 + $0x3c] sm:$0xf]
        %v4265 = vld [vmem:[%s2821 + $0x40] sm:$0xf]
        %v4266 = vld [vmem:[%s2821 + $0x48] sm:$0xf]
        %v4267 = vld [vmem:[%s2821 + $0x4c] sm:$0xf]
        %v4268 = vld [vmem:[%s2821 + $0x54] sm:$0xf]
        %v4269 = vld [vmem:[%s2821 + $0x58] sm:$0xf]
        %v4270 = vld [vmem:[%s2821 + $0x60] sm:$0xf]
        %v4271 = vld [vmem:[%s2821 + $0x64] sm:$0xf]
        %v4272 = vld [vmem:[%s2821 + $0x6c] sm:$0xf]
        %v4273 = vld [vmem:[%s2821 + $0x70] sm:$0xf]
        %v4274 = vld [vmem:[%s2821 + $0x78] sm:$0xf]
        %v4275 = vld [vmem:[%s2821 + $0x7c] sm:$0xf]
        %v4276 = vld [vmem:[%s2821 + $0x84] sm:$0xf]
        %v4277 = vld [vmem:[%s2821 + $0x88] sm:$0xf]
        %v4278 = vld [vmem:[%s2821 + $0x90] sm:$0xf]
        %v4279 = vld [vmem:[%s2821 + $0x94] sm:$0xf]
        %v4280 = vld [vmem:[%s2821 + $0x9c] sm:$0xf]
        %v4281 = vld [vmem:[%s2821 + $0xa0] sm:$0xf]
        %v4282 = vld [vmem:[%s2821 + $0xa8] sm:$0xf]
        %v4283 = vld [vmem:[%s2821 + $0xac] sm:$0xf]
        %v4284 = vld [vmem:[%s2821 + $0xb4] sm:$0xf]
        %v4285 = vld [vmem:[%s2821 + $0xb8] sm:$0xf]
        %s4286 = scalar_lea.vmem %s3, 192
        %v4287 = vld [vmem:[%s4286] sm:$0xf]
        %v4288 = vld [vmem:[%s4286 + $0x4] sm:$0xf]
        %v4289 = vld [vmem:[%s4286 + $0x8] sm:$0xf]
        %v4290 = vld [vmem:[%s4286 + $0xc] sm:$0xf]
        %v4291 = vld [vmem:[%s4286 + $0x10] sm:$0xf]
        %v4292 = vld [vmem:[%s4286 + $0x14] sm:$0xf]
        %v4293 = vld [vmem:[%s4286 + $0x18] sm:$0xf]
        %v4294 = vld [vmem:[%s4286 + $0x1c] sm:$0xf]
        %v4295 = vld [vmem:[%s4286 + $0x20] sm:$0xf]
        %v4296 = vld [vmem:[%s4286 + $0x24] sm:$0xf]
        %v4297 = vld [vmem:[%s4286 + $0x28] sm:$0xf]
        %v4298 = vld [vmem:[%s4286 + $0x2c] sm:$0xf]
        %v4299 = vld [vmem:[%s4286 + $0x30] sm:$0xf]
        %v4300 = vld [vmem:[%s4286 + $0x34] sm:$0xf]
        %v4301 = vld [vmem:[%s4286 + $0x38] sm:$0xf]
        %v4302 = vld [vmem:[%s4286 + $0x3c] sm:$0xf]
        %v4335 = vunpack.c.l.b16 %v4254
        %v4336 = vunpack.c.l.b16 %v4255
        %v4337 = vunpack.c.l.b16 %v4256
        %v4338 = vunpack.c.l.b16 %v4257
        %v4339 = vunpack.c.l.b16 %v4258
        %v4340 = vunpack.c.l.b16 %v4259
        %v4341 = vunpack.c.l.b16 %v4260
        %v4342 = vunpack.c.l.b16 %v4261
        %v4343 = vunpack.c.l.b16 %v4262
        %v4344 = vunpack.c.l.b16 %v4263
        %v4345 = vunpack.c.l.b16 %v4264
        %v4346 = vunpack.c.l.b16 %v4265
        %v4347 = vunpack.c.l.b16 %v4266
        %v4348 = vunpack.c.l.b16 %v4267
        %v4349 = vunpack.c.l.b16 %v4268
        %v4350 = vunpack.c.l.b16 %v4269
        %v4351 = vunpack.c.l.b16 %v4270
        %v4352 = vunpack.c.l.b16 %v4271
        %v4353 = vunpack.c.l.b16 %v4272
        %v4354 = vunpack.c.l.b16 %v4273
        %v4355 = vunpack.c.l.b16 %v4274
        %v4356 = vunpack.c.l.b16 %v4275
        %v4357 = vunpack.c.l.b16 %v4276
        %v4358 = vunpack.c.l.b16 %v4277
        %v4359 = vunpack.c.l.b16 %v4278
        %v4360 = vunpack.c.l.b16 %v4279
        %v4361 = vunpack.c.l.b16 %v4280
        %v4362 = vunpack.c.l.b16 %v4281
        %v4363 = vunpack.c.l.b16 %v4282
        %v4364 = vunpack.c.l.b16 %v4283
        %v4365 = vunpack.c.l.b16 %v4284
        %v4366 = vunpack.c.l.b16 %v4285
        %v4367 = vpack.c.b16 %v4336, %v4335
        %v4368 = vpack.c.b16 %v4338, %v4337
        %v4369 = vpack.c.b16 %v4340, %v4339
        %v4370 = vpack.c.b16 %v4342, %v4341
        %v4371 = vpack.c.b16 %v4344, %v4343
        %v4372 = vpack.c.b16 %v4346, %v4345
        %v4373 = vpack.c.b16 %v4348, %v4347
        %v4374 = vpack.c.b16 %v4350, %v4349
        %v4375 = vpack.c.b16 %v4352, %v4351
        %v4376 = vpack.c.b16 %v4354, %v4353
        %v4377 = vpack.c.b16 %v4356, %v4355
        %v4378 = vpack.c.b16 %v4358, %v4357
        %v4379 = vpack.c.b16 %v4360, %v4359
        %v4380 = vpack.c.b16 %v4362, %v4361
        %v4381 = vpack.c.b16 %v4364, %v4363
        %v4382 = vpack.c.b16 %v4366, %v4365
        %v4415 = vunpack.c.l.b16 %v4287
        %v4416 = vunpack.c.l.b16 %v4288
        %v4417 = vunpack.c.l.b16 %v4289
        %v4418 = vunpack.c.l.b16 %v4290
        %v4419 = vunpack.c.l.b16 %v4291
        %v4420 = vunpack.c.l.b16 %v4292
        %v4421 = vunpack.c.l.b16 %v4293
        %v4422 = vunpack.c.l.b16 %v4294
        %v4423 = vunpack.c.l.b16 %v4295
        %v4424 = vunpack.c.l.b16 %v4296
        %v4425 = vunpack.c.l.b16 %v4297
        %v4426 = vunpack.c.l.b16 %v4298
        %v4427 = vunpack.c.l.b16 %v4299
        %v4428 = vunpack.c.l.b16 %v4300
        %v4429 = vunpack.c.l.b16 %v4301
        %v4430 = vunpack.c.l.b16 %v4302
        %v4431 = vpack.c.b16 %v4416, %v4415
        %v4432 = vpack.c.b16 %v4418, %v4417
        %v4433 = vpack.c.b16 %v4420, %v4419
        %v4434 = vpack.c.b16 %v4422, %v4421
        %v4435 = vpack.c.b16 %v4424, %v4423
        %v4436 = vpack.c.b16 %v4426, %v4425
        %v4437 = vpack.c.b16 %v4428, %v4427
        %v4438 = vpack.c.b16 %v4430, %v4429
        %4447 = vmatpush.bf16.msra.mxu0 %v4438
        %4448 = vmatpush.bf16.msra.mxu0 %v4437
        %4449 = vmatpush.bf16.msra.mxu0 %v4436
        %4450 = vmatpush.bf16.msra.mxu0 %v4435
        %4451 = vmatpush.bf16.msra.mxu0 %v4434
        %4452 = vmatpush.bf16.msra.mxu0 %v4433
        %4453 = vmatpush.bf16.msra.mxu0 %v4432
        %4454 = vmatpush.bf16.msra.mxu0 %v4431
        %4455 = vmatmul.bf16.gmra.mxu0 %v4367
        %v4456 = vpop.f32.mrf.mxu0
        %v4457 = vadd.f32 0.0, %v4456
        %v4458 = vpop.f32.mrf.mxu0
        %v4459 = vadd.f32 0.0, %v4458
        %4460 = vmatmul.bf16.gmra.mxu0 %v4368
        %v4461 = vpop.f32.mrf.mxu0
        %v4462 = vadd.f32 0.0, %v4461
        %v4463 = vpop.f32.mrf.mxu0
        %v4464 = vadd.f32 0.0, %v4463
        %4465 = vmatmul.bf16.gmra.mxu0 %v4369
        %v4466 = vpop.f32.mrf.mxu0
        %v4467 = vadd.f32 0.0, %v4466
        %v4468 = vpop.f32.mrf.mxu0
        %v4469 = vadd.f32 0.0, %v4468
        %4470 = vmatmul.bf16.gmra.mxu0 %v4370
        %v4471 = vpop.f32.mrf.mxu0
        %v4472 = vadd.f32 0.0, %v4471
        %v4473 = vpop.f32.mrf.mxu0
        %v4474 = vadd.f32 0.0, %v4473
        %4475 = vmatmul.bf16.gmra.mxu0 %v4371
        %v4476 = vpop.f32.mrf.mxu0
        %v4477 = vadd.f32 0.0, %v4476
        %v4478 = vpop.f32.mrf.mxu0
        %v4479 = vadd.f32 0.0, %v4478
        %4480 = vmatmul.bf16.gmra.mxu0 %v4372
        %v4481 = vpop.f32.mrf.mxu0
        %v4482 = vadd.f32 0.0, %v4481
        %v4483 = vpop.f32.mrf.mxu0
        %v4484 = vadd.f32 0.0, %v4483
        %4485 = vmatmul.bf16.gmra.mxu0 %v4373
        %v4486 = vpop.f32.mrf.mxu0
        %v4487 = vadd.f32 0.0, %v4486
        %v4488 = vpop.f32.mrf.mxu0
        %v4489 = vadd.f32 0.0, %v4488
        %4490 = vmatmul.bf16.gmra.mxu0 %v4374
        %v4491 = vpop.f32.mrf.mxu0
        %v4492 = vadd.f32 0.0, %v4491
        %v4493 = vpop.f32.mrf.mxu0
        %v4494 = vadd.f32 0.0, %v4493
        %4495 = vmatmul.bf16.gmra.mxu0 %v4375
        %v4496 = vpop.f32.mrf.mxu0
        %v4497 = vadd.f32 0.0, %v4496
        %v4498 = vpop.f32.mrf.mxu0
        %v4499 = vadd.f32 0.0, %v4498
        %4500 = vmatmul.bf16.gmra.mxu0 %v4376
        %v4501 = vpop.f32.mrf.mxu0
        %v4502 = vadd.f32 0.0, %v4501
        %v4503 = vpop.f32.mrf.mxu0
        %v4504 = vadd.f32 0.0, %v4503
        %4505 = vmatmul.bf16.gmra.mxu0 %v4377
        %v4506 = vpop.f32.mrf.mxu0
        %v4507 = vadd.f32 0.0, %v4506
        %v4508 = vpop.f32.mrf.mxu0
        %v4509 = vadd.f32 0.0, %v4508
        %4510 = vmatmul.bf16.gmra.mxu0 %v4378
        %v4511 = vpop.f32.mrf.mxu0
        %v4512 = vadd.f32 0.0, %v4511
        %v4513 = vpop.f32.mrf.mxu0
        %v4514 = vadd.f32 0.0, %v4513
        %4515 = vmatmul.bf16.gmra.mxu0 %v4379
        %v4516 = vpop.f32.mrf.mxu0
        %v4517 = vadd.f32 0.0, %v4516
        %v4518 = vpop.f32.mrf.mxu0
        %v4519 = vadd.f32 0.0, %v4518
        %4520 = vmatmul.bf16.gmra.mxu0 %v4380
        %v4521 = vpop.f32.mrf.mxu0
        %v4522 = vadd.f32 0.0, %v4521
        %v4523 = vpop.f32.mrf.mxu0
        %v4524 = vadd.f32 0.0, %v4523
        %4525 = vmatmul.bf16.gmra.mxu0 %v4381
        %v4526 = vpop.f32.mrf.mxu0
        %v4527 = vadd.f32 0.0, %v4526
        %v4528 = vpop.f32.mrf.mxu0
        %v4529 = vadd.f32 0.0, %v4528
        %4530 = vmatmul.bf16.gmra.mxu0 %v4382
        %v4531 = vpop.f32.mrf.mxu0
        %v4532 = vadd.f32 0.0, %v4531
        %v4533 = vpop.f32.mrf.mxu0
        %v4534 = vadd.f32 0.0, %v4533
        %4535 = vdwg.mxu0
        %v4536 = vadd.f32 %v4222, %v4457
        %v4537 = vadd.f32 %v4223, %v4459
        %v4538 = vadd.f32 %v4224, %v4462
        %v4539 = vadd.f32 %v4225, %v4464
        %v4540 = vadd.f32 %v4226, %v4467
        %v4541 = vadd.f32 %v4227, %v4469
        %v4542 = vadd.f32 %v4228, %v4472
        %v4543 = vadd.f32 %v4229, %v4474
        %v4544 = vadd.f32 %v4230, %v4477
        %v4545 = vadd.f32 %v4231, %v4479
        %v4546 = vadd.f32 %v4232, %v4482
        %v4547 = vadd.f32 %v4233, %v4484
        %v4548 = vadd.f32 %v4234, %v4487
        %v4549 = vadd.f32 %v4235, %v4489
        %v4550 = vadd.f32 %v4236, %v4492
        %v4551 = vadd.f32 %v4237, %v4494
        %v4552 = vadd.f32 %v4238, %v4497
        %v4553 = vadd.f32 %v4239, %v4499
        %v4554 = vadd.f32 %v4240, %v4502
        %v4555 = vadd.f32 %v4241, %v4504
        %v4556 = vadd.f32 %v4242, %v4507
        %v4557 = vadd.f32 %v4243, %v4509
        %v4558 = vadd.f32 %v4244, %v4512
        %v4559 = vadd.f32 %v4245, %v4514
        %v4560 = vadd.f32 %v4246, %v4517
        %v4561 = vadd.f32 %v4247, %v4519
        %v4562 = vadd.f32 %v4248, %v4522
        %v4563 = vadd.f32 %v4249, %v4524
        %v4564 = vadd.f32 %v4250, %v4527
        %v4565 = vadd.f32 %v4251, %v4529
        %v4566 = vadd.f32 %v4252, %v4532
        %v4567 = vadd.f32 %v4253, %v4534
        %v4568 = vld [vmem:[%s2821] sm:$0xf]
        %v4569 = vld [vmem:[%s2821 + $0x4] sm:$0xf]
        %v4570 = vld [vmem:[%s2821 + $0x8] sm:$0x1]
        %v4571 = vld [vmem:[%s2821 + $0xc] sm:$0xf]
        %v4572 = vld [vmem:[%s2821 + $0x10] sm:$0xf]
        %v4573 = vld [vmem:[%s2821 + $0x14] sm:$0x1]
        %v4574 = vld [vmem:[%s2821 + $0x18] sm:$0xf]
        %v4575 = vld [vmem:[%s2821 + $0x1c] sm:$0xf]
        %v4576 = vld [vmem:[%s2821 + $0x20] sm:$0x1]
        %v4577 = vld [vmem:[%s2821 + $0x24] sm:$0xf]
        %v4578 = vld [vmem:[%s2821 + $0x28] sm:$0xf]
        %v4579 = vld [vmem:[%s2821 + $0x2c] sm:$0x1]
        %v4580 = vld [vmem:[%s2821 + $0x30] sm:$0xf]
        %v4581 = vld [vmem:[%s2821 + $0x34] sm:$0xf]
        %v4582 = vld [vmem:[%s2821 + $0x38] sm:$0x1]
        %v4583 = vld [vmem:[%s2821 + $0x3c] sm:$0xf]
        %v4584 = vld [vmem:[%s2821 + $0x40] sm:$0xf]
        %v4585 = vld [vmem:[%s2821 + $0x44] sm:$0x1]
        %v4586 = vld [vmem:[%s2821 + $0x48] sm:$0xf]
        %v4587 = vld [vmem:[%s2821 + $0x4c] sm:$0xf]
        %v4588 = vld [vmem:[%s2821 + $0x50] sm:$0x1]
        %v4589 = vld [vmem:[%s2821 + $0x54] sm:$0xf]
        %v4590 = vld [vmem:[%s2821 + $0x58] sm:$0xf]
        %v4591 = vld [vmem:[%s2821 + $0x5c] sm:$0x1]
        %v4592 = vld [vmem:[%s2821 + $0x60] sm:$0xf]
        %v4593 = vld [vmem:[%s2821 + $0x64] sm:$0xf]
        %v4594 = vld [vmem:[%s2821 + $0x68] sm:$0x1]
        %v4595 = vld [vmem:[%s2821 + $0x6c] sm:$0xf]
        %v4596 = vld [vmem:[%s2821 + $0x70] sm:$0xf]
        %v4597 = vld [vmem:[%s2821 + $0x74] sm:$0x1]
        %v4598 = vld [vmem:[%s2821 + $0x78] sm:$0xf]
        %v4599 = vld [vmem:[%s2821 + $0x7c] sm:$0xf]
        %v4600 = vld [vmem:[%s2821 + $0x80] sm:$0x1]
        %v4601 = vld [vmem:[%s2821 + $0x84] sm:$0xf]
        %v4602 = vld [vmem:[%s2821 + $0x88] sm:$0xf]
        %v4603 = vld [vmem:[%s2821 + $0x8c] sm:$0x1]
        %v4604 = vld [vmem:[%s2821 + $0x90] sm:$0xf]
        %v4605 = vld [vmem:[%s2821 + $0x94] sm:$0xf]
        %v4606 = vld [vmem:[%s2821 + $0x98] sm:$0x1]
        %v4607 = vld [vmem:[%s2821 + $0x9c] sm:$0xf]
        %v4608 = vld [vmem:[%s2821 + $0xa0] sm:$0xf]
        %v4609 = vld [vmem:[%s2821 + $0xa4] sm:$0x1]
        %v4610 = vld [vmem:[%s2821 + $0xa8] sm:$0xf]
        %v4611 = vld [vmem:[%s2821 + $0xac] sm:$0xf]
        %v4612 = vld [vmem:[%s2821 + $0xb0] sm:$0x1]
        %v4613 = vld [vmem:[%s2821 + $0xb4] sm:$0xf]
        %v4614 = vld [vmem:[%s2821 + $0xb8] sm:$0xf]
        %v4615 = vld [vmem:[%s2821 + $0xbc] sm:$0x1]
        %v4617 = vshrl.u32 %v4568, 16
        %v4619 = vrot.slane %v4617, 4
        %v4620 = vshll.u32 %v4568, 16
        %v4622 = vrot.slane %v4620, 5
        %v4623 = vor.u32 %v4619, %v4622
        %v4624 = vrot.slane %v4623, 4
        %v4626 = vshll.u32 %v4569, 16
        %v4628 = vrot.slane %v4626, 5
        %v4629 = vsel %vm3005, %v4624, %v4628
        %v4630 = vshrl.u32 %v4569, 16
        %v4632 = vrot.slane %v4630, 4
        %v4633 = vor.u32 %v4632, %v4628
        %v4634 = vrot.slane %v4633, 4
        %v4636 = vshll.u32 %v4570, 16
        %v4638 = vrot.slane %v4636, 5
        %v4639 = vsel %vm3005, %v4634, %v4638
        %v4641 = vshrl.u32 %v4571, 16
        %v4643 = vrot.slane %v4641, 4
        %v4644 = vshll.u32 %v4571, 16
        %v4646 = vrot.slane %v4644, 5
        %v4647 = vor.u32 %v4643, %v4646
        %v4648 = vrot.slane %v4647, 4
        %v4650 = vshll.u32 %v4572, 16
        %v4652 = vrot.slane %v4650, 5
        %v4653 = vsel %vm3005, %v4648, %v4652
        %v4654 = vshrl.u32 %v4572, 16
        %v4656 = vrot.slane %v4654, 4
        %v4657 = vor.u32 %v4656, %v4652
        %v4658 = vrot.slane %v4657, 4
        %v4660 = vshll.u32 %v4573, 16
        %v4662 = vrot.slane %v4660, 5
        %v4663 = vsel %vm3005, %v4658, %v4662
        %v4665 = vshrl.u32 %v4574, 16
        %v4667 = vrot.slane %v4665, 4
        %v4668 = vshll.u32 %v4574, 16
        %v4670 = vrot.slane %v4668, 5
        %v4671 = vor.u32 %v4667, %v4670
        %v4672 = vrot.slane %v4671, 4
        %v4674 = vshll.u32 %v4575, 16
        %v4676 = vrot.slane %v4674, 5
        %v4677 = vsel %vm3005, %v4672, %v4676
        %v4678 = vshrl.u32 %v4575, 16
        %v4680 = vrot.slane %v4678, 4
        %v4681 = vor.u32 %v4680, %v4676
        %v4682 = vrot.slane %v4681, 4
        %v4684 = vshll.u32 %v4576, 16
        %v4686 = vrot.slane %v4684, 5
        %v4687 = vsel %vm3005, %v4682, %v4686
        %v4689 = vshrl.u32 %v4577, 16
        %v4691 = vrot.slane %v4689, 4
        %v4692 = vshll.u32 %v4577, 16
        %v4694 = vrot.slane %v4692, 5
        %v4695 = vor.u32 %v4691, %v4694
        %v4696 = vrot.slane %v4695, 4
        %v4698 = vshll.u32 %v4578, 16
        %v4700 = vrot.slane %v4698, 5
        %v4701 = vsel %vm3005, %v4696, %v4700
        %v4702 = vshrl.u32 %v4578, 16
        %v4704 = vrot.slane %v4702, 4
        %v4705 = vor.u32 %v4704, %v4700
        %v4706 = vrot.slane %v4705, 4
        %v4708 = vshll.u32 %v4579, 16
        %v4710 = vrot.slane %v4708, 5
        %v4711 = vsel %vm3005, %v4706, %v4710
        %v4713 = vshrl.u32 %v4580, 16
        %v4715 = vrot.slane %v4713, 4
        %v4716 = vshll.u32 %v4580, 16
        %v4718 = vrot.slane %v4716, 5
        %v4719 = vor.u32 %v4715, %v4718
        %v4720 = vrot.slane %v4719, 4
        %v4722 = vshll.u32 %v4581, 16
        %v4724 = vrot.slane %v4722, 5
        %v4725 = vsel %vm3005, %v4720, %v4724
        %v4726 = vshrl.u32 %v4581, 16
        %v4728 = vrot.slane %v4726, 4
        %v4729 = vor.u32 %v4728, %v4724
        %v4730 = vrot.slane %v4729, 4
        %v4732 = vshll.u32 %v4582, 16
        %v4734 = vrot.slane %v4732, 5
        %v4735 = vsel %vm3005, %v4730, %v4734
        %v4737 = vshrl.u32 %v4583, 16
        %v4739 = vrot.slane %v4737, 4
        %v4740 = vshll.u32 %v4583, 16
        %v4742 = vrot.slane %v4740, 5
        %v4743 = vor.u32 %v4739, %v4742
        %v4744 = vrot.slane %v4743, 4
        %v4746 = vshll.u32 %v4584, 16
        %v4748 = vrot.slane %v4746, 5
        %v4749 = vsel %vm3005, %v4744, %v4748
        %v4750 = vshrl.u32 %v4584, 16
        %v4752 = vrot.slane %v4750, 4
        %v4753 = vor.u32 %v4752, %v4748
        %v4754 = vrot.slane %v4753, 4
        %v4756 = vshll.u32 %v4585, 16
        %v4758 = vrot.slane %v4756, 5
        %v4759 = vsel %vm3005, %v4754, %v4758
        %v4761 = vshrl.u32 %v4586, 16
        %v4763 = vrot.slane %v4761, 4
        %v4764 = vshll.u32 %v4586, 16
        %v4766 = vrot.slane %v4764, 5
        %v4767 = vor.u32 %v4763, %v4766
        %v4768 = vrot.slane %v4767, 4
        %v4770 = vshll.u32 %v4587, 16
        %v4772 = vrot.slane %v4770, 5
        %v4773 = vsel %vm3005, %v4768, %v4772
        %v4774 = vshrl.u32 %v4587, 16
        %v4776 = vrot.slane %v4774, 4
        %v4777 = vor.u32 %v4776, %v4772
        %v4778 = vrot.slane %v4777, 4
        %v4780 = vshll.u32 %v4588, 16
        %v4782 = vrot.slane %v4780, 5
        %v4783 = vsel %vm3005, %v4778, %v4782
        %v4785 = vshrl.u32 %v4589, 16
        %v4787 = vrot.slane %v4785, 4
        %v4788 = vshll.u32 %v4589, 16
        %v4790 = vrot.slane %v4788, 5
        %v4791 = vor.u32 %v4787, %v4790
        %v4792 = vrot.slane %v4791, 4
        %v4794 = vshll.u32 %v4590, 16
        %v4796 = vrot.slane %v4794, 5
        %v4797 = vsel %vm3005, %v4792, %v4796
        %v4798 = vshrl.u32 %v4590, 16
        %v4800 = vrot.slane %v4798, 4
        %v4801 = vor.u32 %v4800, %v4796
        %v4802 = vrot.slane %v4801, 4
        %v4804 = vshll.u32 %v4591, 16
        %v4806 = vrot.slane %v4804, 5
        %v4807 = vsel %vm3005, %v4802, %v4806
        %v4809 = vshrl.u32 %v4592, 16
        %v4811 = vrot.slane %v4809, 4
        %v4812 = vshll.u32 %v4592, 16
        %v4814 = vrot.slane %v4812, 5
        %v4815 = vor.u32 %v4811, %v4814
        %v4816 = vrot.slane %v4815, 4
        %v4818 = vshll.u32 %v4593, 16
        %v4820 = vrot.slane %v4818, 5
        %v4821 = vsel %vm3005, %v4816, %v4820
        %v4822 = vshrl.u32 %v4593, 16
        %v4824 = vrot.slane %v4822, 4
        %v4825 = vor.u32 %v4824, %v4820
        %v4826 = vrot.slane %v4825, 4
        %v4828 = vshll.u32 %v4594, 16
        %v4830 = vrot.slane %v4828, 5
        %v4831 = vsel %vm3005, %v4826, %v4830
        %v4833 = vshrl.u32 %v4595, 16
        %v4835 = vrot.slane %v4833, 4
        %v4836 = vshll.u32 %v4595, 16
        %v4838 = vrot.slane %v4836, 5
        %v4839 = vor.u32 %v4835, %v4838
        %v4840 = vrot.slane %v4839, 4
        %v4842 = vshll.u32 %v4596, 16
        %v4844 = vrot.slane %v4842, 5
        %v4845 = vsel %vm3005, %v4840, %v4844
        %v4846 = vshrl.u32 %v4596, 16
        %v4848 = vrot.slane %v4846, 4
        %v4849 = vor.u32 %v4848, %v4844
        %v4850 = vrot.slane %v4849, 4
        %v4852 = vshll.u32 %v4597, 16
        %v4854 = vrot.slane %v4852, 5
        %v4855 = vsel %vm3005, %v4850, %v4854
        %v4857 = vshrl.u32 %v4598, 16
        %v4859 = vrot.slane %v4857, 4
        %v4860 = vshll.u32 %v4598, 16
        %v4862 = vrot.slane %v4860, 5
        %v4863 = vor.u32 %v4859, %v4862
        %v4864 = vrot.slane %v4863, 4
        %v4866 = vshll.u32 %v4599, 16
        %v4868 = vrot.slane %v4866, 5
        %v4869 = vsel %vm3005, %v4864, %v4868
        %v4870 = vshrl.u32 %v4599, 16
        %v4872 = vrot.slane %v4870, 4
        %v4873 = vor.u32 %v4872, %v4868
        %v4874 = vrot.slane %v4873, 4
        %v4876 = vshll.u32 %v4600, 16
        %v4878 = vrot.slane %v4876, 5
        %v4879 = vsel %vm3005, %v4874, %v4878
        %v4881 = vshrl.u32 %v4601, 16
        %v4883 = vrot.slane %v4881, 4
        %v4884 = vshll.u32 %v4601, 16
        %v4886 = vrot.slane %v4884, 5
        %v4887 = vor.u32 %v4883, %v4886
        %v4888 = vrot.slane %v4887, 4
        %v4890 = vshll.u32 %v4602, 16
        %v4892 = vrot.slane %v4890, 5
        %v4893 = vsel %vm3005, %v4888, %v4892
        %v4894 = vshrl.u32 %v4602, 16
        %v4896 = vrot.slane %v4894, 4
        %v4897 = vor.u32 %v4896, %v4892
        %v4898 = vrot.slane %v4897, 4
        %v4900 = vshll.u32 %v4603, 16
        %v4902 = vrot.slane %v4900, 5
        %v4903 = vsel %vm3005, %v4898, %v4902
        %v4905 = vshrl.u32 %v4604, 16
        %v4907 = vrot.slane %v4905, 4
        %v4908 = vshll.u32 %v4604, 16
        %v4910 = vrot.slane %v4908, 5
        %v4911 = vor.u32 %v4907, %v4910
        %v4912 = vrot.slane %v4911, 4
        %v4914 = vshll.u32 %v4605, 16
        %v4916 = vrot.slane %v4914, 5
        %v4917 = vsel %vm3005, %v4912, %v4916
        %v4918 = vshrl.u32 %v4605, 16
        %v4920 = vrot.slane %v4918, 4
        %v4921 = vor.u32 %v4920, %v4916
        %v4922 = vrot.slane %v4921, 4
        %v4924 = vshll.u32 %v4606, 16
        %v4926 = vrot.slane %v4924, 5
        %v4927 = vsel %vm3005, %v4922, %v4926
        %v4929 = vshrl.u32 %v4607, 16
        %v4931 = vrot.slane %v4929, 4
        %v4932 = vshll.u32 %v4607, 16
        %v4934 = vrot.slane %v4932, 5
        %v4935 = vor.u32 %v4931, %v4934
        %v4936 = vrot.slane %v4935, 4
        %v4938 = vshll.u32 %v4608, 16
        %v4940 = vrot.slane %v4938, 5
        %v4941 = vsel %vm3005, %v4936, %v4940
        %v4942 = vshrl.u32 %v4608, 16
        %v4944 = vrot.slane %v4942, 4
        %v4945 = vor.u32 %v4944, %v4940
        %v4946 = vrot.slane %v4945, 4
        %v4948 = vshll.u32 %v4609, 16
        %v4950 = vrot.slane %v4948, 5
        %v4951 = vsel %vm3005, %v4946, %v4950
        %v4953 = vshrl.u32 %v4610, 16
        %v4955 = vrot.slane %v4953, 4
        %v4956 = vshll.u32 %v4610, 16
        %v4958 = vrot.slane %v4956, 5
        %v4959 = vor.u32 %v4955, %v4958
        %v4960 = vrot.slane %v4959, 4
        %v4962 = vshll.u32 %v4611, 16
        %v4964 = vrot.slane %v4962, 5
        %v4965 = vsel %vm3005, %v4960, %v4964
        %v4966 = vshrl.u32 %v4611, 16
        %v4968 = vrot.slane %v4966, 4
        %v4969 = vor.u32 %v4968, %v4964
        %v4970 = vrot.slane %v4969, 4
        %v4972 = vshll.u32 %v4612, 16
        %v4974 = vrot.slane %v4972, 5
        %v4975 = vsel %vm3005, %v4970, %v4974
        %v4977 = vshrl.u32 %v4613, 16
        %v4979 = vrot.slane %v4977, 4
        %v4980 = vshll.u32 %v4613, 16
        %v4982 = vrot.slane %v4980, 5
        %v4983 = vor.u32 %v4979, %v4982
        %v4984 = vrot.slane %v4983, 4
        %v4986 = vshll.u32 %v4614, 16
        %v4988 = vrot.slane %v4986, 5
        %v4989 = vsel %vm3005, %v4984, %v4988
        %v4990 = vshrl.u32 %v4614, 16
        %v4992 = vrot.slane %v4990, 4
        %v4993 = vor.u32 %v4992, %v4988
        %v4994 = vrot.slane %v4993, 4
        %v4996 = vshll.u32 %v4615, 16
        %v4998 = vrot.slane %v4996, 5
        %v4999 = vsel %vm3005, %v4994, %v4998
        %s5000 = scalar_lea.vmem %s3, 256
        %v5001 = vld [vmem:[%s5000] sm:$0xf]
        %v5002 = vld [vmem:[%s5000 + $0x4] sm:$0xf]
        %v5003 = vld [vmem:[%s5000 + $0x8] sm:$0xf]
        %v5004 = vld [vmem:[%s5000 + $0xc] sm:$0xf]
        %v5005 = vld [vmem:[%s5000 + $0x10] sm:$0xf]
        %v5006 = vld [vmem:[%s5000 + $0x14] sm:$0xf]
        %v5007 = vld [vmem:[%s5000 + $0x18] sm:$0xf]
        %v5008 = vld [vmem:[%s5000 + $0x1c] sm:$0xf]
        %v5009 = vld [vmem:[%s5000 + $0x20] sm:$0xf]
        %v5010 = vld [vmem:[%s5000 + $0x24] sm:$0xf]
        %v5011 = vld [vmem:[%s5000 + $0x28] sm:$0xf]
        %v5012 = vld [vmem:[%s5000 + $0x2c] sm:$0xf]
        %v5013 = vld [vmem:[%s5000 + $0x30] sm:$0xf]
        %v5014 = vld [vmem:[%s5000 + $0x34] sm:$0xf]
        %v5015 = vld [vmem:[%s5000 + $0x38] sm:$0xf]
        %v5016 = vld [vmem:[%s5000 + $0x3c] sm:$0xf]
        %v5017 = vunpack.c.l.b16 %v4629
        %v5018 = vunpack.c.l.b16 %v4639
        %v5019 = vunpack.c.l.b16 %v4653
        %v5020 = vunpack.c.l.b16 %v4663
        %v5021 = vunpack.c.l.b16 %v4677
        %v5022 = vunpack.c.l.b16 %v4687
        %v5023 = vunpack.c.l.b16 %v4701
        %v5024 = vunpack.c.l.b16 %v4711
        %v5025 = vunpack.c.l.b16 %v4725
        %v5026 = vunpack.c.l.b16 %v4735
        %v5027 = vunpack.c.l.b16 %v4749
        %v5028 = vunpack.c.l.b16 %v4759
        %v5029 = vunpack.c.l.b16 %v4773
        %v5030 = vunpack.c.l.b16 %v4783
        %v5031 = vunpack.c.l.b16 %v4797
        %v5032 = vunpack.c.l.b16 %v4807
        %v5033 = vunpack.c.l.b16 %v4821
        %v5034 = vunpack.c.l.b16 %v4831
        %v5035 = vunpack.c.l.b16 %v4845
        %v5036 = vunpack.c.l.b16 %v4855
        %v5037 = vunpack.c.l.b16 %v4869
        %v5038 = vunpack.c.l.b16 %v4879
        %v5039 = vunpack.c.l.b16 %v4893
        %v5040 = vunpack.c.l.b16 %v4903
        %v5041 = vunpack.c.l.b16 %v4917
        %v5042 = vunpack.c.l.b16 %v4927
        %v5043 = vunpack.c.l.b16 %v4941
        %v5044 = vunpack.c.l.b16 %v4951
        %v5045 = vunpack.c.l.b16 %v4965
        %v5046 = vunpack.c.l.b16 %v4975
        %v5047 = vunpack.c.l.b16 %v4989
        %v5048 = vunpack.c.l.b16 %v4999
        %v5049 = vpack.c.b16 %v5018, %v5017
        %v5050 = vpack.c.b16 %v5020, %v5019
        %v5051 = vpack.c.b16 %v5022, %v5021
        %v5052 = vpack.c.b16 %v5024, %v5023
        %v5053 = vpack.c.b16 %v5026, %v5025
        %v5054 = vpack.c.b16 %v5028, %v5027
        %v5055 = vpack.c.b16 %v5030, %v5029
        %v5056 = vpack.c.b16 %v5032, %v5031
        %v5057 = vpack.c.b16 %v5034, %v5033
        %v5058 = vpack.c.b16 %v5036, %v5035
        %v5059 = vpack.c.b16 %v5038, %v5037
        %v5060 = vpack.c.b16 %v5040, %v5039
        %v5061 = vpack.c.b16 %v5042, %v5041
        %v5062 = vpack.c.b16 %v5044, %v5043
        %v5063 = vpack.c.b16 %v5046, %v5045
        %v5064 = vpack.c.b16 %v5048, %v5047
        %v5097 = vunpack.c.l.b16 %v5001
        %v5098 = vunpack.c.l.b16 %v5002
        %v5099 = vunpack.c.l.b16 %v5003
        %v5100 = vunpack.c.l.b16 %v5004
        %v5101 = vunpack.c.l.b16 %v5005
        %v5102 = vunpack.c.l.b16 %v5006
        %v5103 = vunpack.c.l.b16 %v5007
        %v5104 = vunpack.c.l.b16 %v5008
        %v5105 = vunpack.c.l.b16 %v5009
        %v5106 = vunpack.c.l.b16 %v5010
        %v5107 = vunpack.c.l.b16 %v5011
        %v5108 = vunpack.c.l.b16 %v5012
        %v5109 = vunpack.c.l.b16 %v5013
        %v5110 = vunpack.c.l.b16 %v5014
        %v5111 = vunpack.c.l.b16 %v5015
        %v5112 = vunpack.c.l.b16 %v5016
        %v5113 = vpack.c.b16 %v5098, %v5097
        %v5114 = vpack.c.b16 %v5100, %v5099
        %v5115 = vpack.c.b16 %v5102, %v5101
        %v5116 = vpack.c.b16 %v5104, %v5103
        %v5117 = vpack.c.b16 %v5106, %v5105
        %v5118 = vpack.c.b16 %v5108, %v5107
        %v5119 = vpack.c.b16 %v5110, %v5109
        %v5120 = vpack.c.b16 %v5112, %v5111
        %5129 = vmatpush.bf16.msra.mxu0 %v5120
        %5130 = vmatpush.bf16.msra.mxu0 %v5119
        %5131 = vmatpush.bf16.msra.mxu0 %v5118
        %5132 = vmatpush.bf16.msra.mxu0 %v5117
        %5133 = vmatpush.bf16.msra.mxu0 %v5116
        %5134 = vmatpush.bf16.msra.mxu0 %v5115
        %5135 = vmatpush.bf16.msra.mxu0 %v5114
        %5136 = vmatpush.bf16.msra.mxu0 %v5113
        %5137 = vmatmul.bf16.gmra.mxu0 %v5049
        %v5138 = vpop.f32.mrf.mxu0
        %v5139 = vadd.f32 0.0, %v5138
        %v5140 = vpop.f32.mrf.mxu0
        %v5141 = vadd.f32 0.0, %v5140
        %5142 = vmatmul.bf16.gmra.mxu0 %v5050
        %v5143 = vpop.f32.mrf.mxu0
        %v5144 = vadd.f32 0.0, %v5143
        %v5145 = vpop.f32.mrf.mxu0
        %v5146 = vadd.f32 0.0, %v5145
        %5147 = vmatmul.bf16.gmra.mxu0 %v5051
        %v5148 = vpop.f32.mrf.mxu0
        %v5149 = vadd.f32 0.0, %v5148
        %v5150 = vpop.f32.mrf.mxu0
        %v5151 = vadd.f32 0.0, %v5150
        %5152 = vmatmul.bf16.gmra.mxu0 %v5052
        %v5153 = vpop.f32.mrf.mxu0
        %v5154 = vadd.f32 0.0, %v5153
        %v5155 = vpop.f32.mrf.mxu0
        %v5156 = vadd.f32 0.0, %v5155
        %5157 = vmatmul.bf16.gmra.mxu0 %v5053
        %v5158 = vpop.f32.mrf.mxu0
        %v5159 = vadd.f32 0.0, %v5158
        %v5160 = vpop.f32.mrf.mxu0
        %v5161 = vadd.f32 0.0, %v5160
        %5162 = vmatmul.bf16.gmra.mxu0 %v5054
        %v5163 = vpop.f32.mrf.mxu0
        %v5164 = vadd.f32 0.0, %v5163
        %v5165 = vpop.f32.mrf.mxu0
        %v5166 = vadd.f32 0.0, %v5165
        %5167 = vmatmul.bf16.gmra.mxu0 %v5055
        %v5168 = vpop.f32.mrf.mxu0
        %v5169 = vadd.f32 0.0, %v5168
        %v5170 = vpop.f32.mrf.mxu0
        %v5171 = vadd.f32 0.0, %v5170
        %5172 = vmatmul.bf16.gmra.mxu0 %v5056
        %v5173 = vpop.f32.mrf.mxu0
        %v5174 = vadd.f32 0.0, %v5173
        %v5175 = vpop.f32.mrf.mxu0
        %v5176 = vadd.f32 0.0, %v5175
        %5177 = vmatmul.bf16.gmra.mxu0 %v5057
        %v5178 = vpop.f32.mrf.mxu0
        %v5179 = vadd.f32 0.0, %v5178
        %v5180 = vpop.f32.mrf.mxu0
        %v5181 = vadd.f32 0.0, %v5180
        %5182 = vmatmul.bf16.gmra.mxu0 %v5058
        %v5183 = vpop.f32.mrf.mxu0
        %v5184 = vadd.f32 0.0, %v5183
        %v5185 = vpop.f32.mrf.mxu0
        %v5186 = vadd.f32 0.0, %v5185
        %5187 = vmatmul.bf16.gmra.mxu0 %v5059
        %v5188 = vpop.f32.mrf.mxu0
        %v5189 = vadd.f32 0.0, %v5188
        %v5190 = vpop.f32.mrf.mxu0
        %v5191 = vadd.f32 0.0, %v5190
        %5192 = vmatmul.bf16.gmra.mxu0 %v5060
        %v5193 = vpop.f32.mrf.mxu0
        %v5194 = vadd.f32 0.0, %v5193
        %v5195 = vpop.f32.mrf.mxu0
        %v5196 = vadd.f32 0.0, %v5195
        %5197 = vmatmul.bf16.gmra.mxu0 %v5061
        %v5198 = vpop.f32.mrf.mxu0
        %v5199 = vadd.f32 0.0, %v5198
        %v5200 = vpop.f32.mrf.mxu0
        %v5201 = vadd.f32 0.0, %v5200
        %5202 = vmatmul.bf16.gmra.mxu0 %v5062
        %v5203 = vpop.f32.mrf.mxu0
        %v5204 = vadd.f32 0.0, %v5203
        %v5205 = vpop.f32.mrf.mxu0
        %v5206 = vadd.f32 0.0, %v5205
        %5207 = vmatmul.bf16.gmra.mxu0 %v5063
        %v5208 = vpop.f32.mrf.mxu0
        %v5209 = vadd.f32 0.0, %v5208
        %v5210 = vpop.f32.mrf.mxu0
        %v5211 = vadd.f32 0.0, %v5210
        %5212 = vmatmul.bf16.gmra.mxu0 %v5064
        %v5213 = vpop.f32.mrf.mxu0
        %v5214 = vadd.f32 0.0, %v5213
        %v5215 = vpop.f32.mrf.mxu0
        %v5216 = vadd.f32 0.0, %v5215
        %5217 = vdwg.mxu0
        %v5218 = vadd.f32 %v4536, %v5139
        %v5219 = vadd.f32 %v4537, %v5141
        %v5220 = vadd.f32 %v4538, %v5144
        %v5221 = vadd.f32 %v4539, %v5146
        %v5222 = vadd.f32 %v4540, %v5149
        %v5223 = vadd.f32 %v4541, %v5151
        %v5224 = vadd.f32 %v4542, %v5154
        %v5225 = vadd.f32 %v4543, %v5156
        %v5226 = vadd.f32 %v4544, %v5159
        %v5227 = vadd.f32 %v4545, %v5161
        %v5228 = vadd.f32 %v4546, %v5164
        %v5229 = vadd.f32 %v4547, %v5166
        %v5230 = vadd.f32 %v4548, %v5169
        %v5231 = vadd.f32 %v4549, %v5171
        %v5232 = vadd.f32 %v4550, %v5174
        %v5233 = vadd.f32 %v4551, %v5176
        %v5234 = vadd.f32 %v4552, %v5179
        %v5235 = vadd.f32 %v4553, %v5181
        %v5236 = vadd.f32 %v4554, %v5184
        %v5237 = vadd.f32 %v4555, %v5186
        %v5238 = vadd.f32 %v4556, %v5189
        %v5239 = vadd.f32 %v4557, %v5191
        %v5240 = vadd.f32 %v4558, %v5194
        %v5241 = vadd.f32 %v4559, %v5196
        %v5242 = vadd.f32 %v4560, %v5199
        %v5243 = vadd.f32 %v4561, %v5201
        %v5244 = vadd.f32 %v4562, %v5204
        %v5245 = vadd.f32 %v4563, %v5206
        %v5246 = vadd.f32 %v4564, %v5209
        %v5247 = vadd.f32 %v4565, %v5211
        %v5248 = vadd.f32 %v4566, %v5214
        %v5249 = vadd.f32 %v4567, %v5216
        %v5250 = vld [vmem:[%s2821] sm:$0xe]
        %v5251 = vld [vmem:[%s2821 + $0xc] sm:$0xe]
        %v5252 = vld [vmem:[%s2821 + $0x18] sm:$0xe]
        %v5253 = vld [vmem:[%s2821 + $0x24] sm:$0xe]
        %v5254 = vld [vmem:[%s2821 + $0x30] sm:$0xe]
        %v5255 = vld [vmem:[%s2821 + $0x3c] sm:$0xe]
        %v5256 = vld [vmem:[%s2821 + $0x48] sm:$0xe]
        %v5257 = vld [vmem:[%s2821 + $0x54] sm:$0xe]
        %v5258 = vld [vmem:[%s2821 + $0x60] sm:$0xe]
        %v5259 = vld [vmem:[%s2821 + $0x6c] sm:$0xe]
        %v5260 = vld [vmem:[%s2821 + $0x78] sm:$0xe]
        %v5261 = vld [vmem:[%s2821 + $0x84] sm:$0xe]
        %v5262 = vld [vmem:[%s2821 + $0x90] sm:$0xe]
        %v5263 = vld [vmem:[%s2821 + $0x9c] sm:$0xe]
        %v5264 = vld [vmem:[%s2821 + $0xa8] sm:$0xe]
        %v5265 = vld [vmem:[%s2821 + $0xb4] sm:$0xe]
        %v5314 = vrot.slane %v5250, 5
        %v5315 = vrot.slane %v5314, 4
        %v5316 = vrot.slane %v4569, 5
        %v5317 = vsel %vm3891, %v5315, %v5316
        %v5318 = vrot.slane %v5316, 4
        %v5319 = vrot.slane %v4570, 5
        %v5320 = vsel %vm3891, %v5318, %v5319
        %v5321 = vrot.slane %v5251, 5
        %v5322 = vrot.slane %v5321, 4
        %v5323 = vrot.slane %v4572, 5
        %v5324 = vsel %vm3891, %v5322, %v5323
        %v5325 = vrot.slane %v5323, 4
        %v5326 = vrot.slane %v4573, 5
        %v5327 = vsel %vm3891, %v5325, %v5326
        %v5328 = vrot.slane %v5252, 5
        %v5329 = vrot.slane %v5328, 4
        %v5330 = vrot.slane %v4575, 5
        %v5331 = vsel %vm3891, %v5329, %v5330
        %v5332 = vrot.slane %v5330, 4
        %v5333 = vrot.slane %v4576, 5
        %v5334 = vsel %vm3891, %v5332, %v5333
        %v5335 = vrot.slane %v5253, 5
        %v5336 = vrot.slane %v5335, 4
        %v5337 = vrot.slane %v4578, 5
        %v5338 = vsel %vm3891, %v5336, %v5337
        %v5339 = vrot.slane %v5337, 4
        %v5340 = vrot.slane %v4579, 5
        %v5341 = vsel %vm3891, %v5339, %v5340
        %v5342 = vrot.slane %v5254, 5
        %v5343 = vrot.slane %v5342, 4
        %v5344 = vrot.slane %v4581, 5
        %v5345 = vsel %vm3891, %v5343, %v5344
        %v5346 = vrot.slane %v5344, 4
        %v5347 = vrot.slane %v4582, 5
        %v5348 = vsel %vm3891, %v5346, %v5347
        %v5349 = vrot.slane %v5255, 5
        %v5350 = vrot.slane %v5349, 4
        %v5351 = vrot.slane %v4584, 5
        %v5352 = vsel %vm3891, %v5350, %v5351
        %v5353 = vrot.slane %v5351, 4
        %v5354 = vrot.slane %v4585, 5
        %v5355 = vsel %vm3891, %v5353, %v5354
        %v5356 = vrot.slane %v5256, 5
        %v5357 = vrot.slane %v5356, 4
        %v5358 = vrot.slane %v4587, 5
        %v5359 = vsel %vm3891, %v5357, %v5358
        %v5360 = vrot.slane %v5358, 4
        %v5361 = vrot.slane %v4588, 5
        %v5362 = vsel %vm3891, %v5360, %v5361
        %v5363 = vrot.slane %v5257, 5
        %v5364 = vrot.slane %v5363, 4
        %v5365 = vrot.slane %v4590, 5
        %v5366 = vsel %vm3891, %v5364, %v5365
        %v5367 = vrot.slane %v5365, 4
        %v5368 = vrot.slane %v4591, 5
        %v5369 = vsel %vm3891, %v5367, %v5368
        %v5370 = vrot.slane %v5258, 5
        %v5371 = vrot.slane %v5370, 4
        %v5372 = vrot.slane %v4593, 5
        %v5373 = vsel %vm3891, %v5371, %v5372
        %v5374 = vrot.slane %v5372, 4
        %v5375 = vrot.slane %v4594, 5
        %v5376 = vsel %vm3891, %v5374, %v5375
        %v5377 = vrot.slane %v5259, 5
        %v5378 = vrot.slane %v5377, 4
        %v5379 = vrot.slane %v4596, 5
        %v5380 = vsel %vm3891, %v5378, %v5379
        %v5381 = vrot.slane %v5379, 4
        %v5382 = vrot.slane %v4597, 5
        %v5383 = vsel %vm3891, %v5381, %v5382
        %v5384 = vrot.slane %v5260, 5
        %v5385 = vrot.slane %v5384, 4
        %v5386 = vrot.slane %v4599, 5
        %v5387 = vsel %vm3891, %v5385, %v5386
        %v5388 = vrot.slane %v5386, 4
        %v5389 = vrot.slane %v4600, 5
        %v5390 = vsel %vm3891, %v5388, %v5389
        %v5391 = vrot.slane %v5261, 5
        %v5392 = vrot.slane %v5391, 4
        %v5393 = vrot.slane %v4602, 5
        %v5394 = vsel %vm3891, %v5392, %v5393
        %v5395 = vrot.slane %v5393, 4
        %v5396 = vrot.slane %v4603, 5
        %v5397 = vsel %vm3891, %v5395, %v5396
        %v5398 = vrot.slane %v5262, 5
        %v5399 = vrot.slane %v5398, 4
        %v5400 = vrot.slane %v4605, 5
        %v5401 = vsel %vm3891, %v5399, %v5400
        %v5402 = vrot.slane %v5400, 4
        %v5403 = vrot.slane %v4606, 5
        %v5404 = vsel %vm3891, %v5402, %v5403
        %v5405 = vrot.slane %v5263, 5
        %v5406 = vrot.slane %v5405, 4
        %v5407 = vrot.slane %v4608, 5
        %v5408 = vsel %vm3891, %v5406, %v5407
        %v5409 = vrot.slane %v5407, 4
        %v5410 = vrot.slane %v4609, 5
        %v5411 = vsel %vm3891, %v5409, %v5410
        %v5412 = vrot.slane %v5264, 5
        %v5413 = vrot.slane %v5412, 4
        %v5414 = vrot.slane %v4611, 5
        %v5415 = vsel %vm3891, %v5413, %v5414
        %v5416 = vrot.slane %v5414, 4
        %v5417 = vrot.slane %v4612, 5
        %v5418 = vsel %vm3891, %v5416, %v5417
        %v5419 = vrot.slane %v5265, 5
        %v5420 = vrot.slane %v5419, 4
        %v5421 = vrot.slane %v4614, 5
        %v5422 = vsel %vm3891, %v5420, %v5421
        %v5423 = vrot.slane %v5421, 4
        %v5424 = vrot.slane %v4615, 5
        %v5425 = vsel %vm3891, %v5423, %v5424
        %s5426 = scalar_lea.vmem %s3, 320
        %v5427 = vld [vmem:[%s5426] sm:$0xf]
        %v5428 = vld [vmem:[%s5426 + $0x4] sm:$0xf]
        %v5429 = vld [vmem:[%s5426 + $0x8] sm:$0xf]
        %v5430 = vld [vmem:[%s5426 + $0xc] sm:$0xf]
        %v5431 = vld [vmem:[%s5426 + $0x10] sm:$0xf]
        %v5432 = vld [vmem:[%s5426 + $0x14] sm:$0xf]
        %v5433 = vld [vmem:[%s5426 + $0x18] sm:$0xf]
        %v5434 = vld [vmem:[%s5426 + $0x1c] sm:$0xf]
        %v5435 = vld [vmem:[%s5426 + $0x20] sm:$0xf]
        %v5436 = vld [vmem:[%s5426 + $0x24] sm:$0xf]
        %v5437 = vld [vmem:[%s5426 + $0x28] sm:$0xf]
        %v5438 = vld [vmem:[%s5426 + $0x2c] sm:$0xf]
        %v5439 = vld [vmem:[%s5426 + $0x30] sm:$0xf]
        %v5440 = vld [vmem:[%s5426 + $0x34] sm:$0xf]
        %v5441 = vld [vmem:[%s5426 + $0x38] sm:$0xf]
        %v5442 = vld [vmem:[%s5426 + $0x3c] sm:$0xf]
        %v5443 = vunpack.c.l.b16 %v5317
        %v5444 = vunpack.c.l.b16 %v5320
        %v5445 = vunpack.c.l.b16 %v5324
        %v5446 = vunpack.c.l.b16 %v5327
        %v5447 = vunpack.c.l.b16 %v5331
        %v5448 = vunpack.c.l.b16 %v5334
        %v5449 = vunpack.c.l.b16 %v5338
        %v5450 = vunpack.c.l.b16 %v5341
        %v5451 = vunpack.c.l.b16 %v5345
        %v5452 = vunpack.c.l.b16 %v5348
        %v5453 = vunpack.c.l.b16 %v5352
        %v5454 = vunpack.c.l.b16 %v5355
        %v5455 = vunpack.c.l.b16 %v5359
        %v5456 = vunpack.c.l.b16 %v5362
        %v5457 = vunpack.c.l.b16 %v5366
        %v5458 = vunpack.c.l.b16 %v5369
        %v5459 = vunpack.c.l.b16 %v5373
        %v5460 = vunpack.c.l.b16 %v5376
        %v5461 = vunpack.c.l.b16 %v5380
        %v5462 = vunpack.c.l.b16 %v5383
        %v5463 = vunpack.c.l.b16 %v5387
        %v5464 = vunpack.c.l.b16 %v5390
        %v5465 = vunpack.c.l.b16 %v5394
        %v5466 = vunpack.c.l.b16 %v5397
        %v5467 = vunpack.c.l.b16 %v5401
        %v5468 = vunpack.c.l.b16 %v5404
        %v5469 = vunpack.c.l.b16 %v5408
        %v5470 = vunpack.c.l.b16 %v5411
        %v5471 = vunpack.c.l.b16 %v5415
        %v5472 = vunpack.c.l.b16 %v5418
        %v5473 = vunpack.c.l.b16 %v5422
        %v5474 = vunpack.c.l.b16 %v5425
        %v5475 = vpack.c.b16 %v5444, %v5443
        %v5476 = vpack.c.b16 %v5446, %v5445
        %v5477 = vpack.c.b16 %v5448, %v5447
        %v5478 = vpack.c.b16 %v5450, %v5449
        %v5479 = vpack.c.b16 %v5452, %v5451
        %v5480 = vpack.c.b16 %v5454, %v5453
        %v5481 = vpack.c.b16 %v5456, %v5455
        %v5482 = vpack.c.b16 %v5458, %v5457
        %v5483 = vpack.c.b16 %v5460, %v5459
        %v5484 = vpack.c.b16 %v5462, %v5461
        %v5485 = vpack.c.b16 %v5464, %v5463
        %v5486 = vpack.c.b16 %v5466, %v5465
        %v5487 = vpack.c.b16 %v5468, %v5467
        %v5488 = vpack.c.b16 %v5470, %v5469
        %v5489 = vpack.c.b16 %v5472, %v5471
        %v5490 = vpack.c.b16 %v5474, %v5473
        %v5523 = vunpack.c.l.b16 %v5427
        %v5524 = vunpack.c.l.b16 %v5428
        %v5525 = vunpack.c.l.b16 %v5429
        %v5526 = vunpack.c.l.b16 %v5430
        %v5527 = vunpack.c.l.b16 %v5431
        %v5528 = vunpack.c.l.b16 %v5432
        %v5529 = vunpack.c.l.b16 %v5433
        %v5530 = vunpack.c.l.b16 %v5434
        %v5531 = vunpack.c.l.b16 %v5435
        %v5532 = vunpack.c.l.b16 %v5436
        %v5533 = vunpack.c.l.b16 %v5437
        %v5534 = vunpack.c.l.b16 %v5438
        %v5535 = vunpack.c.l.b16 %v5439
        %v5536 = vunpack.c.l.b16 %v5440
        %v5537 = vunpack.c.l.b16 %v5441
        %v5538 = vunpack.c.l.b16 %v5442
        %v5539 = vpack.c.b16 %v5524, %v5523
        %v5540 = vpack.c.b16 %v5526, %v5525
        %v5541 = vpack.c.b16 %v5528, %v5527
        %v5542 = vpack.c.b16 %v5530, %v5529
        %v5543 = vpack.c.b16 %v5532, %v5531
        %v5544 = vpack.c.b16 %v5534, %v5533
        %v5545 = vpack.c.b16 %v5536, %v5535
        %v5546 = vpack.c.b16 %v5538, %v5537
        %5555 = vmatpush.bf16.msra.mxu0 %v5546
        %5556 = vmatpush.bf16.msra.mxu0 %v5545
        %5557 = vmatpush.bf16.msra.mxu0 %v5544
        %5558 = vmatpush.bf16.msra.mxu0 %v5543
        %5559 = vmatpush.bf16.msra.mxu0 %v5542
        %5560 = vmatpush.bf16.msra.mxu0 %v5541
        %5561 = vmatpush.bf16.msra.mxu0 %v5540
        %5562 = vmatpush.bf16.msra.mxu0 %v5539
        %5563 = vmatmul.bf16.gmra.mxu0 %v5475
        %v5564 = vpop.f32.mrf.mxu0
        %v5565 = vadd.f32 0.0, %v5564
        %v5566 = vpop.f32.mrf.mxu0
        %v5567 = vadd.f32 0.0, %v5566
        %5568 = vmatmul.bf16.gmra.mxu0 %v5476
        %v5569 = vpop.f32.mrf.mxu0
        %v5570 = vadd.f32 0.0, %v5569
        %v5571 = vpop.f32.mrf.mxu0
        %v5572 = vadd.f32 0.0, %v5571
        %5573 = vmatmul.bf16.gmra.mxu0 %v5477
        %v5574 = vpop.f32.mrf.mxu0
        %v5575 = vadd.f32 0.0, %v5574
        %v5576 = vpop.f32.mrf.mxu0
        %v5577 = vadd.f32 0.0, %v5576
        %5578 = vmatmul.bf16.gmra.mxu0 %v5478
        %v5579 = vpop.f32.mrf.mxu0
        %v5580 = vadd.f32 0.0, %v5579
        %v5581 = vpop.f32.mrf.mxu0
        %v5582 = vadd.f32 0.0, %v5581
        %5583 = vmatmul.bf16.gmra.mxu0 %v5479
        %v5584 = vpop.f32.mrf.mxu0
        %v5585 = vadd.f32 0.0, %v5584
        %v5586 = vpop.f32.mrf.mxu0
        %v5587 = vadd.f32 0.0, %v5586
        %5588 = vmatmul.bf16.gmra.mxu0 %v5480
        %v5589 = vpop.f32.mrf.mxu0
        %v5590 = vadd.f32 0.0, %v5589
        %v5591 = vpop.f32.mrf.mxu0
        %v5592 = vadd.f32 0.0, %v5591
        %5593 = vmatmul.bf16.gmra.mxu0 %v5481
        %v5594 = vpop.f32.mrf.mxu0
        %v5595 = vadd.f32 0.0, %v5594
        %v5596 = vpop.f32.mrf.mxu0
        %v5597 = vadd.f32 0.0, %v5596
        %5598 = vmatmul.bf16.gmra.mxu0 %v5482
        %v5599 = vpop.f32.mrf.mxu0
        %v5600 = vadd.f32 0.0, %v5599
        %v5601 = vpop.f32.mrf.mxu0
        %v5602 = vadd.f32 0.0, %v5601
        %5603 = vmatmul.bf16.gmra.mxu0 %v5483
        %v5604 = vpop.f32.mrf.mxu0
        %v5605 = vadd.f32 0.0, %v5604
        %v5606 = vpop.f32.mrf.mxu0
        %v5607 = vadd.f32 0.0, %v5606
        %5608 = vmatmul.bf16.gmra.mxu0 %v5484
        %v5609 = vpop.f32.mrf.mxu0
        %v5610 = vadd.f32 0.0, %v5609
        %v5611 = vpop.f32.mrf.mxu0
        %v5612 = vadd.f32 0.0, %v5611
        %5613 = vmatmul.bf16.gmra.mxu0 %v5485
        %v5614 = vpop.f32.mrf.mxu0
        %v5615 = vadd.f32 0.0, %v5614
        %v5616 = vpop.f32.mrf.mxu0
        %v5617 = vadd.f32 0.0, %v5616
        %5618 = vmatmul.bf16.gmra.mxu0 %v5486
        %v5619 = vpop.f32.mrf.mxu0
        %v5620 = vadd.f32 0.0, %v5619
        %v5621 = vpop.f32.mrf.mxu0
        %v5622 = vadd.f32 0.0, %v5621
        %5623 = vmatmul.bf16.gmra.mxu0 %v5487
        %v5624 = vpop.f32.mrf.mxu0
        %v5625 = vadd.f32 0.0, %v5624
        %v5626 = vpop.f32.mrf.mxu0
        %v5627 = vadd.f32 0.0, %v5626
        %5628 = vmatmul.bf16.gmra.mxu0 %v5488
        %v5629 = vpop.f32.mrf.mxu0
        %v5630 = vadd.f32 0.0, %v5629
        %v5631 = vpop.f32.mrf.mxu0
        %v5632 = vadd.f32 0.0, %v5631
        %5633 = vmatmul.bf16.gmra.mxu0 %v5489
        %v5634 = vpop.f32.mrf.mxu0
        %v5635 = vadd.f32 0.0, %v5634
        %v5636 = vpop.f32.mrf.mxu0
        %v5637 = vadd.f32 0.0, %v5636
        %5638 = vmatmul.bf16.gmra.mxu0 %v5490
        %v5639 = vpop.f32.mrf.mxu0
        %v5640 = vadd.f32 0.0, %v5639
        %v5641 = vpop.f32.mrf.mxu0
        %v5642 = vadd.f32 0.0, %v5641
        %5643 = vdwg.mxu0
        %v5644 = vadd.f32 %v5218, %v5565
        %v5645 = vadd.f32 %v5219, %v5567
        %v5646 = vadd.f32 %v5220, %v5570
        %v5647 = vadd.f32 %v5221, %v5572
        %v5648 = vadd.f32 %v5222, %v5575
        %v5649 = vadd.f32 %v5223, %v5577
        %v5650 = vadd.f32 %v5224, %v5580
        %v5651 = vadd.f32 %v5225, %v5582
        %v5652 = vadd.f32 %v5226, %v5585
        %v5653 = vadd.f32 %v5227, %v5587
        %v5654 = vadd.f32 %v5228, %v5590
        %v5655 = vadd.f32 %v5229, %v5592
        %v5656 = vadd.f32 %v5230, %v5595
        %v5657 = vadd.f32 %v5231, %v5597
        %v5658 = vadd.f32 %v5232, %v5600
        %v5659 = vadd.f32 %v5233, %v5602
        %v5660 = vadd.f32 %v5234, %v5605
        %v5661 = vadd.f32 %v5235, %v5607
        %v5662 = vadd.f32 %v5236, %v5610
        %v5663 = vadd.f32 %v5237, %v5612
        %v5664 = vadd.f32 %v5238, %v5615
        %v5665 = vadd.f32 %v5239, %v5617
        %v5666 = vadd.f32 %v5240, %v5620
        %v5667 = vadd.f32 %v5241, %v5622
        %v5668 = vadd.f32 %v5242, %v5625
        %v5669 = vadd.f32 %v5243, %v5627
        %v5670 = vadd.f32 %v5244, %v5630
        %v5671 = vadd.f32 %v5245, %v5632
        %v5672 = vadd.f32 %v5246, %v5635
        %v5673 = vadd.f32 %v5247, %v5637
        %v5674 = vadd.f32 %v5248, %v5640
        %v5675 = vadd.f32 %v5249, %v5642
        %s5676 = scalar_lea.vmem [#allocation3], 24
        %v5677 = vld [vmem:[%s5676] sm:$0xf]
        %v5678 = vld [vmem:[%s5676 + $0x4] sm:$0xf]
        %v5679 = vld [vmem:[%s5676 + $0xc] sm:$0xf]
        %v5680 = vld [vmem:[%s5676 + $0x10] sm:$0xf]
        %v5681 = vld [vmem:[%s5676 + $0x18] sm:$0xf]
        %v5682 = vld [vmem:[%s5676 + $0x1c] sm:$0xf]
        %v5683 = vld [vmem:[%s5676 + $0x24] sm:$0xf]
        %v5684 = vld [vmem:[%s5676 + $0x28] sm:$0xf]
        %v5685 = vld [vmem:[%s5676 + $0x30] sm:$0xf]
        %v5686 = vld [vmem:[%s5676 + $0x34] sm:$0xf]
        %v5687 = vld [vmem:[%s5676 + $0x3c] sm:$0xf]
        %v5688 = vld [vmem:[%s5676 + $0x40] sm:$0xf]
        %v5689 = vld [vmem:[%s5676 + $0x48] sm:$0xf]
        %v5690 = vld [vmem:[%s5676 + $0x4c] sm:$0xf]
        %v5691 = vld [vmem:[%s5676 + $0x54] sm:$0xf]
        %v5692 = vld [vmem:[%s5676 + $0x58] sm:$0xf]
        %v5693 = vld [vmem:[%s5676 + $0x60] sm:$0xf]
        %v5694 = vld [vmem:[%s5676 + $0x64] sm:$0xf]
        %v5695 = vld [vmem:[%s5676 + $0x6c] sm:$0xf]
        %v5696 = vld [vmem:[%s5676 + $0x70] sm:$0xf]
        %v5697 = vld [vmem:[%s5676 + $0x78] sm:$0xf]
        %v5698 = vld [vmem:[%s5676 + $0x7c] sm:$0xf]
        %v5699 = vld [vmem:[%s5676 + $0x84] sm:$0xf]
        %v5700 = vld [vmem:[%s5676 + $0x88] sm:$0xf]
        %v5701 = vld [vmem:[%s5676 + $0x90] sm:$0xf]
        %v5702 = vld [vmem:[%s5676 + $0x94] sm:$0xf]
        %v5703 = vld [vmem:[%s5676 + $0x9c] sm:$0xf]
        %v5704 = vld [vmem:[%s5676 + $0xa0] sm:$0xf]
        %v5705 = vld [vmem:[%s5676 + $0xa8] sm:$0xf]
        %v5706 = vld [vmem:[%s5676 + $0xac] sm:$0xf]
        %v5707 = vld [vmem:[%s5676 + $0xb4] sm:$0xf]
        %v5708 = vld [vmem:[%s5676 + $0xb8] sm:$0xf]
        %s5709 = scalar_lea.vmem %s3, 384
        %v5710 = vld [vmem:[%s5709] sm:$0xf]
        %v5711 = vld [vmem:[%s5709 + $0x4] sm:$0xf]
        %v5712 = vld [vmem:[%s5709 + $0x8] sm:$0xf]
        %v5713 = vld [vmem:[%s5709 + $0xc] sm:$0xf]
        %v5714 = vld [vmem:[%s5709 + $0x10] sm:$0xf]
        %v5715 = vld [vmem:[%s5709 + $0x14] sm:$0xf]
        %v5716 = vld [vmem:[%s5709 + $0x18] sm:$0xf]
        %v5717 = vld [vmem:[%s5709 + $0x1c] sm:$0xf]
        %v5718 = vld [vmem:[%s5709 + $0x20] sm:$0xf]
        %v5719 = vld [vmem:[%s5709 + $0x24] sm:$0xf]
        %v5720 = vld [vmem:[%s5709 + $0x28] sm:$0xf]
        %v5721 = vld [vmem:[%s5709 + $0x2c] sm:$0xf]
        %v5722 = vld [vmem:[%s5709 + $0x30] sm:$0xf]
        %v5723 = vld [vmem:[%s5709 + $0x34] sm:$0xf]
        %v5724 = vld [vmem:[%s5709 + $0x38] sm:$0xf]
        %v5725 = vld [vmem:[%s5709 + $0x3c] sm:$0xf]
        %v5758 = vunpack.c.l.b16 %v5677
        %v5759 = vunpack.c.l.b16 %v5678
        %v5760 = vunpack.c.l.b16 %v5679
        %v5761 = vunpack.c.l.b16 %v5680
        %v5762 = vunpack.c.l.b16 %v5681
        %v5763 = vunpack.c.l.b16 %v5682
        %v5764 = vunpack.c.l.b16 %v5683
        %v5765 = vunpack.c.l.b16 %v5684
        %v5766 = vunpack.c.l.b16 %v5685
        %v5767 = vunpack.c.l.b16 %v5686
        %v5768 = vunpack.c.l.b16 %v5687
        %v5769 = vunpack.c.l.b16 %v5688
        %v5770 = vunpack.c.l.b16 %v5689
        %v5771 = vunpack.c.l.b16 %v5690
        %v5772 = vunpack.c.l.b16 %v5691
        %v5773 = vunpack.c.l.b16 %v5692
        %v5774 = vunpack.c.l.b16 %v5693
        %v5775 = vunpack.c.l.b16 %v5694
        %v5776 = vunpack.c.l.b16 %v5695
        %v5777 = vunpack.c.l.b16 %v5696
        %v5778 = vunpack.c.l.b16 %v5697
        %v5779 = vunpack.c.l.b16 %v5698
        %v5780 = vunpack.c.l.b16 %v5699
        %v5781 = vunpack.c.l.b16 %v5700
        %v5782 = vunpack.c.l.b16 %v5701
        %v5783 = vunpack.c.l.b16 %v5702
        %v5784 = vunpack.c.l.b16 %v5703
        %v5785 = vunpack.c.l.b16 %v5704
        %v5786 = vunpack.c.l.b16 %v5705
        %v5787 = vunpack.c.l.b16 %v5706
        %v5788 = vunpack.c.l.b16 %v5707
        %v5789 = vunpack.c.l.b16 %v5708
        %v5790 = vpack.c.b16 %v5759, %v5758
        %v5791 = vpack.c.b16 %v5761, %v5760
        %v5792 = vpack.c.b16 %v5763, %v5762
        %v5793 = vpack.c.b16 %v5765, %v5764
        %v5794 = vpack.c.b16 %v5767, %v5766
        %v5795 = vpack.c.b16 %v5769, %v5768
        %v5796 = vpack.c.b16 %v5771, %v5770
        %v5797 = vpack.c.b16 %v5773, %v5772
        %v5798 = vpack.c.b16 %v5775, %v5774
        %v5799 = vpack.c.b16 %v5777, %v5776
        %v5800 = vpack.c.b16 %v5779, %v5778
        %v5801 = vpack.c.b16 %v5781, %v5780
        %v5802 = vpack.c.b16 %v5783, %v5782
        %v5803 = vpack.c.b16 %v5785, %v5784
        %v5804 = vpack.c.b16 %v5787, %v5786
        %v5805 = vpack.c.b16 %v5789, %v5788
        %v5838 = vunpack.c.l.b16 %v5710
        %v5839 = vunpack.c.l.b16 %v5711
        %v5840 = vunpack.c.l.b16 %v5712
        %v5841 = vunpack.c.l.b16 %v5713
        %v5842 = vunpack.c.l.b16 %v5714
        %v5843 = vunpack.c.l.b16 %v5715
        %v5844 = vunpack.c.l.b16 %v5716
        %v5845 = vunpack.c.l.b16 %v5717
        %v5846 = vunpack.c.l.b16 %v5718
        %v5847 = vunpack.c.l.b16 %v5719
        %v5848 = vunpack.c.l.b16 %v5720
        %v5849 = vunpack.c.l.b16 %v5721
        %v5850 = vunpack.c.l.b16 %v5722
        %v5851 = vunpack.c.l.b16 %v5723
        %v5852 = vunpack.c.l.b16 %v5724
        %v5853 = vunpack.c.l.b16 %v5725
        %v5854 = vpack.c.b16 %v5839, %v5838
        %v5855 = vpack.c.b16 %v5841, %v5840
        %v5856 = vpack.c.b16 %v5843, %v5842
        %v5857 = vpack.c.b16 %v5845, %v5844
        %v5858 = vpack.c.b16 %v5847, %v5846
        %v5859 = vpack.c.b16 %v5849, %v5848
        %v5860 = vpack.c.b16 %v5851, %v5850
        %v5861 = vpack.c.b16 %v5853, %v5852
        %5870 = vmatpush.bf16.msra.mxu0 %v5861
        %5871 = vmatpush.bf16.msra.mxu0 %v5860
        %5872 = vmatpush.bf16.msra.mxu0 %v5859
        %5873 = vmatpush.bf16.msra.mxu0 %v5858
        %5874 = vmatpush.bf16.msra.mxu0 %v5857
        %5875 = vmatpush.bf16.msra.mxu0 %v5856
        %5876 = vmatpush.bf16.msra.mxu0 %v5855
        %5877 = vmatpush.bf16.msra.mxu0 %v5854
        %5878 = vmatmul.bf16.gmra.mxu0 %v5790
        %v5879 = vpop.f32.mrf.mxu0
        %v5880 = vadd.f32 0.0, %v5879
        %v5881 = vpop.f32.mrf.mxu0
        %v5882 = vadd.f32 0.0, %v5881
        %5883 = vmatmul.bf16.gmra.mxu0 %v5791
        %v5884 = vpop.f32.mrf.mxu0
        %v5885 = vadd.f32 0.0, %v5884
        %v5886 = vpop.f32.mrf.mxu0
        %v5887 = vadd.f32 0.0, %v5886
        %5888 = vmatmul.bf16.gmra.mxu0 %v5792
        %v5889 = vpop.f32.mrf.mxu0
        %v5890 = vadd.f32 0.0, %v5889
        %v5891 = vpop.f32.mrf.mxu0
        %v5892 = vadd.f32 0.0, %v5891
        %5893 = vmatmul.bf16.gmra.mxu0 %v5793
        %v5894 = vpop.f32.mrf.mxu0
        %v5895 = vadd.f32 0.0, %v5894
        %v5896 = vpop.f32.mrf.mxu0
        %v5897 = vadd.f32 0.0, %v5896
        %5898 = vmatmul.bf16.gmra.mxu0 %v5794
        %v5899 = vpop.f32.mrf.mxu0
        %v5900 = vadd.f32 0.0, %v5899
        %v5901 = vpop.f32.mrf.mxu0
        %v5902 = vadd.f32 0.0, %v5901
        %5903 = vmatmul.bf16.gmra.mxu0 %v5795
        %v5904 = vpop.f32.mrf.mxu0
        %v5905 = vadd.f32 0.0, %v5904
        %v5906 = vpop.f32.mrf.mxu0
        %v5907 = vadd.f32 0.0, %v5906
        %5908 = vmatmul.bf16.gmra.mxu0 %v5796
        %v5909 = vpop.f32.mrf.mxu0
        %v5910 = vadd.f32 0.0, %v5909
        %v5911 = vpop.f32.mrf.mxu0
        %v5912 = vadd.f32 0.0, %v5911
        %5913 = vmatmul.bf16.gmra.mxu0 %v5797
        %v5914 = vpop.f32.mrf.mxu0
        %v5915 = vadd.f32 0.0, %v5914
        %v5916 = vpop.f32.mrf.mxu0
        %v5917 = vadd.f32 0.0, %v5916
        %5918 = vmatmul.bf16.gmra.mxu0 %v5798
        %v5919 = vpop.f32.mrf.mxu0
        %v5920 = vadd.f32 0.0, %v5919
        %v5921 = vpop.f32.mrf.mxu0
        %v5922 = vadd.f32 0.0, %v5921
        %5923 = vmatmul.bf16.gmra.mxu0 %v5799
        %v5924 = vpop.f32.mrf.mxu0
        %v5925 = vadd.f32 0.0, %v5924
        %v5926 = vpop.f32.mrf.mxu0
        %v5927 = vadd.f32 0.0, %v5926
        %5928 = vmatmul.bf16.gmra.mxu0 %v5800
        %v5929 = vpop.f32.mrf.mxu0
        %v5930 = vadd.f32 0.0, %v5929
        %v5931 = vpop.f32.mrf.mxu0
        %v5932 = vadd.f32 0.0, %v5931
        %5933 = vmatmul.bf16.gmra.mxu0 %v5801
        %v5934 = vpop.f32.mrf.mxu0
        %v5935 = vadd.f32 0.0, %v5934
        %v5936 = vpop.f32.mrf.mxu0
        %v5937 = vadd.f32 0.0, %v5936
        %5938 = vmatmul.bf16.gmra.mxu0 %v5802
        %v5939 = vpop.f32.mrf.mxu0
        %v5940 = vadd.f32 0.0, %v5939
        %v5941 = vpop.f32.mrf.mxu0
        %v5942 = vadd.f32 0.0, %v5941
        %5943 = vmatmul.bf16.gmra.mxu0 %v5803
        %v5944 = vpop.f32.mrf.mxu0
        %v5945 = vadd.f32 0.0, %v5944
        %v5946 = vpop.f32.mrf.mxu0
        %v5947 = vadd.f32 0.0, %v5946
        %5948 = vmatmul.bf16.gmra.mxu0 %v5804
        %v5949 = vpop.f32.mrf.mxu0
        %v5950 = vadd.f32 0.0, %v5949
        %v5951 = vpop.f32.mrf.mxu0
        %v5952 = vadd.f32 0.0, %v5951
        %5953 = vmatmul.bf16.gmra.mxu0 %v5805
        %v5954 = vpop.f32.mrf.mxu0
        %v5955 = vadd.f32 0.0, %v5954
        %v5956 = vpop.f32.mrf.mxu0
        %v5957 = vadd.f32 0.0, %v5956
        %5958 = vdwg.mxu0
        %v5959 = vadd.f32 %v5644, %v5880
        %v5960 = vadd.f32 %v5645, %v5882
        %v5961 = vadd.f32 %v5646, %v5885
        %v5962 = vadd.f32 %v5647, %v5887
        %v5963 = vadd.f32 %v5648, %v5890
        %v5964 = vadd.f32 %v5649, %v5892
        %v5965 = vadd.f32 %v5650, %v5895
        %v5966 = vadd.f32 %v5651, %v5897
        %v5967 = vadd.f32 %v5652, %v5900
        %v5968 = vadd.f32 %v5653, %v5902
        %v5969 = vadd.f32 %v5654, %v5905
        %v5970 = vadd.f32 %v5655, %v5907
        %v5971 = vadd.f32 %v5656, %v5910
        %v5972 = vadd.f32 %v5657, %v5912
        %v5973 = vadd.f32 %v5658, %v5915
        %v5974 = vadd.f32 %v5659, %v5917
        %v5975 = vadd.f32 %v5660, %v5920
        %v5976 = vadd.f32 %v5661, %v5922
        %v5977 = vadd.f32 %v5662, %v5925
        %v5978 = vadd.f32 %v5663, %v5927
        %v5979 = vadd.f32 %v5664, %v5930
        %v5980 = vadd.f32 %v5665, %v5932
        %v5981 = vadd.f32 %v5666, %v5935
        %v5982 = vadd.f32 %v5667, %v5937
        %v5983 = vadd.f32 %v5668, %v5940
        %v5984 = vadd.f32 %v5669, %v5942
        %v5985 = vadd.f32 %v5670, %v5945
        %v5986 = vadd.f32 %v5671, %v5947
        %v5987 = vadd.f32 %v5672, %v5950
        %v5988 = vadd.f32 %v5673, %v5952
        %v5989 = vadd.f32 %v5674, %v5955
        %v5990 = vadd.f32 %v5675, %v5957
        %v5991 = vld [vmem:[%s5676] sm:$0xf]
        %v5992 = vld [vmem:[%s5676 + $0x4] sm:$0xf]
        %v5993 = vld [vmem:[%s5676 + $0x8] sm:$0x1]
        %v5994 = vld [vmem:[%s5676 + $0xc] sm:$0xf]
        %v5995 = vld [vmem:[%s5676 + $0x10] sm:$0xf]
        %v5996 = vld [vmem:[%s5676 + $0x14] sm:$0x1]
        %v5997 = vld [vmem:[%s5676 + $0x18] sm:$0xf]
        %v5998 = vld [vmem:[%s5676 + $0x1c] sm:$0xf]
        %v5999 = vld [vmem:[%s5676 + $0x20] sm:$0x1]
        %v6000 = vld [vmem:[%s5676 + $0x24] sm:$0xf]
        %v6001 = vld [vmem:[%s5676 + $0x28] sm:$0xf]
        %v6002 = vld [vmem:[%s5676 + $0x2c] sm:$0x1]
        %v6003 = vld [vmem:[%s5676 + $0x30] sm:$0xf]
        %v6004 = vld [vmem:[%s5676 + $0x34] sm:$0xf]
        %v6005 = vld [vmem:[%s5676 + $0x38] sm:$0x1]
        %v6006 = vld [vmem:[%s5676 + $0x3c] sm:$0xf]
        %v6007 = vld [vmem:[%s5676 + $0x40] sm:$0xf]
        %v6008 = vld [vmem:[%s5676 + $0x44] sm:$0x1]
        %v6009 = vld [vmem:[%s5676 + $0x48] sm:$0xf]
        %v6010 = vld [vmem:[%s5676 + $0x4c] sm:$0xf]
        %v6011 = vld [vmem:[%s5676 + $0x50] sm:$0x1]
        %v6012 = vld [vmem:[%s5676 + $0x54] sm:$0xf]
        %v6013 = vld [vmem:[%s5676 + $0x58] sm:$0xf]
        %v6014 = vld [vmem:[%s5676 + $0x5c] sm:$0x1]
        %v6015 = vld [vmem:[%s5676 + $0x60] sm:$0xf]
        %v6016 = vld [vmem:[%s5676 + $0x64] sm:$0xf]
        %v6017 = vld [vmem:[%s5676 + $0x68] sm:$0x1]
        %v6018 = vld [vmem:[%s5676 + $0x6c] sm:$0xf]
        %v6019 = vld [vmem:[%s5676 + $0x70] sm:$0xf]
        %v6020 = vld [vmem:[%s5676 + $0x74] sm:$0x1]
        %v6021 = vld [vmem:[%s5676 + $0x78] sm:$0xf]
        %v6022 = vld [vmem:[%s5676 + $0x7c] sm:$0xf]
        %v6023 = vld [vmem:[%s5676 + $0x80] sm:$0x1]
        %v6024 = vld [vmem:[%s5676 + $0x84] sm:$0xf]
        %v6025 = vld [vmem:[%s5676 + $0x88] sm:$0xf]
        %v6026 = vld [vmem:[%s5676 + $0x8c] sm:$0x1]
        %v6027 = vld [vmem:[%s5676 + $0x90] sm:$0xf]
        %v6028 = vld [vmem:[%s5676 + $0x94] sm:$0xf]
        %v6029 = vld [vmem:[%s5676 + $0x98] sm:$0x1]
        %v6030 = vld [vmem:[%s5676 + $0x9c] sm:$0xf]
        %v6031 = vld [vmem:[%s5676 + $0xa0] sm:$0xf]
        %v6032 = vld [vmem:[%s5676 + $0xa4] sm:$0x1]
        %v6033 = vld [vmem:[%s5676 + $0xa8] sm:$0xf]
        %v6034 = vld [vmem:[%s5676 + $0xac] sm:$0xf]
        %v6035 = vld [vmem:[%s5676 + $0xb0] sm:$0x1]
        %v6036 = vld [vmem:[%s5676 + $0xb4] sm:$0xf]
        %v6037 = vld [vmem:[%s5676 + $0xb8] sm:$0xf]
        %v6038 = vld [vmem:[%s5676 + $0xbc] sm:$0x1]
        %v6040 = vshrl.u32 %v5991, 16
        %v6042 = vrot.slane %v6040, 4
        %v6043 = vshll.u32 %v5991, 16
        %v6045 = vrot.slane %v6043, 5
        %v6046 = vor.u32 %v6042, %v6045
        %v6047 = vrot.slane %v6046, 4
        %v6049 = vshll.u32 %v5992, 16
        %v6051 = vrot.slane %v6049, 5
        %v6052 = vsel %vm3005, %v6047, %v6051
        %v6053 = vshrl.u32 %v5992, 16
        %v6055 = vrot.slane %v6053, 4
        %v6056 = vor.u32 %v6055, %v6051
        %v6057 = vrot.slane %v6056, 4
        %v6059 = vshll.u32 %v5993, 16
        %v6061 = vrot.slane %v6059, 5
        %v6062 = vsel %vm3005, %v6057, %v6061
        %v6064 = vshrl.u32 %v5994, 16
        %v6066 = vrot.slane %v6064, 4
        %v6067 = vshll.u32 %v5994, 16
        %v6069 = vrot.slane %v6067, 5
        %v6070 = vor.u32 %v6066, %v6069
        %v6071 = vrot.slane %v6070, 4
        %v6073 = vshll.u32 %v5995, 16
        %v6075 = vrot.slane %v6073, 5
        %v6076 = vsel %vm3005, %v6071, %v6075
        %v6077 = vshrl.u32 %v5995, 16
        %v6079 = vrot.slane %v6077, 4
        %v6080 = vor.u32 %v6079, %v6075
        %v6081 = vrot.slane %v6080, 4
        %v6083 = vshll.u32 %v5996, 16
        %v6085 = vrot.slane %v6083, 5
        %v6086 = vsel %vm3005, %v6081, %v6085
        %v6088 = vshrl.u32 %v5997, 16
        %v6090 = vrot.slane %v6088, 4
        %v6091 = vshll.u32 %v5997, 16
        %v6093 = vrot.slane %v6091, 5
        %v6094 = vor.u32 %v6090, %v6093
        %v6095 = vrot.slane %v6094, 4
        %v6097 = vshll.u32 %v5998, 16
        %v6099 = vrot.slane %v6097, 5
        %v6100 = vsel %vm3005, %v6095, %v6099
        %v6101 = vshrl.u32 %v5998, 16
        %v6103 = vrot.slane %v6101, 4
        %v6104 = vor.u32 %v6103, %v6099
        %v6105 = vrot.slane %v6104, 4
        %v6107 = vshll.u32 %v5999, 16
        %v6109 = vrot.slane %v6107, 5
        %v6110 = vsel %vm3005, %v6105, %v6109
        %v6112 = vshrl.u32 %v6000, 16
        %v6114 = vrot.slane %v6112, 4
        %v6115 = vshll.u32 %v6000, 16
        %v6117 = vrot.slane %v6115, 5
        %v6118 = vor.u32 %v6114, %v6117
        %v6119 = vrot.slane %v6118, 4
        %v6121 = vshll.u32 %v6001, 16
        %v6123 = vrot.slane %v6121, 5
        %v6124 = vsel %vm3005, %v6119, %v6123
        %v6125 = vshrl.u32 %v6001, 16
        %v6127 = vrot.slane %v6125, 4
        %v6128 = vor.u32 %v6127, %v6123
        %v6129 = vrot.slane %v6128, 4
        %v6131 = vshll.u32 %v6002, 16
        %v6133 = vrot.slane %v6131, 5
        %v6134 = vsel %vm3005, %v6129, %v6133
        %v6136 = vshrl.u32 %v6003, 16
        %v6138 = vrot.slane %v6136, 4
        %v6139 = vshll.u32 %v6003, 16
        %v6141 = vrot.slane %v6139, 5
        %v6142 = vor.u32 %v6138, %v6141
        %v6143 = vrot.slane %v6142, 4
        %v6145 = vshll.u32 %v6004, 16
        %v6147 = vrot.slane %v6145, 5
        %v6148 = vsel %vm3005, %v6143, %v6147
        %v6149 = vshrl.u32 %v6004, 16
        %v6151 = vrot.slane %v6149, 4
        %v6152 = vor.u32 %v6151, %v6147
        %v6153 = vrot.slane %v6152, 4
        %v6155 = vshll.u32 %v6005, 16
        %v6157 = vrot.slane %v6155, 5
        %v6158 = vsel %vm3005, %v6153, %v6157
        %v6160 = vshrl.u32 %v6006, 16
        %v6162 = vrot.slane %v6160, 4
        %v6163 = vshll.u32 %v6006, 16
        %v6165 = vrot.slane %v6163, 5
        %v6166 = vor.u32 %v6162, %v6165
        %v6167 = vrot.slane %v6166, 4
        %v6169 = vshll.u32 %v6007, 16
        %v6171 = vrot.slane %v6169, 5
        %v6172 = vsel %vm3005, %v6167, %v6171
        %v6173 = vshrl.u32 %v6007, 16
        %v6175 = vrot.slane %v6173, 4
        %v6176 = vor.u32 %v6175, %v6171
        %v6177 = vrot.slane %v6176, 4
        %v6179 = vshll.u32 %v6008, 16
        %v6181 = vrot.slane %v6179, 5
        %v6182 = vsel %vm3005, %v6177, %v6181
        %v6184 = vshrl.u32 %v6009, 16
        %v6186 = vrot.slane %v6184, 4
        %v6187 = vshll.u32 %v6009, 16
        %v6189 = vrot.slane %v6187, 5
        %v6190 = vor.u32 %v6186, %v6189
        %v6191 = vrot.slane %v6190, 4
        %v6193 = vshll.u32 %v6010, 16
        %v6195 = vrot.slane %v6193, 5
        %v6196 = vsel %vm3005, %v6191, %v6195
        %v6197 = vshrl.u32 %v6010, 16
        %v6199 = vrot.slane %v6197, 4
        %v6200 = vor.u32 %v6199, %v6195
        %v6201 = vrot.slane %v6200, 4
        %v6203 = vshll.u32 %v6011, 16
        %v6205 = vrot.slane %v6203, 5
        %v6206 = vsel %vm3005, %v6201, %v6205
        %v6208 = vshrl.u32 %v6012, 16
        %v6210 = vrot.slane %v6208, 4
        %v6211 = vshll.u32 %v6012, 16
        %v6213 = vrot.slane %v6211, 5
        %v6214 = vor.u32 %v6210, %v6213
        %v6215 = vrot.slane %v6214, 4
        %v6217 = vshll.u32 %v6013, 16
        %v6219 = vrot.slane %v6217, 5
        %v6220 = vsel %vm3005, %v6215, %v6219
        %v6221 = vshrl.u32 %v6013, 16
        %v6223 = vrot.slane %v6221, 4
        %v6224 = vor.u32 %v6223, %v6219
        %v6225 = vrot.slane %v6224, 4
        %v6227 = vshll.u32 %v6014, 16
        %v6229 = vrot.slane %v6227, 5
        %v6230 = vsel %vm3005, %v6225, %v6229
        %v6232 = vshrl.u32 %v6015, 16
        %v6234 = vrot.slane %v6232, 4
        %v6235 = vshll.u32 %v6015, 16
        %v6237 = vrot.slane %v6235, 5
        %v6238 = vor.u32 %v6234, %v6237
        %v6239 = vrot.slane %v6238, 4
        %v6241 = vshll.u32 %v6016, 16
        %v6243 = vrot.slane %v6241, 5
        %v6244 = vsel %vm3005, %v6239, %v6243
        %v6245 = vshrl.u32 %v6016, 16
        %v6247 = vrot.slane %v6245, 4
        %v6248 = vor.u32 %v6247, %v6243
        %v6249 = vrot.slane %v6248, 4
        %v6251 = vshll.u32 %v6017, 16
        %v6253 = vrot.slane %v6251, 5
        %v6254 = vsel %vm3005, %v6249, %v6253
        %v6256 = vshrl.u32 %v6018, 16
        %v6258 = vrot.slane %v6256, 4
        %v6259 = vshll.u32 %v6018, 16
        %v6261 = vrot.slane %v6259, 5
        %v6262 = vor.u32 %v6258, %v6261
        %v6263 = vrot.slane %v6262, 4
        %v6265 = vshll.u32 %v6019, 16
        %v6267 = vrot.slane %v6265, 5
        %v6268 = vsel %vm3005, %v6263, %v6267
        %v6269 = vshrl.u32 %v6019, 16
        %v6271 = vrot.slane %v6269, 4
        %v6272 = vor.u32 %v6271, %v6267
        %v6273 = vrot.slane %v6272, 4
        %v6275 = vshll.u32 %v6020, 16
        %v6277 = vrot.slane %v6275, 5
        %v6278 = vsel %vm3005, %v6273, %v6277
        %v6280 = vshrl.u32 %v6021, 16
        %v6282 = vrot.slane %v6280, 4
        %v6283 = vshll.u32 %v6021, 16
        %v6285 = vrot.slane %v6283, 5
        %v6286 = vor.u32 %v6282, %v6285
        %v6287 = vrot.slane %v6286, 4
        %v6289 = vshll.u32 %v6022, 16
        %v6291 = vrot.slane %v6289, 5
        %v6292 = vsel %vm3005, %v6287, %v6291
        %v6293 = vshrl.u32 %v6022, 16
        %v6295 = vrot.slane %v6293, 4
        %v6296 = vor.u32 %v6295, %v6291
        %v6297 = vrot.slane %v6296, 4
        %v6299 = vshll.u32 %v6023, 16
        %v6301 = vrot.slane %v6299, 5
        %v6302 = vsel %vm3005, %v6297, %v6301
        %v6304 = vshrl.u32 %v6024, 16
        %v6306 = vrot.slane %v6304, 4
        %v6307 = vshll.u32 %v6024, 16
        %v6309 = vrot.slane %v6307, 5
        %v6310 = vor.u32 %v6306, %v6309
        %v6311 = vrot.slane %v6310, 4
        %v6313 = vshll.u32 %v6025, 16
        %v6315 = vrot.slane %v6313, 5
        %v6316 = vsel %vm3005, %v6311, %v6315
        %v6317 = vshrl.u32 %v6025, 16
        %v6319 = vrot.slane %v6317, 4
        %v6320 = vor.u32 %v6319, %v6315
        %v6321 = vrot.slane %v6320, 4
        %v6323 = vshll.u32 %v6026, 16
        %v6325 = vrot.slane %v6323, 5
        %v6326 = vsel %vm3005, %v6321, %v6325
        %v6328 = vshrl.u32 %v6027, 16
        %v6330 = vrot.slane %v6328, 4
        %v6331 = vshll.u32 %v6027, 16
        %v6333 = vrot.slane %v6331, 5
        %v6334 = vor.u32 %v6330, %v6333
        %v6335 = vrot.slane %v6334, 4
        %v6337 = vshll.u32 %v6028, 16
        %v6339 = vrot.slane %v6337, 5
        %v6340 = vsel %vm3005, %v6335, %v6339
        %v6341 = vshrl.u32 %v6028, 16
        %v6343 = vrot.slane %v6341, 4
        %v6344 = vor.u32 %v6343, %v6339
        %v6345 = vrot.slane %v6344, 4
        %v6347 = vshll.u32 %v6029, 16
        %v6349 = vrot.slane %v6347, 5
        %v6350 = vsel %vm3005, %v6345, %v6349
        %v6352 = vshrl.u32 %v6030, 16
        %v6354 = vrot.slane %v6352, 4
        %v6355 = vshll.u32 %v6030, 16
        %v6357 = vrot.slane %v6355, 5
        %v6358 = vor.u32 %v6354, %v6357
        %v6359 = vrot.slane %v6358, 4
        %v6361 = vshll.u32 %v6031, 16
        %v6363 = vrot.slane %v6361, 5
        %v6364 = vsel %vm3005, %v6359, %v6363
        %v6365 = vshrl.u32 %v6031, 16
        %v6367 = vrot.slane %v6365, 4
        %v6368 = vor.u32 %v6367, %v6363
        %v6369 = vrot.slane %v6368, 4
        %v6371 = vshll.u32 %v6032, 16
        %v6373 = vrot.slane %v6371, 5
        %v6374 = vsel %vm3005, %v6369, %v6373
        %v6376 = vshrl.u32 %v6033, 16
        %v6378 = vrot.slane %v6376, 4
        %v6379 = vshll.u32 %v6033, 16
        %v6381 = vrot.slane %v6379, 5
        %v6382 = vor.u32 %v6378, %v6381
        %v6383 = vrot.slane %v6382, 4
        %v6385 = vshll.u32 %v6034, 16
        %v6387 = vrot.slane %v6385, 5
        %v6388 = vsel %vm3005, %v6383, %v6387
        %v6389 = vshrl.u32 %v6034, 16
        %v6391 = vrot.slane %v6389, 4
        %v6392 = vor.u32 %v6391, %v6387
        %v6393 = vrot.slane %v6392, 4
        %v6395 = vshll.u32 %v6035, 16
        %v6397 = vrot.slane %v6395, 5
        %v6398 = vsel %vm3005, %v6393, %v6397
        %v6400 = vshrl.u32 %v6036, 16
        %v6402 = vrot.slane %v6400, 4
        %v6403 = vshll.u32 %v6036, 16
        %v6405 = vrot.slane %v6403, 5
        %v6406 = vor.u32 %v6402, %v6405
        %v6407 = vrot.slane %v6406, 4
        %v6409 = vshll.u32 %v6037, 16
        %v6411 = vrot.slane %v6409, 5
        %v6412 = vsel %vm3005, %v6407, %v6411
        %v6413 = vshrl.u32 %v6037, 16
        %v6415 = vrot.slane %v6413, 4
        %v6416 = vor.u32 %v6415, %v6411
        %v6417 = vrot.slane %v6416, 4
        %v6419 = vshll.u32 %v6038, 16
        %v6421 = vrot.slane %v6419, 5
        %v6422 = vsel %vm3005, %v6417, %v6421
        %s6423 = scalar_lea.vmem %s3, 448
        %v6424 = vld [vmem:[%s6423] sm:$0xf]
        %v6425 = vld [vmem:[%s6423 + $0x4] sm:$0xf]
        %v6426 = vld [vmem:[%s6423 + $0x8] sm:$0xf]
        %v6427 = vld [vmem:[%s6423 + $0xc] sm:$0xf]
        %v6428 = vld [vmem:[%s6423 + $0x10] sm:$0xf]
        %v6429 = vld [vmem:[%s6423 + $0x14] sm:$0xf]
        %v6430 = vld [vmem:[%s6423 + $0x18] sm:$0xf]
        %v6431 = vld [vmem:[%s6423 + $0x1c] sm:$0xf]
        %v6432 = vld [vmem:[%s6423 + $0x20] sm:$0xf]
        %v6433 = vld [vmem:[%s6423 + $0x24] sm:$0xf]
        %v6434 = vld [vmem:[%s6423 + $0x28] sm:$0xf]
        %v6435 = vld [vmem:[%s6423 + $0x2c] sm:$0xf]
        %v6436 = vld [vmem:[%s6423 + $0x30] sm:$0xf]
        %v6437 = vld [vmem:[%s6423 + $0x34] sm:$0xf]
        %v6438 = vld [vmem:[%s6423 + $0x38] sm:$0xf]
        %v6439 = vld [vmem:[%s6423 + $0x3c] sm:$0xf]
        %v6440 = vunpack.c.l.b16 %v6052
        %v6441 = vunpack.c.l.b16 %v6062
        %v6442 = vunpack.c.l.b16 %v6076
        %v6443 = vunpack.c.l.b16 %v6086
        %v6444 = vunpack.c.l.b16 %v6100
        %v6445 = vunpack.c.l.b16 %v6110
        %v6446 = vunpack.c.l.b16 %v6124
        %v6447 = vunpack.c.l.b16 %v6134
        %v6448 = vunpack.c.l.b16 %v6148
        %v6449 = vunpack.c.l.b16 %v6158
        %v6450 = vunpack.c.l.b16 %v6172
        %v6451 = vunpack.c.l.b16 %v6182
        %v6452 = vunpack.c.l.b16 %v6196
        %v6453 = vunpack.c.l.b16 %v6206
        %v6454 = vunpack.c.l.b16 %v6220
        %v6455 = vunpack.c.l.b16 %v6230
        %v6456 = vunpack.c.l.b16 %v6244
        %v6457 = vunpack.c.l.b16 %v6254
        %v6458 = vunpack.c.l.b16 %v6268
        %v6459 = vunpack.c.l.b16 %v6278
        %v6460 = vunpack.c.l.b16 %v6292
        %v6461 = vunpack.c.l.b16 %v6302
        %v6462 = vunpack.c.l.b16 %v6316
        %v6463 = vunpack.c.l.b16 %v6326
        %v6464 = vunpack.c.l.b16 %v6340
        %v6465 = vunpack.c.l.b16 %v6350
        %v6466 = vunpack.c.l.b16 %v6364
        %v6467 = vunpack.c.l.b16 %v6374
        %v6468 = vunpack.c.l.b16 %v6388
        %v6469 = vunpack.c.l.b16 %v6398
        %v6470 = vunpack.c.l.b16 %v6412
        %v6471 = vunpack.c.l.b16 %v6422
        %v6472 = vpack.c.b16 %v6441, %v6440
        %v6473 = vpack.c.b16 %v6443, %v6442
        %v6474 = vpack.c.b16 %v6445, %v6444
        %v6475 = vpack.c.b16 %v6447, %v6446
        %v6476 = vpack.c.b16 %v6449, %v6448
        %v6477 = vpack.c.b16 %v6451, %v6450
        %v6478 = vpack.c.b16 %v6453, %v6452
        %v6479 = vpack.c.b16 %v6455, %v6454
        %v6480 = vpack.c.b16 %v6457, %v6456
        %v6481 = vpack.c.b16 %v6459, %v6458
        %v6482 = vpack.c.b16 %v6461, %v6460
        %v6483 = vpack.c.b16 %v6463, %v6462
        %v6484 = vpack.c.b16 %v6465, %v6464
        %v6485 = vpack.c.b16 %v6467, %v6466
        %v6486 = vpack.c.b16 %v6469, %v6468
        %v6487 = vpack.c.b16 %v6471, %v6470
        %v6520 = vunpack.c.l.b16 %v6424
        %v6521 = vunpack.c.l.b16 %v6425
        %v6522 = vunpack.c.l.b16 %v6426
        %v6523 = vunpack.c.l.b16 %v6427
        %v6524 = vunpack.c.l.b16 %v6428
        %v6525 = vunpack.c.l.b16 %v6429
        %v6526 = vunpack.c.l.b16 %v6430
        %v6527 = vunpack.c.l.b16 %v6431
        %v6528 = vunpack.c.l.b16 %v6432
        %v6529 = vunpack.c.l.b16 %v6433
        %v6530 = vunpack.c.l.b16 %v6434
        %v6531 = vunpack.c.l.b16 %v6435
        %v6532 = vunpack.c.l.b16 %v6436
        %v6533 = vunpack.c.l.b16 %v6437
        %v6534 = vunpack.c.l.b16 %v6438
        %v6535 = vunpack.c.l.b16 %v6439
        %v6536 = vpack.c.b16 %v6521, %v6520
        %v6537 = vpack.c.b16 %v6523, %v6522
        %v6538 = vpack.c.b16 %v6525, %v6524
        %v6539 = vpack.c.b16 %v6527, %v6526
        %v6540 = vpack.c.b16 %v6529, %v6528
        %v6541 = vpack.c.b16 %v6531, %v6530
        %v6542 = vpack.c.b16 %v6533, %v6532
        %v6543 = vpack.c.b16 %v6535, %v6534
        %6552 = vmatpush.bf16.msra.mxu0 %v6543
        %6553 = vmatpush.bf16.msra.mxu0 %v6542
        %6554 = vmatpush.bf16.msra.mxu0 %v6541
        %6555 = vmatpush.bf16.msra.mxu0 %v6540
        %6556 = vmatpush.bf16.msra.mxu0 %v6539
        %6557 = vmatpush.bf16.msra.mxu0 %v6538
        %6558 = vmatpush.bf16.msra.mxu0 %v6537
        %6559 = vmatpush.bf16.msra.mxu0 %v6536
        %6560 = vmatmul.bf16.gmra.mxu0 %v6472
        %v6561 = vpop.f32.mrf.mxu0
        %v6562 = vadd.f32 0.0, %v6561
        %v6563 = vpop.f32.mrf.mxu0
        %v6564 = vadd.f32 0.0, %v6563
        %6565 = vmatmul.bf16.gmra.mxu0 %v6473
        %v6566 = vpop.f32.mrf.mxu0
        %v6567 = vadd.f32 0.0, %v6566
        %v6568 = vpop.f32.mrf.mxu0
        %v6569 = vadd.f32 0.0, %v6568
        %6570 = vmatmul.bf16.gmra.mxu0 %v6474
        %v6571 = vpop.f32.mrf.mxu0
        %v6572 = vadd.f32 0.0, %v6571
        %v6573 = vpop.f32.mrf.mxu0
        %v6574 = vadd.f32 0.0, %v6573
        %6575 = vmatmul.bf16.gmra.mxu0 %v6475
        %v6576 = vpop.f32.mrf.mxu0
        %v6577 = vadd.f32 0.0, %v6576
        %v6578 = vpop.f32.mrf.mxu0
        %v6579 = vadd.f32 0.0, %v6578
        %6580 = vmatmul.bf16.gmra.mxu0 %v6476
        %v6581 = vpop.f32.mrf.mxu0
        %v6582 = vadd.f32 0.0, %v6581
        %v6583 = vpop.f32.mrf.mxu0
        %v6584 = vadd.f32 0.0, %v6583
        %6585 = vmatmul.bf16.gmra.mxu0 %v6477
        %v6586 = vpop.f32.mrf.mxu0
        %v6587 = vadd.f32 0.0, %v6586
        %v6588 = vpop.f32.mrf.mxu0
        %v6589 = vadd.f32 0.0, %v6588
        %6590 = vmatmul.bf16.gmra.mxu0 %v6478
        %v6591 = vpop.f32.mrf.mxu0
        %v6592 = vadd.f32 0.0, %v6591
        %v6593 = vpop.f32.mrf.mxu0
        %v6594 = vadd.f32 0.0, %v6593
        %6595 = vmatmul.bf16.gmra.mxu0 %v6479
        %v6596 = vpop.f32.mrf.mxu0
        %v6597 = vadd.f32 0.0, %v6596
        %v6598 = vpop.f32.mrf.mxu0
        %v6599 = vadd.f32 0.0, %v6598
        %6600 = vmatmul.bf16.gmra.mxu0 %v6480
        %v6601 = vpop.f32.mrf.mxu0
        %v6602 = vadd.f32 0.0, %v6601
        %v6603 = vpop.f32.mrf.mxu0
        %v6604 = vadd.f32 0.0, %v6603
        %6605 = vmatmul.bf16.gmra.mxu0 %v6481
        %v6606 = vpop.f32.mrf.mxu0
        %v6607 = vadd.f32 0.0, %v6606
        %v6608 = vpop.f32.mrf.mxu0
        %v6609 = vadd.f32 0.0, %v6608
        %6610 = vmatmul.bf16.gmra.mxu0 %v6482
        %v6611 = vpop.f32.mrf.mxu0
        %v6612 = vadd.f32 0.0, %v6611
        %v6613 = vpop.f32.mrf.mxu0
        %v6614 = vadd.f32 0.0, %v6613
        %6615 = vmatmul.bf16.gmra.mxu0 %v6483
        %v6616 = vpop.f32.mrf.mxu0
        %v6617 = vadd.f32 0.0, %v6616
        %v6618 = vpop.f32.mrf.mxu0
        %v6619 = vadd.f32 0.0, %v6618
        %6620 = vmatmul.bf16.gmra.mxu0 %v6484
        %v6621 = vpop.f32.mrf.mxu0
        %v6622 = vadd.f32 0.0, %v6621
        %v6623 = vpop.f32.mrf.mxu0
        %v6624 = vadd.f32 0.0, %v6623
        %6625 = vmatmul.bf16.gmra.mxu0 %v6485
        %v6626 = vpop.f32.mrf.mxu0
        %v6627 = vadd.f32 0.0, %v6626
        %v6628 = vpop.f32.mrf.mxu0
        %v6629 = vadd.f32 0.0, %v6628
        %6630 = vmatmul.bf16.gmra.mxu0 %v6486
        %v6631 = vpop.f32.mrf.mxu0
        %v6632 = vadd.f32 0.0, %v6631
        %v6633 = vpop.f32.mrf.mxu0
        %v6634 = vadd.f32 0.0, %v6633
        %6635 = vmatmul.bf16.gmra.mxu0 %v6487
        %v6636 = vpop.f32.mrf.mxu0
        %v6637 = vadd.f32 0.0, %v6636
        %v6638 = vpop.f32.mrf.mxu0
        %v6639 = vadd.f32 0.0, %v6638
        %6640 = vdwg.mxu0
        %v6641 = vadd.f32 %v5959, %v6562
        %v6642 = vadd.f32 %v5960, %v6564
        %v6643 = vadd.f32 %v5961, %v6567
        %v6644 = vadd.f32 %v5962, %v6569
        %v6645 = vadd.f32 %v5963, %v6572
        %v6646 = vadd.f32 %v5964, %v6574
        %v6647 = vadd.f32 %v5965, %v6577
        %v6648 = vadd.f32 %v5966, %v6579
        %v6649 = vadd.f32 %v5967, %v6582
        %v6650 = vadd.f32 %v5968, %v6584
        %v6651 = vadd.f32 %v5969, %v6587
        %v6652 = vadd.f32 %v5970, %v6589
        %v6653 = vadd.f32 %v5971, %v6592
        %v6654 = vadd.f32 %v5972, %v6594
        %v6655 = vadd.f32 %v5973, %v6597
        %v6656 = vadd.f32 %v5974, %v6599
        %v6657 = vadd.f32 %v5975, %v6602
        %v6658 = vadd.f32 %v5976, %v6604
        %v6659 = vadd.f32 %v5977, %v6607
        %v6660 = vadd.f32 %v5978, %v6609
        %v6661 = vadd.f32 %v5979, %v6612
        %v6662 = vadd.f32 %v5980, %v6614
        %v6663 = vadd.f32 %v5981, %v6617
        %v6664 = vadd.f32 %v5982, %v6619
        %v6665 = vadd.f32 %v5983, %v6622
        %v6666 = vadd.f32 %v5984, %v6624
        %v6667 = vadd.f32 %v5985, %v6627
        %v6668 = vadd.f32 %v5986, %v6629
        %v6669 = vadd.f32 %v5987, %v6632
        %v6670 = vadd.f32 %v5988, %v6634
        %v6671 = vadd.f32 %v5989, %v6637
        %v6672 = vadd.f32 %v5990, %v6639
        %v6673 = vld [vmem:[%s5676] sm:$0xe]
        %v6674 = vld [vmem:[%s5676 + $0xc] sm:$0xe]
        %v6675 = vld [vmem:[%s5676 + $0x18] sm:$0xe]
        %v6676 = vld [vmem:[%s5676 + $0x24] sm:$0xe]
        %v6677 = vld [vmem:[%s5676 + $0x30] sm:$0xe]
        %v6678 = vld [vmem:[%s5676 + $0x3c] sm:$0xe]
        %v6679 = vld [vmem:[%s5676 + $0x48] sm:$0xe]
        %v6680 = vld [vmem:[%s5676 + $0x54] sm:$0xe]
        %v6681 = vld [vmem:[%s5676 + $0x60] sm:$0xe]
        %v6682 = vld [vmem:[%s5676 + $0x6c] sm:$0xe]
        %v6683 = vld [vmem:[%s5676 + $0x78] sm:$0xe]
        %v6684 = vld [vmem:[%s5676 + $0x84] sm:$0xe]
        %v6685 = vld [vmem:[%s5676 + $0x90] sm:$0xe]
        %v6686 = vld [vmem:[%s5676 + $0x9c] sm:$0xe]
        %v6687 = vld [vmem:[%s5676 + $0xa8] sm:$0xe]
        %v6688 = vld [vmem:[%s5676 + $0xb4] sm:$0xe]
        %v6737 = vrot.slane %v6673, 5
        %v6738 = vrot.slane %v6737, 4
        %v6739 = vrot.slane %v5992, 5
        %v6740 = vsel %vm3891, %v6738, %v6739
        %v6741 = vrot.slane %v6739, 4
        %v6742 = vrot.slane %v5993, 5
        %v6743 = vsel %vm3891, %v6741, %v6742
        %v6744 = vrot.slane %v6674, 5
        %v6745 = vrot.slane %v6744, 4
        %v6746 = vrot.slane %v5995, 5
        %v6747 = vsel %vm3891, %v6745, %v6746
        %v6748 = vrot.slane %v6746, 4
        %v6749 = vrot.slane %v5996, 5
        %v6750 = vsel %vm3891, %v6748, %v6749
        %v6751 = vrot.slane %v6675, 5
        %v6752 = vrot.slane %v6751, 4
        %v6753 = vrot.slane %v5998, 5
        %v6754 = vsel %vm3891, %v6752, %v6753
        %v6755 = vrot.slane %v6753, 4
        %v6756 = vrot.slane %v5999, 5
        %v6757 = vsel %vm3891, %v6755, %v6756
        %v6758 = vrot.slane %v6676, 5
        %v6759 = vrot.slane %v6758, 4
        %v6760 = vrot.slane %v6001, 5
        %v6761 = vsel %vm3891, %v6759, %v6760
        %v6762 = vrot.slane %v6760, 4
        %v6763 = vrot.slane %v6002, 5
        %v6764 = vsel %vm3891, %v6762, %v6763
        %v6765 = vrot.slane %v6677, 5
        %v6766 = vrot.slane %v6765, 4
        %v6767 = vrot.slane %v6004, 5
        %v6768 = vsel %vm3891, %v6766, %v6767
        %v6769 = vrot.slane %v6767, 4
        %v6770 = vrot.slane %v6005, 5
        %v6771 = vsel %vm3891, %v6769, %v6770
        %v6772 = vrot.slane %v6678, 5
        %v6773 = vrot.slane %v6772, 4
        %v6774 = vrot.slane %v6007, 5
        %v6775 = vsel %vm3891, %v6773, %v6774
        %v6776 = vrot.slane %v6774, 4
        %v6777 = vrot.slane %v6008, 5
        %v6778 = vsel %vm3891, %v6776, %v6777
        %v6779 = vrot.slane %v6679, 5
        %v6780 = vrot.slane %v6779, 4
        %v6781 = vrot.slane %v6010, 5
        %v6782 = vsel %vm3891, %v6780, %v6781
        %v6783 = vrot.slane %v6781, 4
        %v6784 = vrot.slane %v6011, 5
        %v6785 = vsel %vm3891, %v6783, %v6784
        %v6786 = vrot.slane %v6680, 5
        %v6787 = vrot.slane %v6786, 4
        %v6788 = vrot.slane %v6013, 5
        %v6789 = vsel %vm3891, %v6787, %v6788
        %v6790 = vrot.slane %v6788, 4
        %v6791 = vrot.slane %v6014, 5
        %v6792 = vsel %vm3891, %v6790, %v6791
        %v6793 = vrot.slane %v6681, 5
        %v6794 = vrot.slane %v6793, 4
        %v6795 = vrot.slane %v6016, 5
        %v6796 = vsel %vm3891, %v6794, %v6795
        %v6797 = vrot.slane %v6795, 4
        %v6798 = vrot.slane %v6017, 5
        %v6799 = vsel %vm3891, %v6797, %v6798
        %v6800 = vrot.slane %v6682, 5
        %v6801 = vrot.slane %v6800, 4
        %v6802 = vrot.slane %v6019, 5
        %v6803 = vsel %vm3891, %v6801, %v6802
        %v6804 = vrot.slane %v6802, 4
        %v6805 = vrot.slane %v6020, 5
        %v6806 = vsel %vm3891, %v6804, %v6805
        %v6807 = vrot.slane %v6683, 5
        %v6808 = vrot.slane %v6807, 4
        %v6809 = vrot.slane %v6022, 5
        %v6810 = vsel %vm3891, %v6808, %v6809
        %v6811 = vrot.slane %v6809, 4
        %v6812 = vrot.slane %v6023, 5
        %v6813 = vsel %vm3891, %v6811, %v6812
        %v6814 = vrot.slane %v6684, 5
        %v6815 = vrot.slane %v6814, 4
        %v6816 = vrot.slane %v6025, 5
        %v6817 = vsel %vm3891, %v6815, %v6816
        %v6818 = vrot.slane %v6816, 4
        %v6819 = vrot.slane %v6026, 5
        %v6820 = vsel %vm3891, %v6818, %v6819
        %v6821 = vrot.slane %v6685, 5
        %v6822 = vrot.slane %v6821, 4
        %v6823 = vrot.slane %v6028, 5
        %v6824 = vsel %vm3891, %v6822, %v6823
        %v6825 = vrot.slane %v6823, 4
        %v6826 = vrot.slane %v6029, 5
        %v6827 = vsel %vm3891, %v6825, %v6826
        %v6828 = vrot.slane %v6686, 5
        %v6829 = vrot.slane %v6828, 4
        %v6830 = vrot.slane %v6031, 5
        %v6831 = vsel %vm3891, %v6829, %v6830
        %v6832 = vrot.slane %v6830, 4
        %v6833 = vrot.slane %v6032, 5
        %v6834 = vsel %vm3891, %v6832, %v6833
        %v6835 = vrot.slane %v6687, 5
        %v6836 = vrot.slane %v6835, 4
        %v6837 = vrot.slane %v6034, 5
        %v6838 = vsel %vm3891, %v6836, %v6837
        %v6839 = vrot.slane %v6837, 4
        %v6840 = vrot.slane %v6035, 5
        %v6841 = vsel %vm3891, %v6839, %v6840
        %v6842 = vrot.slane %v6688, 5
        %v6843 = vrot.slane %v6842, 4
        %v6844 = vrot.slane %v6037, 5
        %v6845 = vsel %vm3891, %v6843, %v6844
        %v6846 = vrot.slane %v6844, 4
        %v6847 = vrot.slane %v6038, 5
        %v6848 = vsel %vm3891, %v6846, %v6847
        %s6849 = scalar_lea.vmem %s3, 512
        %v6850 = vld [vmem:[%s6849] sm:$0xf]
        %v6851 = vld [vmem:[%s6849 + $0x4] sm:$0xf]
        %v6852 = vld [vmem:[%s6849 + $0x8] sm:$0xf]
        %v6853 = vld [vmem:[%s6849 + $0xc] sm:$0xf]
        %v6854 = vld [vmem:[%s6849 + $0x10] sm:$0xf]
        %v6855 = vld [vmem:[%s6849 + $0x14] sm:$0xf]
        %v6856 = vld [vmem:[%s6849 + $0x18] sm:$0xf]
        %v6857 = vld [vmem:[%s6849 + $0x1c] sm:$0xf]
        %v6858 = vld [vmem:[%s6849 + $0x20] sm:$0xf]
        %v6859 = vld [vmem:[%s6849 + $0x24] sm:$0xf]
        %v6860 = vld [vmem:[%s6849 + $0x28] sm:$0xf]
        %v6861 = vld [vmem:[%s6849 + $0x2c] sm:$0xf]
        %v6862 = vld [vmem:[%s6849 + $0x30] sm:$0xf]
        %v6863 = vld [vmem:[%s6849 + $0x34] sm:$0xf]
        %v6864 = vld [vmem:[%s6849 + $0x38] sm:$0xf]
        %v6865 = vld [vmem:[%s6849 + $0x3c] sm:$0xf]
        %v6866 = vunpack.c.l.b16 %v6740
        %v6867 = vunpack.c.l.b16 %v6743
        %v6868 = vunpack.c.l.b16 %v6747
        %v6869 = vunpack.c.l.b16 %v6750
        %v6870 = vunpack.c.l.b16 %v6754
        %v6871 = vunpack.c.l.b16 %v6757
        %v6872 = vunpack.c.l.b16 %v6761
        %v6873 = vunpack.c.l.b16 %v6764
        %v6874 = vunpack.c.l.b16 %v6768
        %v6875 = vunpack.c.l.b16 %v6771
        %v6876 = vunpack.c.l.b16 %v6775
        %v6877 = vunpack.c.l.b16 %v6778
        %v6878 = vunpack.c.l.b16 %v6782
        %v6879 = vunpack.c.l.b16 %v6785
        %v6880 = vunpack.c.l.b16 %v6789
        %v6881 = vunpack.c.l.b16 %v6792
        %v6882 = vunpack.c.l.b16 %v6796
        %v6883 = vunpack.c.l.b16 %v6799
        %v6884 = vunpack.c.l.b16 %v6803
        %v6885 = vunpack.c.l.b16 %v6806
        %v6886 = vunpack.c.l.b16 %v6810
        %v6887 = vunpack.c.l.b16 %v6813
        %v6888 = vunpack.c.l.b16 %v6817
        %v6889 = vunpack.c.l.b16 %v6820
        %v6890 = vunpack.c.l.b16 %v6824
        %v6891 = vunpack.c.l.b16 %v6827
        %v6892 = vunpack.c.l.b16 %v6831
        %v6893 = vunpack.c.l.b16 %v6834
        %v6894 = vunpack.c.l.b16 %v6838
        %v6895 = vunpack.c.l.b16 %v6841
        %v6896 = vunpack.c.l.b16 %v6845
        %v6897 = vunpack.c.l.b16 %v6848
        %v6898 = vpack.c.b16 %v6867, %v6866
        %v6899 = vpack.c.b16 %v6869, %v6868
        %v6900 = vpack.c.b16 %v6871, %v6870
        %v6901 = vpack.c.b16 %v6873, %v6872
        %v6902 = vpack.c.b16 %v6875, %v6874
        %v6903 = vpack.c.b16 %v6877, %v6876
        %v6904 = vpack.c.b16 %v6879, %v6878
        %v6905 = vpack.c.b16 %v6881, %v6880
        %v6906 = vpack.c.b16 %v6883, %v6882
        %v6907 = vpack.c.b16 %v6885, %v6884
        %v6908 = vpack.c.b16 %v6887, %v6886
        %v6909 = vpack.c.b16 %v6889, %v6888
        %v6910 = vpack.c.b16 %v6891, %v6890
        %v6911 = vpack.c.b16 %v6893, %v6892
        %v6912 = vpack.c.b16 %v6895, %v6894
        %v6913 = vpack.c.b16 %v6897, %v6896
        %v6946 = vunpack.c.l.b16 %v6850
        %v6947 = vunpack.c.l.b16 %v6851
        %v6948 = vunpack.c.l.b16 %v6852
        %v6949 = vunpack.c.l.b16 %v6853
        %v6950 = vunpack.c.l.b16 %v6854
        %v6951 = vunpack.c.l.b16 %v6855
        %v6952 = vunpack.c.l.b16 %v6856
        %v6953 = vunpack.c.l.b16 %v6857
        %v6954 = vunpack.c.l.b16 %v6858
        %v6955 = vunpack.c.l.b16 %v6859
        %v6956 = vunpack.c.l.b16 %v6860
        %v6957 = vunpack.c.l.b16 %v6861
        %v6958 = vunpack.c.l.b16 %v6862
        %v6959 = vunpack.c.l.b16 %v6863
        %v6960 = vunpack.c.l.b16 %v6864
        %v6961 = vunpack.c.l.b16 %v6865
        %v6962 = vpack.c.b16 %v6947, %v6946
        %v6963 = vpack.c.b16 %v6949, %v6948
        %v6964 = vpack.c.b16 %v6951, %v6950
        %v6965 = vpack.c.b16 %v6953, %v6952
        %v6966 = vpack.c.b16 %v6955, %v6954
        %v6967 = vpack.c.b16 %v6957, %v6956
        %v6968 = vpack.c.b16 %v6959, %v6958
        %v6969 = vpack.c.b16 %v6961, %v6960
        %6978 = vmatpush.bf16.msra.mxu0 %v6969
        %6979 = vmatpush.bf16.msra.mxu0 %v6968
        %6980 = vmatpush.bf16.msra.mxu0 %v6967
        %6981 = vmatpush.bf16.msra.mxu0 %v6966
        %6982 = vmatpush.bf16.msra.mxu0 %v6965
        %6983 = vmatpush.bf16.msra.mxu0 %v6964
        %6984 = vmatpush.bf16.msra.mxu0 %v6963
        %6985 = vmatpush.bf16.msra.mxu0 %v6962
        %6986 = vmatmul.bf16.gmra.mxu0 %v6898
        %v6987 = vpop.f32.mrf.mxu0
        %v6988 = vadd.f32 0.0, %v6987
        %v6989 = vpop.f32.mrf.mxu0
        %v6990 = vadd.f32 0.0, %v6989
        %6991 = vmatmul.bf16.gmra.mxu0 %v6899
        %v6992 = vpop.f32.mrf.mxu0
        %v6993 = vadd.f32 0.0, %v6992
        %v6994 = vpop.f32.mrf.mxu0
        %v6995 = vadd.f32 0.0, %v6994
        %6996 = vmatmul.bf16.gmra.mxu0 %v6900
        %v6997 = vpop.f32.mrf.mxu0
        %v6998 = vadd.f32 0.0, %v6997
        %v6999 = vpop.f32.mrf.mxu0
        %v7000 = vadd.f32 0.0, %v6999
        %7001 = vmatmul.bf16.gmra.mxu0 %v6901
        %v7002 = vpop.f32.mrf.mxu0
        %v7003 = vadd.f32 0.0, %v7002
        %v7004 = vpop.f32.mrf.mxu0
        %v7005 = vadd.f32 0.0, %v7004
        %7006 = vmatmul.bf16.gmra.mxu0 %v6902
        %v7007 = vpop.f32.mrf.mxu0
        %v7008 = vadd.f32 0.0, %v7007
        %v7009 = vpop.f32.mrf.mxu0
        %v7010 = vadd.f32 0.0, %v7009
        %7011 = vmatmul.bf16.gmra.mxu0 %v6903
        %v7012 = vpop.f32.mrf.mxu0
        %v7013 = vadd.f32 0.0, %v7012
        %v7014 = vpop.f32.mrf.mxu0
        %v7015 = vadd.f32 0.0, %v7014
        %7016 = vmatmul.bf16.gmra.mxu0 %v6904
        %v7017 = vpop.f32.mrf.mxu0
        %v7018 = vadd.f32 0.0, %v7017
        %v7019 = vpop.f32.mrf.mxu0
        %v7020 = vadd.f32 0.0, %v7019
        %7021 = vmatmul.bf16.gmra.mxu0 %v6905
        %v7022 = vpop.f32.mrf.mxu0
        %v7023 = vadd.f32 0.0, %v7022
        %v7024 = vpop.f32.mrf.mxu0
        %v7025 = vadd.f32 0.0, %v7024
        %7026 = vmatmul.bf16.gmra.mxu0 %v6906
        %v7027 = vpop.f32.mrf.mxu0
        %v7028 = vadd.f32 0.0, %v7027
        %v7029 = vpop.f32.mrf.mxu0
        %v7030 = vadd.f32 0.0, %v7029
        %7031 = vmatmul.bf16.gmra.mxu0 %v6907
        %v7032 = vpop.f32.mrf.mxu0
        %v7033 = vadd.f32 0.0, %v7032
        %v7034 = vpop.f32.mrf.mxu0
        %v7035 = vadd.f32 0.0, %v7034
        %7036 = vmatmul.bf16.gmra.mxu0 %v6908
        %v7037 = vpop.f32.mrf.mxu0
        %v7038 = vadd.f32 0.0, %v7037
        %v7039 = vpop.f32.mrf.mxu0
        %v7040 = vadd.f32 0.0, %v7039
        %7041 = vmatmul.bf16.gmra.mxu0 %v6909
        %v7042 = vpop.f32.mrf.mxu0
        %v7043 = vadd.f32 0.0, %v7042
        %v7044 = vpop.f32.mrf.mxu0
        %v7045 = vadd.f32 0.0, %v7044
        %7046 = vmatmul.bf16.gmra.mxu0 %v6910
        %v7047 = vpop.f32.mrf.mxu0
        %v7048 = vadd.f32 0.0, %v7047
        %v7049 = vpop.f32.mrf.mxu0
        %v7050 = vadd.f32 0.0, %v7049
        %7051 = vmatmul.bf16.gmra.mxu0 %v6911
        %v7052 = vpop.f32.mrf.mxu0
        %v7053 = vadd.f32 0.0, %v7052
        %v7054 = vpop.f32.mrf.mxu0
        %v7055 = vadd.f32 0.0, %v7054
        %7056 = vmatmul.bf16.gmra.mxu0 %v6912
        %v7057 = vpop.f32.mrf.mxu0
        %v7058 = vadd.f32 0.0, %v7057
        %v7059 = vpop.f32.mrf.mxu0
        %v7060 = vadd.f32 0.0, %v7059
        %7061 = vmatmul.bf16.gmra.mxu0 %v6913
        %v7062 = vpop.f32.mrf.mxu0
        %v7063 = vadd.f32 0.0, %v7062
        %v7064 = vpop.f32.mrf.mxu0
        %v7065 = vadd.f32 0.0, %v7064
        %7066 = vdwg.mxu0
        %v7067 = vadd.f32 %v6641, %v6988
        %v7068 = vadd.f32 %v6642, %v6990
        %v7069 = vadd.f32 %v6643, %v6993
        %v7070 = vadd.f32 %v6644, %v6995
        %v7071 = vadd.f32 %v6645, %v6998
        %v7072 = vadd.f32 %v6646, %v7000
        %v7073 = vadd.f32 %v6647, %v7003
        %v7074 = vadd.f32 %v6648, %v7005
        %v7075 = vadd.f32 %v6649, %v7008
        %v7076 = vadd.f32 %v6650, %v7010
        %v7077 = vadd.f32 %v6651, %v7013
        %v7078 = vadd.f32 %v6652, %v7015
        %v7079 = vadd.f32 %v6653, %v7018
        %v7080 = vadd.f32 %v6654, %v7020
        %v7081 = vadd.f32 %v6655, %v7023
        %v7082 = vadd.f32 %v6656, %v7025
        %v7083 = vadd.f32 %v6657, %v7028
        %v7084 = vadd.f32 %v6658, %v7030
        %v7085 = vadd.f32 %v6659, %v7033
        %v7086 = vadd.f32 %v6660, %v7035
        %v7087 = vadd.f32 %v6661, %v7038
        %v7088 = vadd.f32 %v6662, %v7040
        %v7089 = vadd.f32 %v6663, %v7043
        %v7090 = vadd.f32 %v6664, %v7045
        %v7091 = vadd.f32 %v6665, %v7048
        %v7092 = vadd.f32 %v6666, %v7050
        %v7093 = vadd.f32 %v6667, %v7053
        %v7094 = vadd.f32 %v6668, %v7055
        %v7095 = vadd.f32 %v6669, %v7058
        %v7096 = vadd.f32 %v6670, %v7060
        %v7097 = vadd.f32 %v6671, %v7063
        %v7098 = vadd.f32 %v6672, %v7065
        %v7099 = vld [vmem:[%s4] sm:$0x7]
        %v7100 = vperm.slane %v7099, 0
        %v7101 = vadd.f32 %v7067, %v7100
        %v7102 = vadd.f32 %v7068, %v7100
        %v7103 = vadd.f32 %v7069, %v7100
        %v7104 = vadd.f32 %v7070, %v7100
        %v7105 = vadd.f32 %v7071, %v7100
        %v7106 = vadd.f32 %v7072, %v7100
        %v7107 = vadd.f32 %v7073, %v7100
        %v7108 = vadd.f32 %v7074, %v7100
        %v7109 = vadd.f32 %v7075, %v7100
        %v7110 = vadd.f32 %v7076, %v7100
        %v7111 = vadd.f32 %v7077, %v7100
        %v7112 = vadd.f32 %v7078, %v7100
        %v7113 = vadd.f32 %v7079, %v7100
        %v7114 = vadd.f32 %v7080, %v7100
        %v7115 = vadd.f32 %v7081, %v7100
        %v7116 = vadd.f32 %v7082, %v7100
        %v7117 = vadd.f32 %v7083, %v7100
        %v7118 = vadd.f32 %v7084, %v7100
        %v7119 = vadd.f32 %v7085, %v7100
        %v7120 = vadd.f32 %v7086, %v7100
        %v7121 = vadd.f32 %v7087, %v7100
        %v7122 = vadd.f32 %v7088, %v7100
        %v7123 = vadd.f32 %v7089, %v7100
        %v7124 = vadd.f32 %v7090, %v7100
        %v7125 = vadd.f32 %v7091, %v7100
        %v7126 = vadd.f32 %v7092, %v7100
        %v7127 = vadd.f32 %v7093, %v7100
        %v7128 = vadd.f32 %v7094, %v7100
        %v7129 = vadd.f32 %v7095, %v7100
        %v7130 = vadd.f32 %v7096, %v7100
        %v7131 = vadd.f32 %v7097, %v7100
        %v7132 = vadd.f32 %v7098, %v7100
        %v7133 = vmax.f32 %v7101, 0.0
        %v7134 = vmax.f32 %v7102, 0.0
        %v7135 = vmax.f32 %v7103, 0.0
        %v7136 = vmax.f32 %v7104, 0.0
        %v7137 = vmax.f32 %v7105, 0.0
        %v7138 = vmax.f32 %v7106, 0.0
        %v7139 = vmax.f32 %v7107, 0.0
        %v7140 = vmax.f32 %v7108, 0.0
        %v7141 = vmax.f32 %v7109, 0.0
        %v7142 = vmax.f32 %v7110, 0.0
        %v7143 = vmax.f32 %v7111, 0.0
        %v7144 = vmax.f32 %v7112, 0.0
        %v7145 = vmax.f32 %v7113, 0.0
        %v7146 = vmax.f32 %v7114, 0.0
        %v7147 = vmax.f32 %v7115, 0.0
        %v7148 = vmax.f32 %v7116, 0.0
        %v7149 = vmax.f32 %v7117, 0.0
        %v7150 = vmax.f32 %v7118, 0.0
        %v7151 = vmax.f32 %v7119, 0.0
        %v7152 = vmax.f32 %v7120, 0.0
        %v7153 = vmax.f32 %v7121, 0.0
        %v7154 = vmax.f32 %v7122, 0.0
        %v7155 = vmax.f32 %v7123, 0.0
        %v7156 = vmax.f32 %v7124, 0.0
        %v7157 = vmax.f32 %v7125, 0.0
        %v7158 = vmax.f32 %v7126, 0.0
        %v7159 = vmax.f32 %v7127, 0.0
        %v7160 = vmax.f32 %v7128, 0.0
        %v7161 = vmax.f32 %v7129, 0.0
        %v7162 = vmax.f32 %v7130, 0.0
        %v7163 = vmax.f32 %v7131, 0.0
        %v7164 = vmax.f32 %v7132, 0.0
        %v7165 = vperm.slane %v7099, 1
        %v7166 = vmul.f32 %v7133, %v7165
        %v7167 = vmul.f32 %v7134, %v7165
        %v7168 = vmul.f32 %v7135, %v7165
        %v7169 = vmul.f32 %v7136, %v7165
        %v7170 = vmul.f32 %v7137, %v7165
        %v7171 = vmul.f32 %v7138, %v7165
        %v7172 = vmul.f32 %v7139, %v7165
        %v7173 = vmul.f32 %v7140, %v7165
        %v7174 = vmul.f32 %v7141, %v7165
        %v7175 = vmul.f32 %v7142, %v7165
        %v7176 = vmul.f32 %v7143, %v7165
        %v7177 = vmul.f32 %v7144, %v7165
        %v7178 = vmul.f32 %v7145, %v7165
        %v7179 = vmul.f32 %v7146, %v7165
        %v7180 = vmul.f32 %v7147, %v7165
        %v7181 = vmul.f32 %v7148, %v7165
        %v7182 = vmul.f32 %v7149, %v7165
        %v7183 = vmul.f32 %v7150, %v7165
        %v7184 = vmul.f32 %v7151, %v7165
        %v7185 = vmul.f32 %v7152, %v7165
        %v7186 = vmul.f32 %v7153, %v7165
        %v7187 = vmul.f32 %v7154, %v7165
        %v7188 = vmul.f32 %v7155, %v7165
        %v7189 = vmul.f32 %v7156, %v7165
        %v7190 = vmul.f32 %v7157, %v7165
        %v7191 = vmul.f32 %v7158, %v7165
        %v7192 = vmul.f32 %v7159, %v7165
        %v7193 = vmul.f32 %v7160, %v7165
        %v7194 = vmul.f32 %v7161, %v7165
        %v7195 = vmul.f32 %v7162, %v7165
        %v7196 = vmul.f32 %v7163, %v7165
        %v7197 = vmul.f32 %v7164, %v7165
        %v7198 = vperm.slane %v7099, 2
        %v7199 = vadd.f32 %v7166, %v7198
        %v7200 = vadd.f32 %v7167, %v7198
        %v7201 = vadd.f32 %v7168, %v7198
        %v7202 = vadd.f32 %v7169, %v7198
        %v7203 = vadd.f32 %v7170, %v7198
        %v7204 = vadd.f32 %v7171, %v7198
        %v7205 = vadd.f32 %v7172, %v7198
        %v7206 = vadd.f32 %v7173, %v7198
        %v7207 = vadd.f32 %v7174, %v7198
        %v7208 = vadd.f32 %v7175, %v7198
        %v7209 = vadd.f32 %v7176, %v7198
        %v7210 = vadd.f32 %v7177, %v7198
        %v7211 = vadd.f32 %v7178, %v7198
        %v7212 = vadd.f32 %v7179, %v7198
        %v7213 = vadd.f32 %v7180, %v7198
        %v7214 = vadd.f32 %v7181, %v7198
        %v7215 = vadd.f32 %v7182, %v7198
        %v7216 = vadd.f32 %v7183, %v7198
        %v7217 = vadd.f32 %v7184, %v7198
        %v7218 = vadd.f32 %v7185, %v7198
        %v7219 = vadd.f32 %v7186, %v7198
        %v7220 = vadd.f32 %v7187, %v7198
        %v7221 = vadd.f32 %v7188, %v7198
        %v7222 = vadd.f32 %v7189, %v7198
        %v7223 = vadd.f32 %v7190, %v7198
        %v7224 = vadd.f32 %v7191, %v7198
        %v7225 = vadd.f32 %v7192, %v7198
        %v7226 = vadd.f32 %v7193, %v7198
        %v7227 = vadd.f32 %v7194, %v7198
        %v7228 = vadd.f32 %v7195, %v7198
        %v7229 = vadd.f32 %v7196, %v7198
        %v7230 = vadd.f32 %v7197, %v7198
        %7231 = vxpose.xlu0.b32.start [1/16] %v7199, 128
        %7232 = vxpose.xlu0.b32.cont [2/16] %v7200, 128
        %7233 = vxpose.xlu0.b32.cont [3/16] %v7201, 128
        %7234 = vxpose.xlu0.b32.cont [4/16] %v7202, 128
        %7235 = vxpose.xlu0.b32.cont [5/16] %v7203, 128
        %7236 = vxpose.xlu0.b32.cont [6/16] %v7204, 128
        %7237 = vxpose.xlu0.b32.cont [7/16] %v7205, 128
        %7238 = vxpose.xlu0.b32.cont [8/16] %v7206, 128
        %7239 = vxpose.xlu0.b32.cont [9/16] %v7207, 128
        %7240 = vxpose.xlu0.b32.cont [10/16] %v7208, 128
        %7241 = vxpose.xlu0.b32.cont [11/16] %v7209, 128
        %7242 = vxpose.xlu0.b32.cont [12/16] %v7210, 128
        %7243 = vxpose.xlu0.b32.cont [13/16] %v7211, 128
        %7244 = vxpose.xlu0.b32.cont [14/16] %v7212, 128
        %7245 = vxpose.xlu0.b32.cont [15/16] %v7213, 128
        %7246 = vxpose.xlu0.b32.end [16/16] %v7214, 128
        %v7247 = vpop.trf.xlu0
        %v7248 = vpop.trf.xlu0
        %v7249 = vpop.trf.xlu0
        %v7250 = vpop.trf.xlu0
        %v7251 = vpop.trf.xlu0
        %v7252 = vpop.trf.xlu0
        %v7253 = vpop.trf.xlu0
        %v7254 = vpop.trf.xlu0
        %v7255 = vpop.trf.xlu0
        %v7256 = vpop.trf.xlu0
        %v7257 = vpop.trf.xlu0
        %v7258 = vpop.trf.xlu0
        %v7259 = vpop.trf.xlu0
        %v7260 = vpop.trf.xlu0
        %v7261 = vpop.trf.xlu0
        %v7262 = vpop.trf.xlu0
        %7263 = vxpose.xlu0.b32.start [1/16] %v7215, 128
        %7264 = vxpose.xlu0.b32.cont [2/16] %v7216, 128
        %7265 = vxpose.xlu0.b32.cont [3/16] %v7217, 128
        %7266 = vxpose.xlu0.b32.cont [4/16] %v7218, 128
        %7267 = vxpose.xlu0.b32.cont [5/16] %v7219, 128
        %7268 = vxpose.xlu0.b32.cont [6/16] %v7220, 128
        %7269 = vxpose.xlu0.b32.cont [7/16] %v7221, 128
        %7270 = vxpose.xlu0.b32.cont [8/16] %v7222, 128
        %7271 = vxpose.xlu0.b32.cont [9/16] %v7223, 128
        %7272 = vxpose.xlu0.b32.cont [10/16] %v7224, 128
        %7273 = vxpose.xlu0.b32.cont [11/16] %v7225, 128
        %7274 = vxpose.xlu0.b32.cont [12/16] %v7226, 128
        %7275 = vxpose.xlu0.b32.cont [13/16] %v7227, 128
        %7276 = vxpose.xlu0.b32.cont [14/16] %v7228, 128
        %7277 = vxpose.xlu0.b32.cont [15/16] %v7229, 128
        %7278 = vxpose.xlu0.b32.end [16/16] %v7230, 128
        %v7279 = vpop.trf.xlu0
        %v7280 = vpop.trf.xlu0
        %v7281 = vpop.trf.xlu0
        %v7282 = vpop.trf.xlu0
        %v7283 = vpop.trf.xlu0
        %v7284 = vpop.trf.xlu0
        %v7285 = vpop.trf.xlu0
        %v7286 = vpop.trf.xlu0
        %v7287 = vpop.trf.xlu0
        %v7288 = vpop.trf.xlu0
        %v7289 = vpop.trf.xlu0
        %v7290 = vpop.trf.xlu0
        %v7291 = vpop.trf.xlu0
        %v7292 = vpop.trf.xlu0
        %v7293 = vpop.trf.xlu0
        %v7294 = vpop.trf.xlu0
        %7295 = vst [vmem:[%s217] sm:$0xff] %v7247
        %7296 = vst [vmem:[%s217 + $0x8] sm:$0xff] %v7279
        %s7297 = sand.u32 %s137, 1
        %s7298 = scalar_lea.sflag [#allocation5], %s7297
        %s7299 = sand.u32 %s137, 1
        %s7300 = smul.addr %s7299, 16
        %s7301 = scalar_lea.vmem [#allocation4], %s7300
        // Predicated region
        $region41: #{tpu_custom_call.1} parent=39 // pred_check
          %p7302 = pneg %p147
        $region42: #{tpu_custom_call.1} parent=39 // pred_check_branch
          %7304 = sbr.rel (%p7302) target = $region44
        $region43: #{tpu_custom_call.1} parent=39 // pred_region
          %7306 = vsyncadd %s7298, 0
          %s7307 = smul.addr %s19, 2
          %s7308 = smul.addr %s7307, 8
          %s7309 = scalar_lea.hbm %s5, %s7308
          %s7311 = sshll.u32 %s7301, 4
          %s7312 = int_to_ptr.vmem [resolvable:$true] %s7311
          %s7313 = sshll.u32 %s7309, 4
          %s7314 = int_to_ptr.hbm [resolvable:$true] %s7313
          %7316 = dma.vmem_to_hbm [thread:$0]  %s7312, 256, %s7314, %s7298
        $region44: #{tpu_custom_call.1} parent=39 // pred_fallthru
          _
      $region40: #{tpu_custom_call.1} parent=5 // pred_fallthru
        _
      %p7317 = scmp.le.s32.totalorder 2, %s14
      // Predicated region
      $region45: #{tpu_custom_call.1} parent=5 // pred_check
        %p7318 = pneg %p7317
      $region46: #{tpu_custom_call.1} parent=5 // pred_check_branch
        %7320 = sbr.rel (%p7318) target = $region48
      $region47: #{tpu_custom_call.1} parent=5 // pred_region
        %s7321 = ssub.s32 %s14, 2
        // Predicated region
        $region49: #{tpu_custom_call.1} parent=47 // pred_check
          %p7322 = pneg %p153
        $region50: #{tpu_custom_call.1} parent=47 // pred_check_branch
          %7324 = sbr.rel (%p7322) target = $region52
        $region51: #{tpu_custom_call.1} parent=47 // pred_region
          %s7325 = sand.u32 %s138, 1
          %s7326 = scalar_lea.sflag [#allocation5], %s7325
          %s7327 = sand.u32 %s138, 1
          %s7328 = smul.addr %s7327, 16
          %s7329 = scalar_lea.vmem [#allocation4], %s7328
          %7331 = dma.done %s7326, 256
        $region52: #{tpu_custom_call.1} parent=47 // pred_fallthru
          _
      $region48: #{tpu_custom_call.1} parent=5 // pred_fallthru
        _
    $region6: #{tpu_custom_call.1} parent=1 // loop_footer
      %s18 = sadd.s32 1, %s14
    $region7: #{tpu_custom_call.1} parent=1 // loop_footer_branch
      %13 = sbr.rel target = $region3
    $region8: #{tpu_custom_call.1} parent=1 // loop_exit
      _
    %7332 = vsyncpa [#allocation5], 1
    %s7333 = scalar_lea.sflag [#allocation5], 1
    %7334 = vsyncpa %s7333, 1

</llo_original>
